<compile_context>
chip_gen: v5e
topology: v5e:2x2
jax: 0.10.0
libtpu: 0.0.40
codegen_flags: <defaults>
</compile_context>

<pallas_src>
import functools

import jax
import jax.numpy as jnp
from jax import lax
from jax.experimental import pallas as pl
from jax.experimental.pallas import tpu as pltpu

EPS = 1e-5
VMEM_LIMIT = 32 * 1024 * 1024  # explicit scoped-VMEM cap (safe on v5e/v6e/v7x)


# ----------------------------------------------------------------------------
# Kernel 1: Conv3d without im2col (KD-decomposed) + bias + optional ReLU
#           + optional fused per-tile BatchNorm partial statistics.
# Grid = (N, Do, KD); KD is the reduction axis (accumulator in VMEM scratch).
# ----------------------------------------------------------------------------
def _conv_kd_kernel(xp_ref, w_ref, b_ref, *rest, relu, with_stats):
    if with_stats:
        o_ref, sum_ref, ssq_ref, acc_ref = rest
    else:
        o_ref, acc_ref = rest

    kd = pl.program_id(2)

    @pl.when(kd == 0)
    def _():
        acc_ref[...] = jnp.zeros_like(acc_ref)

    xs = xp_ref[0, 0]                       # [Hp, Wp, C] padded depth slice
    Hp, Wp, C = xs.shape
    KH, KW = w_ref.shape[1], w_ref.shape[2]
    Ho, Wo = Hp - KH + 1, Wp - KW + 1

    acc = acc_ref[...]
    for kh in range(KH):                    # 9 static tap matmuls per depth slice
        for kw in range(KW):
            patch = xs[kh:kh + Ho, kw:kw + Wo, :].reshape(Ho * Wo, C)
            acc = acc + jnp.dot(patch, w_ref[0, kh, kw],
                                preferred_element_type=jnp.float32)
    acc_ref[...] = acc

    @pl.when(kd == pl.num_programs(2) - 1)
    def _():
        y = acc_ref[...] + b_ref[...]
        if relu:
            y = jnp.maximum(y, 0.0)
        o_ref[0, 0] = y.astype(o_ref.dtype)
        if with_stats:
            # Per-tile partial BN stats (fused: no second read of the output).
            sum_ref[0, 0] = jnp.sum(y, axis=0, keepdims=True)
            ssq_ref[0, 0] = jnp.sum(y * y, axis=0, keepdims=True)


def conv3d_bn(x, w, b, *, stride_d=1, relu=False, with_stats=False):
    """Conv3d, padding (1,1,1), stride (stride_d,1,1).  x: [N,D,H,W,C] (NDHWC),
    w: [KD,KH,KW,Cin,Cout].  Returns out [N,Do,Ho*Wo,Cout]
    (+ per-channel sum / sumsq of the activation when with_stats)."""
    N, D, H, W, C = x.shape
    KD, KH, KW, Cin, Co = w.shape
    assert Cin == C
    xp = jnp.pad(x, ((0, 0), (1, 1), (1, 1), (1, 1), (0, 0)))   # glue: zero halo
    Dp, Hp, Wp = D + 2, H + 2, W + 2
    Do = (Dp - KD) // stride_d + 1
    Ho, Wo = Hp - KH + 1, Wp - KW + 1

    kernel = functools.partial(_conv_kd_kernel, relu=relu, with_stats=with_stats)

    out_shape = jax.ShapeDtypeStruct((N, Do, Ho * Wo, Co), jnp.float32)
    out_spec = pl.BlockSpec((1, 1, Ho * Wo, Co), lambda n, d, k: (n, d, 0, 0))
    if with_stats:
        stat_shape = jax.ShapeDtypeStruct((N, Do, 1, Co), jnp.float32)
        stat_spec = pl.BlockSpec((1, 1, 1, Co), lambda n, d, k: (n, d, 0, 0))
        out_shapes = (out_shape, stat_shape, stat_shape)
        out_specs = (out_spec, stat_spec, stat_spec)
    else:
        out_shapes = out_shape
        out_specs = out_spec

    res = pl.pallas_call(
        kernel,
        out_shape=out_shapes,
        grid_spec=pltpu.PrefetchScalarGridSpec(
            num_scalar_prefetch=0,
            grid=(N, Do, KD),
            in_specs=[
                # one padded depth slice per (n, d_out, kd): no im2col buffer
                pl.BlockSpec((1, 1, Hp, Wp, C),
                             lambda n, d, k: (n, d * stride_d + k, 0, 0, 0)),
                pl.BlockSpec((1, KH, KW, C, Co), lambda n, d, k: (k, 0, 0, 0, 0)),
                pl.BlockSpec((1, Co), lambda n, d, k: (0, 0)),
            ],
            out_specs=out_specs,
            scratch_shapes=[pltpu.VMEM((Ho * Wo, Co), jnp.float32)],
        ),
        compiler_params=pltpu.CompilerParams(
            dimension_semantics=("parallel", "parallel", "arbitrary"),
            vmem_limit_bytes=VMEM_LIMIT,
        ),
    )(xp, w, b.reshape(1, Co))

    if with_stats:
        out, s, ss = res
        return out, jnp.sum(s, axis=(0, 1)), jnp.sum(ss, axis=(0, 1))   # [1, Co]
    return res


# ----------------------------------------------------------------------------
# Kernel 2: lane-folded BatchNorm affine (+ optional ReLU, fused residual add,
#           fused per-sample broadcast row add for the time embedding).
# Data is viewed as [N, M/f, f*C] with f*C == 128 -> 128-lane dense loads/stores.
# ----------------------------------------------------------------------------
def _bn_affine_kernel(x_ref, s_ref, t_ref, *rest, relu, has_res, has_row):
    o_ref = rest[-1]
    extras = rest[:-1]
    y = x_ref[0] * s_ref[...] + t_ref[...]
    if relu:
        y = jnp.maximum(y, 0.0)
    i = 0
    if has_res:                 # x + x1 / x3 + x1 fused here (after the ReLU)
        y = y + extras[i][0]
        i += 1
    if has_row:                 # per-sample time-embedding broadcast add
        y = y + extras[i][0]
    o_ref[0] = y.astype(o_ref.dtype)


def _pick_rows(m, target=1024):
    """Largest multiple-of-8 divisor of m up to `target` (full dim if small)."""
    if m <= target:
        return m
    for r in range(target, 7, -8):
        if m % r == 0:
            return r
    return m


def bn_affine(xf, scale_f, shift_f, *, relu, res_f=None, row_f=None):
    """y = [relu](x * scale + shift) [+ res] [+ row]; all operands lane-folded.
    xf/res_f: [N, Mfn, L]; scale_f/shift_f: [1, L]; row_f: [N, 1, L]."""
    N, Mfn, L = xf.shape
    tr = _pick_rows(Mfn)
    T = Mfn // tr

    in_specs = [
        pl.BlockSpec((1, tr, L), lambda n, t: (n, t, 0)),
        pl.BlockSpec((1, L), lambda n, t: (0, 0)),
        pl.BlockSpec((1, L), lambda n, t: (0, 0)),
    ]
    args = [xf, scale_f, shift_f]
    if res_f is not None:
        in_specs.append(pl.BlockSpec((1, tr, L), lambda n, t: (n, t, 0)))
        args.append(res_f)
    if row_f is not None:
        in_specs.append(pl.BlockSpec((1, 1, L), lambda n, t: (n, 0, 0)))
        args.append(row_f)

    kernel = functools.partial(_bn_affine_kernel, relu=relu,
                               has_res=res_f is not None,
                               has_row=row_f is not None)
    return pl.pallas_call(
        kernel,
        out_shape=jax.ShapeDtypeStruct((N, Mfn, L), jnp.float32),
        grid_spec=pltpu.PrefetchScalarGridSpec(
            num_scalar_prefetch=0,
            grid=(N, T),
            in_specs=in_specs,
            out_specs=pl.BlockSpec((1, tr, L), lambda n, t: (n, t, 0)),
        ),
        compiler_params=pltpu.CompilerParams(
            dimension_semantics=("parallel", "parallel"),
            vmem_limit_bytes=VMEM_LIMIT,
        ),
    )(*args)


# ----------------------------------------------------------------------------
# Kernel 3: tiny time-embedding MLP:  relu(t @ W + b)
# ----------------------------------------------------------------------------
def _linear_relu_kernel(a_ref, w_ref, b_ref, o_ref):
    y = jnp.dot(a_ref[...], w_ref[...], preferred_element_type=jnp.float32)
    o_ref[...] = jnp.maximum(y + b_ref[...], 0.0).astype(o_ref.dtype)


def linear_relu(a, w, b):
    M, K = a.shape
    Co = w.shape[1]
    return pl.pallas_call(
        _linear_relu_kernel,
        out_shape=jax.ShapeDtypeStruct((M, Co), jnp.float32),
        grid_spec=pltpu.PrefetchScalarGridSpec(
            num_scalar_prefetch=0,
            grid=(1,),
            in_specs=[pl.BlockSpec((M, K), lambda i: (0, 0)),
                      pl.BlockSpec((K, Co), lambda i: (0, 0)),
                      pl.BlockSpec((1, Co), lambda i: (0, 0))],
            out_specs=pl.BlockSpec((M, Co), lambda i: (0, 0)),
        ),
        compiler_params=pltpu.CompilerParams(
            dimension_semantics=("arbitrary",),
            vmem_limit_bytes=VMEM_LIMIT,
        ),
    )(a, w, b.reshape(1, Co))


# ----------------------------------------------------------------------------
# Glue: lane-fold factor, BN scale/shift folding
# ----------------------------------------------------------------------------
def _fold_factor(C, per_sample):
    if C <= 128 and 128 % C == 0:
        f = 128 // C
        while f > 1 and per_sample % f:
            f //= 2
        return f
    return 1


def _bn_scale_shift(s, ss, count, gamma, beta):
    # Biased variance (torch BN, training mode).  f32 sum/sumsq accumulation is
    # fine for these O(1) post-conv activations.
    # TODO(synk): switch to per-tile-centered accumulation if activations move to bf16.
    mean = s / count
    var = ss / count - mean * mean
    scale = gamma.reshape(1, -1) * lax.rsqrt(var + EPS)
    shift = beta.reshape(1, -1) - mean * scale
    return scale, shift                     # [1, C]


# ----------------------------------------------------------------------------
# RRConvBlock forward
# ----------------------------------------------------------------------------
def rrconv_block_forward(x_ncdhw, t, params):
    x = jnp.transpose(x_ncdhw, (0, 2, 3, 4, 1))            # NCDHW -> NDHWC (glue)
    N, D, H, W, _ = x.shape
    Co = params["conv1_b"].shape[0]
    dhw = D * H * W
    f = _fold_factor(Co, dhw)
    L = f * Co
    Mfn = dhw // f
    shape5 = (N, D, H, W, Co)
    count = N * dhw

    def fold(a):                 # [N, Do, HW, Co] -> [N, Mfn, L]  (layout-preserving)
        return a.reshape(N, Mfn, L)

    def fold_row(v):             # [1, Co] -> [1, L]
        return jnp.tile(v, (1, f))

    # h = bnorm1(relu(conv1(x)));  x2 = h + relu(time_mlp(t))  (temb add fused)
    c1, s1, ss1 = conv3d_bn(x, params["conv1_w"], params["conv1_b"],
                            relu=True, with_stats=True)
    sc1, sh1 = _bn_scale_shift(s1, ss1, count, params["bn1_g"], params["bn1_b"])
    temb = linear_relu(t, params["mlp_w"], params["mlp_b"])          # [N, Co]
    temb_f = jnp.tile(temb, (1, f)).reshape(N, 1, L)
    x2f = bn_affine(fold(c1), fold_row(sc1), fold_row(sh1),
                    relu=False, row_f=temb_f)

    # x3 = bnorm2(relu(conv2(x2)))
    c2, s2, ss2 = conv3d_bn(x2f.reshape(shape5), params["conv2_w"], params["conv2_b"],
                            relu=True, with_stats=True)
    sc2, sh2 = _bn_scale_shift(s2, ss2, count, params["bn2_g"], params["bn2_b"])
    x3f = bn_affine(fold(c2), fold_row(sc2), fold_row(sh2), relu=False)

    # x1 = RCNN(RCNN(x3)); every "x + x1" is fused into the BN-affine pass.
    pr = params["rcnn"]

    def cbr(zf, resf):           # relu(BN(conv(z))) [+ res]
        c, s, ss = conv3d_bn(zf.reshape(shape5), pr["w"], pr["b"],
                             relu=False, with_stats=True)
        sc, sh = _bn_scale_shift(s, ss, count, pr["gamma"], pr["beta"])
        return bn_affine(fold(c), fold_row(sc), fold_row(sh), relu=True, res_f=resf)

    zf = cbr(x3f, x3f)           # RCNN#1: x1 = conv(x);      carry x + x1
    zf = cbr(zf, x3f)            #         x1 = conv(x + x1); carry x + x1
    yf = cbr(zf, None)           #         x1 = conv(x + x1)  -> RCNN#1 output
    zf = cbr(yf, yf)             # RCNN#2 on y
    zf = cbr(zf, yf)
    xsf = cbr(zf, x3f)           # final x1, fused with "+ x3" (transform input)

    # transform: Conv3d kernel (4,3,3), stride (2,1,1), padding (1,1,1)
    out = conv3d_bn(xsf.reshape(shape5), params["tr_w"], params["tr_b"],
                    stride_d=2, relu=False, with_stats=False)
    out5 = out.reshape(N, out.shape[1], H, W, Co)
    return jnp.transpose(out5, (0, 4, 1, 2, 3))            # NDHWC -> NCDHW


# ----------------------------------------------------------------------------
# Pure-JAX reference (mirrors the PyTorch module) for self-validation
# ----------------------------------------------------------------------------
def _ref_forward(x_ncdhw, t, params):
    x = jnp.transpose(x_ncdhw, (0, 2, 3, 4, 1))

    def conv(z, w, b, stride=(1, 1, 1)):
        return lax.conv_general_dilated(
            z, w, stride, [(1, 1)] * 3,
            dimension_numbers=("NDHWC", "DHWIO", "NDHWC"),
            precision=lax.Precision.HIGHEST) + b

    def bn(z, g, be):
        m = z.mean(axis=(0, 1, 2, 3))
        v = z.var(axis=(0, 1, 2, 3))
        return (z - m) * (g / jnp.sqrt(v + EPS)) + be

    relu = lambda z: jnp.maximum(z, 0.0)
    h = bn(relu(conv(x, params["conv1_w"], params["conv1_b"])),
           params["bn1_g"], params["bn1_b"])
    temb = relu(t @ params["mlp_w"] + params["mlp_b"])
    x2 = h + temb[:, None, None, None, :]
    x3 = bn(relu(conv(x2, params["conv2_w"], params["conv2_b"])),
            params["bn2_g"], params["bn2_b"])
    pr = params["rcnn"]
    cbr = lambda z: relu(bn(conv(z, pr["w"], pr["b"]), pr["gamma"], pr["beta"]))

    def rcnn(z):
        x1 = cbr(z)
        x1 = cbr(z + x1)
        x1 = cbr(z + x1)
        return x1

    x1 = rcnn(rcnn(x3))
    out = conv(x3 + x1, params["tr_w"], params["tr_b"], stride=(2, 1, 1))
    return jnp.transpose(out, (0, 4, 1, 2, 3))


# ----------------------------------------------------------------------------
# Deterministic parameter construction (shapes from RRConvBlock.__init__)
# ----------------------------------------------------------------------------
def make_params(key, in_ch, out_ch, time_emb_dim):
    ks = jax.random.split(key, 12)

    def w(k, shape, scale=0.1):
        return (scale * jax.random.normal(k, shape)).astype(jnp.float32)

    return {
        "conv1_w": w(ks[0], (3, 3, 3, in_ch, out_ch)),
        "conv1_b": w(ks[1], (out_ch,)),
        "conv2_w": w(ks[2], (3, 3, 3, out_ch, out_ch)),
        "conv2_b": w(ks[3], (out_ch,)),
        "bn1_g": 1.0 + w(ks[4], (out_ch,)),
        "bn1_b": w(ks[5], (out_ch,)),
        "bn2_g": 1.0 + w(ks[6], (out_ch,)),
        "bn2_b": w(ks[7], (out_ch,)),
        "mlp_w": w(ks[8], (time_emb_dim, out_ch)),
        "mlp_b": w(ks[9], (out_ch,)),
        "rcnn": {
            "w": w(ks[10], (3, 3, 3, out_ch, out_ch)),
            "b": w(ks[11], (out_ch,)),
            "gamma": jnp.ones((out_ch,), jnp.float32),
            "beta": jnp.zeros((out_ch,), jnp.float32),
        },
        "tr_w": w(jax.random.fold_in(key, 100), (4, 3, 3, out_ch, out_ch)),
        "tr_b": w(jax.random.fold_in(key, 101), (out_ch,)),
    }


if __name__ == "__main__":
    N, in_ch, out_ch, time_emb_dim = 2, 4, 8, 32
    D = H = W = 8

    key = jax.random.PRNGKey(0)
    kx, kt, kp = jax.random.split(key, 3)
    x = jax.random.normal(kx, (N, in_ch, D, H, W), dtype=jnp.float32)  # NCDHW
    t = jax.random.normal(kt, (N, time_emb_dim), dtype=jnp.float32)
    params = make_params(kp, in_ch, out_ch, time_emb_dim)

    out = jax.block_until_ready(jax.jit(rrconv_block_forward)(x, t, params))

    expected_shape = (N, out_ch, D // 2, H, W)   # stride (2,1,1) transform conv
    assert out.shape == expected_shape, (out.shape, expected_shape)
    assert bool(jnp.all(jnp.isfinite(out)))

    ref = jax.block_until_ready(jax.jit(_ref_forward)(x, t, params))
    rel_err = float(jnp.max(jnp.abs(out - ref)) / (jnp.max(jnp.abs(ref)) + 1e-6))
    assert rel_err < 5e-2, f"mismatch vs reference: rel max err {rel_err}"

    print("KERNEL_OK")
</pallas_src>

<mosaic_0001>
module attributes {stable_mosaic.version = 11 : i64} {
  func.func @_linear_relu_kernel(%arg0: i32, %arg1: memref<2x32xf32, #tpu.memory_space<vmem>>, %arg2: memref<32x8xf32, #tpu.memory_space<vmem>>, %arg3: memref<1x8xf32, #tpu.memory_space<vmem>>, %arg4: memref<2x8xf32, #tpu.memory_space<vmem>>) attributes {dimension_semantics = [#tpu.dimension_semantics<arbitrary>], iteration_bounds = array<i64: 1>, scalar_prefetch = 0 : i64, scratch_operands = 0 : i64, tpu.core_type = #tpu.core_type<tc>, window_params = [{pipeline_mode = #tpu.pipeline_mode<synchronous>, transform_indices = @transform_0, window_bounds = array<i64: 2, 32>}, {pipeline_mode = #tpu.pipeline_mode<synchronous>, transform_indices = @transform_1, window_bounds = array<i64: 32, 8>}, {pipeline_mode = #tpu.pipeline_mode<synchronous>, transform_indices = @transform_2, window_bounds = array<i64: 1, 8>}, {pipeline_mode = #tpu.pipeline_mode<synchronous>, transform_indices = @transform_3, window_bounds = array<i64: 2, 8>}]} {
    %c0 = arith.constant 0 : index
    %c0_0 = arith.constant 0 : index
    %0 = vector.load %arg1[%c0, %c0_0] : memref<2x32xf32, #tpu.memory_space<vmem>>, vector<2x32xf32>
    %c0_1 = arith.constant 0 : index
    %c0_2 = arith.constant 0 : index
    %1 = vector.load %arg2[%c0_1, %c0_2] : memref<32x8xf32, #tpu.memory_space<vmem>>, vector<32x8xf32>
    %cst = arith.constant dense<0.000000e+00> : vector<2x8xf32>
    %2 = tpu.matmul %0, %1, %cst {dimension_numbers = #tpu.dot_dimension_numbers<[1], [0], [0], [1], [0, 0, 1, 1], [], []>} : vector<2x32xf32>, vector<32x8xf32>, vector<2x8xf32> -> vector<2x8xf32>
    %c0_3 = arith.constant 0 : index
    %c0_4 = arith.constant 0 : index
    %3 = vector.load %arg3[%c0_3, %c0_4] : memref<1x8xf32, #tpu.memory_space<vmem>>, vector<1x8xf32>
    %4 = vector.broadcast %3 : vector<1x8xf32> to vector<2x8xf32>
    %5 = arith.addf %2, %4 : vector<2x8xf32>
    %cst_5 = arith.constant 0.000000e+00 : f32
    %6 = vector.broadcast %cst_5 : f32 to vector<2x8xf32>
    %7 = arith.maximumf %5, %6 : vector<2x8xf32>
    %c0_6 = arith.constant 0 : index
    %c0_7 = arith.constant 0 : index
    %8 = vector.load %arg4[%c0_6, %c0_7] : memref<2x8xf32, #tpu.memory_space<vmem>>, vector<2x8xf32>
    tpu.vector_store %arg4[%c0_6, %c0_7], %7 {strides = array<i32>} : memref<2x8xf32, #tpu.memory_space<vmem>>, vector<2x8xf32>,
    return
  }
  func.func @transform_0(%arg0: i32) -> (i32, i32) {
    %c0_i32 = arith.constant 0 : i32
    %c0_i32_0 = arith.constant 0 : i32
    %c0_i32_1 = arith.constant 0 : i32
    return %c0_i32, %c0_i32_0 : i32, i32
  }
  func.func @transform_1(%arg0: i32) -> (i32, i32) {
    %c0_i32 = arith.constant 0 : i32
    %c0_i32_0 = arith.constant 0 : i32
    %c0_i32_1 = arith.constant 0 : i32
    return %c0_i32, %c0_i32_0 : i32, i32
  }
  func.func @transform_2(%arg0: i32) -> (i32, i32) {
    %c0_i32 = arith.constant 0 : i32
    %c0_i32_0 = arith.constant 0 : i32
    %c0_i32_1 = arith.constant 0 : i32
    return %c0_i32, %c0_i32_0 : i32, i32
  }
  func.func @transform_3(%arg0: i32) -> (i32, i32) {
    %c0_i32 = arith.constant 0 : i32
    %c0_i32_0 = arith.constant 0 : i32
    %c0_i32_1 = arith.constant 0 : i32
    return %c0_i32, %c0_i32_0 : i32, i32
  }
}

module attributes {stable_mosaic.version = 11 : i64} {
  func.func @_conv_kd_kernel(%arg0: i32, %arg1: i32, %arg2: i32, %arg3: memref<1x1x10x10x4xf32, #tpu.memory_space<vmem>>, %arg4: memref<1x3x3x4x8xf32, #tpu.memory_space<vmem>>, %arg5: memref<1x8xf32, #tpu.memory_space<vmem>>, %arg6: memref<1x1x64x8xf32, #tpu.memory_space<vmem>>, %arg7: memref<1x1x1x8xf32, #tpu.memory_space<vmem>>, %arg8: memref<1x1x1x8xf32, #tpu.memory_space<vmem>>, %arg9: memref<64x8xf32, #tpu.memory_space<vmem>>) attributes {dimension_semantics = [#tpu.dimension_semantics<parallel>, #tpu.dimension_semantics<parallel>, #tpu.dimension_semantics<arbitrary>], iteration_bounds = array<i64: 2, 8, 3>, scalar_prefetch = 0 : i64, scratch_operands = 1 : i64, tpu.core_type = #tpu.core_type<tc>, window_params = [{transform_indices = @transform_0, window_bounds = array<i64: 1, 1, 10, 10, 4>}, {transform_indices = @transform_1, window_bounds = array<i64: 1, 3, 3, 4, 8>}, {pipeline_mode = #tpu.pipeline_mode<synchronous>, transform_indices = @transform_2, window_bounds = array<i64: 1, 8>}, {transform_indices = @transform_3, window_bounds = array<i64: 1, 1, 64, 8>}, {transform_indices = @transform_4, window_bounds = array<i64: 1, 1, 1, 8>}, {transform_indices = @transform_5, window_bounds = array<i64: 1, 1, 1, 8>}]} {
    %c0_i32 = arith.constant 0 : i32
    %0 = arith.cmpi eq, %arg2, %c0_i32 : i32
    %1 = arith.extui %0 : i1 to i32
    %c0_i32_0 = arith.constant 0 : i32
    %2 = arith.cmpi ne, %1, %c0_i32_0 : i32
    scf.if %2 {
      %cst_61 = arith.constant 0.000000e+00 : f32
      %64 = vector.broadcast %cst_61 : f32 to vector<64x8xf32>
      %c0_62 = arith.constant 0 : index
      %c0_63 = arith.constant 0 : index
      %65 = vector.load %arg9[%c0_62, %c0_63] : memref<64x8xf32, #tpu.memory_space<vmem>>, vector<64x8xf32>
      tpu.vector_store %arg9[%c0_62, %c0_63], %64 {strides = array<i32>} : memref<64x8xf32, #tpu.memory_space<vmem>>, vector<64x8xf32>,
    } else {
    }
    %c0 = arith.constant 0 : index
    %c0_1 = arith.constant 0 : index
    %c0_2 = arith.constant 0 : index
    %c0_3 = arith.constant 0 : index
    %c0_4 = arith.constant 0 : index
    %3 = vector.load %arg3[%c0, %c0_1, %c0_2, %c0_3, %c0_4] : memref<1x1x10x10x4xf32, #tpu.memory_space<vmem>>, vector<1x1x10x10x4xf32>
    %4 = vector.shape_cast %3 : vector<1x1x10x10x4xf32> to vector<10x10x4xf32>
    %c0_5 = arith.constant 0 : index
    %c0_6 = arith.constant 0 : index
    %5 = vector.load %arg9[%c0_5, %c0_6] : memref<64x8xf32, #tpu.memory_space<vmem>>, vector<64x8xf32>
    %6 = vector.extract_strided_slice %4 {offsets = [0, 0, 0], sizes = [8, 8, 4], strides = [1, 1, 1]} : vector<10x10x4xf32> to vector<8x8x4xf32>
    %7 = vector.shape_cast %6 : vector<8x8x4xf32> to vector<64x4xf32>
    %c0_7 = arith.constant 0 : index
    %c0_8 = arith.constant 0 : index
    %c0_9 = arith.constant 0 : index
    %c0_10 = arith.constant 0 : index
    %c0_11 = arith.constant 0 : index
    %8 = vector.load %arg4[%c0_7, %c0_8, %c0_9, %c0_10, %c0_11] : memref<1x3x3x4x8xf32, #tpu.memory_space<vmem>>, vector<1x1x1x4x8xf32>
    %9 = vector.shape_cast %8 : vector<1x1x1x4x8xf32> to vector<4x8xf32>
    %cst = arith.constant dense<0.000000e+00> : vector<64x8xf32>
    %10 = tpu.matmul %7, %9, %cst {dimension_numbers = #tpu.dot_dimension_numbers<[1], [0], [0], [1], [0, 0, 1, 1], [], []>} : vector<64x4xf32>, vector<4x8xf32>, vector<64x8xf32> -> vector<64x8xf32>
    %11 = arith.addf %5, %10 : vector<64x8xf32>
    %12 = vector.extract_strided_slice %4 {offsets = [0, 1, 0], sizes = [8, 8, 4], strides = [1, 1, 1]} : vector<10x10x4xf32> to vector<8x8x4xf32>
    %13 = vector.shape_cast %12 : vector<8x8x4xf32> to vector<64x4xf32>
    %c0_12 = arith.constant 0 : index
    %c0_13 = arith.constant 0 : index
    %c1 = arith.constant 1 : index
    %c0_14 = arith.constant 0 : index
    %c0_15 = arith.constant 0 : index
    %14 = vector.load %arg4[%c0_12, %c0_13, %c1, %c0_14, %c0_15] : memref<1x3x3x4x8xf32, #tpu.memory_space<vmem>>, vector<1x1x1x4x8xf32>
    %15 = vector.shape_cast %14 : vector<1x1x1x4x8xf32> to vector<4x8xf32>
    %cst_16 = arith.constant dense<0.000000e+00> : vector<64x8xf32>
    %16 = tpu.matmul %13, %15, %cst_16 {dimension_numbers = #tpu.dot_dimension_numbers<[1], [0], [0], [1], [0, 0, 1, 1], [], []>} : vector<64x4xf32>, vector<4x8xf32>, vector<64x8xf32> -> vector<64x8xf32>
    %17 = arith.addf %11, %16 : vector<64x8xf32>
    %18 = vector.extract_strided_slice %4 {offsets = [0, 2, 0], sizes = [8, 8, 4], strides = [1, 1, 1]} : vector<10x10x4xf32> to vector<8x8x4xf32>
    %19 = vector.shape_cast %18 : vector<8x8x4xf32> to vector<64x4xf32>
    %c0_17 = arith.constant 0 : index
    %c0_18 = arith.constant 0 : index
    %c2 = arith.constant 2 : index
    %c0_19 = arith.constant 0 : index
    %c0_20 = arith.constant 0 : index
    %20 = vector.load %arg4[%c0_17, %c0_18, %c2, %c0_19, %c0_20] : memref<1x3x3x4x8xf32, #tpu.memory_space<vmem>>, vector<1x1x1x4x8xf32>
    %21 = vector.shape_cast %20 : vector<1x1x1x4x8xf32> to vector<4x8xf32>
    %cst_21 = arith.constant dense<0.000000e+00> : vector<64x8xf32>
    %22 = tpu.matmul %19, %21, %cst_21 {dimension_numbers = #tpu.dot_dimension_numbers<[1], [0], [0], [1], [0, 0, 1, 1], [], []>} : vector<64x4xf32>, vector<4x8xf32>, vector<64x8xf32> -> vector<64x8xf32>
    %23 = arith.addf %17, %22 : vector<64x8xf32>
    %24 = vector.extract_strided_slice %4 {offsets = [1, 0, 0], sizes = [8, 8, 4], strides = [1, 1, 1]} : vector<10x10x4xf32> to vector<8x8x4xf32>
    %25 = vector.shape_cast %24 : vector<8x8x4xf32> to vector<64x4xf32>
    %c0_22 = arith.constant 0 : index
    %c1_23 = arith.constant 1 : index
    %c0_24 = arith.constant 0 : index
    %c0_25 = arith.constant 0 : index
    %c0_26 = arith.constant 0 : index
    %26 = vector.load %arg4[%c0_22, %c1_23, %c0_24, %c0_25, %c0_26] : memref<1x3x3x4x8xf32, #tpu.memory_space<vmem>>, vector<1x1x1x4x8xf32>
    %27 = vector.shape_cast %26 : vector<1x1x1x4x8xf32> to vector<4x8xf32>
    %cst_27 = arith.constant dense<0.000000e+00> : vector<64x8xf32>
    %28 = tpu.matmul %25, %27, %cst_27 {dimension_numbers = #tpu.dot_dimension_numbers<[1], [0], [0], [1], [0, 0, 1, 1], [], []>} : vector<64x4xf32>, vector<4x8xf32>, vector<64x8xf32> -> vector<64x8xf32>
    %29 = arith.addf %23, %28 : vector<64x8xf32>
    %30 = vector.extract_strided_slice %4 {offsets = [1, 1, 0], sizes = [8, 8, 4], strides = [1, 1, 1]} : vector<10x10x4xf32> to vector<8x8x4xf32>
    %31 = vector.shape_cast %30 : vector<8x8x4xf32> to vector<64x4xf32>
    %c0_28 = arith.constant 0 : index
    %c1_29 = arith.constant 1 : index
    %c1_30 = arith.constant 1 : index
    %c0_31 = arith.constant 0 : index
    %c0_32 = arith.constant 0 : index
    %32 = vector.load %arg4[%c0_28, %c1_29, %c1_30, %c0_31, %c0_32] : memref<1x3x3x4x8xf32, #tpu.memory_space<vmem>>, vector<1x1x1x4x8xf32>
    %33 = vector.shape_cast %32 : vector<1x1x1x4x8xf32> to vector<4x8xf32>
    %cst_33 = arith.constant dense<0.000000e+00> : vector<64x8xf32>
    %34 = tpu.matmul %31, %33, %cst_33 {dimension_numbers = #tpu.dot_dimension_numbers<[1], [0], [0], [1], [0, 0, 1, 1], [], []>} : vector<64x4xf32>, vector<4x8xf32>, vector<64x8xf32> -> vector<64x8xf32>
    %35 = arith.addf %29, %34 : vector<64x8xf32>
    %36 = vector.extract_strided_slice %4 {offsets = [1, 2, 0], sizes = [8, 8, 4], strides = [1, 1, 1]} : vector<10x10x4xf32> to vector<8x8x4xf32>
    %37 = vector.shape_cast %36 : vector<8x8x4xf32> to vector<64x4xf32>
    %c0_34 = arith.constant 0 : index
    %c1_35 = arith.constant 1 : index
    %c2_36 = arith.constant 2 : index
    %c0_37 = arith.constant 0 : index
    %c0_38 = arith.constant 0 : index
    %38 = vector.load %arg4[%c0_34, %c1_35, %c2_36, %c0_37, %c0_38] : memref<1x3x3x4x8xf32, #tpu.memory_space<vmem>>, vector<1x1x1x4x8xf32>
    %39 = vector.shape_cast %38 : vector<1x1x1x4x8xf32> to vector<4x8xf32>
    %cst_39 = arith.constant dense<0.000000e+00> : vector<64x8xf32>
    %40 = tpu.matmul %37, %39, %cst_39 {dimension_numbers = #tpu.dot_dimension_numbers<[1], [0], [0], [1], [0, 0, 1, 1], [], []>} : vector<64x4xf32>, vector<4x8xf32>, vector<64x8xf32> -> vector<64x8xf32>
    %41 = arith.addf %35, %40 : vector<64x8xf32>
    %42 = vector.extract_strided_slice %4 {offsets = [2, 0, 0], sizes = [8, 8, 4], strides = [1, 1, 1]} : vector<10x10x4xf32> to vector<8x8x4xf32>
    %43 = vector.shape_cast %42 : vector<8x8x4xf32> to vector<64x4xf32>
    %c0_40 = arith.constant 0 : index
    %c2_41 = arith.constant 2 : index
    %c0_42 = arith.constant 0 : index
    %c0_43 = arith.constant 0 : index
    %c0_44 = arith.constant 0 : index
    %44 = vector.load %arg4[%c0_40, %c2_41, %c0_42, %c0_43, %c0_44] : memref<1x3x3x4x8xf32, #tpu.memory_space<vmem>>, vector<1x1x1x4x8xf32>
    %45 = vector.shape_cast %44 : vector<1x1x1x4x8xf32> to vector<4x8xf32>
    %cst_45 = arith.constant dense<0.000000e+00> : vector<64x8xf32>
    %46 = tpu.matmul %43, %45, %cst_45 {dimension_numbers = #tpu.dot_dimension_numbers<[1], [0], [0], [1], [0, 0, 1, 1], [], []>} : vector<64x4xf32>, vector<4x8xf32>, vector<64x8xf32> -> vector<64x8xf32>
    %47 = arith.addf %41, %46 : vector<64x8xf32>
    %48 = vector.extract_strided_slice %4 {offsets = [2, 1, 0], sizes = [8, 8, 4], strides = [1, 1, 1]} : vector<10x10x4xf32> to vector<8x8x4xf32>
    %49 = vector.shape_cast %48 : vector<8x8x4xf32> to vector<64x4xf32>
    %c0_46 = arith.constant 0 : index
    %c2_47 = arith.constant 2 : index
    %c1_48 = arith.constant 1 : index
    %c0_49 = arith.constant 0 : index
    %c0_50 = arith.constant 0 : index
    %50 = vector.load %arg4[%c0_46, %c2_47, %c1_48, %c0_49, %c0_50] : memref<1x3x3x4x8xf32, #tpu.memory_space<vmem>>, vector<1x1x1x4x8xf32>
    %51 = vector.shape_cast %50 : vector<1x1x1x4x8xf32> to vector<4x8xf32>
    %cst_51 = arith.constant dense<0.000000e+00> : vector<64x8xf32>
    %52 = tpu.matmul %49, %51, %cst_51 {dimension_numbers = #tpu.dot_dimension_numbers<[1], [0], [0], [1], [0, 0, 1, 1], [], []>} : vector<64x4xf32>, vector<4x8xf32>, vector<64x8xf32> -> vector<64x8xf32>
    %53 = arith.addf %47, %52 : vector<64x8xf32>
    %54 = vector.extract_strided_slice %4 {offsets = [2, 2, 0], sizes = [8, 8, 4], strides = [1, 1, 1]} : vector<10x10x4xf32> to vector<8x8x4xf32>
    %55 = vector.shape_cast %54 : vector<8x8x4xf32> to vector<64x4xf32>
    %c0_52 = arith.constant 0 : index
    %c2_53 = arith.constant 2 : index
    %c2_54 = arith.constant 2 : index
    %c0_55 = arith.constant 0 : index
    %c0_56 = arith.constant 0 : index
    %56 = vector.load %arg4[%c0_52, %c2_53, %c2_54, %c0_55, %c0_56] : memref<1x3x3x4x8xf32, #tpu.memory_space<vmem>>, vector<1x1x1x4x8xf32>
    %57 = vector.shape_cast %56 : vector<1x1x1x4x8xf32> to vector<4x8xf32>
    %cst_57 = arith.constant dense<0.000000e+00> : vector<64x8xf32>
    %58 = tpu.matmul %55, %57, %cst_57 {dimension_numbers = #tpu.dot_dimension_numbers<[1], [0], [0], [1], [0, 0, 1, 1], [], []>} : vector<64x4xf32>, vector<4x8xf32>, vector<64x8xf32> -> vector<64x8xf32>
    %59 = arith.addf %53, %58 : vector<64x8xf32>
    %c0_58 = arith.constant 0 : index
    %c0_59 = arith.constant 0 : index
    %60 = vector.load %arg9[%c0_58, %c0_59] : memref<64x8xf32, #tpu.memory_space<vmem>>, vector<64x8xf32>
    tpu.vector_store %arg9[%c0_58, %c0_59], %59 {strides = array<i32>} : memref<64x8xf32, #tpu.memory_space<vmem>>, vector<64x8xf32>,
    %c2_i32 = arith.constant 2 : i32
    %61 = arith.cmpi eq, %arg2, %c2_i32 : i32
    %62 = arith.extui %61 : i1 to i32
    %c0_i32_60 = arith.constant 0 : i32
    %63 = arith.cmpi ne, %62, %c0_i32_60 : i32
    scf.if %63 {
      %c0_61 = arith.constant 0 : index
      %c0_62 = arith.constant 0 : index
      %64 = vector.load %arg9[%c0_61, %c0_62] : memref<64x8xf32, #tpu.memory_space<vmem>>, vector<64x8xf32>
      %c0_63 = arith.constant 0 : index
      %c0_64 = arith.constant 0 : index
      %65 = vector.load %arg5[%c0_63, %c0_64] : memref<1x8xf32, #tpu.memory_space<vmem>>, vector<1x8xf32>
      %66 = vector.broadcast %65 : vector<1x8xf32> to vector<64x8xf32>
      %67 = arith.addf %64, %66 : vector<64x8xf32>
      %cst_65 = arith.constant 0.000000e+00 : f32
      %68 = vector.broadcast %cst_65 : f32 to vector<64x8xf32>
      %69 = arith.maximumf %67, %68 : vector<64x8xf32>
      %c0_66 = arith.constant 0 : index
      %c0_67 = arith.constant 0 : index
      %c0_68 = arith.constant 0 : index
      %c0_69 = arith.constant 0 : index
      %70 = vector.load %arg6[%c0_66, %c0_67, %c0_68, %c0_69] : memref<1x1x64x8xf32, #tpu.memory_space<vmem>>, vector<1x1x64x8xf32>
      %71 = vector.shape_cast %70 : vector<1x1x64x8xf32> to vector<64x8xf32>
      %72 = vector.shape_cast %69 : vector<64x8xf32> to vector<1x1x64x8xf32>
      tpu.vector_store %arg6[%c0_66, %c0_67, %c0_68, %c0_69], %72 {strides = array<i32>} : memref<1x1x64x8xf32, #tpu.memory_space<vmem>>, vector<1x1x64x8xf32>,
      %cst_70 = arith.constant dense<0.000000e+00> : vector<8xf32>
      %73 = vector.multi_reduction <add>, %69, %cst_70 [0] : vector<64x8xf32> to vector<8xf32>
      %74 = vector.shape_cast %73 : vector<8xf32> to vector<1x8xf32>
      %c0_71 = arith.constant 0 : index
      %c0_72 = arith.constant 0 : index
      %c0_73 = arith.constant 0 : index
      %c0_74 = arith.constant 0 : index
      %75 = vector.load %arg7[%c0_71, %c0_72, %c0_73, %c0_74] : memref<1x1x1x8xf32, #tpu.memory_space<vmem>>, vector<1x1x1x8xf32>
      %76 = vector.shape_cast %75 : vector<1x1x1x8xf32> to vector<1x8xf32>
      %77 = vector.shape_cast %74 : vector<1x8xf32> to vector<1x1x1x8xf32>
      tpu.vector_store %arg7[%c0_71, %c0_72, %c0_73, %c0_74], %77 {strides = array<i32>} : memref<1x1x1x8xf32, #tpu.memory_space<vmem>>, vector<1x1x1x8xf32>,
      %78 = arith.mulf %69, %69 : vector<64x8xf32>
      %cst_75 = arith.constant dense<0.000000e+00> : vector<8xf32>
      %79 = vector.multi_reduction <add>, %78, %cst_75 [0] : vector<64x8xf32> to vector<8xf32>
      %80 = vector.shape_cast %79 : vector<8xf32> to vector<1x8xf32>
      %c0_76 = arith.constant 0 : index
      %c0_77 = arith.constant 0 : index
      %c0_78 = arith.constant 0 : index
      %c0_79 = arith.constant 0 : index
      %81 = vector.load %arg8[%c0_76, %c0_77, %c0_78, %c0_79] : memref<1x1x1x8xf32, #tpu.memory_space<vmem>>, vector<1x1x1x8xf32>
      %82 = vector.shape_cast %81 : vector<1x1x1x8xf32> to vector<1x8xf32>
      %83 = vector.shape_cast %80 : vector<1x8xf32> to vector<1x1x1x8xf32>
      tpu.vector_store %arg8[%c0_76, %c0_77, %c0_78, %c0_79], %83 {strides = array<i32>} : memref<1x1x1x8xf32, #tpu.memory_space<vmem>>, vector<1x1x1x8xf32>,
    } else {
    }
    return
  }
  func.func @transform_0(%arg0: i32, %arg1: i32, %arg2: i32) -> (i32, i32, i32, i32, i32) {
    %c1_i32 = arith.constant 1 : i32
    %0 = arith.muli %arg1, %c1_i32 : i32
    %1 = arith.addi %0, %arg2 : i32
    %c0_i32 = arith.constant 0 : i32
    %c0_i32_0 = arith.constant 0 : i32
    %c0_i32_1 = arith.constant 0 : i32
    %c0_i32_2 = arith.constant 0 : i32
    return %arg0, %1, %c0_i32, %c0_i32_0, %c0_i32_1 : i32, i32, i32, i32, i32
  }
  func.func @transform_1(%arg0: i32, %arg1: i32, %arg2: i32) -> (i32, i32, i32, i32, i32) {
    %c0_i32 = arith.constant 0 : i32
    %c0_i32_0 = arith.constant 0 : i32
    %c0_i32_1 = arith.constant 0 : i32
    %c0_i32_2 = arith.constant 0 : i32
    %c0_i32_3 = arith.constant 0 : i32
    return %arg2, %c0_i32, %c0_i32_0, %c0_i32_1, %c0_i32_2 : i32, i32, i32, i32, i32
  }
  func.func @transform_2(%arg0: i32, %arg1: i32, %arg2: i32) -> (i32, i32) {
    %c0_i32 = arith.constant 0 : i32
    %c0_i32_0 = arith.constant 0 : i32
    %c0_i32_1 = arith.constant 0 : i32
    return %c0_i32, %c0_i32_0 : i32, i32
  }
  func.func @transform_3(%arg0: i32, %arg1: i32, %arg2: i32) -> (i32, i32, i32, i32) {
    %c0_i32 = arith.constant 0 : i32
    %c0_i32_0 = arith.constant 0 : i32
    %c0_i32_1 = arith.constant 0 : i32
    return %arg0, %arg1, %c0_i32, %c0_i32_0 : i32, i32, i32, i32
  }
  func.func @transform_4(%arg0: i32, %arg1: i32, %arg2: i32) -> (i32, i32, i32, i32) {
    %c0_i32 = arith.constant 0 : i32
    %c0_i32_0 = arith.constant 0 : i32
    %c0_i32_1 = arith.constant 0 : i32
    return %arg0, %arg1, %c0_i32, %c0_i32_0 : i32, i32, i32, i32
  }
  func.func @transform_5(%arg0: i32, %arg1: i32, %arg2: i32) -> (i32, i32, i32, i32) {
    %c0_i32 = arith.constant 0 : i32
    %c0_i32_0 = arith.constant 0 : i32
    %c0_i32_1 = arith.constant 0 : i32
    return %arg0, %arg1, %c0_i32, %c0_i32_0 : i32, i32, i32, i32
  }
}

module attributes {stable_mosaic.version = 11 : i64} {
  func.func @_bn_affine_kernel(%arg0: i32, %arg1: i32, %arg2: memref<1x32x128xf32, #tpu.memory_space<vmem>>, %arg3: memref<1x128xf32, #tpu.memory_space<vmem>>, %arg4: memref<1x128xf32, #tpu.memory_space<vmem>>, %arg5: memref<1x1x128xf32, #tpu.memory_space<vmem>>, %arg6: memref<1x32x128xf32, #tpu.memory_space<vmem>>) attributes {dimension_semantics = [#tpu.dimension_semantics<parallel>, #tpu.dimension_semantics<parallel>], iteration_bounds = array<i64: 2, 1>, scalar_prefetch = 0 : i64, scratch_operands = 0 : i64, tpu.core_type = #tpu.core_type<tc>, window_params = [{transform_indices = @transform_0, window_bounds = array<i64: 1, 32, 128>}, {pipeline_mode = #tpu.pipeline_mode<synchronous>, transform_indices = @transform_1, window_bounds = array<i64: 1, 128>}, {pipeline_mode = #tpu.pipeline_mode<synchronous>, transform_indices = @transform_2, window_bounds = array<i64: 1, 128>}, {transform_indices = @transform_3, window_bounds = array<i64: 1, 1, 128>}, {transform_indices = @transform_4, window_bounds = array<i64: 1, 32, 128>}]} {
    %c0 = arith.constant 0 : index
    %c0_0 = arith.constant 0 : index
    %c0_1 = arith.constant 0 : index
    %0 = vector.load %arg2[%c0, %c0_0, %c0_1] : memref<1x32x128xf32, #tpu.memory_space<vmem>>, vector<1x32x128xf32>
    %1 = vector.shape_cast %0 : vector<1x32x128xf32> to vector<32x128xf32>
    %c0_2 = arith.constant 0 : index
    %c0_3 = arith.constant 0 : index
    %2 = vector.load %arg3[%c0_2, %c0_3] : memref<1x128xf32, #tpu.memory_space<vmem>>, vector<1x128xf32>
    %3 = vector.broadcast %2 : vector<1x128xf32> to vector<32x128xf32>
    %4 = arith.mulf %1, %3 : vector<32x128xf32>
    %c0_4 = arith.constant 0 : index
    %c0_5 = arith.constant 0 : index
    %5 = vector.load %arg4[%c0_4, %c0_5] : memref<1x128xf32, #tpu.memory_space<vmem>>, vector<1x128xf32>
    %6 = vector.broadcast %5 : vector<1x128xf32> to vector<32x128xf32>
    %7 = arith.addf %4, %6 : vector<32x128xf32>
    %c0_6 = arith.constant 0 : index
    %c0_7 = arith.constant 0 : index
    %c0_8 = arith.constant 0 : index
    %8 = vector.load %arg5[%c0_6, %c0_7, %c0_8] : memref<1x1x128xf32, #tpu.memory_space<vmem>>, vector<1x1x128xf32>
    %9 = vector.shape_cast %8 : vector<1x1x128xf32> to vector<1x128xf32>
    %10 = vector.broadcast %9 : vector<1x128xf32> to vector<32x128xf32>
    %11 = arith.addf %7, %10 : vector<32x128xf32>
    %c0_9 = arith.constant 0 : index
    %c0_10 = arith.constant 0 : index
    %c0_11 = arith.constant 0 : index
    %12 = vector.load %arg6[%c0_9, %c0_10, %c0_11] : memref<1x32x128xf32, #tpu.memory_space<vmem>>, vector<1x32x128xf32>
    %13 = vector.shape_cast %12 : vector<1x32x128xf32> to vector<32x128xf32>
    %14 = vector.shape_cast %11 : vector<32x128xf32> to vector<1x32x128xf32>
    tpu.vector_store %arg6[%c0_9, %c0_10, %c0_11], %14 {strides = array<i32>} : memref<1x32x128xf32, #tpu.memory_space<vmem>>, vector<1x32x128xf32>,
    return
  }
  func.func @transform_0(%arg0: i32, %arg1: i32) -> (i32, i32, i32) {
    %c0_i32 = arith.constant 0 : i32
    %c0_i32_0 = arith.constant 0 : i32
    return %arg0, %arg1, %c0_i32 : i32, i32, i32
  }
  func.func @transform_1(%arg0: i32, %arg1: i32) -> (i32, i32) {
    %c0_i32 = arith.constant 0 : i32
    %c0_i32_0 = arith.constant 0 : i32
    %c0_i32_1 = arith.constant 0 : i32
    return %c0_i32, %c0_i32_0 : i32, i32
  }
  func.func @transform_2(%arg0: i32, %arg1: i32) -> (i32, i32) {
    %c0_i32 = arith.constant 0 : i32
    %c0_i32_0 = arith.constant 0 : i32
    %c0_i32_1 = arith.constant 0 : i32
    return %c0_i32, %c0_i32_0 : i32, i32
  }
  func.func @transform_3(%arg0: i32, %arg1: i32) -> (i32, i32, i32) {
    %c0_i32 = arith.constant 0 : i32
    %c0_i32_0 = arith.constant 0 : i32
    %c0_i32_1 = arith.constant 0 : i32
    return %arg0, %c0_i32, %c0_i32_0 : i32, i32, i32
  }
  func.func @transform_4(%arg0: i32, %arg1: i32) -> (i32, i32, i32) {
    %c0_i32 = arith.constant 0 : i32
    %c0_i32_0 = arith.constant 0 : i32
    return %arg0, %arg1, %c0_i32 : i32, i32, i32
  }
}

module attributes {stable_mosaic.version = 11 : i64} {
  func.func @_conv_kd_kernel(%arg0: i32, %arg1: i32, %arg2: i32, %arg3: memref<1x1x10x10x8xf32, #tpu.memory_space<vmem>>, %arg4: memref<1x3x3x8x8xf32, #tpu.memory_space<vmem>>, %arg5: memref<1x8xf32, #tpu.memory_space<vmem>>, %arg6: memref<1x1x64x8xf32, #tpu.memory_space<vmem>>, %arg7: memref<1x1x1x8xf32, #tpu.memory_space<vmem>>, %arg8: memref<1x1x1x8xf32, #tpu.memory_space<vmem>>, %arg9: memref<64x8xf32, #tpu.memory_space<vmem>>) attributes {dimension_semantics = [#tpu.dimension_semantics<parallel>, #tpu.dimension_semantics<parallel>, #tpu.dimension_semantics<arbitrary>], iteration_bounds = array<i64: 2, 8, 3>, scalar_prefetch = 0 : i64, scratch_operands = 1 : i64, tpu.core_type = #tpu.core_type<tc>, window_params = [{transform_indices = @transform_0, window_bounds = array<i64: 1, 1, 10, 10, 8>}, {transform_indices = @transform_1, window_bounds = array<i64: 1, 3, 3, 8, 8>}, {pipeline_mode = #tpu.pipeline_mode<synchronous>, transform_indices = @transform_2, window_bounds = array<i64: 1, 8>}, {transform_indices = @transform_3, window_bounds = array<i64: 1, 1, 64, 8>}, {transform_indices = @transform_4, window_bounds = array<i64: 1, 1, 1, 8>}, {transform_indices = @transform_5, window_bounds = array<i64: 1, 1, 1, 8>}]} {
    %c0_i32 = arith.constant 0 : i32
    %0 = arith.cmpi eq, %arg2, %c0_i32 : i32
    %1 = arith.extui %0 : i1 to i32
    %c0_i32_0 = arith.constant 0 : i32
    %2 = arith.cmpi ne, %1, %c0_i32_0 : i32
    scf.if %2 {
      %cst_61 = arith.constant 0.000000e+00 : f32
      %64 = vector.broadcast %cst_61 : f32 to vector<64x8xf32>
      %c0_62 = arith.constant 0 : index
      %c0_63 = arith.constant 0 : index
      %65 = vector.load %arg9[%c0_62, %c0_63] : memref<64x8xf32, #tpu.memory_space<vmem>>, vector<64x8xf32>
      tpu.vector_store %arg9[%c0_62, %c0_63], %64 {strides = array<i32>} : memref<64x8xf32, #tpu.memory_space<vmem>>, vector<64x8xf32>,
    } else {
    }
    %c0 = arith.constant 0 : index
    %c0_1 = arith.constant 0 : index
    %c0_2 = arith.constant 0 : index
    %c0_3 = arith.constant 0 : index
    %c0_4 = arith.constant 0 : index
    %3 = vector.load %arg3[%c0, %c0_1, %c0_2, %c0_3, %c0_4] : memref<1x1x10x10x8xf32, #tpu.memory_space<vmem>>, vector<1x1x10x10x8xf32>
    %4 = vector.shape_cast %3 : vector<1x1x10x10x8xf32> to vector<10x10x8xf32>
    %c0_5 = arith.constant 0 : index
    %c0_6 = arith.constant 0 : index
    %5 = vector.load %arg9[%c0_5, %c0_6] : memref<64x8xf32, #tpu.memory_space<vmem>>, vector<64x8xf32>
    %6 = vector.extract_strided_slice %4 {offsets = [0, 0, 0], sizes = [8, 8, 8], strides = [1, 1, 1]} : vector<10x10x8xf32> to vector<8x8x8xf32>
    %7 = vector.shape_cast %6 : vector<8x8x8xf32> to vector<64x8xf32>
    %c0_7 = arith.constant 0 : index
    %c0_8 = arith.constant 0 : index
    %c0_9 = arith.constant 0 : index
    %c0_10 = arith.constant 0 : index
    %c0_11 = arith.constant 0 : index
    %8 = vector.load %arg4[%c0_7, %c0_8, %c0_9, %c0_10, %c0_11] : memref<1x3x3x8x8xf32, #tpu.memory_space<vmem>>, vector<1x1x1x8x8xf32>
    %9 = vector.shape_cast %8 : vector<1x1x1x8x8xf32> to vector<8x8xf32>
    %cst = arith.constant dense<0.000000e+00> : vector<64x8xf32>
    %10 = tpu.matmul %7, %9, %cst {dimension_numbers = #tpu.dot_dimension_numbers<[1], [0], [0], [1], [0, 0, 1, 1], [], []>} : vector<64x8xf32>, vector<8x8xf32>, vector<64x8xf32> -> vector<64x8xf32>
    %11 = arith.addf %5, %10 : vector<64x8xf32>
    %12 = vector.extract_strided_slice %4 {offsets = [0, 1, 0], sizes = [8, 8, 8], strides = [1, 1, 1]} : vector<10x10x8xf32> to vector<8x8x8xf32>
    %13 = vector.shape_cast %12 : vector<8x8x8xf32> to vector<64x8xf32>
    %c0_12 = arith.constant 0 : index
    %c0_13 = arith.constant 0 : index
    %c1 = arith.constant 1 : index
    %c0_14 = arith.constant 0 : index
    %c0_15 = arith.constant 0 : index
    %14 = vector.load %arg4[%c0_12, %c0_13, %c1, %c0_14, %c0_15] : memref<1x3x3x8x8xf32, #tpu.memory_space<vmem>>, vector<1x1x1x8x8xf32>
    %15 = vector.shape_cast %14 : vector<1x1x1x8x8xf32> to vector<8x8xf32>
    %cst_16 = arith.constant dense<0.000000e+00> : vector<64x8xf32>
    %16 = tpu.matmul %13, %15, %cst_16 {dimension_numbers = #tpu.dot_dimension_numbers<[1], [0], [0], [1], [0, 0, 1, 1], [], []>} : vector<64x8xf32>, vector<8x8xf32>, vector<64x8xf32> -> vector<64x8xf32>
    %17 = arith.addf %11, %16 : vector<64x8xf32>
    %18 = vector.extract_strided_slice %4 {offsets = [0, 2, 0], sizes = [8, 8, 8], strides = [1, 1, 1]} : vector<10x10x8xf32> to vector<8x8x8xf32>
    %19 = vector.shape_cast %18 : vector<8x8x8xf32> to vector<64x8xf32>
    %c0_17 = arith.constant 0 : index
    %c0_18 = arith.constant 0 : index
    %c2 = arith.constant 2 : index
    %c0_19 = arith.constant 0 : index
    %c0_20 = arith.constant 0 : index
    %20 = vector.load %arg4[%c0_17, %c0_18, %c2, %c0_19, %c0_20] : memref<1x3x3x8x8xf32, #tpu.memory_space<vmem>>, vector<1x1x1x8x8xf32>
    %21 = vector.shape_cast %20 : vector<1x1x1x8x8xf32> to vector<8x8xf32>
    %cst_21 = arith.constant dense<0.000000e+00> : vector<64x8xf32>
    %22 = tpu.matmul %19, %21, %cst_21 {dimension_numbers = #tpu.dot_dimension_numbers<[1], [0], [0], [1], [0, 0, 1, 1], [], []>} : vector<64x8xf32>, vector<8x8xf32>, vector<64x8xf32> -> vector<64x8xf32>
    %23 = arith.addf %17, %22 : vector<64x8xf32>
    %24 = vector.extract_strided_slice %4 {offsets = [1, 0, 0], sizes = [8, 8, 8], strides = [1, 1, 1]} : vector<10x10x8xf32> to vector<8x8x8xf32>
    %25 = vector.shape_cast %24 : vector<8x8x8xf32> to vector<64x8xf32>
    %c0_22 = arith.constant 0 : index
    %c1_23 = arith.constant 1 : index
    %c0_24 = arith.constant 0 : index
    %c0_25 = arith.constant 0 : index
    %c0_26 = arith.constant 0 : index
    %26 = vector.load %arg4[%c0_22, %c1_23, %c0_24, %c0_25, %c0_26] : memref<1x3x3x8x8xf32, #tpu.memory_space<vmem>>, vector<1x1x1x8x8xf32>
    %27 = vector.shape_cast %26 : vector<1x1x1x8x8xf32> to vector<8x8xf32>
    %cst_27 = arith.constant dense<0.000000e+00> : vector<64x8xf32>
    %28 = tpu.matmul %25, %27, %cst_27 {dimension_numbers = #tpu.dot_dimension_numbers<[1], [0], [0], [1], [0, 0, 1, 1], [], []>} : vector<64x8xf32>, vector<8x8xf32>, vector<64x8xf32> -> vector<64x8xf32>
    %29 = arith.addf %23, %28 : vector<64x8xf32>
    %30 = vector.extract_strided_slice %4 {offsets = [1, 1, 0], sizes = [8, 8, 8], strides = [1, 1, 1]} : vector<10x10x8xf32> to vector<8x8x8xf32>
    %31 = vector.shape_cast %30 : vector<8x8x8xf32> to vector<64x8xf32>
    %c0_28 = arith.constant 0 : index
    %c1_29 = arith.constant 1 : index
    %c1_30 = arith.constant 1 : index
    %c0_31 = arith.constant 0 : index
    %c0_32 = arith.constant 0 : index
    %32 = vector.load %arg4[%c0_28, %c1_29, %c1_30, %c0_31, %c0_32] : memref<1x3x3x8x8xf32, #tpu.memory_space<vmem>>, vector<1x1x1x8x8xf32>
    %33 = vector.shape_cast %32 : vector<1x1x1x8x8xf32> to vector<8x8xf32>
    %cst_33 = arith.constant dense<0.000000e+00> : vector<64x8xf32>
    %34 = tpu.matmul %31, %33, %cst_33 {dimension_numbers = #tpu.dot_dimension_numbers<[1], [0], [0], [1], [0, 0, 1, 1], [], []>} : vector<64x8xf32>, vector<8x8xf32>, vector<64x8xf32> -> vector<64x8xf32>
    %35 = arith.addf %29, %34 : vector<64x8xf32>
    %36 = vector.extract_strided_slice %4 {offsets = [1, 2, 0], sizes = [8, 8, 8], strides = [1, 1, 1]} : vector<10x10x8xf32> to vector<8x8x8xf32>
    %37 = vector.shape_cast %36 : vector<8x8x8xf32> to vector<64x8xf32>
    %c0_34 = arith.constant 0 : index
    %c1_35 = arith.constant 1 : index
    %c2_36 = arith.constant 2 : index
    %c0_37 = arith.constant 0 : index
    %c0_38 = arith.constant 0 : index
    %38 = vector.load %arg4[%c0_34, %c1_35, %c2_36, %c0_37, %c0_38] : memref<1x3x3x8x8xf32, #tpu.memory_space<vmem>>, vector<1x1x1x8x8xf32>
    %39 = vector.shape_cast %38 : vector<1x1x1x8x8xf32> to vector<8x8xf32>
    %cst_39 = arith.constant dense<0.000000e+00> : vector<64x8xf32>
    %40 = tpu.matmul %37, %39, %cst_39 {dimension_numbers = #tpu.dot_dimension_numbers<[1], [0], [0], [1], [0, 0, 1, 1], [], []>} : vector<64x8xf32>, vector<8x8xf32>, vector<64x8xf32> -> vector<64x8xf32>
    %41 = arith.addf %35, %40 : vector<64x8xf32>
    %42 = vector.extract_strided_slice %4 {offsets = [2, 0, 0], sizes = [8, 8, 8], strides = [1, 1, 1]} : vector<10x10x8xf32> to vector<8x8x8xf32>
    %43 = vector.shape_cast %42 : vector<8x8x8xf32> to vector<64x8xf32>
    %c0_40 = arith.constant 0 : index
    %c2_41 = arith.constant 2 : index
    %c0_42 = arith.constant 0 : index
    %c0_43 = arith.constant 0 : index
    %c0_44 = arith.constant 0 : index
    %44 = vector.load %arg4[%c0_40, %c2_41, %c0_42, %c0_43, %c0_44] : memref<1x3x3x8x8xf32, #tpu.memory_space<vmem>>, vector<1x1x1x8x8xf32>
    %45 = vector.shape_cast %44 : vector<1x1x1x8x8xf32> to vector<8x8xf32>
    %cst_45 = arith.constant dense<0.000000e+00> : vector<64x8xf32>
    %46 = tpu.matmul %43, %45, %cst_45 {dimension_numbers = #tpu.dot_dimension_numbers<[1], [0], [0], [1], [0, 0, 1, 1], [], []>} : vector<64x8xf32>, vector<8x8xf32>, vector<64x8xf32> -> vector<64x8xf32>
    %47 = arith.addf %41, %46 : vector<64x8xf32>
    %48 = vector.extract_strided_slice %4 {offsets = [2, 1, 0], sizes = [8, 8, 8], strides = [1, 1, 1]} : vector<10x10x8xf32> to vector<8x8x8xf32>
    %49 = vector.shape_cast %48 : vector<8x8x8xf32> to vector<64x8xf32>
    %c0_46 = arith.constant 0 : index
    %c2_47 = arith.constant 2 : index
    %c1_48 = arith.constant 1 : index
    %c0_49 = arith.constant 0 : index
    %c0_50 = arith.constant 0 : index
    %50 = vector.load %arg4[%c0_46, %c2_47, %c1_48, %c0_49, %c0_50] : memref<1x3x3x8x8xf32, #tpu.memory_space<vmem>>, vector<1x1x1x8x8xf32>
    %51 = vector.shape_cast %50 : vector<1x1x1x8x8xf32> to vector<8x8xf32>
    %cst_51 = arith.constant dense<0.000000e+00> : vector<64x8xf32>
    %52 = tpu.matmul %49, %51, %cst_51 {dimension_numbers = #tpu.dot_dimension_numbers<[1], [0], [0], [1], [0, 0, 1, 1], [], []>} : vector<64x8xf32>, vector<8x8xf32>, vector<64x8xf32> -> vector<64x8xf32>
    %53 = arith.addf %47, %52 : vector<64x8xf32>
    %54 = vector.extract_strided_slice %4 {offsets = [2, 2, 0], sizes = [8, 8, 8], strides = [1, 1, 1]} : vector<10x10x8xf32> to vector<8x8x8xf32>
    %55 = vector.shape_cast %54 : vector<8x8x8xf32> to vector<64x8xf32>
    %c0_52 = arith.constant 0 : index
    %c2_53 = arith.constant 2 : index
    %c2_54 = arith.constant 2 : index
    %c0_55 = arith.constant 0 : index
    %c0_56 = arith.constant 0 : index
    %56 = vector.load %arg4[%c0_52, %c2_53, %c2_54, %c0_55, %c0_56] : memref<1x3x3x8x8xf32, #tpu.memory_space<vmem>>, vector<1x1x1x8x8xf32>
    %57 = vector.shape_cast %56 : vector<1x1x1x8x8xf32> to vector<8x8xf32>
    %cst_57 = arith.constant dense<0.000000e+00> : vector<64x8xf32>
    %58 = tpu.matmul %55, %57, %cst_57 {dimension_numbers = #tpu.dot_dimension_numbers<[1], [0], [0], [1], [0, 0, 1, 1], [], []>} : vector<64x8xf32>, vector<8x8xf32>, vector<64x8xf32> -> vector<64x8xf32>
    %59 = arith.addf %53, %58 : vector<64x8xf32>
    %c0_58 = arith.constant 0 : index
    %c0_59 = arith.constant 0 : index
    %60 = vector.load %arg9[%c0_58, %c0_59] : memref<64x8xf32, #tpu.memory_space<vmem>>, vector<64x8xf32>
    tpu.vector_store %arg9[%c0_58, %c0_59], %59 {strides = array<i32>} : memref<64x8xf32, #tpu.memory_space<vmem>>, vector<64x8xf32>,
    %c2_i32 = arith.constant 2 : i32
    %61 = arith.cmpi eq, %arg2, %c2_i32 : i32
    %62 = arith.extui %61 : i1 to i32
    %c0_i32_60 = arith.constant 0 : i32
    %63 = arith.cmpi ne, %62, %c0_i32_60 : i32
    scf.if %63 {
      %c0_61 = arith.constant 0 : index
      %c0_62 = arith.constant 0 : index
      %64 = vector.load %arg9[%c0_61, %c0_62] : memref<64x8xf32, #tpu.memory_space<vmem>>, vector<64x8xf32>
      %c0_63 = arith.constant 0 : index
      %c0_64 = arith.constant 0 : index
      %65 = vector.load %arg5[%c0_63, %c0_64] : memref<1x8xf32, #tpu.memory_space<vmem>>, vector<1x8xf32>
      %66 = vector.broadcast %65 : vector<1x8xf32> to vector<64x8xf32>
      %67 = arith.addf %64, %66 : vector<64x8xf32>
      %cst_65 = arith.constant 0.000000e+00 : f32
      %68 = vector.broadcast %cst_65 : f32 to vector<64x8xf32>
      %69 = arith.maximumf %67, %68 : vector<64x8xf32>
      %c0_66 = arith.constant 0 : index
      %c0_67 = arith.constant 0 : index
      %c0_68 = arith.constant 0 : index
      %c0_69 = arith.constant 0 : index
      %70 = vector.load %arg6[%c0_66, %c0_67, %c0_68, %c0_69] : memref<1x1x64x8xf32, #tpu.memory_space<vmem>>, vector<1x1x64x8xf32>
      %71 = vector.shape_cast %70 : vector<1x1x64x8xf32> to vector<64x8xf32>
      %72 = vector.shape_cast %69 : vector<64x8xf32> to vector<1x1x64x8xf32>
      tpu.vector_store %arg6[%c0_66, %c0_67, %c0_68, %c0_69], %72 {strides = array<i32>} : memref<1x1x64x8xf32, #tpu.memory_space<vmem>>, vector<1x1x64x8xf32>,
      %cst_70 = arith.constant dense<0.000000e+00> : vector<8xf32>
      %73 = vector.multi_reduction <add>, %69, %cst_70 [0] : vector<64x8xf32> to vector<8xf32>
      %74 = vector.shape_cast %73 : vector<8xf32> to vector<1x8xf32>
      %c0_71 = arith.constant 0 : index
      %c0_72 = arith.constant 0 : index
      %c0_73 = arith.constant 0 : index
      %c0_74 = arith.constant 0 : index
      %75 = vector.load %arg7[%c0_71, %c0_72, %c0_73, %c0_74] : memref<1x1x1x8xf32, #tpu.memory_space<vmem>>, vector<1x1x1x8xf32>
      %76 = vector.shape_cast %75 : vector<1x1x1x8xf32> to vector<1x8xf32>
      %77 = vector.shape_cast %74 : vector<1x8xf32> to vector<1x1x1x8xf32>
      tpu.vector_store %arg7[%c0_71, %c0_72, %c0_73, %c0_74], %77 {strides = array<i32>} : memref<1x1x1x8xf32, #tpu.memory_space<vmem>>, vector<1x1x1x8xf32>,
      %78 = arith.mulf %69, %69 : vector<64x8xf32>
      %cst_75 = arith.constant dense<0.000000e+00> : vector<8xf32>
      %79 = vector.multi_reduction <add>, %78, %cst_75 [0] : vector<64x8xf32> to vector<8xf32>
      %80 = vector.shape_cast %79 : vector<8xf32> to vector<1x8xf32>
      %c0_76 = arith.constant 0 : index
      %c0_77 = arith.constant 0 : index
      %c0_78 = arith.constant 0 : index
      %c0_79 = arith.constant 0 : index
      %81 = vector.load %arg8[%c0_76, %c0_77, %c0_78, %c0_79] : memref<1x1x1x8xf32, #tpu.memory_space<vmem>>, vector<1x1x1x8xf32>
      %82 = vector.shape_cast %81 : vector<1x1x1x8xf32> to vector<1x8xf32>
      %83 = vector.shape_cast %80 : vector<1x8xf32> to vector<1x1x1x8xf32>
      tpu.vector_store %arg8[%c0_76, %c0_77, %c0_78, %c0_79], %83 {strides = array<i32>} : memref<1x1x1x8xf32, #tpu.memory_space<vmem>>, vector<1x1x1x8xf32>,
    } else {
    }
    return
  }
  func.func @transform_0(%arg0: i32, %arg1: i32, %arg2: i32) -> (i32, i32, i32, i32, i32) {
    %c1_i32 = arith.constant 1 : i32
    %0 = arith.muli %arg1, %c1_i32 : i32
    %1 = arith.addi %0, %arg2 : i32
    %c0_i32 = arith.constant 0 : i32
    %c0_i32_0 = arith.constant 0 : i32
    %c0_i32_1 = arith.constant 0 : i32
    %c0_i32_2 = arith.constant 0 : i32
    return %arg0, %1, %c0_i32, %c0_i32_0, %c0_i32_1 : i32, i32, i32, i32, i32
  }
  func.func @transform_1(%arg0: i32, %arg1: i32, %arg2: i32) -> (i32, i32, i32, i32, i32) {
    %c0_i32 = arith.constant 0 : i32
    %c0_i32_0 = arith.constant 0 : i32
    %c0_i32_1 = arith.constant 0 : i32
    %c0_i32_2 = arith.constant 0 : i32
    %c0_i32_3 = arith.constant 0 : i32
    return %arg2, %c0_i32, %c0_i32_0, %c0_i32_1, %c0_i32_2 : i32, i32, i32, i32, i32
  }
  func.func @transform_2(%arg0: i32, %arg1: i32, %arg2: i32) -> (i32, i32) {
    %c0_i32 = arith.constant 0 : i32
    %c0_i32_0 = arith.constant 0 : i32
    %c0_i32_1 = arith.constant 0 : i32
    return %c0_i32, %c0_i32_0 : i32, i32
  }
  func.func @transform_3(%arg0: i32, %arg1: i32, %arg2: i32) -> (i32, i32, i32, i32) {
    %c0_i32 = arith.constant 0 : i32
    %c0_i32_0 = arith.constant 0 : i32
    %c0_i32_1 = arith.constant 0 : i32
    return %arg0, %arg1, %c0_i32, %c0_i32_0 : i32, i32, i32, i32
  }
  func.func @transform_4(%arg0: i32, %arg1: i32, %arg2: i32) -> (i32, i32, i32, i32) {
    %c0_i32 = arith.constant 0 : i32
    %c0_i32_0 = arith.constant 0 : i32
    %c0_i32_1 = arith.constant 0 : i32
    return %arg0, %arg1, %c0_i32, %c0_i32_0 : i32, i32, i32, i32
  }
  func.func @transform_5(%arg0: i32, %arg1: i32, %arg2: i32) -> (i32, i32, i32, i32) {
    %c0_i32 = arith.constant 0 : i32
    %c0_i32_0 = arith.constant 0 : i32
    %c0_i32_1 = arith.constant 0 : i32
    return %arg0, %arg1, %c0_i32, %c0_i32_0 : i32, i32, i32, i32
  }
}

module attributes {stable_mosaic.version = 11 : i64} {
  func.func @_conv_kd_kernel(%arg0: i32, %arg1: i32, %arg2: i32, %arg3: memref<1x1x10x10x8xf32, #tpu.memory_space<vmem>>, %arg4: memref<1x3x3x8x8xf32, #tpu.memory_space<vmem>>, %arg5: memref<1x8xf32, #tpu.memory_space<vmem>>, %arg6: memref<1x1x64x8xf32, #tpu.memory_space<vmem>>, %arg7: memref<1x1x1x8xf32, #tpu.memory_space<vmem>>, %arg8: memref<1x1x1x8xf32, #tpu.memory_space<vmem>>, %arg9: memref<64x8xf32, #tpu.memory_space<vmem>>) attributes {dimension_semantics = [#tpu.dimension_semantics<parallel>, #tpu.dimension_semantics<parallel>, #tpu.dimension_semantics<arbitrary>], iteration_bounds = array<i64: 2, 8, 3>, scalar_prefetch = 0 : i64, scratch_operands = 1 : i64, tpu.core_type = #tpu.core_type<tc>, window_params = [{transform_indices = @transform_0, window_bounds = array<i64: 1, 1, 10, 10, 8>}, {transform_indices = @transform_1, window_bounds = array<i64: 1, 3, 3, 8, 8>}, {pipeline_mode = #tpu.pipeline_mode<synchronous>, transform_indices = @transform_2, window_bounds = array<i64: 1, 8>}, {transform_indices = @transform_3, window_bounds = array<i64: 1, 1, 64, 8>}, {transform_indices = @transform_4, window_bounds = array<i64: 1, 1, 1, 8>}, {transform_indices = @transform_5, window_bounds = array<i64: 1, 1, 1, 8>}]} {
    %c0_i32 = arith.constant 0 : i32
    %0 = arith.cmpi eq, %arg2, %c0_i32 : i32
    %1 = arith.extui %0 : i1 to i32
    %c0_i32_0 = arith.constant 0 : i32
    %2 = arith.cmpi ne, %1, %c0_i32_0 : i32
    scf.if %2 {
      %cst_61 = arith.constant 0.000000e+00 : f32
      %64 = vector.broadcast %cst_61 : f32 to vector<64x8xf32>
      %c0_62 = arith.constant 0 : index
      %c0_63 = arith.constant 0 : index
      %65 = vector.load %arg9[%c0_62, %c0_63] : memref<64x8xf32, #tpu.memory_space<vmem>>, vector<64x8xf32>
      tpu.vector_store %arg9[%c0_62, %c0_63], %64 {strides = array<i32>} : memref<64x8xf32, #tpu.memory_space<vmem>>, vector<64x8xf32>,
    } else {
    }
    %c0 = arith.constant 0 : index
    %c0_1 = arith.constant 0 : index
    %c0_2 = arith.constant 0 : index
    %c0_3 = arith.constant 0 : index
    %c0_4 = arith.constant 0 : index
    %3 = vector.load %arg3[%c0, %c0_1, %c0_2, %c0_3, %c0_4] : memref<1x1x10x10x8xf32, #tpu.memory_space<vmem>>, vector<1x1x10x10x8xf32>
    %4 = vector.shape_cast %3 : vector<1x1x10x10x8xf32> to vector<10x10x8xf32>
    %c0_5 = arith.constant 0 : index
    %c0_6 = arith.constant 0 : index
    %5 = vector.load %arg9[%c0_5, %c0_6] : memref<64x8xf32, #tpu.memory_space<vmem>>, vector<64x8xf32>
    %6 = vector.extract_strided_slice %4 {offsets = [0, 0, 0], sizes = [8, 8, 8], strides = [1, 1, 1]} : vector<10x10x8xf32> to vector<8x8x8xf32>
    %7 = vector.shape_cast %6 : vector<8x8x8xf32> to vector<64x8xf32>
    %c0_7 = arith.constant 0 : index
    %c0_8 = arith.constant 0 : index
    %c0_9 = arith.constant 0 : index
    %c0_10 = arith.constant 0 : index
    %c0_11 = arith.constant 0 : index
    %8 = vector.load %arg4[%c0_7, %c0_8, %c0_9, %c0_10, %c0_11] : memref<1x3x3x8x8xf32, #tpu.memory_space<vmem>>, vector<1x1x1x8x8xf32>
    %9 = vector.shape_cast %8 : vector<1x1x1x8x8xf32> to vector<8x8xf32>
    %cst = arith.constant dense<0.000000e+00> : vector<64x8xf32>
    %10 = tpu.matmul %7, %9, %cst {dimension_numbers = #tpu.dot_dimension_numbers<[1], [0], [0], [1], [0, 0, 1, 1], [], []>} : vector<64x8xf32>, vector<8x8xf32>, vector<64x8xf32> -> vector<64x8xf32>
    %11 = arith.addf %5, %10 : vector<64x8xf32>
    %12 = vector.extract_strided_slice %4 {offsets = [0, 1, 0], sizes = [8, 8, 8], strides = [1, 1, 1]} : vector<10x10x8xf32> to vector<8x8x8xf32>
    %13 = vector.shape_cast %12 : vector<8x8x8xf32> to vector<64x8xf32>
    %c0_12 = arith.constant 0 : index
    %c0_13 = arith.constant 0 : index
    %c1 = arith.constant 1 : index
    %c0_14 = arith.constant 0 : index
    %c0_15 = arith.constant 0 : index
    %14 = vector.load %arg4[%c0_12, %c0_13, %c1, %c0_14, %c0_15] : memref<1x3x3x8x8xf32, #tpu.memory_space<vmem>>, vector<1x1x1x8x8xf32>
    %15 = vector.shape_cast %14 : vector<1x1x1x8x8xf32> to vector<8x8xf32>
    %cst_16 = arith.constant dense<0.000000e+00> : vector<64x8xf32>
    %16 = tpu.matmul %13, %15, %cst_16 {dimension_numbers = #tpu.dot_dimension_numbers<[1], [0], [0], [1], [0, 0, 1, 1], [], []>} : vector<64x8xf32>, vector<8x8xf32>, vector<64x8xf32> -> vector<64x8xf32>
    %17 = arith.addf %11, %16 : vector<64x8xf32>
    %18 = vector.extract_strided_slice %4 {offsets = [0, 2, 0], sizes = [8, 8, 8], strides = [1, 1, 1]} : vector<10x10x8xf32> to vector<8x8x8xf32>
    %19 = vector.shape_cast %18 : vector<8x8x8xf32> to vector<64x8xf32>
    %c0_17 = arith.constant 0 : index
    %c0_18 = arith.constant 0 : index
    %c2 = arith.constant 2 : index
    %c0_19 = arith.constant 0 : index
    %c0_20 = arith.constant 0 : index
    %20 = vector.load %arg4[%c0_17, %c0_18, %c2, %c0_19, %c0_20] : memref<1x3x3x8x8xf32, #tpu.memory_space<vmem>>, vector<1x1x1x8x8xf32>
    %21 = vector.shape_cast %20 : vector<1x1x1x8x8xf32> to vector<8x8xf32>
    %cst_21 = arith.constant dense<0.000000e+00> : vector<64x8xf32>
    %22 = tpu.matmul %19, %21, %cst_21 {dimension_numbers = #tpu.dot_dimension_numbers<[1], [0], [0], [1], [0, 0, 1, 1], [], []>} : vector<64x8xf32>, vector<8x8xf32>, vector<64x8xf32> -> vector<64x8xf32>
    %23 = arith.addf %17, %22 : vector<64x8xf32>
    %24 = vector.extract_strided_slice %4 {offsets = [1, 0, 0], sizes = [8, 8, 8], strides = [1, 1, 1]} : vector<10x10x8xf32> to vector<8x8x8xf32>
    %25 = vector.shape_cast %24 : vector<8x8x8xf32> to vector<64x8xf32>
    %c0_22 = arith.constant 0 : index
    %c1_23 = arith.constant 1 : index
    %c0_24 = arith.constant 0 : index
    %c0_25 = arith.constant 0 : index
    %c0_26 = arith.constant 0 : index
    %26 = vector.load %arg4[%c0_22, %c1_23, %c0_24, %c0_25, %c0_26] : memref<1x3x3x8x8xf32, #tpu.memory_space<vmem>>, vector<1x1x1x8x8xf32>
    %27 = vector.shape_cast %26 : vector<1x1x1x8x8xf32> to vector<8x8xf32>
    %cst_27 = arith.constant dense<0.000000e+00> : vector<64x8xf32>
    %28 = tpu.matmul %25, %27, %cst_27 {dimension_numbers = #tpu.dot_dimension_numbers<[1], [0], [0], [1], [0, 0, 1, 1], [], []>} : vector<64x8xf32>, vector<8x8xf32>, vector<64x8xf32> -> vector<64x8xf32>
    %29 = arith.addf %23, %28 : vector<64x8xf32>
    %30 = vector.extract_strided_slice %4 {offsets = [1, 1, 0], sizes = [8, 8, 8], strides = [1, 1, 1]} : vector<10x10x8xf32> to vector<8x8x8xf32>
    %31 = vector.shape_cast %30 : vector<8x8x8xf32> to vector<64x8xf32>
    %c0_28 = arith.constant 0 : index
    %c1_29 = arith.constant 1 : index
    %c1_30 = arith.constant 1 : index
    %c0_31 = arith.constant 0 : index
    %c0_32 = arith.constant 0 : index
    %32 = vector.load %arg4[%c0_28, %c1_29, %c1_30, %c0_31, %c0_32] : memref<1x3x3x8x8xf32, #tpu.memory_space<vmem>>, vector<1x1x1x8x8xf32>
    %33 = vector.shape_cast %32 : vector<1x1x1x8x8xf32> to vector<8x8xf32>
    %cst_33 = arith.constant dense<0.000000e+00> : vector<64x8xf32>
    %34 = tpu.matmul %31, %33, %cst_33 {dimension_numbers = #tpu.dot_dimension_numbers<[1], [0], [0], [1], [0, 0, 1, 1], [], []>} : vector<64x8xf32>, vector<8x8xf32>, vector<64x8xf32> -> vector<64x8xf32>
    %35 = arith.addf %29, %34 : vector<64x8xf32>
    %36 = vector.extract_strided_slice %4 {offsets = [1, 2, 0], sizes = [8, 8, 8], strides = [1, 1, 1]} : vector<10x10x8xf32> to vector<8x8x8xf32>
    %37 = vector.shape_cast %36 : vector<8x8x8xf32> to vector<64x8xf32>
    %c0_34 = arith.constant 0 : index
    %c1_35 = arith.constant 1 : index
    %c2_36 = arith.constant 2 : index
    %c0_37 = arith.constant 0 : index
    %c0_38 = arith.constant 0 : index
    %38 = vector.load %arg4[%c0_34, %c1_35, %c2_36, %c0_37, %c0_38] : memref<1x3x3x8x8xf32, #tpu.memory_space<vmem>>, vector<1x1x1x8x8xf32>
    %39 = vector.shape_cast %38 : vector<1x1x1x8x8xf32> to vector<8x8xf32>
    %cst_39 = arith.constant dense<0.000000e+00> : vector<64x8xf32>
    %40 = tpu.matmul %37, %39, %cst_39 {dimension_numbers = #tpu.dot_dimension_numbers<[1], [0], [0], [1], [0, 0, 1, 1], [], []>} : vector<64x8xf32>, vector<8x8xf32>, vector<64x8xf32> -> vector<64x8xf32>
    %41 = arith.addf %35, %40 : vector<64x8xf32>
    %42 = vector.extract_strided_slice %4 {offsets = [2, 0, 0], sizes = [8, 8, 8], strides = [1, 1, 1]} : vector<10x10x8xf32> to vector<8x8x8xf32>
    %43 = vector.shape_cast %42 : vector<8x8x8xf32> to vector<64x8xf32>
    %c0_40 = arith.constant 0 : index
    %c2_41 = arith.constant 2 : index
    %c0_42 = arith.constant 0 : index
    %c0_43 = arith.constant 0 : index
    %c0_44 = arith.constant 0 : index
    %44 = vector.load %arg4[%c0_40, %c2_41, %c0_42, %c0_43, %c0_44] : memref<1x3x3x8x8xf32, #tpu.memory_space<vmem>>, vector<1x1x1x8x8xf32>
    %45 = vector.shape_cast %44 : vector<1x1x1x8x8xf32> to vector<8x8xf32>
    %cst_45 = arith.constant dense<0.000000e+00> : vector<64x8xf32>
    %46 = tpu.matmul %43, %45, %cst_45 {dimension_numbers = #tpu.dot_dimension_numbers<[1], [0], [0], [1], [0, 0, 1, 1], [], []>} : vector<64x8xf32>, vector<8x8xf32>, vector<64x8xf32> -> vector<64x8xf32>
    %47 = arith.addf %41, %46 : vector<64x8xf32>
    %48 = vector.extract_strided_slice %4 {offsets = [2, 1, 0], sizes = [8, 8, 8], strides = [1, 1, 1]} : vector<10x10x8xf32> to vector<8x8x8xf32>
    %49 = vector.shape_cast %48 : vector<8x8x8xf32> to vector<64x8xf32>
    %c0_46 = arith.constant 0 : index
    %c2_47 = arith.constant 2 : index
    %c1_48 = arith.constant 1 : index
    %c0_49 = arith.constant 0 : index
    %c0_50 = arith.constant 0 : index
    %50 = vector.load %arg4[%c0_46, %c2_47, %c1_48, %c0_49, %c0_50] : memref<1x3x3x8x8xf32, #tpu.memory_space<vmem>>, vector<1x1x1x8x8xf32>
    %51 = vector.shape_cast %50 : vector<1x1x1x8x8xf32> to vector<8x8xf32>
    %cst_51 = arith.constant dense<0.000000e+00> : vector<64x8xf32>
    %52 = tpu.matmul %49, %51, %cst_51 {dimension_numbers = #tpu.dot_dimension_numbers<[1], [0], [0], [1], [0, 0, 1, 1], [], []>} : vector<64x8xf32>, vector<8x8xf32>, vector<64x8xf32> -> vector<64x8xf32>
    %53 = arith.addf %47, %52 : vector<64x8xf32>
    %54 = vector.extract_strided_slice %4 {offsets = [2, 2, 0], sizes = [8, 8, 8], strides = [1, 1, 1]} : vector<10x10x8xf32> to vector<8x8x8xf32>
    %55 = vector.shape_cast %54 : vector<8x8x8xf32> to vector<64x8xf32>
    %c0_52 = arith.constant 0 : index
    %c2_53 = arith.constant 2 : index
    %c2_54 = arith.constant 2 : index
    %c0_55 = arith.constant 0 : index
    %c0_56 = arith.constant 0 : index
    %56 = vector.load %arg4[%c0_52, %c2_53, %c2_54, %c0_55, %c0_56] : memref<1x3x3x8x8xf32, #tpu.memory_space<vmem>>, vector<1x1x1x8x8xf32>
    %57 = vector.shape_cast %56 : vector<1x1x1x8x8xf32> to vector<8x8xf32>
    %cst_57 = arith.constant dense<0.000000e+00> : vector<64x8xf32>
    %58 = tpu.matmul %55, %57, %cst_57 {dimension_numbers = #tpu.dot_dimension_numbers<[1], [0], [0], [1], [0, 0, 1, 1], [], []>} : vector<64x8xf32>, vector<8x8xf32>, vector<64x8xf32> -> vector<64x8xf32>
    %59 = arith.addf %53, %58 : vector<64x8xf32>
    %c0_58 = arith.constant 0 : index
    %c0_59 = arith.constant 0 : index
    %60 = vector.load %arg9[%c0_58, %c0_59] : memref<64x8xf32, #tpu.memory_space<vmem>>, vector<64x8xf32>
    tpu.vector_store %arg9[%c0_58, %c0_59], %59 {strides = array<i32>} : memref<64x8xf32, #tpu.memory_space<vmem>>, vector<64x8xf32>,
    %c2_i32 = arith.constant 2 : i32
    %61 = arith.cmpi eq, %arg2, %c2_i32 : i32
    %62 = arith.extui %61 : i1 to i32
    %c0_i32_60 = arith.constant 0 : i32
    %63 = arith.cmpi ne, %62, %c0_i32_60 : i32
    scf.if %63 {
      %c0_61 = arith.constant 0 : index
      %c0_62 = arith.constant 0 : index
      %64 = vector.load %arg9[%c0_61, %c0_62] : memref<64x8xf32, #tpu.memory_space<vmem>>, vector<64x8xf32>
      %c0_63 = arith.constant 0 : index
      %c0_64 = arith.constant 0 : index
      %65 = vector.load %arg5[%c0_63, %c0_64] : memref<1x8xf32, #tpu.memory_space<vmem>>, vector<1x8xf32>
      %66 = vector.broadcast %65 : vector<1x8xf32> to vector<64x8xf32>
      %67 = arith.addf %64, %66 : vector<64x8xf32>
      %c0_65 = arith.constant 0 : index
      %c0_66 = arith.constant 0 : index
      %c0_67 = arith.constant 0 : index
      %c0_68 = arith.constant 0 : index
      %68 = vector.load %arg6[%c0_65, %c0_66, %c0_67, %c0_68] : memref<1x1x64x8xf32, #tpu.memory_space<vmem>>, vector<1x1x64x8xf32>
      %69 = vector.shape_cast %68 : vector<1x1x64x8xf32> to vector<64x8xf32>
      %70 = vector.shape_cast %67 : vector<64x8xf32> to vector<1x1x64x8xf32>
      tpu.vector_store %arg6[%c0_65, %c0_66, %c0_67, %c0_68], %70 {strides = array<i32>} : memref<1x1x64x8xf32, #tpu.memory_space<vmem>>, vector<1x1x64x8xf32>,
      %cst_69 = arith.constant dense<0.000000e+00> : vector<8xf32>
      %71 = vector.multi_reduction <add>, %67, %cst_69 [0] : vector<64x8xf32> to vector<8xf32>
      %72 = vector.shape_cast %71 : vector<8xf32> to vector<1x8xf32>
      %c0_70 = arith.constant 0 : index
      %c0_71 = arith.constant 0 : index
      %c0_72 = arith.constant 0 : index
      %c0_73 = arith.constant 0 : index
      %73 = vector.load %arg7[%c0_70, %c0_71, %c0_72, %c0_73] : memref<1x1x1x8xf32, #tpu.memory_space<vmem>>, vector<1x1x1x8xf32>
      %74 = vector.shape_cast %73 : vector<1x1x1x8xf32> to vector<1x8xf32>
      %75 = vector.shape_cast %72 : vector<1x8xf32> to vector<1x1x1x8xf32>
      tpu.vector_store %arg7[%c0_70, %c0_71, %c0_72, %c0_73], %75 {strides = array<i32>} : memref<1x1x1x8xf32, #tpu.memory_space<vmem>>, vector<1x1x1x8xf32>,
      %76 = arith.mulf %67, %67 : vector<64x8xf32>
      %cst_74 = arith.constant dense<0.000000e+00> : vector<8xf32>
      %77 = vector.multi_reduction <add>, %76, %cst_74 [0] : vector<64x8xf32> to vector<8xf32>
      %78 = vector.shape_cast %77 : vector<8xf32> to vector<1x8xf32>
      %c0_75 = arith.constant 0 : index
      %c0_76 = arith.constant 0 : index
      %c0_77 = arith.constant 0 : index
      %c0_78 = arith.constant 0 : index
      %79 = vector.load %arg8[%c0_75, %c0_76, %c0_77, %c0_78] : memref<1x1x1x8xf32, #tpu.memory_space<vmem>>, vector<1x1x1x8xf32>
      %80 = vector.shape_cast %79 : vector<1x1x1x8xf32> to vector<1x8xf32>
      %81 = vector.shape_cast %78 : vector<1x8xf32> to vector<1x1x1x8xf32>
      tpu.vector_store %arg8[%c0_75, %c0_76, %c0_77, %c0_78], %81 {strides = array<i32>} : memref<1x1x1x8xf32, #tpu.memory_space<vmem>>, vector<1x1x1x8xf32>,
    } else {
    }
    return
  }
  func.func @transform_0(%arg0: i32, %arg1: i32, %arg2: i32) -> (i32, i32, i32, i32, i32) {
    %c1_i32 = arith.constant 1 : i32
    %0 = arith.muli %arg1, %c1_i32 : i32
    %1 = arith.addi %0, %arg2 : i32
    %c0_i32 = arith.constant 0 : i32
    %c0_i32_0 = arith.constant 0 : i32
    %c0_i32_1 = arith.constant 0 : i32
    %c0_i32_2 = arith.constant 0 : i32
    return %arg0, %1, %c0_i32, %c0_i32_0, %c0_i32_1 : i32, i32, i32, i32, i32
  }
  func.func @transform_1(%arg0: i32, %arg1: i32, %arg2: i32) -> (i32, i32, i32, i32, i32) {
    %c0_i32 = arith.constant 0 : i32
    %c0_i32_0 = arith.constant 0 : i32
    %c0_i32_1 = arith.constant 0 : i32
    %c0_i32_2 = arith.constant 0 : i32
    %c0_i32_3 = arith.constant 0 : i32
    return %arg2, %c0_i32, %c0_i32_0, %c0_i32_1, %c0_i32_2 : i32, i32, i32, i32, i32
  }
  func.func @transform_2(%arg0: i32, %arg1: i32, %arg2: i32) -> (i32, i32) {
    %c0_i32 = arith.constant 0 : i32
    %c0_i32_0 = arith.constant 0 : i32
    %c0_i32_1 = arith.constant 0 : i32
    return %c0_i32, %c0_i32_0 : i32, i32
  }
  func.func @transform_3(%arg0: i32, %arg1: i32, %arg2: i32) -> (i32, i32, i32, i32) {
    %c0_i32 = arith.constant 0 : i32
    %c0_i32_0 = arith.constant 0 : i32
    %c0_i32_1 = arith.constant 0 : i32
    return %arg0, %arg1, %c0_i32, %c0_i32_0 : i32, i32, i32, i32
  }
  func.func @transform_4(%arg0: i32, %arg1: i32, %arg2: i32) -> (i32, i32, i32, i32) {
    %c0_i32 = arith.constant 0 : i32
    %c0_i32_0 = arith.constant 0 : i32
    %c0_i32_1 = arith.constant 0 : i32
    return %arg0, %arg1, %c0_i32, %c0_i32_0 : i32, i32, i32, i32
  }
  func.func @transform_5(%arg0: i32, %arg1: i32, %arg2: i32) -> (i32, i32, i32, i32) {
    %c0_i32 = arith.constant 0 : i32
    %c0_i32_0 = arith.constant 0 : i32
    %c0_i32_1 = arith.constant 0 : i32
    return %arg0, %arg1, %c0_i32, %c0_i32_0 : i32, i32, i32, i32
  }
}

module attributes {stable_mosaic.version = 11 : i64} {
  func.func @_bn_affine_kernel(%arg0: i32, %arg1: i32, %arg2: memref<1x32x128xf32, #tpu.memory_space<vmem>>, %arg3: memref<1x128xf32, #tpu.memory_space<vmem>>, %arg4: memref<1x128xf32, #tpu.memory_space<vmem>>, %arg5: memref<1x32x128xf32, #tpu.memory_space<vmem>>) attributes {dimension_semantics = [#tpu.dimension_semantics<parallel>, #tpu.dimension_semantics<parallel>], iteration_bounds = array<i64: 2, 1>, scalar_prefetch = 0 : i64, scratch_operands = 0 : i64, tpu.core_type = #tpu.core_type<tc>, window_params = [{transform_indices = @transform_0, window_bounds = array<i64: 1, 32, 128>}, {pipeline_mode = #tpu.pipeline_mode<synchronous>, transform_indices = @transform_1, window_bounds = array<i64: 1, 128>}, {pipeline_mode = #tpu.pipeline_mode<synchronous>, transform_indices = @transform_2, window_bounds = array<i64: 1, 128>}, {transform_indices = @transform_3, window_bounds = array<i64: 1, 32, 128>}]} {
    %c0 = arith.constant 0 : index
    %c0_0 = arith.constant 0 : index
    %c0_1 = arith.constant 0 : index
    %0 = vector.load %arg2[%c0, %c0_0, %c0_1] : memref<1x32x128xf32, #tpu.memory_space<vmem>>, vector<1x32x128xf32>
    %1 = vector.shape_cast %0 : vector<1x32x128xf32> to vector<32x128xf32>
    %c0_2 = arith.constant 0 : index
    %c0_3 = arith.constant 0 : index
    %2 = vector.load %arg3[%c0_2, %c0_3] : memref<1x128xf32, #tpu.memory_space<vmem>>, vector<1x128xf32>
    %3 = vector.broadcast %2 : vector<1x128xf32> to vector<32x128xf32>
    %4 = arith.mulf %1, %3 : vector<32x128xf32>
    %c0_4 = arith.constant 0 : index
    %c0_5 = arith.constant 0 : index
    %5 = vector.load %arg4[%c0_4, %c0_5] : memref<1x128xf32, #tpu.memory_space<vmem>>, vector<1x128xf32>
    %6 = vector.broadcast %5 : vector<1x128xf32> to vector<32x128xf32>
    %7 = arith.addf %4, %6 : vector<32x128xf32>
    %c0_6 = arith.constant 0 : index
    %c0_7 = arith.constant 0 : index
    %c0_8 = arith.constant 0 : index
    %8 = vector.load %arg5[%c0_6, %c0_7, %c0_8] : memref<1x32x128xf32, #tpu.memory_space<vmem>>, vector<1x32x128xf32>
    %9 = vector.shape_cast %8 : vector<1x32x128xf32> to vector<32x128xf32>
    %10 = vector.shape_cast %7 : vector<32x128xf32> to vector<1x32x128xf32>
    tpu.vector_store %arg5[%c0_6, %c0_7, %c0_8], %10 {strides = array<i32>} : memref<1x32x128xf32, #tpu.memory_space<vmem>>, vector<1x32x128xf32>,
    return
  }
  func.func @transform_0(%arg0: i32, %arg1: i32) -> (i32, i32, i32) {
    %c0_i32 = arith.constant 0 : i32
    %c0_i32_0 = arith.constant 0 : i32
    return %arg0, %arg1, %c0_i32 : i32, i32, i32
  }
  func.func @transform_1(%arg0: i32, %arg1: i32) -> (i32, i32) {
    %c0_i32 = arith.constant 0 : i32
    %c0_i32_0 = arith.constant 0 : i32
    %c0_i32_1 = arith.constant 0 : i32
    return %c0_i32, %c0_i32_0 : i32, i32
  }
  func.func @transform_2(%arg0: i32, %arg1: i32) -> (i32, i32) {
    %c0_i32 = arith.constant 0 : i32
    %c0_i32_0 = arith.constant 0 : i32
    %c0_i32_1 = arith.constant 0 : i32
    return %c0_i32, %c0_i32_0 : i32, i32
  }
  func.func @transform_3(%arg0: i32, %arg1: i32) -> (i32, i32, i32) {
    %c0_i32 = arith.constant 0 : i32
    %c0_i32_0 = arith.constant 0 : i32
    return %arg0, %arg1, %c0_i32 : i32, i32, i32
  }
}

module attributes {stable_mosaic.version = 11 : i64} {
  func.func @_bn_affine_kernel(%arg0: i32, %arg1: i32, %arg2: memref<1x32x128xf32, #tpu.memory_space<vmem>>, %arg3: memref<1x128xf32, #tpu.memory_space<vmem>>, %arg4: memref<1x128xf32, #tpu.memory_space<vmem>>, %arg5: memref<1x32x128xf32, #tpu.memory_space<vmem>>, %arg6: memref<1x32x128xf32, #tpu.memory_space<vmem>>) attributes {dimension_semantics = [#tpu.dimension_semantics<parallel>, #tpu.dimension_semantics<parallel>], iteration_bounds = array<i64: 2, 1>, scalar_prefetch = 0 : i64, scratch_operands = 0 : i64, tpu.core_type = #tpu.core_type<tc>, window_params = [{transform_indices = @transform_0, window_bounds = array<i64: 1, 32, 128>}, {pipeline_mode = #tpu.pipeline_mode<synchronous>, transform_indices = @transform_1, window_bounds = array<i64: 1, 128>}, {pipeline_mode = #tpu.pipeline_mode<synchronous>, transform_indices = @transform_2, window_bounds = array<i64: 1, 128>}, {transform_indices = @transform_3, window_bounds = array<i64: 1, 32, 128>}, {transform_indices = @transform_4, window_bounds = array<i64: 1, 32, 128>}]} {
    %c0 = arith.constant 0 : index
    %c0_0 = arith.constant 0 : index
    %c0_1 = arith.constant 0 : index
    %0 = vector.load %arg2[%c0, %c0_0, %c0_1] : memref<1x32x128xf32, #tpu.memory_space<vmem>>, vector<1x32x128xf32>
    %1 = vector.shape_cast %0 : vector<1x32x128xf32> to vector<32x128xf32>
    %c0_2 = arith.constant 0 : index
    %c0_3 = arith.constant 0 : index
    %2 = vector.load %arg3[%c0_2, %c0_3] : memref<1x128xf32, #tpu.memory_space<vmem>>, vector<1x128xf32>
    %3 = vector.broadcast %2 : vector<1x128xf32> to vector<32x128xf32>
    %4 = arith.mulf %1, %3 : vector<32x128xf32>
    %c0_4 = arith.constant 0 : index
    %c0_5 = arith.constant 0 : index
    %5 = vector.load %arg4[%c0_4, %c0_5] : memref<1x128xf32, #tpu.memory_space<vmem>>, vector<1x128xf32>
    %6 = vector.broadcast %5 : vector<1x128xf32> to vector<32x128xf32>
    %7 = arith.addf %4, %6 : vector<32x128xf32>
    %cst = arith.constant 0.000000e+00 : f32
    %8 = vector.broadcast %cst : f32 to vector<32x128xf32>
    %9 = arith.maximumf %7, %8 : vector<32x128xf32>
    %c0_6 = arith.constant 0 : index
    %c0_7 = arith.constant 0 : index
    %c0_8 = arith.constant 0 : index
    %10 = vector.load %arg5[%c0_6, %c0_7, %c0_8] : memref<1x32x128xf32, #tpu.memory_space<vmem>>, vector<1x32x128xf32>
    %11 = vector.shape_cast %10 : vector<1x32x128xf32> to vector<32x128xf32>
    %12 = arith.addf %9, %11 : vector<32x128xf32>
    %c0_9 = arith.constant 0 : index
    %c0_10 = arith.constant 0 : index
    %c0_11 = arith.constant 0 : index
    %13 = vector.load %arg6[%c0_9, %c0_10, %c0_11] : memref<1x32x128xf32, #tpu.memory_space<vmem>>, vector<1x32x128xf32>
    %14 = vector.shape_cast %13 : vector<1x32x128xf32> to vector<32x128xf32>
    %15 = vector.shape_cast %12 : vector<32x128xf32> to vector<1x32x128xf32>
    tpu.vector_store %arg6[%c0_9, %c0_10, %c0_11], %15 {strides = array<i32>} : memref<1x32x128xf32, #tpu.memory_space<vmem>>, vector<1x32x128xf32>,
    return
  }
  func.func @transform_0(%arg0: i32, %arg1: i32) -> (i32, i32, i32) {
    %c0_i32 = arith.constant 0 : i32
    %c0_i32_0 = arith.constant 0 : i32
    return %arg0, %arg1, %c0_i32 : i32, i32, i32
  }
  func.func @transform_1(%arg0: i32, %arg1: i32) -> (i32, i32) {
    %c0_i32 = arith.constant 0 : i32
    %c0_i32_0 = arith.constant 0 : i32
    %c0_i32_1 = arith.constant 0 : i32
    return %c0_i32, %c0_i32_0 : i32, i32
  }
  func.func @transform_2(%arg0: i32, %arg1: i32) -> (i32, i32) {
    %c0_i32 = arith.constant 0 : i32
    %c0_i32_0 = arith.constant 0 : i32
    %c0_i32_1 = arith.constant 0 : i32
    return %c0_i32, %c0_i32_0 : i32, i32
  }
  func.func @transform_3(%arg0: i32, %arg1: i32) -> (i32, i32, i32) {
    %c0_i32 = arith.constant 0 : i32
    %c0_i32_0 = arith.constant 0 : i32
    return %arg0, %arg1, %c0_i32 : i32, i32, i32
  }
  func.func @transform_4(%arg0: i32, %arg1: i32) -> (i32, i32, i32) {
    %c0_i32 = arith.constant 0 : i32
    %c0_i32_0 = arith.constant 0 : i32
    return %arg0, %arg1, %c0_i32 : i32, i32, i32
  }
}

module attributes {stable_mosaic.version = 11 : i64} {
  func.func @_bn_affine_kernel(%arg0: i32, %arg1: i32, %arg2: memref<1x32x128xf32, #tpu.memory_space<vmem>>, %arg3: memref<1x128xf32, #tpu.memory_space<vmem>>, %arg4: memref<1x128xf32, #tpu.memory_space<vmem>>, %arg5: memref<1x32x128xf32, #tpu.memory_space<vmem>>) attributes {dimension_semantics = [#tpu.dimension_semantics<parallel>, #tpu.dimension_semantics<parallel>], iteration_bounds = array<i64: 2, 1>, scalar_prefetch = 0 : i64, scratch_operands = 0 : i64, tpu.core_type = #tpu.core_type<tc>, window_params = [{transform_indices = @transform_0, window_bounds = array<i64: 1, 32, 128>}, {pipeline_mode = #tpu.pipeline_mode<synchronous>, transform_indices = @transform_1, window_bounds = array<i64: 1, 128>}, {pipeline_mode = #tpu.pipeline_mode<synchronous>, transform_indices = @transform_2, window_bounds = array<i64: 1, 128>}, {transform_indices = @transform_3, window_bounds = array<i64: 1, 32, 128>}]} {
    %c0 = arith.constant 0 : index
    %c0_0 = arith.constant 0 : index
    %c0_1 = arith.constant 0 : index
    %0 = vector.load %arg2[%c0, %c0_0, %c0_1] : memref<1x32x128xf32, #tpu.memory_space<vmem>>, vector<1x32x128xf32>
    %1 = vector.shape_cast %0 : vector<1x32x128xf32> to vector<32x128xf32>
    %c0_2 = arith.constant 0 : index
    %c0_3 = arith.constant 0 : index
    %2 = vector.load %arg3[%c0_2, %c0_3] : memref<1x128xf32, #tpu.memory_space<vmem>>, vector<1x128xf32>
    %3 = vector.broadcast %2 : vector<1x128xf32> to vector<32x128xf32>
    %4 = arith.mulf %1, %3 : vector<32x128xf32>
    %c0_4 = arith.constant 0 : index
    %c0_5 = arith.constant 0 : index
    %5 = vector.load %arg4[%c0_4, %c0_5] : memref<1x128xf32, #tpu.memory_space<vmem>>, vector<1x128xf32>
    %6 = vector.broadcast %5 : vector<1x128xf32> to vector<32x128xf32>
    %7 = arith.addf %4, %6 : vector<32x128xf32>
    %cst = arith.constant 0.000000e+00 : f32
    %8 = vector.broadcast %cst : f32 to vector<32x128xf32>
    %9 = arith.maximumf %7, %8 : vector<32x128xf32>
    %c0_6 = arith.constant 0 : index
    %c0_7 = arith.constant 0 : index
    %c0_8 = arith.constant 0 : index
    %10 = vector.load %arg5[%c0_6, %c0_7, %c0_8] : memref<1x32x128xf32, #tpu.memory_space<vmem>>, vector<1x32x128xf32>
    %11 = vector.shape_cast %10 : vector<1x32x128xf32> to vector<32x128xf32>
    %12 = vector.shape_cast %9 : vector<32x128xf32> to vector<1x32x128xf32>
    tpu.vector_store %arg5[%c0_6, %c0_7, %c0_8], %12 {strides = array<i32>} : memref<1x32x128xf32, #tpu.memory_space<vmem>>, vector<1x32x128xf32>,
    return
  }
  func.func @transform_0(%arg0: i32, %arg1: i32) -> (i32, i32, i32) {
    %c0_i32 = arith.constant 0 : i32
    %c0_i32_0 = arith.constant 0 : i32
    return %arg0, %arg1, %c0_i32 : i32, i32, i32
  }
  func.func @transform_1(%arg0: i32, %arg1: i32) -> (i32, i32) {
    %c0_i32 = arith.constant 0 : i32
    %c0_i32_0 = arith.constant 0 : i32
    %c0_i32_1 = arith.constant 0 : i32
    return %c0_i32, %c0_i32_0 : i32, i32
  }
  func.func @transform_2(%arg0: i32, %arg1: i32) -> (i32, i32) {
    %c0_i32 = arith.constant 0 : i32
    %c0_i32_0 = arith.constant 0 : i32
    %c0_i32_1 = arith.constant 0 : i32
    return %c0_i32, %c0_i32_0 : i32, i32
  }
  func.func @transform_3(%arg0: i32, %arg1: i32) -> (i32, i32, i32) {
    %c0_i32 = arith.constant 0 : i32
    %c0_i32_0 = arith.constant 0 : i32
    return %arg0, %arg1, %c0_i32 : i32, i32, i32
  }
}

module attributes {stable_mosaic.version = 11 : i64} {
  func.func @_conv_kd_kernel(%arg0: i32, %arg1: i32, %arg2: i32, %arg3: memref<1x1x10x10x8xf32, #tpu.memory_space<vmem>>, %arg4: memref<1x3x3x8x8xf32, #tpu.memory_space<vmem>>, %arg5: memref<1x8xf32, #tpu.memory_space<vmem>>, %arg6: memref<1x1x64x8xf32, #tpu.memory_space<vmem>>, %arg7: memref<64x8xf32, #tpu.memory_space<vmem>>) attributes {dimension_semantics = [#tpu.dimension_semantics<parallel>, #tpu.dimension_semantics<parallel>, #tpu.dimension_semantics<arbitrary>], iteration_bounds = array<i64: 2, 4, 4>, scalar_prefetch = 0 : i64, scratch_operands = 1 : i64, tpu.core_type = #tpu.core_type<tc>, window_params = [{transform_indices = @transform_0, window_bounds = array<i64: 1, 1, 10, 10, 8>}, {transform_indices = @transform_1, window_bounds = array<i64: 1, 3, 3, 8, 8>}, {pipeline_mode = #tpu.pipeline_mode<synchronous>, transform_indices = @transform_2, window_bounds = array<i64: 1, 8>}, {transform_indices = @transform_3, window_bounds = array<i64: 1, 1, 64, 8>}]} {
    %c0_i32 = arith.constant 0 : i32
    %0 = arith.cmpi eq, %arg2, %c0_i32 : i32
    %1 = arith.extui %0 : i1 to i32
    %c0_i32_0 = arith.constant 0 : i32
    %2 = arith.cmpi ne, %1, %c0_i32_0 : i32
    scf.if %2 {
      %cst_61 = arith.constant 0.000000e+00 : f32
      %64 = vector.broadcast %cst_61 : f32 to vector<64x8xf32>
      %c0_62 = arith.constant 0 : index
      %c0_63 = arith.constant 0 : index
      %65 = vector.load %arg7[%c0_62, %c0_63] : memref<64x8xf32, #tpu.memory_space<vmem>>, vector<64x8xf32>
      tpu.vector_store %arg7[%c0_62, %c0_63], %64 {strides = array<i32>} : memref<64x8xf32, #tpu.memory_space<vmem>>, vector<64x8xf32>,
    } else {
    }
    %c0 = arith.constant 0 : index
    %c0_1 = arith.constant 0 : index
    %c0_2 = arith.constant 0 : index
    %c0_3 = arith.constant 0 : index
    %c0_4 = arith.constant 0 : index
    %3 = vector.load %arg3[%c0, %c0_1, %c0_2, %c0_3, %c0_4] : memref<1x1x10x10x8xf32, #tpu.memory_space<vmem>>, vector<1x1x10x10x8xf32>
    %4 = vector.shape_cast %3 : vector<1x1x10x10x8xf32> to vector<10x10x8xf32>
    %c0_5 = arith.constant 0 : index
    %c0_6 = arith.constant 0 : index
    %5 = vector.load %arg7[%c0_5, %c0_6] : memref<64x8xf32, #tpu.memory_space<vmem>>, vector<64x8xf32>
    %6 = vector.extract_strided_slice %4 {offsets = [0, 0, 0], sizes = [8, 8, 8], strides = [1, 1, 1]} : vector<10x10x8xf32> to vector<8x8x8xf32>
    %7 = vector.shape_cast %6 : vector<8x8x8xf32> to vector<64x8xf32>
    %c0_7 = arith.constant 0 : index
    %c0_8 = arith.constant 0 : index
    %c0_9 = arith.constant 0 : index
    %c0_10 = arith.constant 0 : index
    %c0_11 = arith.constant 0 : index
    %8 = vector.load %arg4[%c0_7, %c0_8, %c0_9, %c0_10, %c0_11] : memref<1x3x3x8x8xf32, #tpu.memory_space<vmem>>, vector<1x1x1x8x8xf32>
    %9 = vector.shape_cast %8 : vector<1x1x1x8x8xf32> to vector<8x8xf32>
    %cst = arith.constant dense<0.000000e+00> : vector<64x8xf32>
    %10 = tpu.matmul %7, %9, %cst {dimension_numbers = #tpu.dot_dimension_numbers<[1], [0], [0], [1], [0, 0, 1, 1], [], []>} : vector<64x8xf32>, vector<8x8xf32>, vector<64x8xf32> -> vector<64x8xf32>
    %11 = arith.addf %5, %10 : vector<64x8xf32>
    %12 = vector.extract_strided_slice %4 {offsets = [0, 1, 0], sizes = [8, 8, 8], strides = [1, 1, 1]} : vector<10x10x8xf32> to vector<8x8x8xf32>
    %13 = vector.shape_cast %12 : vector<8x8x8xf32> to vector<64x8xf32>
    %c0_12 = arith.constant 0 : index
    %c0_13 = arith.constant 0 : index
    %c1 = arith.constant 1 : index
    %c0_14 = arith.constant 0 : index
    %c0_15 = arith.constant 0 : index
    %14 = vector.load %arg4[%c0_12, %c0_13, %c1, %c0_14, %c0_15] : memref<1x3x3x8x8xf32, #tpu.memory_space<vmem>>, vector<1x1x1x8x8xf32>
    %15 = vector.shape_cast %14 : vector<1x1x1x8x8xf32> to vector<8x8xf32>
    %cst_16 = arith.constant dense<0.000000e+00> : vector<64x8xf32>
    %16 = tpu.matmul %13, %15, %cst_16 {dimension_numbers = #tpu.dot_dimension_numbers<[1], [0], [0], [1], [0, 0, 1, 1], [], []>} : vector<64x8xf32>, vector<8x8xf32>, vector<64x8xf32> -> vector<64x8xf32>
    %17 = arith.addf %11, %16 : vector<64x8xf32>
    %18 = vector.extract_strided_slice %4 {offsets = [0, 2, 0], sizes = [8, 8, 8], strides = [1, 1, 1]} : vector<10x10x8xf32> to vector<8x8x8xf32>
    %19 = vector.shape_cast %18 : vector<8x8x8xf32> to vector<64x8xf32>
    %c0_17 = arith.constant 0 : index
    %c0_18 = arith.constant 0 : index
    %c2 = arith.constant 2 : index
    %c0_19 = arith.constant 0 : index
    %c0_20 = arith.constant 0 : index
    %20 = vector.load %arg4[%c0_17, %c0_18, %c2, %c0_19, %c0_20] : memref<1x3x3x8x8xf32, #tpu.memory_space<vmem>>, vector<1x1x1x8x8xf32>
    %21 = vector.shape_cast %20 : vector<1x1x1x8x8xf32> to vector<8x8xf32>
    %cst_21 = arith.constant dense<0.000000e+00> : vector<64x8xf32>
    %22 = tpu.matmul %19, %21, %cst_21 {dimension_numbers = #tpu.dot_dimension_numbers<[1], [0], [0], [1], [0, 0, 1, 1], [], []>} : vector<64x8xf32>, vector<8x8xf32>, vector<64x8xf32> -> vector<64x8xf32>
    %23 = arith.addf %17, %22 : vector<64x8xf32>
    %24 = vector.extract_strided_slice %4 {offsets = [1, 0, 0], sizes = [8, 8, 8], strides = [1, 1, 1]} : vector<10x10x8xf32> to vector<8x8x8xf32>
    %25 = vector.shape_cast %24 : vector<8x8x8xf32> to vector<64x8xf32>
    %c0_22 = arith.constant 0 : index
    %c1_23 = arith.constant 1 : index
    %c0_24 = arith.constant 0 : index
    %c0_25 = arith.constant 0 : index
    %c0_26 = arith.constant 0 : index
    %26 = vector.load %arg4[%c0_22, %c1_23, %c0_24, %c0_25, %c0_26] : memref<1x3x3x8x8xf32, #tpu.memory_space<vmem>>, vector<1x1x1x8x8xf32>
    %27 = vector.shape_cast %26 : vector<1x1x1x8x8xf32> to vector<8x8xf32>
    %cst_27 = arith.constant dense<0.000000e+00> : vector<64x8xf32>
    %28 = tpu.matmul %25, %27, %cst_27 {dimension_numbers = #tpu.dot_dimension_numbers<[1], [0], [0], [1], [0, 0, 1, 1], [], []>} : vector<64x8xf32>, vector<8x8xf32>, vector<64x8xf32> -> vector<64x8xf32>
    %29 = arith.addf %23, %28 : vector<64x8xf32>
    %30 = vector.extract_strided_slice %4 {offsets = [1, 1, 0], sizes = [8, 8, 8], strides = [1, 1, 1]} : vector<10x10x8xf32> to vector<8x8x8xf32>
    %31 = vector.shape_cast %30 : vector<8x8x8xf32> to vector<64x8xf32>
    %c0_28 = arith.constant 0 : index
    %c1_29 = arith.constant 1 : index
    %c1_30 = arith.constant 1 : index
    %c0_31 = arith.constant 0 : index
    %c0_32 = arith.constant 0 : index
    %32 = vector.load %arg4[%c0_28, %c1_29, %c1_30, %c0_31, %c0_32] : memref<1x3x3x8x8xf32, #tpu.memory_space<vmem>>, vector<1x1x1x8x8xf32>
    %33 = vector.shape_cast %32 : vector<1x1x1x8x8xf32> to vector<8x8xf32>
    %cst_33 = arith.constant dense<0.000000e+00> : vector<64x8xf32>
    %34 = tpu.matmul %31, %33, %cst_33 {dimension_numbers = #tpu.dot_dimension_numbers<[1], [0], [0], [1], [0, 0, 1, 1], [], []>} : vector<64x8xf32>, vector<8x8xf32>, vector<64x8xf32> -> vector<64x8xf32>
    %35 = arith.addf %29, %34 : vector<64x8xf32>
    %36 = vector.extract_strided_slice %4 {offsets = [1, 2, 0], sizes = [8, 8, 8], strides = [1, 1, 1]} : vector<10x10x8xf32> to vector<8x8x8xf32>
    %37 = vector.shape_cast %36 : vector<8x8x8xf32> to vector<64x8xf32>
    %c0_34 = arith.constant 0 : index
    %c1_35 = arith.constant 1 : index
    %c2_36 = arith.constant 2 : index
    %c0_37 = arith.constant 0 : index
    %c0_38 = arith.constant 0 : index
    %38 = vector.load %arg4[%c0_34, %c1_35, %c2_36, %c0_37, %c0_38] : memref<1x3x3x8x8xf32, #tpu.memory_space<vmem>>, vector<1x1x1x8x8xf32>
    %39 = vector.shape_cast %38 : vector<1x1x1x8x8xf32> to vector<8x8xf32>
    %cst_39 = arith.constant dense<0.000000e+00> : vector<64x8xf32>
    %40 = tpu.matmul %37, %39, %cst_39 {dimension_numbers = #tpu.dot_dimension_numbers<[1], [0], [0], [1], [0, 0, 1, 1], [], []>} : vector<64x8xf32>, vector<8x8xf32>, vector<64x8xf32> -> vector<64x8xf32>
    %41 = arith.addf %35, %40 : vector<64x8xf32>
    %42 = vector.extract_strided_slice %4 {offsets = [2, 0, 0], sizes = [8, 8, 8], strides = [1, 1, 1]} : vector<10x10x8xf32> to vector<8x8x8xf32>
    %43 = vector.shape_cast %42 : vector<8x8x8xf32> to vector<64x8xf32>
    %c0_40 = arith.constant 0 : index
    %c2_41 = arith.constant 2 : index
    %c0_42 = arith.constant 0 : index
    %c0_43 = arith.constant 0 : index
    %c0_44 = arith.constant 0 : index
    %44 = vector.load %arg4[%c0_40, %c2_41, %c0_42, %c0_43, %c0_44] : memref<1x3x3x8x8xf32, #tpu.memory_space<vmem>>, vector<1x1x1x8x8xf32>
    %45 = vector.shape_cast %44 : vector<1x1x1x8x8xf32> to vector<8x8xf32>
    %cst_45 = arith.constant dense<0.000000e+00> : vector<64x8xf32>
    %46 = tpu.matmul %43, %45, %cst_45 {dimension_numbers = #tpu.dot_dimension_numbers<[1], [0], [0], [1], [0, 0, 1, 1], [], []>} : vector<64x8xf32>, vector<8x8xf32>, vector<64x8xf32> -> vector<64x8xf32>
    %47 = arith.addf %41, %46 : vector<64x8xf32>
    %48 = vector.extract_strided_slice %4 {offsets = [2, 1, 0], sizes = [8, 8, 8], strides = [1, 1, 1]} : vector<10x10x8xf32> to vector<8x8x8xf32>
    %49 = vector.shape_cast %48 : vector<8x8x8xf32> to vector<64x8xf32>
    %c0_46 = arith.constant 0 : index
    %c2_47 = arith.constant 2 : index
    %c1_48 = arith.constant 1 : index
    %c0_49 = arith.constant 0 : index
    %c0_50 = arith.constant 0 : index
    %50 = vector.load %arg4[%c0_46, %c2_47, %c1_48, %c0_49, %c0_50] : memref<1x3x3x8x8xf32, #tpu.memory_space<vmem>>, vector<1x1x1x8x8xf32>
    %51 = vector.shape_cast %50 : vector<1x1x1x8x8xf32> to vector<8x8xf32>
    %cst_51 = arith.constant dense<0.000000e+00> : vector<64x8xf32>
    %52 = tpu.matmul %49, %51, %cst_51 {dimension_numbers = #tpu.dot_dimension_numbers<[1], [0], [0], [1], [0, 0, 1, 1], [], []>} : vector<64x8xf32>, vector<8x8xf32>, vector<64x8xf32> -> vector<64x8xf32>
    %53 = arith.addf %47, %52 : vector<64x8xf32>
    %54 = vector.extract_strided_slice %4 {offsets = [2, 2, 0], sizes = [8, 8, 8], strides = [1, 1, 1]} : vector<10x10x8xf32> to vector<8x8x8xf32>
    %55 = vector.shape_cast %54 : vector<8x8x8xf32> to vector<64x8xf32>
    %c0_52 = arith.constant 0 : index
    %c2_53 = arith.constant 2 : index
    %c2_54 = arith.constant 2 : index
    %c0_55 = arith.constant 0 : index
    %c0_56 = arith.constant 0 : index
    %56 = vector.load %arg4[%c0_52, %c2_53, %c2_54, %c0_55, %c0_56] : memref<1x3x3x8x8xf32, #tpu.memory_space<vmem>>, vector<1x1x1x8x8xf32>
    %57 = vector.shape_cast %56 : vector<1x1x1x8x8xf32> to vector<8x8xf32>
    %cst_57 = arith.constant dense<0.000000e+00> : vector<64x8xf32>
    %58 = tpu.matmul %55, %57, %cst_57 {dimension_numbers = #tpu.dot_dimension_numbers<[1], [0], [0], [1], [0, 0, 1, 1], [], []>} : vector<64x8xf32>, vector<8x8xf32>, vector<64x8xf32> -> vector<64x8xf32>
    %59 = arith.addf %53, %58 : vector<64x8xf32>
    %c0_58 = arith.constant 0 : index
    %c0_59 = arith.constant 0 : index
    %60 = vector.load %arg7[%c0_58, %c0_59] : memref<64x8xf32, #tpu.memory_space<vmem>>, vector<64x8xf32>
    tpu.vector_store %arg7[%c0_58, %c0_59], %59 {strides = array<i32>} : memref<64x8xf32, #tpu.memory_space<vmem>>, vector<64x8xf32>,
    %c3_i32 = arith.constant 3 : i32
    %61 = arith.cmpi eq, %arg2, %c3_i32 : i32
    %62 = arith.extui %61 : i1 to i32
    %c0_i32_60 = arith.constant 0 : i32
    %63 = arith.cmpi ne, %62, %c0_i32_60 : i32
    scf.if %63 {
      %c0_61 = arith.constant 0 : index
      %c0_62 = arith.constant 0 : index
      %64 = vector.load %arg7[%c0_61, %c0_62] : memref<64x8xf32, #tpu.memory_space<vmem>>, vector<64x8xf32>
      %c0_63 = arith.constant 0 : index
      %c0_64 = arith.constant 0 : index
      %65 = vector.load %arg5[%c0_63, %c0_64] : memref<1x8xf32, #tpu.memory_space<vmem>>, vector<1x8xf32>
      %66 = vector.broadcast %65 : vector<1x8xf32> to vector<64x8xf32>
      %67 = arith.addf %64, %66 : vector<64x8xf32>
      %c0_65 = arith.constant 0 : index
      %c0_66 = arith.constant 0 : index
      %c0_67 = arith.constant 0 : index
      %c0_68 = arith.constant 0 : index
      %68 = vector.load %arg6[%c0_65, %c0_66, %c0_67, %c0_68] : memref<1x1x64x8xf32, #tpu.memory_space<vmem>>, vector<1x1x64x8xf32>
      %69 = vector.shape_cast %68 : vector<1x1x64x8xf32> to vector<64x8xf32>
      %70 = vector.shape_cast %67 : vector<64x8xf32> to vector<1x1x64x8xf32>
      tpu.vector_store %arg6[%c0_65, %c0_66, %c0_67, %c0_68], %70 {strides = array<i32>} : memref<1x1x64x8xf32, #tpu.memory_space<vmem>>, vector<1x1x64x8xf32>,
    } else {
    }
    return
  }
  func.func @transform_0(%arg0: i32, %arg1: i32, %arg2: i32) -> (i32, i32, i32, i32, i32) {
    %c2_i32 = arith.constant 2 : i32
    %0 = arith.muli %arg1, %c2_i32 : i32
    %1 = arith.addi %0, %arg2 : i32
    %c0_i32 = arith.constant 0 : i32
    %c0_i32_0 = arith.constant 0 : i32
    %c0_i32_1 = arith.constant 0 : i32
    %c0_i32_2 = arith.constant 0 : i32
    return %arg0, %1, %c0_i32, %c0_i32_0, %c0_i32_1 : i32, i32, i32, i32, i32
  }
  func.func @transform_1(%arg0: i32, %arg1: i32, %arg2: i32) -> (i32, i32, i32, i32, i32) {
    %c0_i32 = arith.constant 0 : i32
    %c0_i32_0 = arith.constant 0 : i32
    %c0_i32_1 = arith.constant 0 : i32
    %c0_i32_2 = arith.constant 0 : i32
    %c0_i32_3 = arith.constant 0 : i32
    return %arg2, %c0_i32, %c0_i32_0, %c0_i32_1, %c0_i32_2 : i32, i32, i32, i32, i32
  }
  func.func @transform_2(%arg0: i32, %arg1: i32, %arg2: i32) -> (i32, i32) {
    %c0_i32 = arith.constant 0 : i32
    %c0_i32_0 = arith.constant 0 : i32
    %c0_i32_1 = arith.constant 0 : i32
    return %c0_i32, %c0_i32_0 : i32, i32
  }
  func.func @transform_3(%arg0: i32, %arg1: i32, %arg2: i32) -> (i32, i32, i32, i32) {
    %c0_i32 = arith.constant 0 : i32
    %c0_i32_0 = arith.constant 0 : i32
    %c0_i32_1 = arith.constant 0 : i32
    return %arg0, %arg1, %c0_i32, %c0_i32_0 : i32, i32, i32, i32
  }
}

</mosaic_0001>

<llo_original>
// kernel: rrconv_block_forward.19
$region0: #{rrconv_block_forward.19}
  #allocation0 [shape = 'u32[]', space=smem, size = 0x4, offset = 0x4, fixed_abs, tag = 'smem constant byte address 0x4 - core index']
  #allocation1 [shape = 'u32[72,128]{1,0:T(1,128)}', space=vmem, size = 0x9000, scoped, tag = 'internal scratch']
  %s0 = inlined_call_operand.hbm [shape: f32[2,32], index: 0, kind: input, shape index: {}]
  %s1 = inlined_call_operand.vmem [shape: f32[32,8], index: 1, kind: input, shape index: {}]
  %s2 = inlined_call_operand.hbm [shape: f32[1,8], index: 2, kind: input, shape index: {}]
  %s3 = inlined_call_operand.vmem [shape: f32[2,8], index: 3, kind: output, shape index: {}]
  %s4 = sld [smem:[#allocation0]]
  $region30: #{rrconv_block_forward.19} parent=0
    _
  %s6 = ssub.s32 1, %s4
  %s7 = scalar_select 0, %s6, %s4
  $region1: #{rrconv_block_forward.19} parent=0
    #allocation2 [shape = 'u8[1024]{0}', space=vmem, size = 0x400, scoped, tag = 'input window, operand 0, single buffered']
    #allocation3 [shape = 's32[1]{0}', space=sflag, size = 0x4, scoped, tag = 'scoped memory for rrconv_block_forward.19']
    #allocation4 [shape = 'u8[512]{0}', space=vmem, size = 0x400, scoped, tag = 'input window, operand 2, single buffered']
    #allocation5 [shape = 's32[1]{0}', space=sflag, size = 0x4, scoped, tag = 'scoped memory for rrconv_block_forward.19']
    %8 = vsyncpa [#allocation3], 0
    %9 = vsyncpa [#allocation5], 0
    // Predicated region
    $region2: #{rrconv_block_forward.19} parent=1 // pred_check
      _
    $region3: #{rrconv_block_forward.19} parent=1 // pred_check_branch
      %11 = sbr.rel (0) target = $region5
    $region4: #{rrconv_block_forward.19} parent=1 // pred_region
      %13 = vsyncadd [#allocation3], 0
      %s15 = sshll.u32 %s0, 4
      %s16 = int_to_ptr.hbm [resolvable:$true] %s15
      %s17 = sshll.u32 [#allocation2], 4
      %s18 = int_to_ptr.vmem [resolvable:$true] %s17
      %20 = dma.hbm_to_vmem [thread:$0]  %s16, 32, %s18, [#allocation3]
    $region5: #{rrconv_block_forward.19} parent=1 // pred_fallthru
      _
    // Predicated region
    $region6: #{rrconv_block_forward.19} parent=1 // pred_check
      _
    $region7: #{rrconv_block_forward.19} parent=1 // pred_check_branch
      %22 = sbr.rel (0) target = $region9
    $region8: #{rrconv_block_forward.19} parent=1 // pred_region
      _
    $region9: #{rrconv_block_forward.19} parent=1 // pred_fallthru
      _
    // Predicated region
    $region10: #{rrconv_block_forward.19} parent=1 // pred_check
      _
    $region11: #{rrconv_block_forward.19} parent=1 // pred_check_branch
      %24 = sbr.rel (0) target = $region13
    $region12: #{rrconv_block_forward.19} parent=1 // pred_region
      %26 = vsyncadd [#allocation5], 0
      %s28 = sshll.u32 %s2, 4
      %s29 = int_to_ptr.hbm [resolvable:$true] %s28
      %s30 = sshll.u32 [#allocation4], 4
      %s31 = int_to_ptr.vmem [resolvable:$true] %s30
      %33 = dma.hbm_to_vmem [thread:$0]  %s29, 16, %s31, [#allocation5]
    $region13: #{rrconv_block_forward.19} parent=1 // pred_fallthru
      _
    // Predicated region
    $region14: #{rrconv_block_forward.19} parent=1 // pred_check
      _
    $region15: #{rrconv_block_forward.19} parent=1 // pred_check_branch
      %35 = sbr.rel (0) target = $region17
    $region16: #{rrconv_block_forward.19} parent=1 // pred_region
      %37 = dma.done [#allocation3], 32
    $region17: #{rrconv_block_forward.19} parent=1 // pred_fallthru
      _
    // Predicated region
    $region18: #{rrconv_block_forward.19} parent=1 // pred_check
      _
    $region19: #{rrconv_block_forward.19} parent=1 // pred_check_branch
      %39 = sbr.rel (0) target = $region21
    $region20: #{rrconv_block_forward.19} parent=1 // pred_region
      %41 = dma.done [#allocation5], 16
    $region21: #{rrconv_block_forward.19} parent=1 // pred_fallthru
      _
    %v42 = vld [vmem:[#allocation2] sm:$0x3]
    %v43 = vld [vmem:[%s1] sm:$0xff]
    %v44 = vld [vmem:[%s1 + $0x8] sm:$0xff]
    %v45 = vld [vmem:[%s1 + $0x10] sm:$0xff]
    %v46 = vld [vmem:[%s1 + $0x18] sm:$0xff]
    %v47 = vld [vmem:[#allocation4] sm:$0x1]
    %v49 = vperm.slane %v47, 0
    %vm51 = vcmask 261120
    %v53 = vsel %vm51, %v42, 0
    %55 = vmatpush.msra.mxu0 0.0
    %56 = vmatpush.msra.mxu0 0.0
    %57 = vmatpush.msra.mxu0 0.0
    %58 = vmatpush.msra.mxu0 0.0
    %59 = vmatpush.msra.mxu0 0.0
    %60 = vmatpush.msra.mxu0 0.0
    %61 = vmatpush.msra.mxu0 0.0
    %62 = vmatpush.msra.mxu0 0.0
    %63 = vmatpush.msra.mxu0 0.0
    %64 = vmatpush.msra.mxu0 0.0
    %65 = vmatpush.msra.mxu0 0.0
    %66 = vmatpush.msra.mxu0 0.0
    %67 = vmatpush.msra.mxu0 %v46
    %68 = vmatpush.msra.mxu0 %v45
    %69 = vmatpush.msra.mxu0 %v44
    %70 = vmatpush.msra.mxu0 %v43
    %71 = vmatmul.f32.gmra.mxu0 %v53
    %v72 = vpop.f32.mrf.mxu0
    %v73 = vadd.f32 %v49, %v72
    %74 = vdwg.mxu0
    %v75 = vmax.f32 %v73, 0.0
    %vm76 = vcmask 58368
    %77 = vst.msk [vmem:[%s3] sm:$0x3] %vm76, %v75
    // Predicated region
    $region22: #{rrconv_block_forward.19} parent=1 // pred_check
      _
    $region23: #{rrconv_block_forward.19} parent=1 // pred_check_branch
      %79 = sbr.rel (0) target = $region25
    $region24: #{rrconv_block_forward.19} parent=1 // pred_region
      _
    $region25: #{rrconv_block_forward.19} parent=1 // pred_fallthru
      _
    // Predicated region
    $region26: #{rrconv_block_forward.19} parent=1 // pred_check
      _
    $region27: #{rrconv_block_forward.19} parent=1 // pred_check_branch
      %81 = sbr.rel (0) target = $region29
    $region28: #{rrconv_block_forward.19} parent=1 // pred_region
      _
    $region29: #{rrconv_block_forward.19} parent=1 // pred_fallthru
      _
    %82 = vsyncpa [#allocation3], 1
    %83 = vsyncpa [#allocation5], 1

// kernel: rrconv_block_forward.18
$region0: #{rrconv_block_forward.18}
  #allocation0 [shape = 'u32[]', space=smem, size = 0x4, offset = 0x4, fixed_abs, tag = 'smem constant byte address 0x4 - core index']
  #allocation1 [shape = 'u32[72,128]{1,0:T(1,128)}', space=vmem, size = 0x9000, scoped, tag = 'internal scratch']
  #allocation2 [shape = 'f32[64,8]{1,0:T(8,128)}', space=vmem, size = 0x8000, scoped, tag = 'scratch operand']
  %s0 = inlined_call_operand.vmem [shape: f32[2,10,10,10,4], index: 0, kind: input, shape index: {}]
  %s1 = inlined_call_operand.vmem [shape: f32[3,3,3,4,8], index: 1, kind: input, shape index: {}]
  %s2 = inlined_call_operand.vmem [shape: f32[1,8], index: 2, kind: input, shape index: {}]
  %s3 = inlined_call_operand.vmem [shape: f32[2,8,64,8], index: 3, kind: output, shape index: {0}]
  %s4 = inlined_call_operand.vmem [shape: f32[2,8,1,8], index: 4, kind: output, shape index: {1}]
  %s5 = inlined_call_operand.vmem [shape: f32[2,8,1,8], index: 5, kind: output, shape index: {2}]
  %6 = xla_tuple %s3, %s4, %s5
  %s7 = sld [smem:[#allocation0]]
  $region69: #{rrconv_block_forward.18} parent=0
    _
  %s9 = ssub.s32 1, %s7
  %s10 = scalar_select 0, %s9, %s7
  loop: start=0, step=1, limit=50
  $region2: #{rrconv_block_forward.18} parent=0 // loop_pre_header
    _
  $region3: #{rrconv_block_forward.18} parent=0 // loop_header
    %s12 = sphi 0, %s16
    %p13 = scmp.ge.s32.totalorder %s12, 50
    %s19 = sphi 0, %s38
    %s20 = sphi 0, %s34
    %s21 = sphi 0, %s30
    %s22 = sphi 0, %s19
    %s23 = sphi 0, %s20
    %s24 = sphi 0, %s21
    %s25 = sphi 0, %s22
    %s26 = sphi 0, %s23
    %s27 = sphi 0, %s24
    %s45 = sphi 0, %s47
    %s48 = sphi 0, %s45
    %s49 = sphi 0, %s48
    %s65 = sphi 0, %s49
    %s71 = sphi 0, %s73
    %s74 = sphi 0, %s71
    %s75 = sphi 0, %s74
    %s91 = sphi 0, %s75
    %s95 = sphi 0, %s95
    %s97 = sphi 0, %s95
    %s98 = sphi 0, %s97
    %s112 = sphi 0, %s98
    %s120 = sphi 0, %s122
    %s123 = sphi 0, %s120
    %s124 = sphi 0, %s123
    %s140 = sphi 0, %s124
    %s148 = sphi 0, %s150
    %s151 = sphi 0, %s148
    %s152 = sphi 0, %s151
    %s168 = sphi 0, %s152
    %s176 = sphi 0, %s178
    %s179 = sphi 0, %s176
    %s180 = sphi 0, %s179
    %s196 = sphi 0, %s180
  $region4: #{rrconv_block_forward.18} parent=0 // loop_header_branch
    %15 = sbr.rel (%p13) target = $region8
  $region5: #{rrconv_block_forward.18} parent=0 // loop_body
    %s17 = ssub.s32 %s12, 1
    %s18 = ssub.s32 %s12, 2
    %s28 = sadd.s32 1, %s21
    %p29 = scmp.ge.s32.totalorder %s28, 3
    %s30 = scalar_select %p29, 0, %s28
    %s31 = sadd.s32 1, %s20
    %s32 = scalar_select %p29, %s31, %s20
    %p33 = scmp.ge.s32.totalorder %s32, 8
    %s34 = scalar_select %p33, 0, %s32
    %s35 = sadd.s32 1, %s19
    %s36 = scalar_select %p33, %s35, %s19
    %p37 = scmp.ge.s32.totalorder %s36, 2
    %s38 = scalar_select %p37, 0, %s36
    %s39 = sadd.s32 %s20, %s21
    %s40 = sadd.s32 %s34, %s30
    %s41 = ssub.s32 %s19, %s38
    %s42 = ssub.s32 %s39, %s40
    %s43 = sor.u32 %s41, %s42
    %p44 = scmp.eq.s32.totalorder %s43, 0
    %s46 = sadd.s32 %s45, 1
    %s47 = scalar_select %p44, %s45, %s46
    %p50 = pneg %p44
    %p51 = scmp.eq.s32.totalorder %s12, 47
    %p52 = por %p50, %p51
    %p53 = scmp.ne.s32.totalorder %s45, %s48
    %p54 = scmp.eq.s32.totalorder %s12, 0
    %p55 = por %p53, %p54
    %p56 = scmp.ne.s32.totalorder %s45, %s48
    %p57 = scmp.eq.s32.totalorder %s17, 47
    %p58 = por %p56, %p57
    %p59 = scmp.ne.s32.totalorder %s48, %s49
    %p60 = scmp.eq.s32.totalorder %s17, 0
    %p61 = por %p59, %p60
    %p62 = scmp.ne.s32.totalorder %s48, %s49
    %p63 = scmp.eq.s32.totalorder %s18, 47
    %p64 = por %p62, %p63
    %p66 = scmp.ne.s32.totalorder %s49, %s65
    %p67 = scmp.eq.s32.totalorder %s18, 0
    %p68 = por %p66, %p67
    %s69 = ssub.s32 %s21, %s30
    %p70 = scmp.eq.s32.totalorder %s69, 0
    %s72 = sadd.s32 %s71, 1
    %s73 = scalar_select %p70, %s71, %s72
    %p76 = pneg %p70
    %p77 = scmp.eq.s32.totalorder %s12, 47
    %p78 = por %p76, %p77
    %p79 = scmp.ne.s32.totalorder %s71, %s74
    %p80 = scmp.eq.s32.totalorder %s12, 0
    %p81 = por %p79, %p80
    %p82 = scmp.ne.s32.totalorder %s71, %s74
    %p83 = scmp.eq.s32.totalorder %s17, 47
    %p84 = por %p82, %p83
    %p85 = scmp.ne.s32.totalorder %s74, %s75
    %p86 = scmp.eq.s32.totalorder %s17, 0
    %p87 = por %p85, %p86
    %p88 = scmp.ne.s32.totalorder %s74, %s75
    %p89 = scmp.eq.s32.totalorder %s18, 47
    %p90 = por %p88, %p89
    %p92 = scmp.ne.s32.totalorder %s75, %s91
    %p93 = scmp.eq.s32.totalorder %s18, 0
    %p94 = por %p92, %p93
    %s96 = sadd.s32 %s95, 1
    %p99 = scmp.eq.s32.totalorder %s12, 47
    %p100 = scmp.ne.s32.totalorder %s95, %s97
    %p101 = scmp.eq.s32.totalorder %s12, 0
    %p102 = por %p100, %p101
    %p103 = scmp.ne.s32.totalorder %s95, %s97
    %p104 = scmp.eq.s32.totalorder %s17, 47
    %p105 = por %p103, %p104
    %p106 = scmp.ne.s32.totalorder %s97, %s98
    %p107 = scmp.eq.s32.totalorder %s17, 0
    %p108 = por %p106, %p107
    %p109 = scmp.ne.s32.totalorder %s97, %s98
    %p110 = scmp.eq.s32.totalorder %s18, 47
    %p111 = por %p109, %p110
    %p113 = scmp.ne.s32.totalorder %s98, %s112
    %p114 = scmp.eq.s32.totalorder %s18, 0
    %p115 = por %p113, %p114
    %s116 = ssub.s32 %s19, %s38
    %s117 = ssub.s32 %s20, %s34
    %s118 = sor.u32 %s116, %s117
    %p119 = scmp.eq.s32.totalorder %s118, 0
    %s121 = sadd.s32 %s120, 1
    %s122 = scalar_select %p119, %s120, %s121
    %p125 = pneg %p119
    %p126 = scmp.eq.s32.totalorder %s12, 47
    %p127 = por %p125, %p126
    %p128 = scmp.ne.s32.totalorder %s120, %s123
    %p129 = scmp.eq.s32.totalorder %s12, 0
    %p130 = por %p128, %p129
    %p131 = scmp.ne.s32.totalorder %s120, %s123
    %p132 = scmp.eq.s32.totalorder %s17, 47
    %p133 = por %p131, %p132
    %p134 = scmp.ne.s32.totalorder %s123, %s124
    %p135 = scmp.eq.s32.totalorder %s17, 0
    %p136 = por %p134, %p135
    %p137 = scmp.ne.s32.totalorder %s123, %s124
    %p138 = scmp.eq.s32.totalorder %s18, 47
    %p139 = por %p137, %p138
    %p141 = scmp.ne.s32.totalorder %s124, %s140
    %p142 = scmp.eq.s32.totalorder %s18, 0
    %p143 = por %p141, %p142
    %s144 = ssub.s32 %s19, %s38
    %s145 = ssub.s32 %s20, %s34
    %s146 = sor.u32 %s144, %s145
    %p147 = scmp.eq.s32.totalorder %s146, 0
    %s149 = sadd.s32 %s148, 1
    %s150 = scalar_select %p147, %s148, %s149
    %p153 = pneg %p147
    %p154 = scmp.eq.s32.totalorder %s12, 47
    %p155 = por %p153, %p154
    %p156 = scmp.ne.s32.totalorder %s148, %s151
    %p157 = scmp.eq.s32.totalorder %s12, 0
    %p158 = por %p156, %p157
    %p159 = scmp.ne.s32.totalorder %s148, %s151
    %p160 = scmp.eq.s32.totalorder %s17, 47
    %p161 = por %p159, %p160
    %p162 = scmp.ne.s32.totalorder %s151, %s152
    %p163 = scmp.eq.s32.totalorder %s17, 0
    %p164 = por %p162, %p163
    %p165 = scmp.ne.s32.totalorder %s151, %s152
    %p166 = scmp.eq.s32.totalorder %s18, 47
    %p167 = por %p165, %p166
    %p169 = scmp.ne.s32.totalorder %s152, %s168
    %p170 = scmp.eq.s32.totalorder %s18, 0
    %p171 = por %p169, %p170
    %s172 = ssub.s32 %s19, %s38
    %s173 = ssub.s32 %s20, %s34
    %s174 = sor.u32 %s172, %s173
    %p175 = scmp.eq.s32.totalorder %s174, 0
    %s177 = sadd.s32 %s176, 1
    %s178 = scalar_select %p175, %s176, %s177
    %p181 = pneg %p175
    %p182 = scmp.eq.s32.totalorder %s12, 47
    %p183 = por %p181, %p182
    %p184 = scmp.ne.s32.totalorder %s176, %s179
    %p185 = scmp.eq.s32.totalorder %s12, 0
    %p186 = por %p184, %p185
    %p187 = scmp.ne.s32.totalorder %s176, %s179
    %p188 = scmp.eq.s32.totalorder %s17, 47
    %p189 = por %p187, %p188
    %p190 = scmp.ne.s32.totalorder %s179, %s180
    %p191 = scmp.eq.s32.totalorder %s17, 0
    %p192 = por %p190, %p191
    %p193 = scmp.ne.s32.totalorder %s179, %s180
    %p194 = scmp.eq.s32.totalorder %s18, 47
    %p195 = por %p193, %p194
    %p197 = scmp.ne.s32.totalorder %s180, %s196
    %p198 = scmp.eq.s32.totalorder %s18, 0
    %p199 = por %p197, %p198
    %p200 = scmp.le.s32.totalorder 1, %s12
    %p201 = scmp.lt.s32.totalorder %s12, 49
    %p202 = pnand %p200, %p201
    %p203 = pneg %p202
    // Predicated region
    $region9: #{rrconv_block_forward.18} parent=5 // pred_check
      _
    $region10: #{rrconv_block_forward.18} parent=5 // pred_check_branch
      %205 = sbr.rel (%p202) target = $region12
    $region11: #{rrconv_block_forward.18} parent=5 // pred_region
      %s206 = ssub.s32 %s12, 1
      // Predicated region
      $region13: #{rrconv_block_forward.18} parent=11 // pred_check
        %p207 = pneg %p108
      $region14: #{rrconv_block_forward.18} parent=11 // pred_check_branch
        %209 = sbr.rel (%p207) target = $region16
      $region15: #{rrconv_block_forward.18} parent=11 // pred_region
        _
      $region16: #{rrconv_block_forward.18} parent=11 // pred_fallthru
        _
    $region12: #{rrconv_block_forward.18} parent=5 // pred_fallthru
      _
    %p210 = scmp.lt.s32.totalorder %s12, 48
    // Predicated region
    $region17: #{rrconv_block_forward.18} parent=5 // pred_check
      %p211 = pneg %p210
    $region18: #{rrconv_block_forward.18} parent=5 // pred_check_branch
      %213 = sbr.rel (%p211) target = $region20
    $region19: #{rrconv_block_forward.18} parent=5 // pred_region
      // Predicated region
      $region21: #{rrconv_block_forward.18} parent=19 // pred_check
        %p214 = pneg %p55
      $region22: #{rrconv_block_forward.18} parent=19 // pred_check_branch
        %216 = sbr.rel (%p214) target = $region24
      $region23: #{rrconv_block_forward.18} parent=19 // pred_region
        %s217 = sadd.s32 %s20, %s21
        %p218 = scmp.lt.s32.totalorder %s19, 1
        %s219 = scalar_select %p218, %s19, 1
        %p220 = scmp.lt.s32.totalorder %s217, 9
        %s221 = scalar_select %p220, %s217, 9
        %s222 = smul.addr %s221, 20
        %s223 = smul.addr %s219, 200
        %s224 = sadd.s32 %s222, %s223
        %s225 = smul.addr %s224, 8
        %s226 = scalar_lea.vmem %s0, %s225
        %s227 = sadd.s32 %s20, %s21
      $region24: #{rrconv_block_forward.18} parent=19 // pred_fallthru
        _
      // Predicated region
      $region25: #{rrconv_block_forward.18} parent=19 // pred_check
        %p228 = pneg %p81
      $region26: #{rrconv_block_forward.18} parent=19 // pred_check_branch
        %230 = sbr.rel (%p228) target = $region28
      $region27: #{rrconv_block_forward.18} parent=19 // pred_region
        %p231 = scmp.lt.s32.totalorder %s21, 2
        %s232 = scalar_select %p231, %s21, 2
        %s233 = smul.addr %s232, 9
        %s234 = smul.addr %s233, 4
        %s235 = scalar_lea.vmem %s1, %s234
      $region28: #{rrconv_block_forward.18} parent=19 // pred_fallthru
        _
    $region20: #{rrconv_block_forward.18} parent=5 // pred_fallthru
      _
    %p236 = scmp.le.s32.totalorder 1, %s12
    %p237 = scmp.lt.s32.totalorder %s12, 49
    %p238 = pnand %p236, %p237
    %p239 = pneg %p238
    // Predicated region
    $region29: #{rrconv_block_forward.18} parent=5 // pred_check
      _
    $region30: #{rrconv_block_forward.18} parent=5 // pred_check_branch
      %241 = sbr.rel (%p238) target = $region32
    $region31: #{rrconv_block_forward.18} parent=5 // pred_region
      %s242 = ssub.s32 %s12, 1
      %s243 = sadd.s32 %s23, %s24
      %p244 = scmp.lt.s32.totalorder %s22, 1
      %s245 = scalar_select %p244, %s22, 1
      %p246 = scmp.lt.s32.totalorder %s243, 9
      %s247 = scalar_select %p246, %s243, 9
      %s248 = smul.addr %s247, 20
      %s249 = smul.addr %s245, 200
      %s250 = sadd.s32 %s248, %s249
      %s251 = smul.addr %s250, 8
      %s252 = scalar_lea.vmem %s0, %s251
      %p253 = pneg %p61
      %p254 = pneg %p58
      %p255 = scmp.lt.s32.totalorder %s24, 2
      %s256 = scalar_select %p255, %s24, 2
      %s257 = smul.addr %s256, 9
      %s258 = smul.addr %s257, 4
      %s259 = scalar_lea.vmem %s1, %s258
      %p260 = pneg %p87
      %p261 = pneg %p84
      %p262 = pneg %p108
      %p263 = pneg %p105
      %p264 = pneg %p136
      %p265 = pneg %p133
      %p266 = scmp.lt.s32.totalorder %s22, 1
      %s267 = scalar_select %p266, %s22, 1
      %p268 = scmp.lt.s32.totalorder %s23, 7
      %s269 = scalar_select %p268, %s23, 7
      %s270 = smul.addr %s269, 8
      %s271 = smul.addr %s267, 64
      %s272 = sadd.s32 %s270, %s271
      %s273 = smul.addr %s272, 8
      %s274 = scalar_lea.vmem %s3, %s273
      %p275 = pneg %p164
      %p276 = pneg %p161
      %p277 = scmp.lt.s32.totalorder %s22, 1
      %s278 = scalar_select %p277, %s22, 1
      %p279 = scmp.lt.s32.totalorder %s23, 7
      %s280 = scalar_select %p279, %s23, 7
      %s281 = smul.addr %s278, 8
      %s282 = sadd.s32 %s280, %s281
      %s283 = scalar_lea.vmem %s4, %s282
      %p284 = pneg %p192
      %p285 = pneg %p189
      %p286 = scmp.lt.s32.totalorder %s22, 1
      %s287 = scalar_select %p286, %s22, 1
      %p288 = scmp.lt.s32.totalorder %s23, 7
      %s289 = scalar_select %p288, %s23, 7
      %s290 = smul.addr %s287, 8
      %s291 = sadd.s32 %s289, %s290
      %s292 = scalar_lea.vmem %s5, %s291
      %s293 = sadd.s32 %s23, %s24
      %p294 = scmp.lt.s32.totalorder %s22, 1
      %s295 = scalar_select %p294, %s22, 1
      %p296 = scmp.lt.s32.totalorder %s293, 9
      %s297 = scalar_select %p296, %s293, 9
      %s298 = smul.addr %s297, 20
      %s299 = smul.addr %s295, 200
      %s300 = sadd.s32 %s298, %s299
      %s301 = smul.addr %s300, 8
      %s302 = scalar_lea.vmem %s0, %s301
      %s303 = sadd.s32 %s23, %s24
      %p304 = scmp.lt.s32.totalorder %s24, 2
      %s305 = scalar_select %p304, %s24, 2
      %s306 = smul.addr %s305, 9
      %s307 = smul.addr %s306, 4
      %s308 = scalar_lea.vmem %s1, %s307
      %p309 = scmp.lt.s32.totalorder %s22, 1
      %s310 = scalar_select %p309, %s22, 1
      %p311 = scmp.lt.s32.totalorder %s23, 7
      %s312 = scalar_select %p311, %s23, 7
      %s313 = smul.addr %s312, 8
      %s314 = smul.addr %s310, 64
      %s315 = sadd.s32 %s313, %s314
      %s316 = smul.addr %s315, 8
      %s317 = scalar_lea.vmem %s3, %s316
      %p318 = scmp.lt.s32.totalorder %s22, 1
      %s319 = scalar_select %p318, %s22, 1
      %p320 = scmp.lt.s32.totalorder %s23, 7
      %s321 = scalar_select %p320, %s23, 7
      %s322 = smul.addr %s319, 8
      %s323 = sadd.s32 %s321, %s322
      %s324 = scalar_lea.vmem %s4, %s323
      %p325 = scmp.lt.s32.totalorder %s22, 1
      %s326 = scalar_select %p325, %s22, 1
      %p327 = scmp.lt.s32.totalorder %s23, 7
      %s328 = scalar_select %p327, %s23, 7
      %s329 = smul.addr %s326, 8
      %s330 = sadd.s32 %s328, %s329
      %s331 = scalar_lea.vmem %s5, %s330
      %p332 = scmp.eq.s32.totalorder %s24, 0
      // Predicated region
      $region33: #{rrconv_block_forward.18} parent=31 // pred_check
        %p333 = pneg %p332
      $region34: #{rrconv_block_forward.18} parent=31 // pred_check_branch
        %335 = sbr.rel (%p333) target = $region36
      $region35: #{rrconv_block_forward.18} parent=31 // pred_region
        %vm336 = vcmask 64512
        %337 = vst.msk [vmem:[#allocation2] sm:$0xff] %vm336, 0.0
        %338 = vst.msk [vmem:[#allocation2 + $0x8] sm:$0xff] %vm336, 0.0
        %339 = vst.msk [vmem:[#allocation2 + $0x10] sm:$0xff] %vm336, 0.0
        %340 = vst.msk [vmem:[#allocation2 + $0x18] sm:$0xff] %vm336, 0.0
        %341 = vst.msk [vmem:[#allocation2 + $0x20] sm:$0xff] %vm336, 0.0
        %342 = vst.msk [vmem:[#allocation2 + $0x28] sm:$0xff] %vm336, 0.0
        %343 = vst.msk [vmem:[#allocation2 + $0x30] sm:$0xff] %vm336, 0.0
        %344 = vst.msk [vmem:[#allocation2 + $0x38] sm:$0xff] %vm336, 0.0
      $region36: #{rrconv_block_forward.18} parent=31 // pred_fallthru
        _
      %v345 = vld [vmem:[%s302] sm:$0xff]
      %v346 = vld [vmem:[%s302 + $0x8] sm:$0x3]
      %v347 = vld [vmem:[%s302 + $0x10] sm:$0xff]
      %v348 = vld [vmem:[%s302 + $0x18] sm:$0x3]
      %v349 = vld [vmem:[%s302 + $0x20] sm:$0xff]
      %v350 = vld [vmem:[%s302 + $0x28] sm:$0x3]
      %v351 = vld [vmem:[%s302 + $0x30] sm:$0xff]
      %v352 = vld [vmem:[%s302 + $0x38] sm:$0x3]
      %v353 = vld [vmem:[%s302 + $0x40] sm:$0xff]
      %v354 = vld [vmem:[%s302 + $0x48] sm:$0x3]
      %v355 = vld [vmem:[%s302 + $0x50] sm:$0xff]
      %v356 = vld [vmem:[%s302 + $0x58] sm:$0x3]
      %v357 = vld [vmem:[%s302 + $0x60] sm:$0xff]
      %v358 = vld [vmem:[%s302 + $0x68] sm:$0x3]
      %v359 = vld [vmem:[%s302 + $0x70] sm:$0xff]
      %v360 = vld [vmem:[%s302 + $0x78] sm:$0x3]
      %v361 = vld [vmem:[%s302 + $0x80] sm:$0xff]
      %v362 = vld [vmem:[%s302 + $0x88] sm:$0x3]
      %v363 = vld [vmem:[%s302 + $0x90] sm:$0xff]
      %v364 = vld [vmem:[%s302 + $0x98] sm:$0x3]
      %v365 = vld [vmem:[#allocation2] sm:$0xff]
      %v366 = vld [vmem:[#allocation2 + $0x8] sm:$0xff]
      %v367 = vld [vmem:[#allocation2 + $0x10] sm:$0xff]
      %v368 = vld [vmem:[#allocation2 + $0x18] sm:$0xff]
      %v369 = vld [vmem:[#allocation2 + $0x20] sm:$0xff]
      %v370 = vld [vmem:[#allocation2 + $0x28] sm:$0xff]
      %v371 = vld [vmem:[#allocation2 + $0x30] sm:$0xff]
      %v372 = vld [vmem:[#allocation2 + $0x38] sm:$0xff]
      %v373 = vld [vmem:[%s308] sm:$0xf]
      %vm374 = vcmask 31744
      %v376 = vsel %vm374, %v345, 0
      %v379 = vsel %vm374, %v347, 0
      %v382 = vsel %vm374, %v349, 0
      %v385 = vsel %vm374, %v351, 0
      %v388 = vsel %vm374, %v353, 0
      %v391 = vsel %vm374, %v355, 0
      %v394 = vsel %vm374, %v357, 0
      %v397 = vsel %vm374, %v359, 0
      %vm399 = vcmask 1043456
      %v401 = vsel %vm399, %v373, 0
      %403 = vmatpush.msra.mxu0 0.0
      %404 = vmatpush.msra.mxu0 0.0
      %405 = vmatpush.msra.mxu0 0.0
      %406 = vmatpush.msra.mxu0 0.0
      %407 = vmatpush.msra.mxu0 0.0
      %408 = vmatpush.msra.mxu0 0.0
      %409 = vmatpush.msra.mxu0 0.0
      %410 = vmatpush.msra.mxu0 0.0
      %411 = vmatpush.msra.mxu0 0.0
      %412 = vmatpush.msra.mxu0 0.0
      %413 = vmatpush.msra.mxu0 0.0
      %414 = vmatpush.msra.mxu0 0.0
      %415 = vmatpush.msra.mxu0 0.0
      %416 = vmatpush.msra.mxu0 0.0
      %417 = vmatpush.msra.mxu0 0.0
      %418 = vmatpush.msra.mxu0 %v401
      %419 = vmatmul.f32.gmra.mxu0 %v376
      %v420 = vpop.f32.mrf.mxu0
      %v421 = vadd.f32 0.0, %v420
      %422 = vmatmul.f32.gmra.mxu0 %v379
      %v423 = vpop.f32.mrf.mxu0
      %v424 = vadd.f32 0.0, %v423
      %425 = vmatmul.f32.gmra.mxu0 %v382
      %v426 = vpop.f32.mrf.mxu0
      %v427 = vadd.f32 0.0, %v426
      %428 = vmatmul.f32.gmra.mxu0 %v385
      %v429 = vpop.f32.mrf.mxu0
      %v430 = vadd.f32 0.0, %v429
      %431 = vmatmul.f32.gmra.mxu0 %v388
      %v432 = vpop.f32.mrf.mxu0
      %v433 = vadd.f32 0.0, %v432
      %434 = vmatmul.f32.gmra.mxu0 %v391
      %v435 = vpop.f32.mrf.mxu0
      %v436 = vadd.f32 0.0, %v435
      %437 = vmatmul.f32.gmra.mxu0 %v394
      %v438 = vpop.f32.mrf.mxu0
      %v439 = vadd.f32 0.0, %v438
      %440 = vmatmul.f32.gmra.mxu0 %v397
      %v441 = vpop.f32.mrf.mxu0
      %v442 = vadd.f32 0.0, %v441
      %443 = vdwg.mxu0
      %v444 = vadd.f32 %v365, %v421
      %v445 = vadd.f32 %v366, %v424
      %v446 = vadd.f32 %v367, %v427
      %v447 = vadd.f32 %v368, %v430
      %v448 = vadd.f32 %v369, %v433
      %v449 = vadd.f32 %v370, %v436
      %v450 = vadd.f32 %v371, %v439
      %v451 = vadd.f32 %v372, %v442
      %vm460 = vcmask 1046528
      %v461 = vrot.slane %v345, 1
      %v462 = vrot.slane %v346, 1
      %v463 = vsel %vm460, %v461, %v462
      %v464 = vrot.slane %v347, 1
      %v465 = vrot.slane %v348, 1
      %v466 = vsel %vm460, %v464, %v465
      %v467 = vrot.slane %v349, 1
      %v468 = vrot.slane %v350, 1
      %v469 = vsel %vm460, %v467, %v468
      %v470 = vrot.slane %v351, 1
      %v471 = vrot.slane %v352, 1
      %v472 = vsel %vm460, %v470, %v471
      %v473 = vrot.slane %v353, 1
      %v474 = vrot.slane %v354, 1
      %v475 = vsel %vm460, %v473, %v474
      %v476 = vrot.slane %v355, 1
      %v477 = vrot.slane %v356, 1
      %v478 = vsel %vm460, %v476, %v477
      %v479 = vrot.slane %v357, 1
      %v480 = vrot.slane %v358, 1
      %v481 = vsel %vm460, %v479, %v480
      %v482 = vrot.slane %v359, 1
      %v483 = vrot.slane %v360, 1
      %v484 = vsel %vm460, %v482, %v483
      %s485 = scalar_lea.vmem %s308, 4
      %v486 = vld [vmem:[%s485] sm:$0xf]
      %v487 = vsel %vm374, %v463, 0
      %v489 = vsel %vm374, %v466, 0
      %v491 = vsel %vm374, %v469, 0
      %v493 = vsel %vm374, %v472, 0
      %v495 = vsel %vm374, %v475, 0
      %v497 = vsel %vm374, %v478, 0
      %v499 = vsel %vm374, %v481, 0
      %v501 = vsel %vm374, %v484, 0
      %v504 = vsel %vm399, %v486, 0
      %506 = vmatpush.msra.mxu0 0.0
      %507 = vmatpush.msra.mxu0 0.0
      %508 = vmatpush.msra.mxu0 0.0
      %509 = vmatpush.msra.mxu0 0.0
      %510 = vmatpush.msra.mxu0 0.0
      %511 = vmatpush.msra.mxu0 0.0
      %512 = vmatpush.msra.mxu0 0.0
      %513 = vmatpush.msra.mxu0 0.0
      %514 = vmatpush.msra.mxu0 0.0
      %515 = vmatpush.msra.mxu0 0.0
      %516 = vmatpush.msra.mxu0 0.0
      %517 = vmatpush.msra.mxu0 0.0
      %518 = vmatpush.msra.mxu0 0.0
      %519 = vmatpush.msra.mxu0 0.0
      %520 = vmatpush.msra.mxu0 0.0
      %521 = vmatpush.msra.mxu0 %v504
      %522 = vmatmul.f32.gmra.mxu0 %v487
      %v523 = vpop.f32.mrf.mxu0
      %v524 = vadd.f32 0.0, %v523
      %525 = vmatmul.f32.gmra.mxu0 %v489
      %v526 = vpop.f32.mrf.mxu0
      %v527 = vadd.f32 0.0, %v526
      %528 = vmatmul.f32.gmra.mxu0 %v491
      %v529 = vpop.f32.mrf.mxu0
      %v530 = vadd.f32 0.0, %v529
      %531 = vmatmul.f32.gmra.mxu0 %v493
      %v532 = vpop.f32.mrf.mxu0
      %v533 = vadd.f32 0.0, %v532
      %534 = vmatmul.f32.gmra.mxu0 %v495
      %v535 = vpop.f32.mrf.mxu0
      %v536 = vadd.f32 0.0, %v535
      %537 = vmatmul.f32.gmra.mxu0 %v497
      %v538 = vpop.f32.mrf.mxu0
      %v539 = vadd.f32 0.0, %v538
      %540 = vmatmul.f32.gmra.mxu0 %v499
      %v541 = vpop.f32.mrf.mxu0
      %v542 = vadd.f32 0.0, %v541
      %543 = vmatmul.f32.gmra.mxu0 %v501
      %v544 = vpop.f32.mrf.mxu0
      %v545 = vadd.f32 0.0, %v544
      %546 = vdwg.mxu0
      %v547 = vadd.f32 %v444, %v524
      %v548 = vadd.f32 %v445, %v527
      %v549 = vadd.f32 %v446, %v530
      %v550 = vadd.f32 %v447, %v533
      %v551 = vadd.f32 %v448, %v536
      %v552 = vadd.f32 %v449, %v539
      %v553 = vadd.f32 %v450, %v542
      %v554 = vadd.f32 %v451, %v545
      %vm555 = vcmask 1045504
      %v556 = vrot.slane %v345, 2
      %v557 = vrot.slane %v346, 2
      %v558 = vsel %vm555, %v556, %v557
      %v559 = vrot.slane %v347, 2
      %v560 = vrot.slane %v348, 2
      %v561 = vsel %vm555, %v559, %v560
      %v562 = vrot.slane %v349, 2
      %v563 = vrot.slane %v350, 2
      %v564 = vsel %vm555, %v562, %v563
      %v565 = vrot.slane %v351, 2
      %v566 = vrot.slane %v352, 2
      %v567 = vsel %vm555, %v565, %v566
      %v568 = vrot.slane %v353, 2
      %v569 = vrot.slane %v354, 2
      %v570 = vsel %vm555, %v568, %v569
      %v571 = vrot.slane %v355, 2
      %v572 = vrot.slane %v356, 2
      %v573 = vsel %vm555, %v571, %v572
      %v574 = vrot.slane %v357, 2
      %v575 = vrot.slane %v358, 2
      %v576 = vsel %vm555, %v574, %v575
      %v577 = vrot.slane %v359, 2
      %v578 = vrot.slane %v360, 2
      %v579 = vsel %vm555, %v577, %v578
      %s580 = scalar_lea.vmem %s308, 8
      %v581 = vld [vmem:[%s580] sm:$0xf]
      %v582 = vsel %vm374, %v558, 0
      %v584 = vsel %vm374, %v561, 0
      %v586 = vsel %vm374, %v564, 0
      %v588 = vsel %vm374, %v567, 0
      %v590 = vsel %vm374, %v570, 0
      %v592 = vsel %vm374, %v573, 0
      %v594 = vsel %vm374, %v576, 0
      %v596 = vsel %vm374, %v579, 0
      %v599 = vsel %vm399, %v581, 0
      %601 = vmatpush.msra.mxu0 0.0
      %602 = vmatpush.msra.mxu0 0.0
      %603 = vmatpush.msra.mxu0 0.0
      %604 = vmatpush.msra.mxu0 0.0
      %605 = vmatpush.msra.mxu0 0.0
      %606 = vmatpush.msra.mxu0 0.0
      %607 = vmatpush.msra.mxu0 0.0
      %608 = vmatpush.msra.mxu0 0.0
      %609 = vmatpush.msra.mxu0 0.0
      %610 = vmatpush.msra.mxu0 0.0
      %611 = vmatpush.msra.mxu0 0.0
      %612 = vmatpush.msra.mxu0 0.0
      %613 = vmatpush.msra.mxu0 0.0
      %614 = vmatpush.msra.mxu0 0.0
      %615 = vmatpush.msra.mxu0 0.0
      %616 = vmatpush.msra.mxu0 %v599
      %617 = vmatmul.f32.gmra.mxu0 %v582
      %v618 = vpop.f32.mrf.mxu0
      %v619 = vadd.f32 0.0, %v618
      %620 = vmatmul.f32.gmra.mxu0 %v584
      %v621 = vpop.f32.mrf.mxu0
      %v622 = vadd.f32 0.0, %v621
      %623 = vmatmul.f32.gmra.mxu0 %v586
      %v624 = vpop.f32.mrf.mxu0
      %v625 = vadd.f32 0.0, %v624
      %626 = vmatmul.f32.gmra.mxu0 %v588
      %v627 = vpop.f32.mrf.mxu0
      %v628 = vadd.f32 0.0, %v627
      %629 = vmatmul.f32.gmra.mxu0 %v590
      %v630 = vpop.f32.mrf.mxu0
      %v631 = vadd.f32 0.0, %v630
      %632 = vmatmul.f32.gmra.mxu0 %v592
      %v633 = vpop.f32.mrf.mxu0
      %v634 = vadd.f32 0.0, %v633
      %635 = vmatmul.f32.gmra.mxu0 %v594
      %v636 = vpop.f32.mrf.mxu0
      %v637 = vadd.f32 0.0, %v636
      %638 = vmatmul.f32.gmra.mxu0 %v596
      %v639 = vpop.f32.mrf.mxu0
      %v640 = vadd.f32 0.0, %v639
      %641 = vdwg.mxu0
      %v642 = vadd.f32 %v547, %v619
      %v643 = vadd.f32 %v548, %v622
      %v644 = vadd.f32 %v549, %v625
      %v645 = vadd.f32 %v550, %v628
      %v646 = vadd.f32 %v551, %v631
      %v647 = vadd.f32 %v552, %v634
      %v648 = vadd.f32 %v553, %v637
      %v649 = vadd.f32 %v554, %v640
      %s650 = scalar_lea.vmem %s308, 12
      %v651 = vld [vmem:[%s650] sm:$0xf]
      %v653 = vsel %vm374, %v361, 0
      %v656 = vsel %vm399, %v651, 0
      %658 = vmatpush.msra.mxu0 0.0
      %659 = vmatpush.msra.mxu0 0.0
      %660 = vmatpush.msra.mxu0 0.0
      %661 = vmatpush.msra.mxu0 0.0
      %662 = vmatpush.msra.mxu0 0.0
      %663 = vmatpush.msra.mxu0 0.0
      %664 = vmatpush.msra.mxu0 0.0
      %665 = vmatpush.msra.mxu0 0.0
      %666 = vmatpush.msra.mxu0 0.0
      %667 = vmatpush.msra.mxu0 0.0
      %668 = vmatpush.msra.mxu0 0.0
      %669 = vmatpush.msra.mxu0 0.0
      %670 = vmatpush.msra.mxu0 0.0
      %671 = vmatpush.msra.mxu0 0.0
      %672 = vmatpush.msra.mxu0 0.0
      %673 = vmatpush.msra.mxu0 %v656
      %674 = vmatmul.f32.gmra.mxu0 %v379
      %v675 = vpop.f32.mrf.mxu0
      %v676 = vadd.f32 0.0, %v675
      %677 = vmatmul.f32.gmra.mxu0 %v382
      %v678 = vpop.f32.mrf.mxu0
      %v679 = vadd.f32 0.0, %v678
      %680 = vmatmul.f32.gmra.mxu0 %v385
      %v681 = vpop.f32.mrf.mxu0
      %v682 = vadd.f32 0.0, %v681
      %683 = vmatmul.f32.gmra.mxu0 %v388
      %v684 = vpop.f32.mrf.mxu0
      %v685 = vadd.f32 0.0, %v684
      %686 = vmatmul.f32.gmra.mxu0 %v391
      %v687 = vpop.f32.mrf.mxu0
      %v688 = vadd.f32 0.0, %v687
      %689 = vmatmul.f32.gmra.mxu0 %v394
      %v690 = vpop.f32.mrf.mxu0
      %v691 = vadd.f32 0.0, %v690
      %692 = vmatmul.f32.gmra.mxu0 %v397
      %v693 = vpop.f32.mrf.mxu0
      %v694 = vadd.f32 0.0, %v693
      %695 = vmatmul.f32.gmra.mxu0 %v653
      %v696 = vpop.f32.mrf.mxu0
      %v697 = vadd.f32 0.0, %v696
      %698 = vdwg.mxu0
      %v699 = vadd.f32 %v642, %v676
      %v700 = vadd.f32 %v643, %v679
      %v701 = vadd.f32 %v644, %v682
      %v702 = vadd.f32 %v645, %v685
      %v703 = vadd.f32 %v646, %v688
      %v704 = vadd.f32 %v647, %v691
      %v705 = vadd.f32 %v648, %v694
      %v706 = vadd.f32 %v649, %v697
      %v708 = vrot.slane %v361, 1
      %v709 = vrot.slane %v362, 1
      %v710 = vsel %vm460, %v708, %v709
      %s711 = scalar_lea.vmem %s308, 16
      %v712 = vld [vmem:[%s711] sm:$0xf]
      %v713 = vsel %vm374, %v710, 0
      %v716 = vsel %vm399, %v712, 0
      %718 = vmatpush.msra.mxu0 0.0
      %719 = vmatpush.msra.mxu0 0.0
      %720 = vmatpush.msra.mxu0 0.0
      %721 = vmatpush.msra.mxu0 0.0
      %722 = vmatpush.msra.mxu0 0.0
      %723 = vmatpush.msra.mxu0 0.0
      %724 = vmatpush.msra.mxu0 0.0
      %725 = vmatpush.msra.mxu0 0.0
      %726 = vmatpush.msra.mxu0 0.0
      %727 = vmatpush.msra.mxu0 0.0
      %728 = vmatpush.msra.mxu0 0.0
      %729 = vmatpush.msra.mxu0 0.0
      %730 = vmatpush.msra.mxu0 0.0
      %731 = vmatpush.msra.mxu0 0.0
      %732 = vmatpush.msra.mxu0 0.0
      %733 = vmatpush.msra.mxu0 %v716
      %734 = vmatmul.f32.gmra.mxu0 %v489
      %v735 = vpop.f32.mrf.mxu0
      %v736 = vadd.f32 0.0, %v735
      %737 = vmatmul.f32.gmra.mxu0 %v491
      %v738 = vpop.f32.mrf.mxu0
      %v739 = vadd.f32 0.0, %v738
      %740 = vmatmul.f32.gmra.mxu0 %v493
      %v741 = vpop.f32.mrf.mxu0
      %v742 = vadd.f32 0.0, %v741
      %743 = vmatmul.f32.gmra.mxu0 %v495
      %v744 = vpop.f32.mrf.mxu0
      %v745 = vadd.f32 0.0, %v744
      %746 = vmatmul.f32.gmra.mxu0 %v497
      %v747 = vpop.f32.mrf.mxu0
      %v748 = vadd.f32 0.0, %v747
      %749 = vmatmul.f32.gmra.mxu0 %v499
      %v750 = vpop.f32.mrf.mxu0
      %v751 = vadd.f32 0.0, %v750
      %752 = vmatmul.f32.gmra.mxu0 %v501
      %v753 = vpop.f32.mrf.mxu0
      %v754 = vadd.f32 0.0, %v753
      %755 = vmatmul.f32.gmra.mxu0 %v713
      %v756 = vpop.f32.mrf.mxu0
      %v757 = vadd.f32 0.0, %v756
      %758 = vdwg.mxu0
      %v759 = vadd.f32 %v699, %v736
      %v760 = vadd.f32 %v700, %v739
      %v761 = vadd.f32 %v701, %v742
      %v762 = vadd.f32 %v702, %v745
      %v763 = vadd.f32 %v703, %v748
      %v764 = vadd.f32 %v704, %v751
      %v765 = vadd.f32 %v705, %v754
      %v766 = vadd.f32 %v706, %v757
      %v767 = vrot.slane %v361, 2
      %v768 = vrot.slane %v362, 2
      %v769 = vsel %vm555, %v767, %v768
      %s770 = scalar_lea.vmem %s308, 20
      %v771 = vld [vmem:[%s770] sm:$0xf]
      %v772 = vsel %vm374, %v769, 0
      %v775 = vsel %vm399, %v771, 0
      %777 = vmatpush.msra.mxu0 0.0
      %778 = vmatpush.msra.mxu0 0.0
      %779 = vmatpush.msra.mxu0 0.0
      %780 = vmatpush.msra.mxu0 0.0
      %781 = vmatpush.msra.mxu0 0.0
      %782 = vmatpush.msra.mxu0 0.0
      %783 = vmatpush.msra.mxu0 0.0
      %784 = vmatpush.msra.mxu0 0.0
      %785 = vmatpush.msra.mxu0 0.0
      %786 = vmatpush.msra.mxu0 0.0
      %787 = vmatpush.msra.mxu0 0.0
      %788 = vmatpush.msra.mxu0 0.0
      %789 = vmatpush.msra.mxu0 0.0
      %790 = vmatpush.msra.mxu0 0.0
      %791 = vmatpush.msra.mxu0 0.0
      %792 = vmatpush.msra.mxu0 %v775
      %793 = vmatmul.f32.gmra.mxu0 %v584
      %v794 = vpop.f32.mrf.mxu0
      %v795 = vadd.f32 0.0, %v794
      %796 = vmatmul.f32.gmra.mxu0 %v586
      %v797 = vpop.f32.mrf.mxu0
      %v798 = vadd.f32 0.0, %v797
      %799 = vmatmul.f32.gmra.mxu0 %v588
      %v800 = vpop.f32.mrf.mxu0
      %v801 = vadd.f32 0.0, %v800
      %802 = vmatmul.f32.gmra.mxu0 %v590
      %v803 = vpop.f32.mrf.mxu0
      %v804 = vadd.f32 0.0, %v803
      %805 = vmatmul.f32.gmra.mxu0 %v592
      %v806 = vpop.f32.mrf.mxu0
      %v807 = vadd.f32 0.0, %v806
      %808 = vmatmul.f32.gmra.mxu0 %v594
      %v809 = vpop.f32.mrf.mxu0
      %v810 = vadd.f32 0.0, %v809
      %811 = vmatmul.f32.gmra.mxu0 %v596
      %v812 = vpop.f32.mrf.mxu0
      %v813 = vadd.f32 0.0, %v812
      %814 = vmatmul.f32.gmra.mxu0 %v772
      %v815 = vpop.f32.mrf.mxu0
      %v816 = vadd.f32 0.0, %v815
      %817 = vdwg.mxu0
      %v818 = vadd.f32 %v759, %v795
      %v819 = vadd.f32 %v760, %v798
      %v820 = vadd.f32 %v761, %v801
      %v821 = vadd.f32 %v762, %v804
      %v822 = vadd.f32 %v763, %v807
      %v823 = vadd.f32 %v764, %v810
      %v824 = vadd.f32 %v765, %v813
      %v825 = vadd.f32 %v766, %v816
      %s826 = scalar_lea.vmem %s308, 24
      %v827 = vld [vmem:[%s826] sm:$0xf]
      %v829 = vsel %vm374, %v363, 0
      %v832 = vsel %vm399, %v827, 0
      %834 = vmatpush.msra.mxu0 0.0
      %835 = vmatpush.msra.mxu0 0.0
      %836 = vmatpush.msra.mxu0 0.0
      %837 = vmatpush.msra.mxu0 0.0
      %838 = vmatpush.msra.mxu0 0.0
      %839 = vmatpush.msra.mxu0 0.0
      %840 = vmatpush.msra.mxu0 0.0
      %841 = vmatpush.msra.mxu0 0.0
      %842 = vmatpush.msra.mxu0 0.0
      %843 = vmatpush.msra.mxu0 0.0
      %844 = vmatpush.msra.mxu0 0.0
      %845 = vmatpush.msra.mxu0 0.0
      %846 = vmatpush.msra.mxu0 0.0
      %847 = vmatpush.msra.mxu0 0.0
      %848 = vmatpush.msra.mxu0 0.0
      %849 = vmatpush.msra.mxu0 %v832
      %850 = vmatmul.f32.gmra.mxu0 %v382
      %v851 = vpop.f32.mrf.mxu0
      %v852 = vadd.f32 0.0, %v851
      %853 = vmatmul.f32.gmra.mxu0 %v385
      %v854 = vpop.f32.mrf.mxu0
      %v855 = vadd.f32 0.0, %v854
      %856 = vmatmul.f32.gmra.mxu0 %v388
      %v857 = vpop.f32.mrf.mxu0
      %v858 = vadd.f32 0.0, %v857
      %859 = vmatmul.f32.gmra.mxu0 %v391
      %v860 = vpop.f32.mrf.mxu0
      %v861 = vadd.f32 0.0, %v860
      %862 = vmatmul.f32.gmra.mxu0 %v394
      %v863 = vpop.f32.mrf.mxu0
      %v864 = vadd.f32 0.0, %v863
      %865 = vmatmul.f32.gmra.mxu0 %v397
      %v866 = vpop.f32.mrf.mxu0
      %v867 = vadd.f32 0.0, %v866
      %868 = vmatmul.f32.gmra.mxu0 %v653
      %v869 = vpop.f32.mrf.mxu0
      %v870 = vadd.f32 0.0, %v869
      %871 = vmatmul.f32.gmra.mxu0 %v829
      %v872 = vpop.f32.mrf.mxu0
      %v873 = vadd.f32 0.0, %v872
      %874 = vdwg.mxu0
      %v875 = vadd.f32 %v818, %v852
      %v876 = vadd.f32 %v819, %v855
      %v877 = vadd.f32 %v820, %v858
      %v878 = vadd.f32 %v821, %v861
      %v879 = vadd.f32 %v822, %v864
      %v880 = vadd.f32 %v823, %v867
      %v881 = vadd.f32 %v824, %v870
      %v882 = vadd.f32 %v825, %v873
      %v884 = vrot.slane %v363, 1
      %v885 = vrot.slane %v364, 1
      %v886 = vsel %vm460, %v884, %v885
      %s887 = scalar_lea.vmem %s308, 28
      %v888 = vld [vmem:[%s887] sm:$0xf]
      %v889 = vsel %vm374, %v886, 0
      %v892 = vsel %vm399, %v888, 0
      %894 = vmatpush.msra.mxu0 0.0
      %895 = vmatpush.msra.mxu0 0.0
      %896 = vmatpush.msra.mxu0 0.0
      %897 = vmatpush.msra.mxu0 0.0
      %898 = vmatpush.msra.mxu0 0.0
      %899 = vmatpush.msra.mxu0 0.0
      %900 = vmatpush.msra.mxu0 0.0
      %901 = vmatpush.msra.mxu0 0.0
      %902 = vmatpush.msra.mxu0 0.0
      %903 = vmatpush.msra.mxu0 0.0
      %904 = vmatpush.msra.mxu0 0.0
      %905 = vmatpush.msra.mxu0 0.0
      %906 = vmatpush.msra.mxu0 0.0
      %907 = vmatpush.msra.mxu0 0.0
      %908 = vmatpush.msra.mxu0 0.0
      %909 = vmatpush.msra.mxu0 %v892
      %910 = vmatmul.f32.gmra.mxu0 %v491
      %v911 = vpop.f32.mrf.mxu0
      %v912 = vadd.f32 0.0, %v911
      %913 = vmatmul.f32.gmra.mxu0 %v493
      %v914 = vpop.f32.mrf.mxu0
      %v915 = vadd.f32 0.0, %v914
      %916 = vmatmul.f32.gmra.mxu0 %v495
      %v917 = vpop.f32.mrf.mxu0
      %v918 = vadd.f32 0.0, %v917
      %919 = vmatmul.f32.gmra.mxu0 %v497
      %v920 = vpop.f32.mrf.mxu0
      %v921 = vadd.f32 0.0, %v920
      %922 = vmatmul.f32.gmra.mxu0 %v499
      %v923 = vpop.f32.mrf.mxu0
      %v924 = vadd.f32 0.0, %v923
      %925 = vmatmul.f32.gmra.mxu0 %v501
      %v926 = vpop.f32.mrf.mxu0
      %v927 = vadd.f32 0.0, %v926
      %928 = vmatmul.f32.gmra.mxu0 %v713
      %v929 = vpop.f32.mrf.mxu0
      %v930 = vadd.f32 0.0, %v929
      %931 = vmatmul.f32.gmra.mxu0 %v889
      %v932 = vpop.f32.mrf.mxu0
      %v933 = vadd.f32 0.0, %v932
      %934 = vdwg.mxu0
      %v935 = vadd.f32 %v875, %v912
      %v936 = vadd.f32 %v876, %v915
      %v937 = vadd.f32 %v877, %v918
      %v938 = vadd.f32 %v878, %v921
      %v939 = vadd.f32 %v879, %v924
      %v940 = vadd.f32 %v880, %v927
      %v941 = vadd.f32 %v881, %v930
      %v942 = vadd.f32 %v882, %v933
      %v943 = vrot.slane %v363, 2
      %v944 = vrot.slane %v364, 2
      %v945 = vsel %vm555, %v943, %v944
      %s946 = scalar_lea.vmem %s308, 32
      %v947 = vld [vmem:[%s946] sm:$0xf]
      %v948 = vsel %vm374, %v945, 0
      %v951 = vsel %vm399, %v947, 0
      %953 = vmatpush.msra.mxu0 0.0
      %954 = vmatpush.msra.mxu0 0.0
      %955 = vmatpush.msra.mxu0 0.0
      %956 = vmatpush.msra.mxu0 0.0
      %957 = vmatpush.msra.mxu0 0.0
      %958 = vmatpush.msra.mxu0 0.0
      %959 = vmatpush.msra.mxu0 0.0
      %960 = vmatpush.msra.mxu0 0.0
      %961 = vmatpush.msra.mxu0 0.0
      %962 = vmatpush.msra.mxu0 0.0
      %963 = vmatpush.msra.mxu0 0.0
      %964 = vmatpush.msra.mxu0 0.0
      %965 = vmatpush.msra.mxu0 0.0
      %966 = vmatpush.msra.mxu0 0.0
      %967 = vmatpush.msra.mxu0 0.0
      %968 = vmatpush.msra.mxu0 %v951
      %969 = vmatmul.f32.gmra.mxu0 %v586
      %v970 = vpop.f32.mrf.mxu0
      %v971 = vadd.f32 0.0, %v970
      %972 = vmatmul.f32.gmra.mxu0 %v588
      %v973 = vpop.f32.mrf.mxu0
      %v974 = vadd.f32 0.0, %v973
      %975 = vmatmul.f32.gmra.mxu0 %v590
      %v976 = vpop.f32.mrf.mxu0
      %v977 = vadd.f32 0.0, %v976
      %978 = vmatmul.f32.gmra.mxu0 %v592
      %v979 = vpop.f32.mrf.mxu0
      %v980 = vadd.f32 0.0, %v979
      %981 = vmatmul.f32.gmra.mxu0 %v594
      %v982 = vpop.f32.mrf.mxu0
      %v983 = vadd.f32 0.0, %v982
      %984 = vmatmul.f32.gmra.mxu0 %v596
      %v985 = vpop.f32.mrf.mxu0
      %v986 = vadd.f32 0.0, %v985
      %987 = vmatmul.f32.gmra.mxu0 %v772
      %v988 = vpop.f32.mrf.mxu0
      %v989 = vadd.f32 0.0, %v988
      %990 = vmatmul.f32.gmra.mxu0 %v948
      %v991 = vpop.f32.mrf.mxu0
      %v992 = vadd.f32 0.0, %v991
      %993 = vdwg.mxu0
      %v994 = vadd.f32 %v935, %v971
      %v995 = vadd.f32 %v936, %v974
      %v996 = vadd.f32 %v937, %v977
      %v997 = vadd.f32 %v938, %v980
      %v998 = vadd.f32 %v939, %v983
      %v999 = vadd.f32 %v940, %v986
      %v1000 = vadd.f32 %v941, %v989
      %v1001 = vadd.f32 %v942, %v992
      %vm1002 = vcmask 64512
      %1003 = vst.msk [vmem:[#allocation2] sm:$0xff] %vm1002, %v994
      %1004 = vst.msk [vmem:[#allocation2 + $0x8] sm:$0xff] %vm1002, %v995
      %1005 = vst.msk [vmem:[#allocation2 + $0x10] sm:$0xff] %vm1002, %v996
      %1006 = vst.msk [vmem:[#allocation2 + $0x18] sm:$0xff] %vm1002, %v997
      %1007 = vst.msk [vmem:[#allocation2 + $0x20] sm:$0xff] %vm1002, %v998
      %1008 = vst.msk [vmem:[#allocation2 + $0x28] sm:$0xff] %vm1002, %v999
      %1009 = vst.msk [vmem:[#allocation2 + $0x30] sm:$0xff] %vm1002, %v1000
      %1010 = vst.msk [vmem:[#allocation2 + $0x38] sm:$0xff] %vm1002, %v1001
      %p1011 = scmp.eq.s32.totalorder %s24, 2
      // Predicated region
      $region37: #{rrconv_block_forward.18} parent=31 // pred_check
        %p1012 = pneg %p1011
      $region38: #{rrconv_block_forward.18} parent=31 // pred_check_branch
        %1014 = sbr.rel (%p1012) target = $region40
      $region39: #{rrconv_block_forward.18} parent=31 // pred_region
        %v1015 = vld [vmem:[#allocation2] sm:$0xff]
        %v1016 = vld [vmem:[#allocation2 + $0x8] sm:$0xff]
        %v1017 = vld [vmem:[#allocation2 + $0x10] sm:$0xff]
        %v1018 = vld [vmem:[#allocation2 + $0x18] sm:$0xff]
        %v1019 = vld [vmem:[#allocation2 + $0x20] sm:$0xff]
        %v1020 = vld [vmem:[#allocation2 + $0x28] sm:$0xff]
        %v1021 = vld [vmem:[#allocation2 + $0x30] sm:$0xff]
        %v1022 = vld [vmem:[#allocation2 + $0x38] sm:$0xff]
        %v1023 = vld [vmem:[%s2] sm:$0x1]
        %v1025 = vperm.slane %v1023, 0
        %v1027 = vadd.f32 %v1015, %v1025
        %v1028 = vadd.f32 %v1016, %v1025
        %v1029 = vadd.f32 %v1017, %v1025
        %v1030 = vadd.f32 %v1018, %v1025
        %v1031 = vadd.f32 %v1019, %v1025
        %v1032 = vadd.f32 %v1020, %v1025
        %v1033 = vadd.f32 %v1021, %v1025
        %v1034 = vadd.f32 %v1022, %v1025
        %v1035 = vmax.f32 %v1027, 0.0
        %v1036 = vmax.f32 %v1028, 0.0
        %v1037 = vmax.f32 %v1029, 0.0
        %v1038 = vmax.f32 %v1030, 0.0
        %v1039 = vmax.f32 %v1031, 0.0
        %v1040 = vmax.f32 %v1032, 0.0
        %v1041 = vmax.f32 %v1033, 0.0
        %v1042 = vmax.f32 %v1034, 0.0
        %1043 = vst.msk [vmem:[%s317] sm:$0xff] %vm1002, %v1035
        %1044 = vst.msk [vmem:[%s317 + $0x8] sm:$0xff] %vm1002, %v1036
        %1045 = vst.msk [vmem:[%s317 + $0x10] sm:$0xff] %vm1002, %v1037
        %1046 = vst.msk [vmem:[%s317 + $0x18] sm:$0xff] %vm1002, %v1038
        %1047 = vst.msk [vmem:[%s317 + $0x20] sm:$0xff] %vm1002, %v1039
        %1048 = vst.msk [vmem:[%s317 + $0x28] sm:$0xff] %vm1002, %v1040
        %1049 = vst.msk [vmem:[%s317 + $0x30] sm:$0xff] %vm1002, %v1041
        %1050 = vst.msk [vmem:[%s317 + $0x38] sm:$0xff] %vm1002, %v1042
        %v1051 = vsel %vm1002, %v1035, 0.0
        %v1052 = vsel %vm1002, %v1036, 0.0
        %v1053 = vadd.f32 %v1051, %v1052
        %v1054 = vsel %vm1002, %v1037, 0.0
        %v1055 = vadd.f32 %v1053, %v1054
        %v1056 = vsel %vm1002, %v1038, 0.0
        %v1057 = vadd.f32 %v1055, %v1056
        %v1058 = vsel %vm1002, %v1039, 0.0
        %v1059 = vadd.f32 %v1057, %v1058
        %v1060 = vsel %vm1002, %v1040, 0.0
        %v1061 = vadd.f32 %v1059, %v1060
        %v1062 = vsel %vm1002, %v1041, 0.0
        %v1063 = vadd.f32 %v1061, %v1062
        %v1064 = vsel %vm1002, %v1042, 0.0
        %v1065 = vadd.f32 %v1063, %v1064
        %v1066 = vrot.slane %v1065, 4
        %v1067 = vadd.f32 %v1065, %v1066
        %v1068 = vrot.slane %v1067, 2
        %v1069 = vadd.f32 %v1067, %v1068
        %v1070 = vrot.slane %v1069, 1
        %v1071 = vadd.f32 %v1069, %v1070
        %vm1072 = vcmask 57344
        %1073 = vst.msk [vmem:[%s324] sm:$0x1] %vm1072, %v1071
        %v1074 = vmul.f32 %v1035, %v1035
        %v1075 = vmul.f32 %v1036, %v1036
        %v1076 = vmul.f32 %v1037, %v1037
        %v1077 = vmul.f32 %v1038, %v1038
        %v1078 = vmul.f32 %v1039, %v1039
        %v1079 = vmul.f32 %v1040, %v1040
        %v1080 = vmul.f32 %v1041, %v1041
        %v1081 = vmul.f32 %v1042, %v1042
        %v1082 = vsel %vm1002, %v1074, 0.0
        %v1083 = vsel %vm1002, %v1075, 0.0
        %v1084 = vadd.f32 %v1082, %v1083
        %v1085 = vsel %vm1002, %v1076, 0.0
        %v1086 = vadd.f32 %v1084, %v1085
        %v1087 = vsel %vm1002, %v1077, 0.0
        %v1088 = vadd.f32 %v1086, %v1087
        %v1089 = vsel %vm1002, %v1078, 0.0
        %v1090 = vadd.f32 %v1088, %v1089
        %v1091 = vsel %vm1002, %v1079, 0.0
        %v1092 = vadd.f32 %v1090, %v1091
        %v1093 = vsel %vm1002, %v1080, 0.0
        %v1094 = vadd.f32 %v1092, %v1093
        %v1095 = vsel %vm1002, %v1081, 0.0
        %v1096 = vadd.f32 %v1094, %v1095
        %v1097 = vrot.slane %v1096, 4
        %v1098 = vadd.f32 %v1096, %v1097
        %v1099 = vrot.slane %v1098, 2
        %v1100 = vadd.f32 %v1098, %v1099
        %v1101 = vrot.slane %v1100, 1
        %v1102 = vadd.f32 %v1100, %v1101
        %1103 = vst.msk [vmem:[%s331] sm:$0x1] %vm1072, %v1102
      $region40: #{rrconv_block_forward.18} parent=31 // pred_fallthru
        _
      %p1104 = scmp.lt.s32.totalorder %s22, 1
      %s1105 = scalar_select %p1104, %s22, 1
      %p1106 = scmp.lt.s32.totalorder %s23, 7
      %s1107 = scalar_select %p1106, %s23, 7
      %s1108 = smul.addr %s1107, 8
      %s1109 = smul.addr %s1105, 64
      %s1110 = sadd.s32 %s1108, %s1109
      %s1111 = smul.addr %s1110, 8
      %s1112 = scalar_lea.vmem %s3, %s1111
      %p1113 = scmp.lt.s32.totalorder %s22, 1
      %s1114 = scalar_select %p1113, %s22, 1
      %p1115 = scmp.lt.s32.totalorder %s23, 7
      %s1116 = scalar_select %p1115, %s23, 7
      %s1117 = smul.addr %s1114, 8
      %s1118 = sadd.s32 %s1116, %s1117
      %s1119 = scalar_lea.vmem %s4, %s1118
      %p1120 = scmp.lt.s32.totalorder %s22, 1
      %s1121 = scalar_select %p1120, %s22, 1
      %p1122 = scmp.lt.s32.totalorder %s23, 7
      %s1123 = scalar_select %p1122, %s23, 7
      %s1124 = smul.addr %s1121, 8
      %s1125 = sadd.s32 %s1123, %s1124
      %s1126 = scalar_lea.vmem %s5, %s1125
      // Predicated region
      $region41: #{rrconv_block_forward.18} parent=31 // pred_check
        %p1127 = pneg %p133
      $region42: #{rrconv_block_forward.18} parent=31 // pred_check_branch
        %1129 = sbr.rel (%p1127) target = $region44
      $region43: #{rrconv_block_forward.18} parent=31 // pred_region
        _
      $region44: #{rrconv_block_forward.18} parent=31 // pred_fallthru
        _
      // Predicated region
      $region45: #{rrconv_block_forward.18} parent=31 // pred_check
        %p1130 = pneg %p161
      $region46: #{rrconv_block_forward.18} parent=31 // pred_check_branch
        %1132 = sbr.rel (%p1130) target = $region48
      $region47: #{rrconv_block_forward.18} parent=31 // pred_region
        _
      $region48: #{rrconv_block_forward.18} parent=31 // pred_fallthru
        _
      // Predicated region
      $region49: #{rrconv_block_forward.18} parent=31 // pred_check
        %p1133 = pneg %p189
      $region50: #{rrconv_block_forward.18} parent=31 // pred_check_branch
        %1135 = sbr.rel (%p1133) target = $region52
      $region51: #{rrconv_block_forward.18} parent=31 // pred_region
        _
      $region52: #{rrconv_block_forward.18} parent=31 // pred_fallthru
        _
    $region32: #{rrconv_block_forward.18} parent=5 // pred_fallthru
      _
    %p1136 = scmp.le.s32.totalorder 2, %s12
    // Predicated region
    $region53: #{rrconv_block_forward.18} parent=5 // pred_check
      %p1137 = pneg %p1136
    $region54: #{rrconv_block_forward.18} parent=5 // pred_check_branch
      %1139 = sbr.rel (%p1137) target = $region56
    $region55: #{rrconv_block_forward.18} parent=5 // pred_region
      %s1140 = ssub.s32 %s12, 2
      // Predicated region
      $region57: #{rrconv_block_forward.18} parent=55 // pred_check
        %p1141 = pneg %p139
      $region58: #{rrconv_block_forward.18} parent=55 // pred_check_branch
        %1143 = sbr.rel (%p1141) target = $region60
      $region59: #{rrconv_block_forward.18} parent=55 // pred_region
        %p1144 = scmp.lt.s32.totalorder %s25, 1
        %s1145 = scalar_select %p1144, %s25, 1
        %p1146 = scmp.lt.s32.totalorder %s26, 7
        %s1147 = scalar_select %p1146, %s26, 7
        %s1148 = smul.addr %s1147, 8
        %s1149 = smul.addr %s1145, 64
        %s1150 = sadd.s32 %s1148, %s1149
        %s1151 = smul.addr %s1150, 8
        %s1152 = scalar_lea.vmem %s3, %s1151
      $region60: #{rrconv_block_forward.18} parent=55 // pred_fallthru
        _
      // Predicated region
      $region61: #{rrconv_block_forward.18} parent=55 // pred_check
        %p1153 = pneg %p167
      $region62: #{rrconv_block_forward.18} parent=55 // pred_check_branch
        %1155 = sbr.rel (%p1153) target = $region64
      $region63: #{rrconv_block_forward.18} parent=55 // pred_region
        %p1156 = scmp.lt.s32.totalorder %s25, 1
        %s1157 = scalar_select %p1156, %s25, 1
        %p1158 = scmp.lt.s32.totalorder %s26, 7
        %s1159 = scalar_select %p1158, %s26, 7
        %s1160 = smul.addr %s1157, 8
        %s1161 = sadd.s32 %s1159, %s1160
        %s1162 = scalar_lea.vmem %s4, %s1161
      $region64: #{rrconv_block_forward.18} parent=55 // pred_fallthru
        _
      // Predicated region
      $region65: #{rrconv_block_forward.18} parent=55 // pred_check
        %p1163 = pneg %p195
      $region66: #{rrconv_block_forward.18} parent=55 // pred_check_branch
        %1165 = sbr.rel (%p1163) target = $region68
      $region67: #{rrconv_block_forward.18} parent=55 // pred_region
        %p1166 = scmp.lt.s32.totalorder %s25, 1
        %s1167 = scalar_select %p1166, %s25, 1
        %p1168 = scmp.lt.s32.totalorder %s26, 7
        %s1169 = scalar_select %p1168, %s26, 7
        %s1170 = smul.addr %s1167, 8
        %s1171 = sadd.s32 %s1169, %s1170
        %s1172 = scalar_lea.vmem %s5, %s1171
      $region68: #{rrconv_block_forward.18} parent=55 // pred_fallthru
        _
    $region56: #{rrconv_block_forward.18} parent=5 // pred_fallthru
      _
  $region6: #{rrconv_block_forward.18} parent=0 // loop_footer
    %s16 = sadd.s32 1, %s12
  $region7: #{rrconv_block_forward.18} parent=0 // loop_footer_branch
    %11 = sbr.rel target = $region3
  $region8: #{rrconv_block_forward.18} parent=0 // loop_exit
    _

// kernel: rrconv_block_forward.20
$region0: #{rrconv_block_forward.20}
  #allocation0 [shape = 'u32[]', space=smem, size = 0x4, offset = 0x4, fixed_abs, tag = 'smem constant byte address 0x4 - core index']
  #allocation1 [shape = 'u32[72,128]{1,0:T(1,128)}', space=vmem, size = 0x9000, scoped, tag = 'internal scratch']
  %s0 = inlined_call_operand.vmem [shape: f32[2,32,128], index: 0, kind: input, shape index: {}]
  %s1 = inlined_call_operand.vmem [shape: f32[1,128], index: 1, kind: input, shape index: {}]
  %s2 = inlined_call_operand.vmem [shape: f32[1,128], index: 2, kind: input, shape index: {}]
  %s3 = inlined_call_operand.vmem [shape: f32[2,1,128], index: 3, kind: input, shape index: {}]
  %s4 = inlined_call_operand.vmem [shape: f32[2,32,128], index: 4, kind: output, shape index: {}]
  %s5 = sld [smem:[#allocation0]]
  $region49: #{rrconv_block_forward.20} parent=0
    _
  %s7 = ssub.s32 1, %s5
  %s8 = scalar_select 0, %s7, %s5
  loop: start=0, step=1, limit=4
  $region2: #{rrconv_block_forward.20} parent=0 // loop_pre_header
    _
  $region3: #{rrconv_block_forward.20} parent=0 // loop_header
    %s10 = sphi 0, %s14
    %p11 = scmp.ge.s32.totalorder %s10, 4
    %s17 = sphi 0, %s29
    %s18 = sphi 0, %s25
    %s19 = sphi 0, %s17
    %s20 = sphi 0, %s18
    %s21 = sphi 0, %s19
    %s22 = sphi 0, %s20
    %s34 = sphi 0, %s36
    %s37 = sphi 0, %s34
    %s38 = sphi 0, %s37
    %s54 = sphi 0, %s38
    %s58 = sphi 0, %s58
    %s60 = sphi 0, %s58
    %s61 = sphi 0, %s60
    %s75 = sphi 0, %s61
    %s79 = sphi 0, %s79
    %s81 = sphi 0, %s79
    %s82 = sphi 0, %s81
    %s96 = sphi 0, %s82
    %s102 = sphi 0, %s104
    %s105 = sphi 0, %s102
    %s106 = sphi 0, %s105
    %s122 = sphi 0, %s106
    %s130 = sphi 0, %s132
    %s133 = sphi 0, %s130
    %s134 = sphi 0, %s133
    %s150 = sphi 0, %s134
  $region4: #{rrconv_block_forward.20} parent=0 // loop_header_branch
    %13 = sbr.rel (%p11) target = $region8
  $region5: #{rrconv_block_forward.20} parent=0 // loop_body
    %s15 = ssub.s32 %s10, 1
    %s16 = ssub.s32 %s10, 2
    %s23 = sadd.s32 1, %s18
    %p24 = scmp.ge.s32.totalorder %s23, 1
    %s25 = scalar_select %p24, 0, %s23
    %s26 = sadd.s32 1, %s17
    %s27 = scalar_select %p24, %s26, %s17
    %p28 = scmp.ge.s32.totalorder %s27, 2
    %s29 = scalar_select %p28, 0, %s27
    %s30 = ssub.s32 %s17, %s29
    %s31 = ssub.s32 %s18, %s25
    %s32 = sor.u32 %s30, %s31
    %p33 = scmp.eq.s32.totalorder %s32, 0
    %s35 = sadd.s32 %s34, 1
    %s36 = scalar_select %p33, %s34, %s35
    %p39 = pneg %p33
    %p40 = scmp.eq.s32.totalorder %s10, 1
    %p41 = por %p39, %p40
    %p42 = scmp.ne.s32.totalorder %s34, %s37
    %p43 = scmp.eq.s32.totalorder %s10, 0
    %p44 = por %p42, %p43
    %p45 = scmp.ne.s32.totalorder %s34, %s37
    %p46 = scmp.eq.s32.totalorder %s15, 1
    %p47 = por %p45, %p46
    %p48 = scmp.ne.s32.totalorder %s37, %s38
    %p49 = scmp.eq.s32.totalorder %s15, 0
    %p50 = por %p48, %p49
    %p51 = scmp.ne.s32.totalorder %s37, %s38
    %p52 = scmp.eq.s32.totalorder %s16, 1
    %p53 = por %p51, %p52
    %p55 = scmp.ne.s32.totalorder %s38, %s54
    %p56 = scmp.eq.s32.totalorder %s16, 0
    %p57 = por %p55, %p56
    %s59 = sadd.s32 %s58, 1
    %p62 = scmp.eq.s32.totalorder %s10, 1
    %p63 = scmp.ne.s32.totalorder %s58, %s60
    %p64 = scmp.eq.s32.totalorder %s10, 0
    %p65 = por %p63, %p64
    %p66 = scmp.ne.s32.totalorder %s58, %s60
    %p67 = scmp.eq.s32.totalorder %s15, 1
    %p68 = por %p66, %p67
    %p69 = scmp.ne.s32.totalorder %s60, %s61
    %p70 = scmp.eq.s32.totalorder %s15, 0
    %p71 = por %p69, %p70
    %p72 = scmp.ne.s32.totalorder %s60, %s61
    %p73 = scmp.eq.s32.totalorder %s16, 1
    %p74 = por %p72, %p73
    %p76 = scmp.ne.s32.totalorder %s61, %s75
    %p77 = scmp.eq.s32.totalorder %s16, 0
    %p78 = por %p76, %p77
    %s80 = sadd.s32 %s79, 1
    %p83 = scmp.eq.s32.totalorder %s10, 1
    %p84 = scmp.ne.s32.totalorder %s79, %s81
    %p85 = scmp.eq.s32.totalorder %s10, 0
    %p86 = por %p84, %p85
    %p87 = scmp.ne.s32.totalorder %s79, %s81
    %p88 = scmp.eq.s32.totalorder %s15, 1
    %p89 = por %p87, %p88
    %p90 = scmp.ne.s32.totalorder %s81, %s82
    %p91 = scmp.eq.s32.totalorder %s15, 0
    %p92 = por %p90, %p91
    %p93 = scmp.ne.s32.totalorder %s81, %s82
    %p94 = scmp.eq.s32.totalorder %s16, 1
    %p95 = por %p93, %p94
    %p97 = scmp.ne.s32.totalorder %s82, %s96
    %p98 = scmp.eq.s32.totalorder %s16, 0
    %p99 = por %p97, %p98
    %s100 = ssub.s32 %s17, %s29
    %p101 = scmp.eq.s32.totalorder %s100, 0
    %s103 = sadd.s32 %s102, 1
    %s104 = scalar_select %p101, %s102, %s103
    %p107 = pneg %p101
    %p108 = scmp.eq.s32.totalorder %s10, 1
    %p109 = por %p107, %p108
    %p110 = scmp.ne.s32.totalorder %s102, %s105
    %p111 = scmp.eq.s32.totalorder %s10, 0
    %p112 = por %p110, %p111
    %p113 = scmp.ne.s32.totalorder %s102, %s105
    %p114 = scmp.eq.s32.totalorder %s15, 1
    %p115 = por %p113, %p114
    %p116 = scmp.ne.s32.totalorder %s105, %s106
    %p117 = scmp.eq.s32.totalorder %s15, 0
    %p118 = por %p116, %p117
    %p119 = scmp.ne.s32.totalorder %s105, %s106
    %p120 = scmp.eq.s32.totalorder %s16, 1
    %p121 = por %p119, %p120
    %p123 = scmp.ne.s32.totalorder %s106, %s122
    %p124 = scmp.eq.s32.totalorder %s16, 0
    %p125 = por %p123, %p124
    %s126 = ssub.s32 %s17, %s29
    %s127 = ssub.s32 %s18, %s25
    %s128 = sor.u32 %s126, %s127
    %p129 = scmp.eq.s32.totalorder %s128, 0
    %s131 = sadd.s32 %s130, 1
    %s132 = scalar_select %p129, %s130, %s131
    %p135 = pneg %p129
    %p136 = scmp.eq.s32.totalorder %s10, 1
    %p137 = por %p135, %p136
    %p138 = scmp.ne.s32.totalorder %s130, %s133
    %p139 = scmp.eq.s32.totalorder %s10, 0
    %p140 = por %p138, %p139
    %p141 = scmp.ne.s32.totalorder %s130, %s133
    %p142 = scmp.eq.s32.totalorder %s15, 1
    %p143 = por %p141, %p142
    %p144 = scmp.ne.s32.totalorder %s133, %s134
    %p145 = scmp.eq.s32.totalorder %s15, 0
    %p146 = por %p144, %p145
    %p147 = scmp.ne.s32.totalorder %s133, %s134
    %p148 = scmp.eq.s32.totalorder %s16, 1
    %p149 = por %p147, %p148
    %p151 = scmp.ne.s32.totalorder %s134, %s150
    %p152 = scmp.eq.s32.totalorder %s16, 0
    %p153 = por %p151, %p152
    %p154 = scmp.le.s32.totalorder 1, %s10
    %p155 = scmp.lt.s32.totalorder %s10, 3
    %p156 = pnand %p154, %p155
    %p157 = pneg %p156
    // Predicated region
    $region9: #{rrconv_block_forward.20} parent=5 // pred_check
      _
    $region10: #{rrconv_block_forward.20} parent=5 // pred_check_branch
      %159 = sbr.rel (%p156) target = $region12
    $region11: #{rrconv_block_forward.20} parent=5 // pred_region
      %s160 = ssub.s32 %s10, 1
      // Predicated region
      $region13: #{rrconv_block_forward.20} parent=11 // pred_check
        %p161 = pneg %p71
      $region14: #{rrconv_block_forward.20} parent=11 // pred_check_branch
        %163 = sbr.rel (%p161) target = $region16
      $region15: #{rrconv_block_forward.20} parent=11 // pred_region
        _
      $region16: #{rrconv_block_forward.20} parent=11 // pred_fallthru
        _
      // Predicated region
      $region17: #{rrconv_block_forward.20} parent=11 // pred_check
        %p164 = pneg %p92
      $region18: #{rrconv_block_forward.20} parent=11 // pred_check_branch
        %166 = sbr.rel (%p164) target = $region20
      $region19: #{rrconv_block_forward.20} parent=11 // pred_region
        _
      $region20: #{rrconv_block_forward.20} parent=11 // pred_fallthru
        _
    $region12: #{rrconv_block_forward.20} parent=5 // pred_fallthru
      _
    %p167 = scmp.lt.s32.totalorder %s10, 2
    // Predicated region
    $region21: #{rrconv_block_forward.20} parent=5 // pred_check
      %p168 = pneg %p167
    $region22: #{rrconv_block_forward.20} parent=5 // pred_check_branch
      %170 = sbr.rel (%p168) target = $region24
    $region23: #{rrconv_block_forward.20} parent=5 // pred_region
      // Predicated region
      $region25: #{rrconv_block_forward.20} parent=23 // pred_check
        %p171 = pneg %p44
      $region26: #{rrconv_block_forward.20} parent=23 // pred_check_branch
        %173 = sbr.rel (%p171) target = $region28
      $region27: #{rrconv_block_forward.20} parent=23 // pred_region
        %s174 = smul.u32 4, %s18
        %p175 = scmp.lt.s32.totalorder %s17, 1
        %s176 = scalar_select %p175, %s17, 1
        %p177 = scmp.lt.s32.totalorder %s174, 3
        %s178 = scalar_select %p177, %s174, 3
        %s179 = smul.addr %s176, 4
        %s180 = sadd.s32 %s178, %s179
        %s181 = smul.addr %s180, 8
        %s182 = scalar_lea.vmem %s0, %s181
        %s183 = smul.u32 4, %s18
      $region28: #{rrconv_block_forward.20} parent=23 // pred_fallthru
        _
      // Predicated region
      $region29: #{rrconv_block_forward.20} parent=23 // pred_check
        %p184 = pneg %p112
      $region30: #{rrconv_block_forward.20} parent=23 // pred_check_branch
        %186 = sbr.rel (%p184) target = $region32
      $region31: #{rrconv_block_forward.20} parent=23 // pred_region
        %p187 = scmp.lt.s32.totalorder %s17, 1
        %s188 = scalar_select %p187, %s17, 1
        %s189 = scalar_lea.vmem %s3, %s188
      $region32: #{rrconv_block_forward.20} parent=23 // pred_fallthru
        _
    $region24: #{rrconv_block_forward.20} parent=5 // pred_fallthru
      _
    %p190 = scmp.le.s32.totalorder 1, %s10
    %p191 = scmp.lt.s32.totalorder %s10, 3
    %p192 = pnand %p190, %p191
    %p193 = pneg %p192
    // Predicated region
    $region33: #{rrconv_block_forward.20} parent=5 // pred_check
      _
    $region34: #{rrconv_block_forward.20} parent=5 // pred_check_branch
      %195 = sbr.rel (%p192) target = $region36
    $region35: #{rrconv_block_forward.20} parent=5 // pred_region
      %s196 = ssub.s32 %s10, 1
      %s197 = smul.u32 4, %s20
      %p198 = scmp.lt.s32.totalorder %s19, 1
      %s199 = scalar_select %p198, %s19, 1
      %p200 = scmp.lt.s32.totalorder %s197, 3
      %s201 = scalar_select %p200, %s197, 3
      %s202 = smul.addr %s199, 4
      %s203 = sadd.s32 %s201, %s202
      %s204 = smul.addr %s203, 8
      %s205 = scalar_lea.vmem %s0, %s204
      %p206 = pneg %p50
      %p207 = pneg %p47
      %p208 = pneg %p71
      %p209 = pneg %p68
      %p210 = pneg %p92
      %p211 = pneg %p89
      %p212 = scmp.lt.s32.totalorder %s19, 1
      %s213 = scalar_select %p212, %s19, 1
      %s214 = scalar_lea.vmem %s3, %s213
      %p215 = pneg %p118
      %p216 = pneg %p115
      %p217 = pneg %p146
      %p218 = pneg %p143
      %s219 = smul.u32 4, %s20
      %p220 = scmp.lt.s32.totalorder %s19, 1
      %s221 = scalar_select %p220, %s19, 1
      %p222 = scmp.lt.s32.totalorder %s219, 3
      %s223 = scalar_select %p222, %s219, 3
      %s224 = smul.addr %s221, 4
      %s225 = sadd.s32 %s223, %s224
      %s226 = smul.addr %s225, 8
      %s227 = scalar_lea.vmem %s4, %s226
      %s228 = smul.u32 4, %s20
      %p229 = scmp.lt.s32.totalorder %s19, 1
      %s230 = scalar_select %p229, %s19, 1
      %p231 = scmp.lt.s32.totalorder %s228, 3
      %s232 = scalar_select %p231, %s228, 3
      %s233 = smul.addr %s230, 4
      %s234 = sadd.s32 %s232, %s233
      %s235 = smul.addr %s234, 8
      %s236 = scalar_lea.vmem %s0, %s235
      %s237 = smul.u32 4, %s20
      %p238 = scmp.lt.s32.totalorder %s19, 1
      %s239 = scalar_select %p238, %s19, 1
      %s240 = scalar_lea.vmem %s3, %s239
      %s241 = smul.u32 4, %s20
      %p242 = scmp.lt.s32.totalorder %s19, 1
      %s243 = scalar_select %p242, %s19, 1
      %p244 = scmp.lt.s32.totalorder %s241, 3
      %s245 = scalar_select %p244, %s241, 3
      %s246 = smul.addr %s243, 4
      %s247 = sadd.s32 %s245, %s246
      %s248 = smul.addr %s247, 8
      %s249 = scalar_lea.vmem %s4, %s248
      %s250 = smul.u32 4, %s20
      %v251 = vld [vmem:[%s236] sm:$0xff]
      %v252 = vld [vmem:[%s236 + $0x8] sm:$0xff]
      %v253 = vld [vmem:[%s236 + $0x10] sm:$0xff]
      %v254 = vld [vmem:[%s236 + $0x18] sm:$0xff]
      %v255 = vld [vmem:[%s1] sm:$0x1]
      %v257 = vperm.slane %v255, 0
      %v259 = vmul.f32 %v251, %v257
      %v260 = vmul.f32 %v252, %v257
      %v261 = vmul.f32 %v253, %v257
      %v262 = vmul.f32 %v254, %v257
      %v263 = vld [vmem:[%s2] sm:$0x1]
      %v265 = vperm.slane %v263, 0
      %v267 = vadd.f32 %v259, %v265
      %v268 = vadd.f32 %v260, %v265
      %v269 = vadd.f32 %v261, %v265
      %v270 = vadd.f32 %v262, %v265
      %v271 = vld [vmem:[%s240] sm:$0x1]
      %v273 = vperm.slane %v271, 0
      %v275 = vadd.f32 %v267, %v273
      %v276 = vadd.f32 %v268, %v273
      %v277 = vadd.f32 %v269, %v273
      %v278 = vadd.f32 %v270, %v273
      %279 = vst [vmem:[%s249] sm:$0xff] %v275
      %280 = vst [vmem:[%s249 + $0x8] sm:$0xff] %v276
      %281 = vst [vmem:[%s249 + $0x10] sm:$0xff] %v277
      %282 = vst [vmem:[%s249 + $0x18] sm:$0xff] %v278
      %s283 = smul.u32 4, %s20
      %p284 = scmp.lt.s32.totalorder %s19, 1
      %s285 = scalar_select %p284, %s19, 1
      %p286 = scmp.lt.s32.totalorder %s283, 3
      %s287 = scalar_select %p286, %s283, 3
      %s288 = smul.addr %s285, 4
      %s289 = sadd.s32 %s287, %s288
      %s290 = smul.addr %s289, 8
      %s291 = scalar_lea.vmem %s4, %s290
      // Predicated region
      $region37: #{rrconv_block_forward.20} parent=35 // pred_check
        %p292 = pneg %p143
      $region38: #{rrconv_block_forward.20} parent=35 // pred_check_branch
        %294 = sbr.rel (%p292) target = $region40
      $region39: #{rrconv_block_forward.20} parent=35 // pred_region
        %s295 = smul.u32 4, %s20
      $region40: #{rrconv_block_forward.20} parent=35 // pred_fallthru
        _
    $region36: #{rrconv_block_forward.20} parent=5 // pred_fallthru
      _
    %p296 = scmp.le.s32.totalorder 2, %s10
    // Predicated region
    $region41: #{rrconv_block_forward.20} parent=5 // pred_check
      %p297 = pneg %p296
    $region42: #{rrconv_block_forward.20} parent=5 // pred_check_branch
      %299 = sbr.rel (%p297) target = $region44
    $region43: #{rrconv_block_forward.20} parent=5 // pred_region
      %s300 = ssub.s32 %s10, 2
      // Predicated region
      $region45: #{rrconv_block_forward.20} parent=43 // pred_check
        %p301 = pneg %p149
      $region46: #{rrconv_block_forward.20} parent=43 // pred_check_branch
        %303 = sbr.rel (%p301) target = $region48
      $region47: #{rrconv_block_forward.20} parent=43 // pred_region
        %s304 = smul.u32 4, %s22
        %p305 = scmp.lt.s32.totalorder %s21, 1
        %s306 = scalar_select %p305, %s21, 1
        %p307 = scmp.lt.s32.totalorder %s304, 3
        %s308 = scalar_select %p307, %s304, 3
        %s309 = smul.addr %s306, 4
        %s310 = sadd.s32 %s308, %s309
        %s311 = smul.addr %s310, 8
        %s312 = scalar_lea.vmem %s4, %s311
      $region48: #{rrconv_block_forward.20} parent=43 // pred_fallthru
        _
    $region44: #{rrconv_block_forward.20} parent=5 // pred_fallthru
      _
  $region6: #{rrconv_block_forward.20} parent=0 // loop_footer
    %s14 = sadd.s32 1, %s10
  $region7: #{rrconv_block_forward.20} parent=0 // loop_footer_branch
    %9 = sbr.rel target = $region3
  $region8: #{rrconv_block_forward.20} parent=0 // loop_exit
    _

// kernel: rrconv_block_forward.22
$region0: #{rrconv_block_forward.22}
  #allocation0 [shape = 'u32[]', space=smem, size = 0x4, offset = 0x4, fixed_abs, tag = 'smem constant byte address 0x4 - core index']
  #allocation1 [shape = 'u32[72,128]{1,0:T(1,128)}', space=vmem, size = 0x9000, scoped, tag = 'internal scratch']
  %s0 = inlined_call_operand.vmem [shape: f32[2,32,128], index: 0, kind: input, shape index: {}]
  %s1 = inlined_call_operand.vmem [shape: f32[1,128], index: 1, kind: input, shape index: {}]
  %s2 = inlined_call_operand.vmem [shape: f32[1,128], index: 2, kind: input, shape index: {}]
  %s3 = inlined_call_operand.vmem [shape: f32[2,32,128], index: 3, kind: output, shape index: {}]
  %s4 = sld [smem:[#allocation0]]
  $region45: #{rrconv_block_forward.22} parent=0
    _
  %s6 = ssub.s32 1, %s4
  %s7 = scalar_select 0, %s6, %s4
  loop: start=0, step=1, limit=4
  $region2: #{rrconv_block_forward.22} parent=0 // loop_pre_header
    _
  $region3: #{rrconv_block_forward.22} parent=0 // loop_header
    %s9 = sphi 0, %s13
    %p10 = scmp.ge.s32.totalorder %s9, 4
    %s16 = sphi 0, %s28
    %s17 = sphi 0, %s24
    %s18 = sphi 0, %s16
    %s19 = sphi 0, %s17
    %s20 = sphi 0, %s18
    %s21 = sphi 0, %s19
    %s33 = sphi 0, %s35
    %s36 = sphi 0, %s33
    %s37 = sphi 0, %s36
    %s53 = sphi 0, %s37
    %s57 = sphi 0, %s57
    %s59 = sphi 0, %s57
    %s60 = sphi 0, %s59
    %s74 = sphi 0, %s60
    %s78 = sphi 0, %s78
    %s80 = sphi 0, %s78
    %s81 = sphi 0, %s80
    %s95 = sphi 0, %s81
    %s103 = sphi 0, %s105
    %s106 = sphi 0, %s103
    %s107 = sphi 0, %s106
    %s123 = sphi 0, %s107
  $region4: #{rrconv_block_forward.22} parent=0 // loop_header_branch
    %12 = sbr.rel (%p10) target = $region8
  $region5: #{rrconv_block_forward.22} parent=0 // loop_body
    %s14 = ssub.s32 %s9, 1
    %s15 = ssub.s32 %s9, 2
    %s22 = sadd.s32 1, %s17
    %p23 = scmp.ge.s32.totalorder %s22, 1
    %s24 = scalar_select %p23, 0, %s22
    %s25 = sadd.s32 1, %s16
    %s26 = scalar_select %p23, %s25, %s16
    %p27 = scmp.ge.s32.totalorder %s26, 2
    %s28 = scalar_select %p27, 0, %s26
    %s29 = ssub.s32 %s16, %s28
    %s30 = ssub.s32 %s17, %s24
    %s31 = sor.u32 %s29, %s30
    %p32 = scmp.eq.s32.totalorder %s31, 0
    %s34 = sadd.s32 %s33, 1
    %s35 = scalar_select %p32, %s33, %s34
    %p38 = pneg %p32
    %p39 = scmp.eq.s32.totalorder %s9, 1
    %p40 = por %p38, %p39
    %p41 = scmp.ne.s32.totalorder %s33, %s36
    %p42 = scmp.eq.s32.totalorder %s9, 0
    %p43 = por %p41, %p42
    %p44 = scmp.ne.s32.totalorder %s33, %s36
    %p45 = scmp.eq.s32.totalorder %s14, 1
    %p46 = por %p44, %p45
    %p47 = scmp.ne.s32.totalorder %s36, %s37
    %p48 = scmp.eq.s32.totalorder %s14, 0
    %p49 = por %p47, %p48
    %p50 = scmp.ne.s32.totalorder %s36, %s37
    %p51 = scmp.eq.s32.totalorder %s15, 1
    %p52 = por %p50, %p51
    %p54 = scmp.ne.s32.totalorder %s37, %s53
    %p55 = scmp.eq.s32.totalorder %s15, 0
    %p56 = por %p54, %p55
    %s58 = sadd.s32 %s57, 1
    %p61 = scmp.eq.s32.totalorder %s9, 1
    %p62 = scmp.ne.s32.totalorder %s57, %s59
    %p63 = scmp.eq.s32.totalorder %s9, 0
    %p64 = por %p62, %p63
    %p65 = scmp.ne.s32.totalorder %s57, %s59
    %p66 = scmp.eq.s32.totalorder %s14, 1
    %p67 = por %p65, %p66
    %p68 = scmp.ne.s32.totalorder %s59, %s60
    %p69 = scmp.eq.s32.totalorder %s14, 0
    %p70 = por %p68, %p69
    %p71 = scmp.ne.s32.totalorder %s59, %s60
    %p72 = scmp.eq.s32.totalorder %s15, 1
    %p73 = por %p71, %p72
    %p75 = scmp.ne.s32.totalorder %s60, %s74
    %p76 = scmp.eq.s32.totalorder %s15, 0
    %p77 = por %p75, %p76
    %s79 = sadd.s32 %s78, 1
    %p82 = scmp.eq.s32.totalorder %s9, 1
    %p83 = scmp.ne.s32.totalorder %s78, %s80
    %p84 = scmp.eq.s32.totalorder %s9, 0
    %p85 = por %p83, %p84
    %p86 = scmp.ne.s32.totalorder %s78, %s80
    %p87 = scmp.eq.s32.totalorder %s14, 1
    %p88 = por %p86, %p87
    %p89 = scmp.ne.s32.totalorder %s80, %s81
    %p90 = scmp.eq.s32.totalorder %s14, 0
    %p91 = por %p89, %p90
    %p92 = scmp.ne.s32.totalorder %s80, %s81
    %p93 = scmp.eq.s32.totalorder %s15, 1
    %p94 = por %p92, %p93
    %p96 = scmp.ne.s32.totalorder %s81, %s95
    %p97 = scmp.eq.s32.totalorder %s15, 0
    %p98 = por %p96, %p97
    %s99 = ssub.s32 %s16, %s28
    %s100 = ssub.s32 %s17, %s24
    %s101 = sor.u32 %s99, %s100
    %p102 = scmp.eq.s32.totalorder %s101, 0
    %s104 = sadd.s32 %s103, 1
    %s105 = scalar_select %p102, %s103, %s104
    %p108 = pneg %p102
    %p109 = scmp.eq.s32.totalorder %s9, 1
    %p110 = por %p108, %p109
    %p111 = scmp.ne.s32.totalorder %s103, %s106
    %p112 = scmp.eq.s32.totalorder %s9, 0
    %p113 = por %p111, %p112
    %p114 = scmp.ne.s32.totalorder %s103, %s106
    %p115 = scmp.eq.s32.totalorder %s14, 1
    %p116 = por %p114, %p115
    %p117 = scmp.ne.s32.totalorder %s106, %s107
    %p118 = scmp.eq.s32.totalorder %s14, 0
    %p119 = por %p117, %p118
    %p120 = scmp.ne.s32.totalorder %s106, %s107
    %p121 = scmp.eq.s32.totalorder %s15, 1
    %p122 = por %p120, %p121
    %p124 = scmp.ne.s32.totalorder %s107, %s123
    %p125 = scmp.eq.s32.totalorder %s15, 0
    %p126 = por %p124, %p125
    %p127 = scmp.le.s32.totalorder 1, %s9
    %p128 = scmp.lt.s32.totalorder %s9, 3
    %p129 = pnand %p127, %p128
    %p130 = pneg %p129
    // Predicated region
    $region9: #{rrconv_block_forward.22} parent=5 // pred_check
      _
    $region10: #{rrconv_block_forward.22} parent=5 // pred_check_branch
      %132 = sbr.rel (%p129) target = $region12
    $region11: #{rrconv_block_forward.22} parent=5 // pred_region
      %s133 = ssub.s32 %s9, 1
      // Predicated region
      $region13: #{rrconv_block_forward.22} parent=11 // pred_check
        %p134 = pneg %p70
      $region14: #{rrconv_block_forward.22} parent=11 // pred_check_branch
        %136 = sbr.rel (%p134) target = $region16
      $region15: #{rrconv_block_forward.22} parent=11 // pred_region
        _
      $region16: #{rrconv_block_forward.22} parent=11 // pred_fallthru
        _
      // Predicated region
      $region17: #{rrconv_block_forward.22} parent=11 // pred_check
        %p137 = pneg %p91
      $region18: #{rrconv_block_forward.22} parent=11 // pred_check_branch
        %139 = sbr.rel (%p137) target = $region20
      $region19: #{rrconv_block_forward.22} parent=11 // pred_region
        _
      $region20: #{rrconv_block_forward.22} parent=11 // pred_fallthru
        _
    $region12: #{rrconv_block_forward.22} parent=5 // pred_fallthru
      _
    %p140 = scmp.lt.s32.totalorder %s9, 2
    // Predicated region
    $region21: #{rrconv_block_forward.22} parent=5 // pred_check
      %p141 = pneg %p140
    $region22: #{rrconv_block_forward.22} parent=5 // pred_check_branch
      %143 = sbr.rel (%p141) target = $region24
    $region23: #{rrconv_block_forward.22} parent=5 // pred_region
      // Predicated region
      $region25: #{rrconv_block_forward.22} parent=23 // pred_check
        %p144 = pneg %p43
      $region26: #{rrconv_block_forward.22} parent=23 // pred_check_branch
        %146 = sbr.rel (%p144) target = $region28
      $region27: #{rrconv_block_forward.22} parent=23 // pred_region
        %s147 = smul.u32 4, %s17
        %p148 = scmp.lt.s32.totalorder %s16, 1
        %s149 = scalar_select %p148, %s16, 1
        %p150 = scmp.lt.s32.totalorder %s147, 3
        %s151 = scalar_select %p150, %s147, 3
        %s152 = smul.addr %s149, 4
        %s153 = sadd.s32 %s151, %s152
        %s154 = smul.addr %s153, 8
        %s155 = scalar_lea.vmem %s0, %s154
        %s156 = smul.u32 4, %s17
      $region28: #{rrconv_block_forward.22} parent=23 // pred_fallthru
        _
    $region24: #{rrconv_block_forward.22} parent=5 // pred_fallthru
      _
    %p157 = scmp.le.s32.totalorder 1, %s9
    %p158 = scmp.lt.s32.totalorder %s9, 3
    %p159 = pnand %p157, %p158
    %p160 = pneg %p159
    // Predicated region
    $region29: #{rrconv_block_forward.22} parent=5 // pred_check
      _
    $region30: #{rrconv_block_forward.22} parent=5 // pred_check_branch
      %162 = sbr.rel (%p159) target = $region32
    $region31: #{rrconv_block_forward.22} parent=5 // pred_region
      %s163 = ssub.s32 %s9, 1
      %s164 = smul.u32 4, %s19
      %p165 = scmp.lt.s32.totalorder %s18, 1
      %s166 = scalar_select %p165, %s18, 1
      %p167 = scmp.lt.s32.totalorder %s164, 3
      %s168 = scalar_select %p167, %s164, 3
      %s169 = smul.addr %s166, 4
      %s170 = sadd.s32 %s168, %s169
      %s171 = smul.addr %s170, 8
      %s172 = scalar_lea.vmem %s0, %s171
      %p173 = pneg %p49
      %p174 = pneg %p46
      %p175 = pneg %p70
      %p176 = pneg %p67
      %p177 = pneg %p91
      %p178 = pneg %p88
      %p179 = pneg %p119
      %p180 = pneg %p116
      %s181 = smul.u32 4, %s19
      %p182 = scmp.lt.s32.totalorder %s18, 1
      %s183 = scalar_select %p182, %s18, 1
      %p184 = scmp.lt.s32.totalorder %s181, 3
      %s185 = scalar_select %p184, %s181, 3
      %s186 = smul.addr %s183, 4
      %s187 = sadd.s32 %s185, %s186
      %s188 = smul.addr %s187, 8
      %s189 = scalar_lea.vmem %s3, %s188
      %s190 = smul.u32 4, %s19
      %p191 = scmp.lt.s32.totalorder %s18, 1
      %s192 = scalar_select %p191, %s18, 1
      %p193 = scmp.lt.s32.totalorder %s190, 3
      %s194 = scalar_select %p193, %s190, 3
      %s195 = smul.addr %s192, 4
      %s196 = sadd.s32 %s194, %s195
      %s197 = smul.addr %s196, 8
      %s198 = scalar_lea.vmem %s0, %s197
      %s199 = smul.u32 4, %s19
      %s200 = smul.u32 4, %s19
      %p201 = scmp.lt.s32.totalorder %s18, 1
      %s202 = scalar_select %p201, %s18, 1
      %p203 = scmp.lt.s32.totalorder %s200, 3
      %s204 = scalar_select %p203, %s200, 3
      %s205 = smul.addr %s202, 4
      %s206 = sadd.s32 %s204, %s205
      %s207 = smul.addr %s206, 8
      %s208 = scalar_lea.vmem %s3, %s207
      %s209 = smul.u32 4, %s19
      %v210 = vld [vmem:[%s198] sm:$0xff]
      %v211 = vld [vmem:[%s198 + $0x8] sm:$0xff]
      %v212 = vld [vmem:[%s198 + $0x10] sm:$0xff]
      %v213 = vld [vmem:[%s198 + $0x18] sm:$0xff]
      %v214 = vld [vmem:[%s1] sm:$0x1]
      %v216 = vperm.slane %v214, 0
      %v218 = vmul.f32 %v210, %v216
      %v219 = vmul.f32 %v211, %v216
      %v220 = vmul.f32 %v212, %v216
      %v221 = vmul.f32 %v213, %v216
      %v222 = vld [vmem:[%s2] sm:$0x1]
      %v224 = vperm.slane %v222, 0
      %v226 = vadd.f32 %v218, %v224
      %v227 = vadd.f32 %v219, %v224
      %v228 = vadd.f32 %v220, %v224
      %v229 = vadd.f32 %v221, %v224
      %230 = vst [vmem:[%s208] sm:$0xff] %v226
      %231 = vst [vmem:[%s208 + $0x8] sm:$0xff] %v227
      %232 = vst [vmem:[%s208 + $0x10] sm:$0xff] %v228
      %233 = vst [vmem:[%s208 + $0x18] sm:$0xff] %v229
      %s234 = smul.u32 4, %s19
      %p235 = scmp.lt.s32.totalorder %s18, 1
      %s236 = scalar_select %p235, %s18, 1
      %p237 = scmp.lt.s32.totalorder %s234, 3
      %s238 = scalar_select %p237, %s234, 3
      %s239 = smul.addr %s236, 4
      %s240 = sadd.s32 %s238, %s239
      %s241 = smul.addr %s240, 8
      %s242 = scalar_lea.vmem %s3, %s241
      // Predicated region
      $region33: #{rrconv_block_forward.22} parent=31 // pred_check
        %p243 = pneg %p116
      $region34: #{rrconv_block_forward.22} parent=31 // pred_check_branch
        %245 = sbr.rel (%p243) target = $region36
      $region35: #{rrconv_block_forward.22} parent=31 // pred_region
        %s246 = smul.u32 4, %s19
      $region36: #{rrconv_block_forward.22} parent=31 // pred_fallthru
        _
    $region32: #{rrconv_block_forward.22} parent=5 // pred_fallthru
      _
    %p247 = scmp.le.s32.totalorder 2, %s9
    // Predicated region
    $region37: #{rrconv_block_forward.22} parent=5 // pred_check
      %p248 = pneg %p247
    $region38: #{rrconv_block_forward.22} parent=5 // pred_check_branch
      %250 = sbr.rel (%p248) target = $region40
    $region39: #{rrconv_block_forward.22} parent=5 // pred_region
      %s251 = ssub.s32 %s9, 2
      // Predicated region
      $region41: #{rrconv_block_forward.22} parent=39 // pred_check
        %p252 = pneg %p122
      $region42: #{rrconv_block_forward.22} parent=39 // pred_check_branch
        %254 = sbr.rel (%p252) target = $region44
      $region43: #{rrconv_block_forward.22} parent=39 // pred_region
        %s255 = smul.u32 4, %s21
        %p256 = scmp.lt.s32.totalorder %s20, 1
        %s257 = scalar_select %p256, %s20, 1
        %p258 = scmp.lt.s32.totalorder %s255, 3
        %s259 = scalar_select %p258, %s255, 3
        %s260 = smul.addr %s257, 4
        %s261 = sadd.s32 %s259, %s260
        %s262 = smul.addr %s261, 8
        %s263 = scalar_lea.vmem %s3, %s262
      $region44: #{rrconv_block_forward.22} parent=39 // pred_fallthru
        _
    $region40: #{rrconv_block_forward.22} parent=5 // pred_fallthru
      _
  $region6: #{rrconv_block_forward.22} parent=0 // loop_footer
    %s13 = sadd.s32 1, %s9
  $region7: #{rrconv_block_forward.22} parent=0 // loop_footer_branch
    %8 = sbr.rel target = $region3
  $region8: #{rrconv_block_forward.22} parent=0 // loop_exit
    _

// kernel: rrconv_block_forward.24
$region0: #{rrconv_block_forward.24}
  #allocation0 [shape = 'u32[]', space=smem, size = 0x4, offset = 0x4, fixed_abs, tag = 'smem constant byte address 0x4 - core index']
  #allocation1 [shape = 'u32[72,128]{1,0:T(1,128)}', space=vmem, size = 0x9000, scoped, tag = 'internal scratch']
  %s0 = inlined_call_operand.vmem [shape: f32[2,32,128], index: 0, kind: input, shape index: {}]
  %s1 = inlined_call_operand.vmem [shape: f32[1,128], index: 1, kind: input, shape index: {}]
  %s2 = inlined_call_operand.vmem [shape: f32[1,128], index: 2, kind: input, shape index: {}]
  %s3 = inlined_call_operand.vmem [shape: f32[2,32,128], index: 3, kind: input, shape index: {}]
  %s4 = inlined_call_operand.vmem [shape: f32[2,32,128], index: 4, kind: output, shape index: {}]
  %s5 = sld [smem:[#allocation0]]
  $region49: #{rrconv_block_forward.24} parent=0
    _
  %s7 = ssub.s32 1, %s5
  %s8 = scalar_select 0, %s7, %s5
  loop: start=0, step=1, limit=4
  $region2: #{rrconv_block_forward.24} parent=0 // loop_pre_header
    _
  $region3: #{rrconv_block_forward.24} parent=0 // loop_header
    %s10 = sphi 0, %s14
    %p11 = scmp.ge.s32.totalorder %s10, 4
    %s17 = sphi 0, %s29
    %s18 = sphi 0, %s25
    %s19 = sphi 0, %s17
    %s20 = sphi 0, %s18
    %s21 = sphi 0, %s19
    %s22 = sphi 0, %s20
    %s34 = sphi 0, %s36
    %s37 = sphi 0, %s34
    %s38 = sphi 0, %s37
    %s54 = sphi 0, %s38
    %s58 = sphi 0, %s58
    %s60 = sphi 0, %s58
    %s61 = sphi 0, %s60
    %s75 = sphi 0, %s61
    %s79 = sphi 0, %s79
    %s81 = sphi 0, %s79
    %s82 = sphi 0, %s81
    %s96 = sphi 0, %s82
    %s104 = sphi 0, %s106
    %s107 = sphi 0, %s104
    %s108 = sphi 0, %s107
    %s124 = sphi 0, %s108
    %s132 = sphi 0, %s134
    %s135 = sphi 0, %s132
    %s136 = sphi 0, %s135
    %s152 = sphi 0, %s136
  $region4: #{rrconv_block_forward.24} parent=0 // loop_header_branch
    %13 = sbr.rel (%p11) target = $region8
  $region5: #{rrconv_block_forward.24} parent=0 // loop_body
    %s15 = ssub.s32 %s10, 1
    %s16 = ssub.s32 %s10, 2
    %s23 = sadd.s32 1, %s18
    %p24 = scmp.ge.s32.totalorder %s23, 1
    %s25 = scalar_select %p24, 0, %s23
    %s26 = sadd.s32 1, %s17
    %s27 = scalar_select %p24, %s26, %s17
    %p28 = scmp.ge.s32.totalorder %s27, 2
    %s29 = scalar_select %p28, 0, %s27
    %s30 = ssub.s32 %s17, %s29
    %s31 = ssub.s32 %s18, %s25
    %s32 = sor.u32 %s30, %s31
    %p33 = scmp.eq.s32.totalorder %s32, 0
    %s35 = sadd.s32 %s34, 1
    %s36 = scalar_select %p33, %s34, %s35
    %p39 = pneg %p33
    %p40 = scmp.eq.s32.totalorder %s10, 1
    %p41 = por %p39, %p40
    %p42 = scmp.ne.s32.totalorder %s34, %s37
    %p43 = scmp.eq.s32.totalorder %s10, 0
    %p44 = por %p42, %p43
    %p45 = scmp.ne.s32.totalorder %s34, %s37
    %p46 = scmp.eq.s32.totalorder %s15, 1
    %p47 = por %p45, %p46
    %p48 = scmp.ne.s32.totalorder %s37, %s38
    %p49 = scmp.eq.s32.totalorder %s15, 0
    %p50 = por %p48, %p49
    %p51 = scmp.ne.s32.totalorder %s37, %s38
    %p52 = scmp.eq.s32.totalorder %s16, 1
    %p53 = por %p51, %p52
    %p55 = scmp.ne.s32.totalorder %s38, %s54
    %p56 = scmp.eq.s32.totalorder %s16, 0
    %p57 = por %p55, %p56
    %s59 = sadd.s32 %s58, 1
    %p62 = scmp.eq.s32.totalorder %s10, 1
    %p63 = scmp.ne.s32.totalorder %s58, %s60
    %p64 = scmp.eq.s32.totalorder %s10, 0
    %p65 = por %p63, %p64
    %p66 = scmp.ne.s32.totalorder %s58, %s60
    %p67 = scmp.eq.s32.totalorder %s15, 1
    %p68 = por %p66, %p67
    %p69 = scmp.ne.s32.totalorder %s60, %s61
    %p70 = scmp.eq.s32.totalorder %s15, 0
    %p71 = por %p69, %p70
    %p72 = scmp.ne.s32.totalorder %s60, %s61
    %p73 = scmp.eq.s32.totalorder %s16, 1
    %p74 = por %p72, %p73
    %p76 = scmp.ne.s32.totalorder %s61, %s75
    %p77 = scmp.eq.s32.totalorder %s16, 0
    %p78 = por %p76, %p77
    %s80 = sadd.s32 %s79, 1
    %p83 = scmp.eq.s32.totalorder %s10, 1
    %p84 = scmp.ne.s32.totalorder %s79, %s81
    %p85 = scmp.eq.s32.totalorder %s10, 0
    %p86 = por %p84, %p85
    %p87 = scmp.ne.s32.totalorder %s79, %s81
    %p88 = scmp.eq.s32.totalorder %s15, 1
    %p89 = por %p87, %p88
    %p90 = scmp.ne.s32.totalorder %s81, %s82
    %p91 = scmp.eq.s32.totalorder %s15, 0
    %p92 = por %p90, %p91
    %p93 = scmp.ne.s32.totalorder %s81, %s82
    %p94 = scmp.eq.s32.totalorder %s16, 1
    %p95 = por %p93, %p94
    %p97 = scmp.ne.s32.totalorder %s82, %s96
    %p98 = scmp.eq.s32.totalorder %s16, 0
    %p99 = por %p97, %p98
    %s100 = ssub.s32 %s17, %s29
    %s101 = ssub.s32 %s18, %s25
    %s102 = sor.u32 %s100, %s101
    %p103 = scmp.eq.s32.totalorder %s102, 0
    %s105 = sadd.s32 %s104, 1
    %s106 = scalar_select %p103, %s104, %s105
    %p109 = pneg %p103
    %p110 = scmp.eq.s32.totalorder %s10, 1
    %p111 = por %p109, %p110
    %p112 = scmp.ne.s32.totalorder %s104, %s107
    %p113 = scmp.eq.s32.totalorder %s10, 0
    %p114 = por %p112, %p113
    %p115 = scmp.ne.s32.totalorder %s104, %s107
    %p116 = scmp.eq.s32.totalorder %s15, 1
    %p117 = por %p115, %p116
    %p118 = scmp.ne.s32.totalorder %s107, %s108
    %p119 = scmp.eq.s32.totalorder %s15, 0
    %p120 = por %p118, %p119
    %p121 = scmp.ne.s32.totalorder %s107, %s108
    %p122 = scmp.eq.s32.totalorder %s16, 1
    %p123 = por %p121, %p122
    %p125 = scmp.ne.s32.totalorder %s108, %s124
    %p126 = scmp.eq.s32.totalorder %s16, 0
    %p127 = por %p125, %p126
    %s128 = ssub.s32 %s17, %s29
    %s129 = ssub.s32 %s18, %s25
    %s130 = sor.u32 %s128, %s129
    %p131 = scmp.eq.s32.totalorder %s130, 0
    %s133 = sadd.s32 %s132, 1
    %s134 = scalar_select %p131, %s132, %s133
    %p137 = pneg %p131
    %p138 = scmp.eq.s32.totalorder %s10, 1
    %p139 = por %p137, %p138
    %p140 = scmp.ne.s32.totalorder %s132, %s135
    %p141 = scmp.eq.s32.totalorder %s10, 0
    %p142 = por %p140, %p141
    %p143 = scmp.ne.s32.totalorder %s132, %s135
    %p144 = scmp.eq.s32.totalorder %s15, 1
    %p145 = por %p143, %p144
    %p146 = scmp.ne.s32.totalorder %s135, %s136
    %p147 = scmp.eq.s32.totalorder %s15, 0
    %p148 = por %p146, %p147
    %p149 = scmp.ne.s32.totalorder %s135, %s136
    %p150 = scmp.eq.s32.totalorder %s16, 1
    %p151 = por %p149, %p150
    %p153 = scmp.ne.s32.totalorder %s136, %s152
    %p154 = scmp.eq.s32.totalorder %s16, 0
    %p155 = por %p153, %p154
    %p156 = scmp.le.s32.totalorder 1, %s10
    %p157 = scmp.lt.s32.totalorder %s10, 3
    %p158 = pnand %p156, %p157
    %p159 = pneg %p158
    // Predicated region
    $region9: #{rrconv_block_forward.24} parent=5 // pred_check
      _
    $region10: #{rrconv_block_forward.24} parent=5 // pred_check_branch
      %161 = sbr.rel (%p158) target = $region12
    $region11: #{rrconv_block_forward.24} parent=5 // pred_region
      %s162 = ssub.s32 %s10, 1
      // Predicated region
      $region13: #{rrconv_block_forward.24} parent=11 // pred_check
        %p163 = pneg %p71
      $region14: #{rrconv_block_forward.24} parent=11 // pred_check_branch
        %165 = sbr.rel (%p163) target = $region16
      $region15: #{rrconv_block_forward.24} parent=11 // pred_region
        _
      $region16: #{rrconv_block_forward.24} parent=11 // pred_fallthru
        _
      // Predicated region
      $region17: #{rrconv_block_forward.24} parent=11 // pred_check
        %p166 = pneg %p92
      $region18: #{rrconv_block_forward.24} parent=11 // pred_check_branch
        %168 = sbr.rel (%p166) target = $region20
      $region19: #{rrconv_block_forward.24} parent=11 // pred_region
        _
      $region20: #{rrconv_block_forward.24} parent=11 // pred_fallthru
        _
    $region12: #{rrconv_block_forward.24} parent=5 // pred_fallthru
      _
    %p169 = scmp.lt.s32.totalorder %s10, 2
    // Predicated region
    $region21: #{rrconv_block_forward.24} parent=5 // pred_check
      %p170 = pneg %p169
    $region22: #{rrconv_block_forward.24} parent=5 // pred_check_branch
      %172 = sbr.rel (%p170) target = $region24
    $region23: #{rrconv_block_forward.24} parent=5 // pred_region
      // Predicated region
      $region25: #{rrconv_block_forward.24} parent=23 // pred_check
        %p173 = pneg %p44
      $region26: #{rrconv_block_forward.24} parent=23 // pred_check_branch
        %175 = sbr.rel (%p173) target = $region28
      $region27: #{rrconv_block_forward.24} parent=23 // pred_region
        %s176 = smul.u32 4, %s18
        %p177 = scmp.lt.s32.totalorder %s17, 1
        %s178 = scalar_select %p177, %s17, 1
        %p179 = scmp.lt.s32.totalorder %s176, 3
        %s180 = scalar_select %p179, %s176, 3
        %s181 = smul.addr %s178, 4
        %s182 = sadd.s32 %s180, %s181
        %s183 = smul.addr %s182, 8
        %s184 = scalar_lea.vmem %s0, %s183
        %s185 = smul.u32 4, %s18
      $region28: #{rrconv_block_forward.24} parent=23 // pred_fallthru
        _
      // Predicated region
      $region29: #{rrconv_block_forward.24} parent=23 // pred_check
        %p186 = pneg %p114
      $region30: #{rrconv_block_forward.24} parent=23 // pred_check_branch
        %188 = sbr.rel (%p186) target = $region32
      $region31: #{rrconv_block_forward.24} parent=23 // pred_region
        %s189 = smul.u32 4, %s18
        %p190 = scmp.lt.s32.totalorder %s17, 1
        %s191 = scalar_select %p190, %s17, 1
        %p192 = scmp.lt.s32.totalorder %s189, 3
        %s193 = scalar_select %p192, %s189, 3
        %s194 = smul.addr %s191, 4
        %s195 = sadd.s32 %s193, %s194
        %s196 = smul.addr %s195, 8
        %s197 = scalar_lea.vmem %s3, %s196
        %s198 = smul.u32 4, %s18
      $region32: #{rrconv_block_forward.24} parent=23 // pred_fallthru
        _
    $region24: #{rrconv_block_forward.24} parent=5 // pred_fallthru
      _
    %p199 = scmp.le.s32.totalorder 1, %s10
    %p200 = scmp.lt.s32.totalorder %s10, 3
    %p201 = pnand %p199, %p200
    %p202 = pneg %p201
    // Predicated region
    $region33: #{rrconv_block_forward.24} parent=5 // pred_check
      _
    $region34: #{rrconv_block_forward.24} parent=5 // pred_check_branch
      %204 = sbr.rel (%p201) target = $region36
    $region35: #{rrconv_block_forward.24} parent=5 // pred_region
      %s205 = ssub.s32 %s10, 1
      %s206 = smul.u32 4, %s20
      %p207 = scmp.lt.s32.totalorder %s19, 1
      %s208 = scalar_select %p207, %s19, 1
      %p209 = scmp.lt.s32.totalorder %s206, 3
      %s210 = scalar_select %p209, %s206, 3
      %s211 = smul.addr %s208, 4
      %s212 = sadd.s32 %s210, %s211
      %s213 = smul.addr %s212, 8
      %s214 = scalar_lea.vmem %s0, %s213
      %p215 = pneg %p50
      %p216 = pneg %p47
      %p217 = pneg %p71
      %p218 = pneg %p68
      %p219 = pneg %p92
      %p220 = pneg %p89
      %s221 = smul.u32 4, %s20
      %p222 = scmp.lt.s32.totalorder %s19, 1
      %s223 = scalar_select %p222, %s19, 1
      %p224 = scmp.lt.s32.totalorder %s221, 3
      %s225 = scalar_select %p224, %s221, 3
      %s226 = smul.addr %s223, 4
      %s227 = sadd.s32 %s225, %s226
      %s228 = smul.addr %s227, 8
      %s229 = scalar_lea.vmem %s3, %s228
      %p230 = pneg %p120
      %p231 = pneg %p117
      %p232 = pneg %p148
      %p233 = pneg %p145
      %s234 = smul.u32 4, %s20
      %p235 = scmp.lt.s32.totalorder %s19, 1
      %s236 = scalar_select %p235, %s19, 1
      %p237 = scmp.lt.s32.totalorder %s234, 3
      %s238 = scalar_select %p237, %s234, 3
      %s239 = smul.addr %s236, 4
      %s240 = sadd.s32 %s238, %s239
      %s241 = smul.addr %s240, 8
      %s242 = scalar_lea.vmem %s4, %s241
      %s243 = smul.u32 4, %s20
      %p244 = scmp.lt.s32.totalorder %s19, 1
      %s245 = scalar_select %p244, %s19, 1
      %p246 = scmp.lt.s32.totalorder %s243, 3
      %s247 = scalar_select %p246, %s243, 3
      %s248 = smul.addr %s245, 4
      %s249 = sadd.s32 %s247, %s248
      %s250 = smul.addr %s249, 8
      %s251 = scalar_lea.vmem %s0, %s250
      %s252 = smul.u32 4, %s20
      %s253 = smul.u32 4, %s20
      %p254 = scmp.lt.s32.totalorder %s19, 1
      %s255 = scalar_select %p254, %s19, 1
      %p256 = scmp.lt.s32.totalorder %s253, 3
      %s257 = scalar_select %p256, %s253, 3
      %s258 = smul.addr %s255, 4
      %s259 = sadd.s32 %s257, %s258
      %s260 = smul.addr %s259, 8
      %s261 = scalar_lea.vmem %s3, %s260
      %s262 = smul.u32 4, %s20
      %s263 = smul.u32 4, %s20
      %p264 = scmp.lt.s32.totalorder %s19, 1
      %s265 = scalar_select %p264, %s19, 1
      %p266 = scmp.lt.s32.totalorder %s263, 3
      %s267 = scalar_select %p266, %s263, 3
      %s268 = smul.addr %s265, 4
      %s269 = sadd.s32 %s267, %s268
      %s270 = smul.addr %s269, 8
      %s271 = scalar_lea.vmem %s4, %s270
      %s272 = smul.u32 4, %s20
      %v273 = vld [vmem:[%s251] sm:$0xff]
      %v274 = vld [vmem:[%s251 + $0x8] sm:$0xff]
      %v275 = vld [vmem:[%s251 + $0x10] sm:$0xff]
      %v276 = vld [vmem:[%s251 + $0x18] sm:$0xff]
      %v277 = vld [vmem:[%s1] sm:$0x1]
      %v279 = vperm.slane %v277, 0
      %v281 = vmul.f32 %v273, %v279
      %v282 = vmul.f32 %v274, %v279
      %v283 = vmul.f32 %v275, %v279
      %v284 = vmul.f32 %v276, %v279
      %v285 = vld [vmem:[%s2] sm:$0x1]
      %v287 = vperm.slane %v285, 0
      %v289 = vadd.f32 %v281, %v287
      %v290 = vadd.f32 %v282, %v287
      %v291 = vadd.f32 %v283, %v287
      %v292 = vadd.f32 %v284, %v287
      %v293 = vmax.f32 %v289, 0.0
      %v294 = vmax.f32 %v290, 0.0
      %v295 = vmax.f32 %v291, 0.0
      %v296 = vmax.f32 %v292, 0.0
      %v297 = vld [vmem:[%s261] sm:$0xff]
      %v298 = vld [vmem:[%s261 + $0x8] sm:$0xff]
      %v299 = vld [vmem:[%s261 + $0x10] sm:$0xff]
      %v300 = vld [vmem:[%s261 + $0x18] sm:$0xff]
      %v301 = vadd.f32 %v293, %v297
      %v302 = vadd.f32 %v294, %v298
      %v303 = vadd.f32 %v295, %v299
      %v304 = vadd.f32 %v296, %v300
      %305 = vst [vmem:[%s271] sm:$0xff] %v301
      %306 = vst [vmem:[%s271 + $0x8] sm:$0xff] %v302
      %307 = vst [vmem:[%s271 + $0x10] sm:$0xff] %v303
      %308 = vst [vmem:[%s271 + $0x18] sm:$0xff] %v304
      %s309 = smul.u32 4, %s20
      %p310 = scmp.lt.s32.totalorder %s19, 1
      %s311 = scalar_select %p310, %s19, 1
      %p312 = scmp.lt.s32.totalorder %s309, 3
      %s313 = scalar_select %p312, %s309, 3
      %s314 = smul.addr %s311, 4
      %s315 = sadd.s32 %s313, %s314
      %s316 = smul.addr %s315, 8
      %s317 = scalar_lea.vmem %s4, %s316
      // Predicated region
      $region37: #{rrconv_block_forward.24} parent=35 // pred_check
        %p318 = pneg %p145
      $region38: #{rrconv_block_forward.24} parent=35 // pred_check_branch
        %320 = sbr.rel (%p318) target = $region40
      $region39: #{rrconv_block_forward.24} parent=35 // pred_region
        %s321 = smul.u32 4, %s20
      $region40: #{rrconv_block_forward.24} parent=35 // pred_fallthru
        _
    $region36: #{rrconv_block_forward.24} parent=5 // pred_fallthru
      _
    %p322 = scmp.le.s32.totalorder 2, %s10
    // Predicated region
    $region41: #{rrconv_block_forward.24} parent=5 // pred_check
      %p323 = pneg %p322
    $region42: #{rrconv_block_forward.24} parent=5 // pred_check_branch
      %325 = sbr.rel (%p323) target = $region44
    $region43: #{rrconv_block_forward.24} parent=5 // pred_region
      %s326 = ssub.s32 %s10, 2
      // Predicated region
      $region45: #{rrconv_block_forward.24} parent=43 // pred_check
        %p327 = pneg %p151
      $region46: #{rrconv_block_forward.24} parent=43 // pred_check_branch
        %329 = sbr.rel (%p327) target = $region48
      $region47: #{rrconv_block_forward.24} parent=43 // pred_region
        %s330 = smul.u32 4, %s22
        %p331 = scmp.lt.s32.totalorder %s21, 1
        %s332 = scalar_select %p331, %s21, 1
        %p333 = scmp.lt.s32.totalorder %s330, 3
        %s334 = scalar_select %p333, %s330, 3
        %s335 = smul.addr %s332, 4
        %s336 = sadd.s32 %s334, %s335
        %s337 = smul.addr %s336, 8
        %s338 = scalar_lea.vmem %s4, %s337
      $region48: #{rrconv_block_forward.24} parent=43 // pred_fallthru
        _
    $region44: #{rrconv_block_forward.24} parent=5 // pred_fallthru
      _
  $region6: #{rrconv_block_forward.24} parent=0 // loop_footer
    %s14 = sadd.s32 1, %s10
  $region7: #{rrconv_block_forward.24} parent=0 // loop_footer_branch
    %9 = sbr.rel target = $region3
  $region8: #{rrconv_block_forward.24} parent=0 // loop_exit
    _

// kernel: rrconv_block_forward.21
$region0: #{rrconv_block_forward.21}
  #allocation0 [shape = 'u32[]', space=smem, size = 0x4, offset = 0x4, fixed_abs, tag = 'smem constant byte address 0x4 - core index']
  #allocation1 [shape = 'u32[72,128]{1,0:T(1,128)}', space=vmem, size = 0x9000, scoped, tag = 'internal scratch']
  #allocation2 [shape = 'f32[64,8]{1,0:T(8,128)}', space=vmem, size = 0x8000, scoped, tag = 'scratch operand']
  %s0 = inlined_call_operand.vmem [shape: f32[2,10,10,10,8], index: 0, kind: input, shape index: {}]
  %s1 = inlined_call_operand.vmem [shape: f32[3,3,3,8,8], index: 1, kind: input, shape index: {}]
  %s2 = inlined_call_operand.vmem [shape: f32[1,8], index: 2, kind: input, shape index: {}]
  %s3 = inlined_call_operand.vmem [shape: f32[2,8,64,8], index: 3, kind: output, shape index: {0}]
  %s4 = inlined_call_operand.vmem [shape: f32[2,8,1,8], index: 4, kind: output, shape index: {1}]
  %s5 = inlined_call_operand.vmem [shape: f32[2,8,1,8], index: 5, kind: output, shape index: {2}]
  %6 = xla_tuple %s3, %s4, %s5
  %s7 = sld [smem:[#allocation0]]
  $region69: #{rrconv_block_forward.21} parent=0
    _
  %s9 = ssub.s32 1, %s7
  %s10 = scalar_select 0, %s9, %s7
  loop: start=0, step=1, limit=50
  $region2: #{rrconv_block_forward.21} parent=0 // loop_pre_header
    _
  $region3: #{rrconv_block_forward.21} parent=0 // loop_header
    %s12 = sphi 0, %s16
    %p13 = scmp.ge.s32.totalorder %s12, 50
    %s19 = sphi 0, %s38
    %s20 = sphi 0, %s34
    %s21 = sphi 0, %s30
    %s22 = sphi 0, %s19
    %s23 = sphi 0, %s20
    %s24 = sphi 0, %s21
    %s25 = sphi 0, %s22
    %s26 = sphi 0, %s23
    %s27 = sphi 0, %s24
    %s45 = sphi 0, %s47
    %s48 = sphi 0, %s45
    %s49 = sphi 0, %s48
    %s65 = sphi 0, %s49
    %s71 = sphi 0, %s73
    %s74 = sphi 0, %s71
    %s75 = sphi 0, %s74
    %s91 = sphi 0, %s75
    %s95 = sphi 0, %s95
    %s97 = sphi 0, %s95
    %s98 = sphi 0, %s97
    %s112 = sphi 0, %s98
    %s120 = sphi 0, %s122
    %s123 = sphi 0, %s120
    %s124 = sphi 0, %s123
    %s140 = sphi 0, %s124
    %s148 = sphi 0, %s150
    %s151 = sphi 0, %s148
    %s152 = sphi 0, %s151
    %s168 = sphi 0, %s152
    %s176 = sphi 0, %s178
    %s179 = sphi 0, %s176
    %s180 = sphi 0, %s179
    %s196 = sphi 0, %s180
  $region4: #{rrconv_block_forward.21} parent=0 // loop_header_branch
    %15 = sbr.rel (%p13) target = $region8
  $region5: #{rrconv_block_forward.21} parent=0 // loop_body
    %s17 = ssub.s32 %s12, 1
    %s18 = ssub.s32 %s12, 2
    %s28 = sadd.s32 1, %s21
    %p29 = scmp.ge.s32.totalorder %s28, 3
    %s30 = scalar_select %p29, 0, %s28
    %s31 = sadd.s32 1, %s20
    %s32 = scalar_select %p29, %s31, %s20
    %p33 = scmp.ge.s32.totalorder %s32, 8
    %s34 = scalar_select %p33, 0, %s32
    %s35 = sadd.s32 1, %s19
    %s36 = scalar_select %p33, %s35, %s19
    %p37 = scmp.ge.s32.totalorder %s36, 2
    %s38 = scalar_select %p37, 0, %s36
    %s39 = sadd.s32 %s20, %s21
    %s40 = sadd.s32 %s34, %s30
    %s41 = ssub.s32 %s19, %s38
    %s42 = ssub.s32 %s39, %s40
    %s43 = sor.u32 %s41, %s42
    %p44 = scmp.eq.s32.totalorder %s43, 0
    %s46 = sadd.s32 %s45, 1
    %s47 = scalar_select %p44, %s45, %s46
    %p50 = pneg %p44
    %p51 = scmp.eq.s32.totalorder %s12, 47
    %p52 = por %p50, %p51
    %p53 = scmp.ne.s32.totalorder %s45, %s48
    %p54 = scmp.eq.s32.totalorder %s12, 0
    %p55 = por %p53, %p54
    %p56 = scmp.ne.s32.totalorder %s45, %s48
    %p57 = scmp.eq.s32.totalorder %s17, 47
    %p58 = por %p56, %p57
    %p59 = scmp.ne.s32.totalorder %s48, %s49
    %p60 = scmp.eq.s32.totalorder %s17, 0
    %p61 = por %p59, %p60
    %p62 = scmp.ne.s32.totalorder %s48, %s49
    %p63 = scmp.eq.s32.totalorder %s18, 47
    %p64 = por %p62, %p63
    %p66 = scmp.ne.s32.totalorder %s49, %s65
    %p67 = scmp.eq.s32.totalorder %s18, 0
    %p68 = por %p66, %p67
    %s69 = ssub.s32 %s21, %s30
    %p70 = scmp.eq.s32.totalorder %s69, 0
    %s72 = sadd.s32 %s71, 1
    %s73 = scalar_select %p70, %s71, %s72
    %p76 = pneg %p70
    %p77 = scmp.eq.s32.totalorder %s12, 47
    %p78 = por %p76, %p77
    %p79 = scmp.ne.s32.totalorder %s71, %s74
    %p80 = scmp.eq.s32.totalorder %s12, 0
    %p81 = por %p79, %p80
    %p82 = scmp.ne.s32.totalorder %s71, %s74
    %p83 = scmp.eq.s32.totalorder %s17, 47
    %p84 = por %p82, %p83
    %p85 = scmp.ne.s32.totalorder %s74, %s75
    %p86 = scmp.eq.s32.totalorder %s17, 0
    %p87 = por %p85, %p86
    %p88 = scmp.ne.s32.totalorder %s74, %s75
    %p89 = scmp.eq.s32.totalorder %s18, 47
    %p90 = por %p88, %p89
    %p92 = scmp.ne.s32.totalorder %s75, %s91
    %p93 = scmp.eq.s32.totalorder %s18, 0
    %p94 = por %p92, %p93
    %s96 = sadd.s32 %s95, 1
    %p99 = scmp.eq.s32.totalorder %s12, 47
    %p100 = scmp.ne.s32.totalorder %s95, %s97
    %p101 = scmp.eq.s32.totalorder %s12, 0
    %p102 = por %p100, %p101
    %p103 = scmp.ne.s32.totalorder %s95, %s97
    %p104 = scmp.eq.s32.totalorder %s17, 47
    %p105 = por %p103, %p104
    %p106 = scmp.ne.s32.totalorder %s97, %s98
    %p107 = scmp.eq.s32.totalorder %s17, 0
    %p108 = por %p106, %p107
    %p109 = scmp.ne.s32.totalorder %s97, %s98
    %p110 = scmp.eq.s32.totalorder %s18, 47
    %p111 = por %p109, %p110
    %p113 = scmp.ne.s32.totalorder %s98, %s112
    %p114 = scmp.eq.s32.totalorder %s18, 0
    %p115 = por %p113, %p114
    %s116 = ssub.s32 %s19, %s38
    %s117 = ssub.s32 %s20, %s34
    %s118 = sor.u32 %s116, %s117
    %p119 = scmp.eq.s32.totalorder %s118, 0
    %s121 = sadd.s32 %s120, 1
    %s122 = scalar_select %p119, %s120, %s121
    %p125 = pneg %p119
    %p126 = scmp.eq.s32.totalorder %s12, 47
    %p127 = por %p125, %p126
    %p128 = scmp.ne.s32.totalorder %s120, %s123
    %p129 = scmp.eq.s32.totalorder %s12, 0
    %p130 = por %p128, %p129
    %p131 = scmp.ne.s32.totalorder %s120, %s123
    %p132 = scmp.eq.s32.totalorder %s17, 47
    %p133 = por %p131, %p132
    %p134 = scmp.ne.s32.totalorder %s123, %s124
    %p135 = scmp.eq.s32.totalorder %s17, 0
    %p136 = por %p134, %p135
    %p137 = scmp.ne.s32.totalorder %s123, %s124
    %p138 = scmp.eq.s32.totalorder %s18, 47
    %p139 = por %p137, %p138
    %p141 = scmp.ne.s32.totalorder %s124, %s140
    %p142 = scmp.eq.s32.totalorder %s18, 0
    %p143 = por %p141, %p142
    %s144 = ssub.s32 %s19, %s38
    %s145 = ssub.s32 %s20, %s34
    %s146 = sor.u32 %s144, %s145
    %p147 = scmp.eq.s32.totalorder %s146, 0
    %s149 = sadd.s32 %s148, 1
    %s150 = scalar_select %p147, %s148, %s149
    %p153 = pneg %p147
    %p154 = scmp.eq.s32.totalorder %s12, 47
    %p155 = por %p153, %p154
    %p156 = scmp.ne.s32.totalorder %s148, %s151
    %p157 = scmp.eq.s32.totalorder %s12, 0
    %p158 = por %p156, %p157
    %p159 = scmp.ne.s32.totalorder %s148, %s151
    %p160 = scmp.eq.s32.totalorder %s17, 47
    %p161 = por %p159, %p160
    %p162 = scmp.ne.s32.totalorder %s151, %s152
    %p163 = scmp.eq.s32.totalorder %s17, 0
    %p164 = por %p162, %p163
    %p165 = scmp.ne.s32.totalorder %s151, %s152
    %p166 = scmp.eq.s32.totalorder %s18, 47
    %p167 = por %p165, %p166
    %p169 = scmp.ne.s32.totalorder %s152, %s168
    %p170 = scmp.eq.s32.totalorder %s18, 0
    %p171 = por %p169, %p170
    %s172 = ssub.s32 %s19, %s38
    %s173 = ssub.s32 %s20, %s34
    %s174 = sor.u32 %s172, %s173
    %p175 = scmp.eq.s32.totalorder %s174, 0
    %s177 = sadd.s32 %s176, 1
    %s178 = scalar_select %p175, %s176, %s177
    %p181 = pneg %p175
    %p182 = scmp.eq.s32.totalorder %s12, 47
    %p183 = por %p181, %p182
    %p184 = scmp.ne.s32.totalorder %s176, %s179
    %p185 = scmp.eq.s32.totalorder %s12, 0
    %p186 = por %p184, %p185
    %p187 = scmp.ne.s32.totalorder %s176, %s179
    %p188 = scmp.eq.s32.totalorder %s17, 47
    %p189 = por %p187, %p188
    %p190 = scmp.ne.s32.totalorder %s179, %s180
    %p191 = scmp.eq.s32.totalorder %s17, 0
    %p192 = por %p190, %p191
    %p193 = scmp.ne.s32.totalorder %s179, %s180
    %p194 = scmp.eq.s32.totalorder %s18, 47
    %p195 = por %p193, %p194
    %p197 = scmp.ne.s32.totalorder %s180, %s196
    %p198 = scmp.eq.s32.totalorder %s18, 0
    %p199 = por %p197, %p198
    %p200 = scmp.le.s32.totalorder 1, %s12
    %p201 = scmp.lt.s32.totalorder %s12, 49
    %p202 = pnand %p200, %p201
    %p203 = pneg %p202
    // Predicated region
    $region9: #{rrconv_block_forward.21} parent=5 // pred_check
      _
    $region10: #{rrconv_block_forward.21} parent=5 // pred_check_branch
      %205 = sbr.rel (%p202) target = $region12
    $region11: #{rrconv_block_forward.21} parent=5 // pred_region
      %s206 = ssub.s32 %s12, 1
      // Predicated region
      $region13: #{rrconv_block_forward.21} parent=11 // pred_check
        %p207 = pneg %p108
      $region14: #{rrconv_block_forward.21} parent=11 // pred_check_branch
        %209 = sbr.rel (%p207) target = $region16
      $region15: #{rrconv_block_forward.21} parent=11 // pred_region
        _
      $region16: #{rrconv_block_forward.21} parent=11 // pred_fallthru
        _
    $region12: #{rrconv_block_forward.21} parent=5 // pred_fallthru
      _
    %p210 = scmp.lt.s32.totalorder %s12, 48
    // Predicated region
    $region17: #{rrconv_block_forward.21} parent=5 // pred_check
      %p211 = pneg %p210
    $region18: #{rrconv_block_forward.21} parent=5 // pred_check_branch
      %213 = sbr.rel (%p211) target = $region20
    $region19: #{rrconv_block_forward.21} parent=5 // pred_region
      // Predicated region
      $region21: #{rrconv_block_forward.21} parent=19 // pred_check
        %p214 = pneg %p55
      $region22: #{rrconv_block_forward.21} parent=19 // pred_check_branch
        %216 = sbr.rel (%p214) target = $region24
      $region23: #{rrconv_block_forward.21} parent=19 // pred_region
        %s217 = sadd.s32 %s20, %s21
        %p218 = scmp.lt.s32.totalorder %s19, 1
        %s219 = scalar_select %p218, %s19, 1
        %p220 = scmp.lt.s32.totalorder %s217, 9
        %s221 = scalar_select %p220, %s217, 9
        %s222 = smul.addr %s221, 20
        %s223 = smul.addr %s219, 200
        %s224 = sadd.s32 %s222, %s223
        %s225 = smul.addr %s224, 8
        %s226 = scalar_lea.vmem %s0, %s225
        %s227 = sadd.s32 %s20, %s21
      $region24: #{rrconv_block_forward.21} parent=19 // pred_fallthru
        _
      // Predicated region
      $region25: #{rrconv_block_forward.21} parent=19 // pred_check
        %p228 = pneg %p81
      $region26: #{rrconv_block_forward.21} parent=19 // pred_check_branch
        %230 = sbr.rel (%p228) target = $region28
      $region27: #{rrconv_block_forward.21} parent=19 // pred_region
        %p231 = scmp.lt.s32.totalorder %s21, 2
        %s232 = scalar_select %p231, %s21, 2
        %s233 = smul.addr %s232, 9
        %s234 = smul.addr %s233, 8
        %s235 = scalar_lea.vmem %s1, %s234
      $region28: #{rrconv_block_forward.21} parent=19 // pred_fallthru
        _
    $region20: #{rrconv_block_forward.21} parent=5 // pred_fallthru
      _
    %p236 = scmp.le.s32.totalorder 1, %s12
    %p237 = scmp.lt.s32.totalorder %s12, 49
    %p238 = pnand %p236, %p237
    %p239 = pneg %p238
    // Predicated region
    $region29: #{rrconv_block_forward.21} parent=5 // pred_check
      _
    $region30: #{rrconv_block_forward.21} parent=5 // pred_check_branch
      %241 = sbr.rel (%p238) target = $region32
    $region31: #{rrconv_block_forward.21} parent=5 // pred_region
      %s242 = ssub.s32 %s12, 1
      %s243 = sadd.s32 %s23, %s24
      %p244 = scmp.lt.s32.totalorder %s22, 1
      %s245 = scalar_select %p244, %s22, 1
      %p246 = scmp.lt.s32.totalorder %s243, 9
      %s247 = scalar_select %p246, %s243, 9
      %s248 = smul.addr %s247, 20
      %s249 = smul.addr %s245, 200
      %s250 = sadd.s32 %s248, %s249
      %s251 = smul.addr %s250, 8
      %s252 = scalar_lea.vmem %s0, %s251
      %p253 = pneg %p61
      %p254 = pneg %p58
      %p255 = scmp.lt.s32.totalorder %s24, 2
      %s256 = scalar_select %p255, %s24, 2
      %s257 = smul.addr %s256, 9
      %s258 = smul.addr %s257, 8
      %s259 = scalar_lea.vmem %s1, %s258
      %p260 = pneg %p87
      %p261 = pneg %p84
      %p262 = pneg %p108
      %p263 = pneg %p105
      %p264 = pneg %p136
      %p265 = pneg %p133
      %p266 = scmp.lt.s32.totalorder %s22, 1
      %s267 = scalar_select %p266, %s22, 1
      %p268 = scmp.lt.s32.totalorder %s23, 7
      %s269 = scalar_select %p268, %s23, 7
      %s270 = smul.addr %s269, 8
      %s271 = smul.addr %s267, 64
      %s272 = sadd.s32 %s270, %s271
      %s273 = smul.addr %s272, 8
      %s274 = scalar_lea.vmem %s3, %s273
      %p275 = pneg %p164
      %p276 = pneg %p161
      %p277 = scmp.lt.s32.totalorder %s22, 1
      %s278 = scalar_select %p277, %s22, 1
      %p279 = scmp.lt.s32.totalorder %s23, 7
      %s280 = scalar_select %p279, %s23, 7
      %s281 = smul.addr %s278, 8
      %s282 = sadd.s32 %s280, %s281
      %s283 = scalar_lea.vmem %s4, %s282
      %p284 = pneg %p192
      %p285 = pneg %p189
      %p286 = scmp.lt.s32.totalorder %s22, 1
      %s287 = scalar_select %p286, %s22, 1
      %p288 = scmp.lt.s32.totalorder %s23, 7
      %s289 = scalar_select %p288, %s23, 7
      %s290 = smul.addr %s287, 8
      %s291 = sadd.s32 %s289, %s290
      %s292 = scalar_lea.vmem %s5, %s291
      %s293 = sadd.s32 %s23, %s24
      %p294 = scmp.lt.s32.totalorder %s22, 1
      %s295 = scalar_select %p294, %s22, 1
      %p296 = scmp.lt.s32.totalorder %s293, 9
      %s297 = scalar_select %p296, %s293, 9
      %s298 = smul.addr %s297, 20
      %s299 = smul.addr %s295, 200
      %s300 = sadd.s32 %s298, %s299
      %s301 = smul.addr %s300, 8
      %s302 = scalar_lea.vmem %s0, %s301
      %s303 = sadd.s32 %s23, %s24
      %p304 = scmp.lt.s32.totalorder %s24, 2
      %s305 = scalar_select %p304, %s24, 2
      %s306 = smul.addr %s305, 9
      %s307 = smul.addr %s306, 8
      %s308 = scalar_lea.vmem %s1, %s307
      %p309 = scmp.lt.s32.totalorder %s22, 1
      %s310 = scalar_select %p309, %s22, 1
      %p311 = scmp.lt.s32.totalorder %s23, 7
      %s312 = scalar_select %p311, %s23, 7
      %s313 = smul.addr %s312, 8
      %s314 = smul.addr %s310, 64
      %s315 = sadd.s32 %s313, %s314
      %s316 = smul.addr %s315, 8
      %s317 = scalar_lea.vmem %s3, %s316
      %p318 = scmp.lt.s32.totalorder %s22, 1
      %s319 = scalar_select %p318, %s22, 1
      %p320 = scmp.lt.s32.totalorder %s23, 7
      %s321 = scalar_select %p320, %s23, 7
      %s322 = smul.addr %s319, 8
      %s323 = sadd.s32 %s321, %s322
      %s324 = scalar_lea.vmem %s4, %s323
      %p325 = scmp.lt.s32.totalorder %s22, 1
      %s326 = scalar_select %p325, %s22, 1
      %p327 = scmp.lt.s32.totalorder %s23, 7
      %s328 = scalar_select %p327, %s23, 7
      %s329 = smul.addr %s326, 8
      %s330 = sadd.s32 %s328, %s329
      %s331 = scalar_lea.vmem %s5, %s330
      %p332 = scmp.eq.s32.totalorder %s24, 0
      // Predicated region
      $region33: #{rrconv_block_forward.21} parent=31 // pred_check
        %p333 = pneg %p332
      $region34: #{rrconv_block_forward.21} parent=31 // pred_check_branch
        %335 = sbr.rel (%p333) target = $region36
      $region35: #{rrconv_block_forward.21} parent=31 // pred_region
        %vm336 = vcmask 64512
        %337 = vst.msk [vmem:[#allocation2] sm:$0xff] %vm336, 0.0
        %338 = vst.msk [vmem:[#allocation2 + $0x8] sm:$0xff] %vm336, 0.0
        %339 = vst.msk [vmem:[#allocation2 + $0x10] sm:$0xff] %vm336, 0.0
        %340 = vst.msk [vmem:[#allocation2 + $0x18] sm:$0xff] %vm336, 0.0
        %341 = vst.msk [vmem:[#allocation2 + $0x20] sm:$0xff] %vm336, 0.0
        %342 = vst.msk [vmem:[#allocation2 + $0x28] sm:$0xff] %vm336, 0.0
        %343 = vst.msk [vmem:[#allocation2 + $0x30] sm:$0xff] %vm336, 0.0
        %344 = vst.msk [vmem:[#allocation2 + $0x38] sm:$0xff] %vm336, 0.0
      $region36: #{rrconv_block_forward.21} parent=31 // pred_fallthru
        _
      %v345 = vld [vmem:[%s302] sm:$0xff]
      %v346 = vld [vmem:[%s302 + $0x8] sm:$0x3]
      %v347 = vld [vmem:[%s302 + $0x10] sm:$0xff]
      %v348 = vld [vmem:[%s302 + $0x18] sm:$0x3]
      %v349 = vld [vmem:[%s302 + $0x20] sm:$0xff]
      %v350 = vld [vmem:[%s302 + $0x28] sm:$0x3]
      %v351 = vld [vmem:[%s302 + $0x30] sm:$0xff]
      %v352 = vld [vmem:[%s302 + $0x38] sm:$0x3]
      %v353 = vld [vmem:[%s302 + $0x40] sm:$0xff]
      %v354 = vld [vmem:[%s302 + $0x48] sm:$0x3]
      %v355 = vld [vmem:[%s302 + $0x50] sm:$0xff]
      %v356 = vld [vmem:[%s302 + $0x58] sm:$0x3]
      %v357 = vld [vmem:[%s302 + $0x60] sm:$0xff]
      %v358 = vld [vmem:[%s302 + $0x68] sm:$0x3]
      %v359 = vld [vmem:[%s302 + $0x70] sm:$0xff]
      %v360 = vld [vmem:[%s302 + $0x78] sm:$0x3]
      %v361 = vld [vmem:[%s302 + $0x80] sm:$0xff]
      %v362 = vld [vmem:[%s302 + $0x88] sm:$0x3]
      %v363 = vld [vmem:[%s302 + $0x90] sm:$0xff]
      %v364 = vld [vmem:[%s302 + $0x98] sm:$0x3]
      %v365 = vld [vmem:[#allocation2] sm:$0xff]
      %v366 = vld [vmem:[#allocation2 + $0x8] sm:$0xff]
      %v367 = vld [vmem:[#allocation2 + $0x10] sm:$0xff]
      %v368 = vld [vmem:[#allocation2 + $0x18] sm:$0xff]
      %v369 = vld [vmem:[#allocation2 + $0x20] sm:$0xff]
      %v370 = vld [vmem:[#allocation2 + $0x28] sm:$0xff]
      %v371 = vld [vmem:[#allocation2 + $0x30] sm:$0xff]
      %v372 = vld [vmem:[#allocation2 + $0x38] sm:$0xff]
      %v373 = vld [vmem:[%s308] sm:$0xff]
      %vm374 = vcmask 64512
      %v376 = vsel %vm374, %v345, 0
      %v379 = vsel %vm374, %v347, 0
      %v382 = vsel %vm374, %v349, 0
      %v385 = vsel %vm374, %v351, 0
      %v388 = vsel %vm374, %v353, 0
      %v391 = vsel %vm374, %v355, 0
      %v394 = vsel %vm374, %v357, 0
      %v397 = vsel %vm374, %v359, 0
      %399 = vmatpush.msra.mxu0 0.0
      %400 = vmatpush.msra.mxu0 0.0
      %401 = vmatpush.msra.mxu0 0.0
      %402 = vmatpush.msra.mxu0 0.0
      %403 = vmatpush.msra.mxu0 0.0
      %404 = vmatpush.msra.mxu0 0.0
      %405 = vmatpush.msra.mxu0 0.0
      %406 = vmatpush.msra.mxu0 0.0
      %407 = vmatpush.msra.mxu0 0.0
      %408 = vmatpush.msra.mxu0 0.0
      %409 = vmatpush.msra.mxu0 0.0
      %410 = vmatpush.msra.mxu0 0.0
      %411 = vmatpush.msra.mxu0 0.0
      %412 = vmatpush.msra.mxu0 0.0
      %413 = vmatpush.msra.mxu0 0.0
      %414 = vmatpush.msra.mxu0 %v373
      %415 = vmatmul.f32.gmra.mxu0 %v376
      %v416 = vpop.f32.mrf.mxu0
      %v417 = vadd.f32 0.0, %v416
      %418 = vmatmul.f32.gmra.mxu0 %v379
      %v419 = vpop.f32.mrf.mxu0
      %v420 = vadd.f32 0.0, %v419
      %421 = vmatmul.f32.gmra.mxu0 %v382
      %v422 = vpop.f32.mrf.mxu0
      %v423 = vadd.f32 0.0, %v422
      %424 = vmatmul.f32.gmra.mxu0 %v385
      %v425 = vpop.f32.mrf.mxu0
      %v426 = vadd.f32 0.0, %v425
      %427 = vmatmul.f32.gmra.mxu0 %v388
      %v428 = vpop.f32.mrf.mxu0
      %v429 = vadd.f32 0.0, %v428
      %430 = vmatmul.f32.gmra.mxu0 %v391
      %v431 = vpop.f32.mrf.mxu0
      %v432 = vadd.f32 0.0, %v431
      %433 = vmatmul.f32.gmra.mxu0 %v394
      %v434 = vpop.f32.mrf.mxu0
      %v435 = vadd.f32 0.0, %v434
      %436 = vmatmul.f32.gmra.mxu0 %v397
      %v437 = vpop.f32.mrf.mxu0
      %v438 = vadd.f32 0.0, %v437
      %439 = vdwg.mxu0
      %v440 = vadd.f32 %v365, %v417
      %v441 = vadd.f32 %v366, %v420
      %v442 = vadd.f32 %v367, %v423
      %v443 = vadd.f32 %v368, %v426
      %v444 = vadd.f32 %v369, %v429
      %v445 = vadd.f32 %v370, %v432
      %v446 = vadd.f32 %v371, %v435
      %v447 = vadd.f32 %v372, %v438
      %vm456 = vcmask 1046528
      %v457 = vrot.slane %v345, 1
      %v458 = vrot.slane %v346, 1
      %v459 = vsel %vm456, %v457, %v458
      %v460 = vrot.slane %v347, 1
      %v461 = vrot.slane %v348, 1
      %v462 = vsel %vm456, %v460, %v461
      %v463 = vrot.slane %v349, 1
      %v464 = vrot.slane %v350, 1
      %v465 = vsel %vm456, %v463, %v464
      %v466 = vrot.slane %v351, 1
      %v467 = vrot.slane %v352, 1
      %v468 = vsel %vm456, %v466, %v467
      %v469 = vrot.slane %v353, 1
      %v470 = vrot.slane %v354, 1
      %v471 = vsel %vm456, %v469, %v470
      %v472 = vrot.slane %v355, 1
      %v473 = vrot.slane %v356, 1
      %v474 = vsel %vm456, %v472, %v473
      %v475 = vrot.slane %v357, 1
      %v476 = vrot.slane %v358, 1
      %v477 = vsel %vm456, %v475, %v476
      %v478 = vrot.slane %v359, 1
      %v479 = vrot.slane %v360, 1
      %v480 = vsel %vm456, %v478, %v479
      %s481 = scalar_lea.vmem %s308, 8
      %v482 = vld [vmem:[%s481] sm:$0xff]
      %v483 = vsel %vm374, %v459, 0
      %v485 = vsel %vm374, %v462, 0
      %v487 = vsel %vm374, %v465, 0
      %v489 = vsel %vm374, %v468, 0
      %v491 = vsel %vm374, %v471, 0
      %v493 = vsel %vm374, %v474, 0
      %v495 = vsel %vm374, %v477, 0
      %v497 = vsel %vm374, %v480, 0
      %499 = vmatpush.msra.mxu0 0.0
      %500 = vmatpush.msra.mxu0 0.0
      %501 = vmatpush.msra.mxu0 0.0
      %502 = vmatpush.msra.mxu0 0.0
      %503 = vmatpush.msra.mxu0 0.0
      %504 = vmatpush.msra.mxu0 0.0
      %505 = vmatpush.msra.mxu0 0.0
      %506 = vmatpush.msra.mxu0 0.0
      %507 = vmatpush.msra.mxu0 0.0
      %508 = vmatpush.msra.mxu0 0.0
      %509 = vmatpush.msra.mxu0 0.0
      %510 = vmatpush.msra.mxu0 0.0
      %511 = vmatpush.msra.mxu0 0.0
      %512 = vmatpush.msra.mxu0 0.0
      %513 = vmatpush.msra.mxu0 0.0
      %514 = vmatpush.msra.mxu0 %v482
      %515 = vmatmul.f32.gmra.mxu0 %v483
      %v516 = vpop.f32.mrf.mxu0
      %v517 = vadd.f32 0.0, %v516
      %518 = vmatmul.f32.gmra.mxu0 %v485
      %v519 = vpop.f32.mrf.mxu0
      %v520 = vadd.f32 0.0, %v519
      %521 = vmatmul.f32.gmra.mxu0 %v487
      %v522 = vpop.f32.mrf.mxu0
      %v523 = vadd.f32 0.0, %v522
      %524 = vmatmul.f32.gmra.mxu0 %v489
      %v525 = vpop.f32.mrf.mxu0
      %v526 = vadd.f32 0.0, %v525
      %527 = vmatmul.f32.gmra.mxu0 %v491
      %v528 = vpop.f32.mrf.mxu0
      %v529 = vadd.f32 0.0, %v528
      %530 = vmatmul.f32.gmra.mxu0 %v493
      %v531 = vpop.f32.mrf.mxu0
      %v532 = vadd.f32 0.0, %v531
      %533 = vmatmul.f32.gmra.mxu0 %v495
      %v534 = vpop.f32.mrf.mxu0
      %v535 = vadd.f32 0.0, %v534
      %536 = vmatmul.f32.gmra.mxu0 %v497
      %v537 = vpop.f32.mrf.mxu0
      %v538 = vadd.f32 0.0, %v537
      %539 = vdwg.mxu0
      %v540 = vadd.f32 %v440, %v517
      %v541 = vadd.f32 %v441, %v520
      %v542 = vadd.f32 %v442, %v523
      %v543 = vadd.f32 %v443, %v526
      %v544 = vadd.f32 %v444, %v529
      %v545 = vadd.f32 %v445, %v532
      %v546 = vadd.f32 %v446, %v535
      %v547 = vadd.f32 %v447, %v538
      %vm548 = vcmask 1045504
      %v549 = vrot.slane %v345, 2
      %v550 = vrot.slane %v346, 2
      %v551 = vsel %vm548, %v549, %v550
      %v552 = vrot.slane %v347, 2
      %v553 = vrot.slane %v348, 2
      %v554 = vsel %vm548, %v552, %v553
      %v555 = vrot.slane %v349, 2
      %v556 = vrot.slane %v350, 2
      %v557 = vsel %vm548, %v555, %v556
      %v558 = vrot.slane %v351, 2
      %v559 = vrot.slane %v352, 2
      %v560 = vsel %vm548, %v558, %v559
      %v561 = vrot.slane %v353, 2
      %v562 = vrot.slane %v354, 2
      %v563 = vsel %vm548, %v561, %v562
      %v564 = vrot.slane %v355, 2
      %v565 = vrot.slane %v356, 2
      %v566 = vsel %vm548, %v564, %v565
      %v567 = vrot.slane %v357, 2
      %v568 = vrot.slane %v358, 2
      %v569 = vsel %vm548, %v567, %v568
      %v570 = vrot.slane %v359, 2
      %v571 = vrot.slane %v360, 2
      %v572 = vsel %vm548, %v570, %v571
      %s573 = scalar_lea.vmem %s308, 16
      %v574 = vld [vmem:[%s573] sm:$0xff]
      %v575 = vsel %vm374, %v551, 0
      %v577 = vsel %vm374, %v554, 0
      %v579 = vsel %vm374, %v557, 0
      %v581 = vsel %vm374, %v560, 0
      %v583 = vsel %vm374, %v563, 0
      %v585 = vsel %vm374, %v566, 0
      %v587 = vsel %vm374, %v569, 0
      %v589 = vsel %vm374, %v572, 0
      %591 = vmatpush.msra.mxu0 0.0
      %592 = vmatpush.msra.mxu0 0.0
      %593 = vmatpush.msra.mxu0 0.0
      %594 = vmatpush.msra.mxu0 0.0
      %595 = vmatpush.msra.mxu0 0.0
      %596 = vmatpush.msra.mxu0 0.0
      %597 = vmatpush.msra.mxu0 0.0
      %598 = vmatpush.msra.mxu0 0.0
      %599 = vmatpush.msra.mxu0 0.0
      %600 = vmatpush.msra.mxu0 0.0
      %601 = vmatpush.msra.mxu0 0.0
      %602 = vmatpush.msra.mxu0 0.0
      %603 = vmatpush.msra.mxu0 0.0
      %604 = vmatpush.msra.mxu0 0.0
      %605 = vmatpush.msra.mxu0 0.0
      %606 = vmatpush.msra.mxu0 %v574
      %607 = vmatmul.f32.gmra.mxu0 %v575
      %v608 = vpop.f32.mrf.mxu0
      %v609 = vadd.f32 0.0, %v608
      %610 = vmatmul.f32.gmra.mxu0 %v577
      %v611 = vpop.f32.mrf.mxu0
      %v612 = vadd.f32 0.0, %v611
      %613 = vmatmul.f32.gmra.mxu0 %v579
      %v614 = vpop.f32.mrf.mxu0
      %v615 = vadd.f32 0.0, %v614
      %616 = vmatmul.f32.gmra.mxu0 %v581
      %v617 = vpop.f32.mrf.mxu0
      %v618 = vadd.f32 0.0, %v617
      %619 = vmatmul.f32.gmra.mxu0 %v583
      %v620 = vpop.f32.mrf.mxu0
      %v621 = vadd.f32 0.0, %v620
      %622 = vmatmul.f32.gmra.mxu0 %v585
      %v623 = vpop.f32.mrf.mxu0
      %v624 = vadd.f32 0.0, %v623
      %625 = vmatmul.f32.gmra.mxu0 %v587
      %v626 = vpop.f32.mrf.mxu0
      %v627 = vadd.f32 0.0, %v626
      %628 = vmatmul.f32.gmra.mxu0 %v589
      %v629 = vpop.f32.mrf.mxu0
      %v630 = vadd.f32 0.0, %v629
      %631 = vdwg.mxu0
      %v632 = vadd.f32 %v540, %v609
      %v633 = vadd.f32 %v541, %v612
      %v634 = vadd.f32 %v542, %v615
      %v635 = vadd.f32 %v543, %v618
      %v636 = vadd.f32 %v544, %v621
      %v637 = vadd.f32 %v545, %v624
      %v638 = vadd.f32 %v546, %v627
      %v639 = vadd.f32 %v547, %v630
      %s640 = scalar_lea.vmem %s308, 24
      %v641 = vld [vmem:[%s640] sm:$0xff]
      %v643 = vsel %vm374, %v361, 0
      %645 = vmatpush.msra.mxu0 0.0
      %646 = vmatpush.msra.mxu0 0.0
      %647 = vmatpush.msra.mxu0 0.0
      %648 = vmatpush.msra.mxu0 0.0
      %649 = vmatpush.msra.mxu0 0.0
      %650 = vmatpush.msra.mxu0 0.0
      %651 = vmatpush.msra.mxu0 0.0
      %652 = vmatpush.msra.mxu0 0.0
      %653 = vmatpush.msra.mxu0 0.0
      %654 = vmatpush.msra.mxu0 0.0
      %655 = vmatpush.msra.mxu0 0.0
      %656 = vmatpush.msra.mxu0 0.0
      %657 = vmatpush.msra.mxu0 0.0
      %658 = vmatpush.msra.mxu0 0.0
      %659 = vmatpush.msra.mxu0 0.0
      %660 = vmatpush.msra.mxu0 %v641
      %661 = vmatmul.f32.gmra.mxu0 %v379
      %v662 = vpop.f32.mrf.mxu0
      %v663 = vadd.f32 0.0, %v662
      %664 = vmatmul.f32.gmra.mxu0 %v382
      %v665 = vpop.f32.mrf.mxu0
      %v666 = vadd.f32 0.0, %v665
      %667 = vmatmul.f32.gmra.mxu0 %v385
      %v668 = vpop.f32.mrf.mxu0
      %v669 = vadd.f32 0.0, %v668
      %670 = vmatmul.f32.gmra.mxu0 %v388
      %v671 = vpop.f32.mrf.mxu0
      %v672 = vadd.f32 0.0, %v671
      %673 = vmatmul.f32.gmra.mxu0 %v391
      %v674 = vpop.f32.mrf.mxu0
      %v675 = vadd.f32 0.0, %v674
      %676 = vmatmul.f32.gmra.mxu0 %v394
      %v677 = vpop.f32.mrf.mxu0
      %v678 = vadd.f32 0.0, %v677
      %679 = vmatmul.f32.gmra.mxu0 %v397
      %v680 = vpop.f32.mrf.mxu0
      %v681 = vadd.f32 0.0, %v680
      %682 = vmatmul.f32.gmra.mxu0 %v643
      %v683 = vpop.f32.mrf.mxu0
      %v684 = vadd.f32 0.0, %v683
      %685 = vdwg.mxu0
      %v686 = vadd.f32 %v632, %v663
      %v687 = vadd.f32 %v633, %v666
      %v688 = vadd.f32 %v634, %v669
      %v689 = vadd.f32 %v635, %v672
      %v690 = vadd.f32 %v636, %v675
      %v691 = vadd.f32 %v637, %v678
      %v692 = vadd.f32 %v638, %v681
      %v693 = vadd.f32 %v639, %v684
      %v695 = vrot.slane %v361, 1
      %v696 = vrot.slane %v362, 1
      %v697 = vsel %vm456, %v695, %v696
      %s698 = scalar_lea.vmem %s308, 32
      %v699 = vld [vmem:[%s698] sm:$0xff]
      %v700 = vsel %vm374, %v697, 0
      %702 = vmatpush.msra.mxu0 0.0
      %703 = vmatpush.msra.mxu0 0.0
      %704 = vmatpush.msra.mxu0 0.0
      %705 = vmatpush.msra.mxu0 0.0
      %706 = vmatpush.msra.mxu0 0.0
      %707 = vmatpush.msra.mxu0 0.0
      %708 = vmatpush.msra.mxu0 0.0
      %709 = vmatpush.msra.mxu0 0.0
      %710 = vmatpush.msra.mxu0 0.0
      %711 = vmatpush.msra.mxu0 0.0
      %712 = vmatpush.msra.mxu0 0.0
      %713 = vmatpush.msra.mxu0 0.0
      %714 = vmatpush.msra.mxu0 0.0
      %715 = vmatpush.msra.mxu0 0.0
      %716 = vmatpush.msra.mxu0 0.0
      %717 = vmatpush.msra.mxu0 %v699
      %718 = vmatmul.f32.gmra.mxu0 %v485
      %v719 = vpop.f32.mrf.mxu0
      %v720 = vadd.f32 0.0, %v719
      %721 = vmatmul.f32.gmra.mxu0 %v487
      %v722 = vpop.f32.mrf.mxu0
      %v723 = vadd.f32 0.0, %v722
      %724 = vmatmul.f32.gmra.mxu0 %v489
      %v725 = vpop.f32.mrf.mxu0
      %v726 = vadd.f32 0.0, %v725
      %727 = vmatmul.f32.gmra.mxu0 %v491
      %v728 = vpop.f32.mrf.mxu0
      %v729 = vadd.f32 0.0, %v728
      %730 = vmatmul.f32.gmra.mxu0 %v493
      %v731 = vpop.f32.mrf.mxu0
      %v732 = vadd.f32 0.0, %v731
      %733 = vmatmul.f32.gmra.mxu0 %v495
      %v734 = vpop.f32.mrf.mxu0
      %v735 = vadd.f32 0.0, %v734
      %736 = vmatmul.f32.gmra.mxu0 %v497
      %v737 = vpop.f32.mrf.mxu0
      %v738 = vadd.f32 0.0, %v737
      %739 = vmatmul.f32.gmra.mxu0 %v700
      %v740 = vpop.f32.mrf.mxu0
      %v741 = vadd.f32 0.0, %v740
      %742 = vdwg.mxu0
      %v743 = vadd.f32 %v686, %v720
      %v744 = vadd.f32 %v687, %v723
      %v745 = vadd.f32 %v688, %v726
      %v746 = vadd.f32 %v689, %v729
      %v747 = vadd.f32 %v690, %v732
      %v748 = vadd.f32 %v691, %v735
      %v749 = vadd.f32 %v692, %v738
      %v750 = vadd.f32 %v693, %v741
      %v751 = vrot.slane %v361, 2
      %v752 = vrot.slane %v362, 2
      %v753 = vsel %vm548, %v751, %v752
      %s754 = scalar_lea.vmem %s308, 40
      %v755 = vld [vmem:[%s754] sm:$0xff]
      %v756 = vsel %vm374, %v753, 0
      %758 = vmatpush.msra.mxu0 0.0
      %759 = vmatpush.msra.mxu0 0.0
      %760 = vmatpush.msra.mxu0 0.0
      %761 = vmatpush.msra.mxu0 0.0
      %762 = vmatpush.msra.mxu0 0.0
      %763 = vmatpush.msra.mxu0 0.0
      %764 = vmatpush.msra.mxu0 0.0
      %765 = vmatpush.msra.mxu0 0.0
      %766 = vmatpush.msra.mxu0 0.0
      %767 = vmatpush.msra.mxu0 0.0
      %768 = vmatpush.msra.mxu0 0.0
      %769 = vmatpush.msra.mxu0 0.0
      %770 = vmatpush.msra.mxu0 0.0
      %771 = vmatpush.msra.mxu0 0.0
      %772 = vmatpush.msra.mxu0 0.0
      %773 = vmatpush.msra.mxu0 %v755
      %774 = vmatmul.f32.gmra.mxu0 %v577
      %v775 = vpop.f32.mrf.mxu0
      %v776 = vadd.f32 0.0, %v775
      %777 = vmatmul.f32.gmra.mxu0 %v579
      %v778 = vpop.f32.mrf.mxu0
      %v779 = vadd.f32 0.0, %v778
      %780 = vmatmul.f32.gmra.mxu0 %v581
      %v781 = vpop.f32.mrf.mxu0
      %v782 = vadd.f32 0.0, %v781
      %783 = vmatmul.f32.gmra.mxu0 %v583
      %v784 = vpop.f32.mrf.mxu0
      %v785 = vadd.f32 0.0, %v784
      %786 = vmatmul.f32.gmra.mxu0 %v585
      %v787 = vpop.f32.mrf.mxu0
      %v788 = vadd.f32 0.0, %v787
      %789 = vmatmul.f32.gmra.mxu0 %v587
      %v790 = vpop.f32.mrf.mxu0
      %v791 = vadd.f32 0.0, %v790
      %792 = vmatmul.f32.gmra.mxu0 %v589
      %v793 = vpop.f32.mrf.mxu0
      %v794 = vadd.f32 0.0, %v793
      %795 = vmatmul.f32.gmra.mxu0 %v756
      %v796 = vpop.f32.mrf.mxu0
      %v797 = vadd.f32 0.0, %v796
      %798 = vdwg.mxu0
      %v799 = vadd.f32 %v743, %v776
      %v800 = vadd.f32 %v744, %v779
      %v801 = vadd.f32 %v745, %v782
      %v802 = vadd.f32 %v746, %v785
      %v803 = vadd.f32 %v747, %v788
      %v804 = vadd.f32 %v748, %v791
      %v805 = vadd.f32 %v749, %v794
      %v806 = vadd.f32 %v750, %v797
      %s807 = scalar_lea.vmem %s308, 48
      %v808 = vld [vmem:[%s807] sm:$0xff]
      %v810 = vsel %vm374, %v363, 0
      %812 = vmatpush.msra.mxu0 0.0
      %813 = vmatpush.msra.mxu0 0.0
      %814 = vmatpush.msra.mxu0 0.0
      %815 = vmatpush.msra.mxu0 0.0
      %816 = vmatpush.msra.mxu0 0.0
      %817 = vmatpush.msra.mxu0 0.0
      %818 = vmatpush.msra.mxu0 0.0
      %819 = vmatpush.msra.mxu0 0.0
      %820 = vmatpush.msra.mxu0 0.0
      %821 = vmatpush.msra.mxu0 0.0
      %822 = vmatpush.msra.mxu0 0.0
      %823 = vmatpush.msra.mxu0 0.0
      %824 = vmatpush.msra.mxu0 0.0
      %825 = vmatpush.msra.mxu0 0.0
      %826 = vmatpush.msra.mxu0 0.0
      %827 = vmatpush.msra.mxu0 %v808
      %828 = vmatmul.f32.gmra.mxu0 %v382
      %v829 = vpop.f32.mrf.mxu0
      %v830 = vadd.f32 0.0, %v829
      %831 = vmatmul.f32.gmra.mxu0 %v385
      %v832 = vpop.f32.mrf.mxu0
      %v833 = vadd.f32 0.0, %v832
      %834 = vmatmul.f32.gmra.mxu0 %v388
      %v835 = vpop.f32.mrf.mxu0
      %v836 = vadd.f32 0.0, %v835
      %837 = vmatmul.f32.gmra.mxu0 %v391
      %v838 = vpop.f32.mrf.mxu0
      %v839 = vadd.f32 0.0, %v838
      %840 = vmatmul.f32.gmra.mxu0 %v394
      %v841 = vpop.f32.mrf.mxu0
      %v842 = vadd.f32 0.0, %v841
      %843 = vmatmul.f32.gmra.mxu0 %v397
      %v844 = vpop.f32.mrf.mxu0
      %v845 = vadd.f32 0.0, %v844
      %846 = vmatmul.f32.gmra.mxu0 %v643
      %v847 = vpop.f32.mrf.mxu0
      %v848 = vadd.f32 0.0, %v847
      %849 = vmatmul.f32.gmra.mxu0 %v810
      %v850 = vpop.f32.mrf.mxu0
      %v851 = vadd.f32 0.0, %v850
      %852 = vdwg.mxu0
      %v853 = vadd.f32 %v799, %v830
      %v854 = vadd.f32 %v800, %v833
      %v855 = vadd.f32 %v801, %v836
      %v856 = vadd.f32 %v802, %v839
      %v857 = vadd.f32 %v803, %v842
      %v858 = vadd.f32 %v804, %v845
      %v859 = vadd.f32 %v805, %v848
      %v860 = vadd.f32 %v806, %v851
      %v862 = vrot.slane %v363, 1
      %v863 = vrot.slane %v364, 1
      %v864 = vsel %vm456, %v862, %v863
      %s865 = scalar_lea.vmem %s308, 56
      %v866 = vld [vmem:[%s865] sm:$0xff]
      %v867 = vsel %vm374, %v864, 0
      %869 = vmatpush.msra.mxu0 0.0
      %870 = vmatpush.msra.mxu0 0.0
      %871 = vmatpush.msra.mxu0 0.0
      %872 = vmatpush.msra.mxu0 0.0
      %873 = vmatpush.msra.mxu0 0.0
      %874 = vmatpush.msra.mxu0 0.0
      %875 = vmatpush.msra.mxu0 0.0
      %876 = vmatpush.msra.mxu0 0.0
      %877 = vmatpush.msra.mxu0 0.0
      %878 = vmatpush.msra.mxu0 0.0
      %879 = vmatpush.msra.mxu0 0.0
      %880 = vmatpush.msra.mxu0 0.0
      %881 = vmatpush.msra.mxu0 0.0
      %882 = vmatpush.msra.mxu0 0.0
      %883 = vmatpush.msra.mxu0 0.0
      %884 = vmatpush.msra.mxu0 %v866
      %885 = vmatmul.f32.gmra.mxu0 %v487
      %v886 = vpop.f32.mrf.mxu0
      %v887 = vadd.f32 0.0, %v886
      %888 = vmatmul.f32.gmra.mxu0 %v489
      %v889 = vpop.f32.mrf.mxu0
      %v890 = vadd.f32 0.0, %v889
      %891 = vmatmul.f32.gmra.mxu0 %v491
      %v892 = vpop.f32.mrf.mxu0
      %v893 = vadd.f32 0.0, %v892
      %894 = vmatmul.f32.gmra.mxu0 %v493
      %v895 = vpop.f32.mrf.mxu0
      %v896 = vadd.f32 0.0, %v895
      %897 = vmatmul.f32.gmra.mxu0 %v495
      %v898 = vpop.f32.mrf.mxu0
      %v899 = vadd.f32 0.0, %v898
      %900 = vmatmul.f32.gmra.mxu0 %v497
      %v901 = vpop.f32.mrf.mxu0
      %v902 = vadd.f32 0.0, %v901
      %903 = vmatmul.f32.gmra.mxu0 %v700
      %v904 = vpop.f32.mrf.mxu0
      %v905 = vadd.f32 0.0, %v904
      %906 = vmatmul.f32.gmra.mxu0 %v867
      %v907 = vpop.f32.mrf.mxu0
      %v908 = vadd.f32 0.0, %v907
      %909 = vdwg.mxu0
      %v910 = vadd.f32 %v853, %v887
      %v911 = vadd.f32 %v854, %v890
      %v912 = vadd.f32 %v855, %v893
      %v913 = vadd.f32 %v856, %v896
      %v914 = vadd.f32 %v857, %v899
      %v915 = vadd.f32 %v858, %v902
      %v916 = vadd.f32 %v859, %v905
      %v917 = vadd.f32 %v860, %v908
      %v918 = vrot.slane %v363, 2
      %v919 = vrot.slane %v364, 2
      %v920 = vsel %vm548, %v918, %v919
      %s921 = scalar_lea.vmem %s308, 64
      %v922 = vld [vmem:[%s921] sm:$0xff]
      %v923 = vsel %vm374, %v920, 0
      %925 = vmatpush.msra.mxu0 0.0
      %926 = vmatpush.msra.mxu0 0.0
      %927 = vmatpush.msra.mxu0 0.0
      %928 = vmatpush.msra.mxu0 0.0
      %929 = vmatpush.msra.mxu0 0.0
      %930 = vmatpush.msra.mxu0 0.0
      %931 = vmatpush.msra.mxu0 0.0
      %932 = vmatpush.msra.mxu0 0.0
      %933 = vmatpush.msra.mxu0 0.0
      %934 = vmatpush.msra.mxu0 0.0
      %935 = vmatpush.msra.mxu0 0.0
      %936 = vmatpush.msra.mxu0 0.0
      %937 = vmatpush.msra.mxu0 0.0
      %938 = vmatpush.msra.mxu0 0.0
      %939 = vmatpush.msra.mxu0 0.0
      %940 = vmatpush.msra.mxu0 %v922
      %941 = vmatmul.f32.gmra.mxu0 %v579
      %v942 = vpop.f32.mrf.mxu0
      %v943 = vadd.f32 0.0, %v942
      %944 = vmatmul.f32.gmra.mxu0 %v581
      %v945 = vpop.f32.mrf.mxu0
      %v946 = vadd.f32 0.0, %v945
      %947 = vmatmul.f32.gmra.mxu0 %v583
      %v948 = vpop.f32.mrf.mxu0
      %v949 = vadd.f32 0.0, %v948
      %950 = vmatmul.f32.gmra.mxu0 %v585
      %v951 = vpop.f32.mrf.mxu0
      %v952 = vadd.f32 0.0, %v951
      %953 = vmatmul.f32.gmra.mxu0 %v587
      %v954 = vpop.f32.mrf.mxu0
      %v955 = vadd.f32 0.0, %v954
      %956 = vmatmul.f32.gmra.mxu0 %v589
      %v957 = vpop.f32.mrf.mxu0
      %v958 = vadd.f32 0.0, %v957
      %959 = vmatmul.f32.gmra.mxu0 %v756
      %v960 = vpop.f32.mrf.mxu0
      %v961 = vadd.f32 0.0, %v960
      %962 = vmatmul.f32.gmra.mxu0 %v923
      %v963 = vpop.f32.mrf.mxu0
      %v964 = vadd.f32 0.0, %v963
      %965 = vdwg.mxu0
      %v966 = vadd.f32 %v910, %v943
      %v967 = vadd.f32 %v911, %v946
      %v968 = vadd.f32 %v912, %v949
      %v969 = vadd.f32 %v913, %v952
      %v970 = vadd.f32 %v914, %v955
      %v971 = vadd.f32 %v915, %v958
      %v972 = vadd.f32 %v916, %v961
      %v973 = vadd.f32 %v917, %v964
      %974 = vst.msk [vmem:[#allocation2] sm:$0xff] %vm374, %v966
      %975 = vst.msk [vmem:[#allocation2 + $0x8] sm:$0xff] %vm374, %v967
      %976 = vst.msk [vmem:[#allocation2 + $0x10] sm:$0xff] %vm374, %v968
      %977 = vst.msk [vmem:[#allocation2 + $0x18] sm:$0xff] %vm374, %v969
      %978 = vst.msk [vmem:[#allocation2 + $0x20] sm:$0xff] %vm374, %v970
      %979 = vst.msk [vmem:[#allocation2 + $0x28] sm:$0xff] %vm374, %v971
      %980 = vst.msk [vmem:[#allocation2 + $0x30] sm:$0xff] %vm374, %v972
      %981 = vst.msk [vmem:[#allocation2 + $0x38] sm:$0xff] %vm374, %v973
      %p982 = scmp.eq.s32.totalorder %s24, 2
      // Predicated region
      $region37: #{rrconv_block_forward.21} parent=31 // pred_check
        %p983 = pneg %p982
      $region38: #{rrconv_block_forward.21} parent=31 // pred_check_branch
        %985 = sbr.rel (%p983) target = $region40
      $region39: #{rrconv_block_forward.21} parent=31 // pred_region
        %v986 = vld [vmem:[#allocation2] sm:$0xff]
        %v987 = vld [vmem:[#allocation2 + $0x8] sm:$0xff]
        %v988 = vld [vmem:[#allocation2 + $0x10] sm:$0xff]
        %v989 = vld [vmem:[#allocation2 + $0x18] sm:$0xff]
        %v990 = vld [vmem:[#allocation2 + $0x20] sm:$0xff]
        %v991 = vld [vmem:[#allocation2 + $0x28] sm:$0xff]
        %v992 = vld [vmem:[#allocation2 + $0x30] sm:$0xff]
        %v993 = vld [vmem:[#allocation2 + $0x38] sm:$0xff]
        %v994 = vld [vmem:[%s2] sm:$0x1]
        %v996 = vperm.slane %v994, 0
        %v998 = vadd.f32 %v986, %v996
        %v999 = vadd.f32 %v987, %v996
        %v1000 = vadd.f32 %v988, %v996
        %v1001 = vadd.f32 %v989, %v996
        %v1002 = vadd.f32 %v990, %v996
        %v1003 = vadd.f32 %v991, %v996
        %v1004 = vadd.f32 %v992, %v996
        %v1005 = vadd.f32 %v993, %v996
        %v1006 = vmax.f32 %v998, 0.0
        %v1007 = vmax.f32 %v999, 0.0
        %v1008 = vmax.f32 %v1000, 0.0
        %v1009 = vmax.f32 %v1001, 0.0
        %v1010 = vmax.f32 %v1002, 0.0
        %v1011 = vmax.f32 %v1003, 0.0
        %v1012 = vmax.f32 %v1004, 0.0
        %v1013 = vmax.f32 %v1005, 0.0
        %1014 = vst.msk [vmem:[%s317] sm:$0xff] %vm374, %v1006
        %1015 = vst.msk [vmem:[%s317 + $0x8] sm:$0xff] %vm374, %v1007
        %1016 = vst.msk [vmem:[%s317 + $0x10] sm:$0xff] %vm374, %v1008
        %1017 = vst.msk [vmem:[%s317 + $0x18] sm:$0xff] %vm374, %v1009
        %1018 = vst.msk [vmem:[%s317 + $0x20] sm:$0xff] %vm374, %v1010
        %1019 = vst.msk [vmem:[%s317 + $0x28] sm:$0xff] %vm374, %v1011
        %1020 = vst.msk [vmem:[%s317 + $0x30] sm:$0xff] %vm374, %v1012
        %1021 = vst.msk [vmem:[%s317 + $0x38] sm:$0xff] %vm374, %v1013
        %v1022 = vsel %vm374, %v1006, 0.0
        %v1023 = vsel %vm374, %v1007, 0.0
        %v1024 = vadd.f32 %v1022, %v1023
        %v1025 = vsel %vm374, %v1008, 0.0
        %v1026 = vadd.f32 %v1024, %v1025
        %v1027 = vsel %vm374, %v1009, 0.0
        %v1028 = vadd.f32 %v1026, %v1027
        %v1029 = vsel %vm374, %v1010, 0.0
        %v1030 = vadd.f32 %v1028, %v1029
        %v1031 = vsel %vm374, %v1011, 0.0
        %v1032 = vadd.f32 %v1030, %v1031
        %v1033 = vsel %vm374, %v1012, 0.0
        %v1034 = vadd.f32 %v1032, %v1033
        %v1035 = vsel %vm374, %v1013, 0.0
        %v1036 = vadd.f32 %v1034, %v1035
        %v1037 = vrot.slane %v1036, 4
        %v1038 = vadd.f32 %v1036, %v1037
        %v1039 = vrot.slane %v1038, 2
        %v1040 = vadd.f32 %v1038, %v1039
        %v1041 = vrot.slane %v1040, 1
        %v1042 = vadd.f32 %v1040, %v1041
        %vm1043 = vcmask 57344
        %1044 = vst.msk [vmem:[%s324] sm:$0x1] %vm1043, %v1042
        %v1045 = vmul.f32 %v1006, %v1006
        %v1046 = vmul.f32 %v1007, %v1007
        %v1047 = vmul.f32 %v1008, %v1008
        %v1048 = vmul.f32 %v1009, %v1009
        %v1049 = vmul.f32 %v1010, %v1010
        %v1050 = vmul.f32 %v1011, %v1011
        %v1051 = vmul.f32 %v1012, %v1012
        %v1052 = vmul.f32 %v1013, %v1013
        %v1053 = vsel %vm374, %v1045, 0.0
        %v1054 = vsel %vm374, %v1046, 0.0
        %v1055 = vadd.f32 %v1053, %v1054
        %v1056 = vsel %vm374, %v1047, 0.0
        %v1057 = vadd.f32 %v1055, %v1056
        %v1058 = vsel %vm374, %v1048, 0.0
        %v1059 = vadd.f32 %v1057, %v1058
        %v1060 = vsel %vm374, %v1049, 0.0
        %v1061 = vadd.f32 %v1059, %v1060
        %v1062 = vsel %vm374, %v1050, 0.0
        %v1063 = vadd.f32 %v1061, %v1062
        %v1064 = vsel %vm374, %v1051, 0.0
        %v1065 = vadd.f32 %v1063, %v1064
        %v1066 = vsel %vm374, %v1052, 0.0
        %v1067 = vadd.f32 %v1065, %v1066
        %v1068 = vrot.slane %v1067, 4
        %v1069 = vadd.f32 %v1067, %v1068
        %v1070 = vrot.slane %v1069, 2
        %v1071 = vadd.f32 %v1069, %v1070
        %v1072 = vrot.slane %v1071, 1
        %v1073 = vadd.f32 %v1071, %v1072
        %1074 = vst.msk [vmem:[%s331] sm:$0x1] %vm1043, %v1073
      $region40: #{rrconv_block_forward.21} parent=31 // pred_fallthru
        _
      %p1075 = scmp.lt.s32.totalorder %s22, 1
      %s1076 = scalar_select %p1075, %s22, 1
      %p1077 = scmp.lt.s32.totalorder %s23, 7
      %s1078 = scalar_select %p1077, %s23, 7
      %s1079 = smul.addr %s1078, 8
      %s1080 = smul.addr %s1076, 64
      %s1081 = sadd.s32 %s1079, %s1080
      %s1082 = smul.addr %s1081, 8
      %s1083 = scalar_lea.vmem %s3, %s1082
      %p1084 = scmp.lt.s32.totalorder %s22, 1
      %s1085 = scalar_select %p1084, %s22, 1
      %p1086 = scmp.lt.s32.totalorder %s23, 7
      %s1087 = scalar_select %p1086, %s23, 7
      %s1088 = smul.addr %s1085, 8
      %s1089 = sadd.s32 %s1087, %s1088
      %s1090 = scalar_lea.vmem %s4, %s1089
      %p1091 = scmp.lt.s32.totalorder %s22, 1
      %s1092 = scalar_select %p1091, %s22, 1
      %p1093 = scmp.lt.s32.totalorder %s23, 7
      %s1094 = scalar_select %p1093, %s23, 7
      %s1095 = smul.addr %s1092, 8
      %s1096 = sadd.s32 %s1094, %s1095
      %s1097 = scalar_lea.vmem %s5, %s1096
      // Predicated region
      $region41: #{rrconv_block_forward.21} parent=31 // pred_check
        %p1098 = pneg %p133
      $region42: #{rrconv_block_forward.21} parent=31 // pred_check_branch
        %1100 = sbr.rel (%p1098) target = $region44
      $region43: #{rrconv_block_forward.21} parent=31 // pred_region
        _
      $region44: #{rrconv_block_forward.21} parent=31 // pred_fallthru
        _
      // Predicated region
      $region45: #{rrconv_block_forward.21} parent=31 // pred_check
        %p1101 = pneg %p161
      $region46: #{rrconv_block_forward.21} parent=31 // pred_check_branch
        %1103 = sbr.rel (%p1101) target = $region48
      $region47: #{rrconv_block_forward.21} parent=31 // pred_region
        _
      $region48: #{rrconv_block_forward.21} parent=31 // pred_fallthru
        _
      // Predicated region
      $region49: #{rrconv_block_forward.21} parent=31 // pred_check
        %p1104 = pneg %p189
      $region50: #{rrconv_block_forward.21} parent=31 // pred_check_branch
        %1106 = sbr.rel (%p1104) target = $region52
      $region51: #{rrconv_block_forward.21} parent=31 // pred_region
        _
      $region52: #{rrconv_block_forward.21} parent=31 // pred_fallthru
        _
    $region32: #{rrconv_block_forward.21} parent=5 // pred_fallthru
      _
    %p1107 = scmp.le.s32.totalorder 2, %s12
    // Predicated region
    $region53: #{rrconv_block_forward.21} parent=5 // pred_check
      %p1108 = pneg %p1107
    $region54: #{rrconv_block_forward.21} parent=5 // pred_check_branch
      %1110 = sbr.rel (%p1108) target = $region56
    $region55: #{rrconv_block_forward.21} parent=5 // pred_region
      %s1111 = ssub.s32 %s12, 2
      // Predicated region
      $region57: #{rrconv_block_forward.21} parent=55 // pred_check
        %p1112 = pneg %p139
      $region58: #{rrconv_block_forward.21} parent=55 // pred_check_branch
        %1114 = sbr.rel (%p1112) target = $region60
      $region59: #{rrconv_block_forward.21} parent=55 // pred_region
        %p1115 = scmp.lt.s32.totalorder %s25, 1
        %s1116 = scalar_select %p1115, %s25, 1
        %p1117 = scmp.lt.s32.totalorder %s26, 7
        %s1118 = scalar_select %p1117, %s26, 7
        %s1119 = smul.addr %s1118, 8
        %s1120 = smul.addr %s1116, 64
        %s1121 = sadd.s32 %s1119, %s1120
        %s1122 = smul.addr %s1121, 8
        %s1123 = scalar_lea.vmem %s3, %s1122
      $region60: #{rrconv_block_forward.21} parent=55 // pred_fallthru
        _
      // Predicated region
      $region61: #{rrconv_block_forward.21} parent=55 // pred_check
        %p1124 = pneg %p167
      $region62: #{rrconv_block_forward.21} parent=55 // pred_check_branch
        %1126 = sbr.rel (%p1124) target = $region64
      $region63: #{rrconv_block_forward.21} parent=55 // pred_region
        %p1127 = scmp.lt.s32.totalorder %s25, 1
        %s1128 = scalar_select %p1127, %s25, 1
        %p1129 = scmp.lt.s32.totalorder %s26, 7
        %s1130 = scalar_select %p1129, %s26, 7
        %s1131 = smul.addr %s1128, 8
        %s1132 = sadd.s32 %s1130, %s1131
        %s1133 = scalar_lea.vmem %s4, %s1132
      $region64: #{rrconv_block_forward.21} parent=55 // pred_fallthru
        _
      // Predicated region
      $region65: #{rrconv_block_forward.21} parent=55 // pred_check
        %p1134 = pneg %p195
      $region66: #{rrconv_block_forward.21} parent=55 // pred_check_branch
        %1136 = sbr.rel (%p1134) target = $region68
      $region67: #{rrconv_block_forward.21} parent=55 // pred_region
        %p1137 = scmp.lt.s32.totalorder %s25, 1
        %s1138 = scalar_select %p1137, %s25, 1
        %p1139 = scmp.lt.s32.totalorder %s26, 7
        %s1140 = scalar_select %p1139, %s26, 7
        %s1141 = smul.addr %s1138, 8
        %s1142 = sadd.s32 %s1140, %s1141
        %s1143 = scalar_lea.vmem %s5, %s1142
      $region68: #{rrconv_block_forward.21} parent=55 // pred_fallthru
        _
    $region56: #{rrconv_block_forward.21} parent=5 // pred_fallthru
      _
  $region6: #{rrconv_block_forward.21} parent=0 // loop_footer
    %s16 = sadd.s32 1, %s12
  $region7: #{rrconv_block_forward.21} parent=0 // loop_footer_branch
    %11 = sbr.rel target = $region3
  $region8: #{rrconv_block_forward.21} parent=0 // loop_exit
    _

// kernel: rrconv_block_forward.23
$region0: #{rrconv_block_forward.23}
  #allocation0 [shape = 'u32[]', space=smem, size = 0x4, offset = 0x4, fixed_abs, tag = 'smem constant byte address 0x4 - core index']
  #allocation1 [shape = 'u32[72,128]{1,0:T(1,128)}', space=vmem, size = 0x9000, scoped, tag = 'internal scratch']
  #allocation2 [shape = 'f32[64,8]{1,0:T(8,128)}', space=vmem, size = 0x8000, scoped, tag = 'scratch operand']
  %s0 = inlined_call_operand.vmem [shape: f32[2,10,10,10,8], index: 0, kind: input, shape index: {}]
  %s1 = inlined_call_operand.vmem [shape: f32[3,3,3,8,8], index: 1, kind: input, shape index: {}]
  %s2 = inlined_call_operand.vmem [shape: f32[1,8], index: 2, kind: input, shape index: {}]
  %s3 = inlined_call_operand.vmem [shape: f32[2,8,64,8], index: 3, kind: output, shape index: {0}]
  %s4 = inlined_call_operand.vmem [shape: f32[2,8,1,8], index: 4, kind: output, shape index: {1}]
  %s5 = inlined_call_operand.vmem [shape: f32[2,8,1,8], index: 5, kind: output, shape index: {2}]
  %6 = xla_tuple %s3, %s4, %s5
  %s7 = sld [smem:[#allocation0]]
  $region69: #{rrconv_block_forward.23} parent=0
    _
  %s9 = ssub.s32 1, %s7
  %s10 = scalar_select 0, %s9, %s7
  loop: start=0, step=1, limit=50
  $region2: #{rrconv_block_forward.23} parent=0 // loop_pre_header
    _
  $region3: #{rrconv_block_forward.23} parent=0 // loop_header
    %s12 = sphi 0, %s16
    %p13 = scmp.ge.s32.totalorder %s12, 50
    %s19 = sphi 0, %s38
    %s20 = sphi 0, %s34
    %s21 = sphi 0, %s30
    %s22 = sphi 0, %s19
    %s23 = sphi 0, %s20
    %s24 = sphi 0, %s21
    %s25 = sphi 0, %s22
    %s26 = sphi 0, %s23
    %s27 = sphi 0, %s24
    %s45 = sphi 0, %s47
    %s48 = sphi 0, %s45
    %s49 = sphi 0, %s48
    %s65 = sphi 0, %s49
    %s71 = sphi 0, %s73
    %s74 = sphi 0, %s71
    %s75 = sphi 0, %s74
    %s91 = sphi 0, %s75
    %s95 = sphi 0, %s95
    %s97 = sphi 0, %s95
    %s98 = sphi 0, %s97
    %s112 = sphi 0, %s98
    %s120 = sphi 0, %s122
    %s123 = sphi 0, %s120
    %s124 = sphi 0, %s123
    %s140 = sphi 0, %s124
    %s148 = sphi 0, %s150
    %s151 = sphi 0, %s148
    %s152 = sphi 0, %s151
    %s168 = sphi 0, %s152
    %s176 = sphi 0, %s178
    %s179 = sphi 0, %s176
    %s180 = sphi 0, %s179
    %s196 = sphi 0, %s180
  $region4: #{rrconv_block_forward.23} parent=0 // loop_header_branch
    %15 = sbr.rel (%p13) target = $region8
  $region5: #{rrconv_block_forward.23} parent=0 // loop_body
    %s17 = ssub.s32 %s12, 1
    %s18 = ssub.s32 %s12, 2
    %s28 = sadd.s32 1, %s21
    %p29 = scmp.ge.s32.totalorder %s28, 3
    %s30 = scalar_select %p29, 0, %s28
    %s31 = sadd.s32 1, %s20
    %s32 = scalar_select %p29, %s31, %s20
    %p33 = scmp.ge.s32.totalorder %s32, 8
    %s34 = scalar_select %p33, 0, %s32
    %s35 = sadd.s32 1, %s19
    %s36 = scalar_select %p33, %s35, %s19
    %p37 = scmp.ge.s32.totalorder %s36, 2
    %s38 = scalar_select %p37, 0, %s36
    %s39 = sadd.s32 %s20, %s21
    %s40 = sadd.s32 %s34, %s30
    %s41 = ssub.s32 %s19, %s38
    %s42 = ssub.s32 %s39, %s40
    %s43 = sor.u32 %s41, %s42
    %p44 = scmp.eq.s32.totalorder %s43, 0
    %s46 = sadd.s32 %s45, 1
    %s47 = scalar_select %p44, %s45, %s46
    %p50 = pneg %p44
    %p51 = scmp.eq.s32.totalorder %s12, 47
    %p52 = por %p50, %p51
    %p53 = scmp.ne.s32.totalorder %s45, %s48
    %p54 = scmp.eq.s32.totalorder %s12, 0
    %p55 = por %p53, %p54
    %p56 = scmp.ne.s32.totalorder %s45, %s48
    %p57 = scmp.eq.s32.totalorder %s17, 47
    %p58 = por %p56, %p57
    %p59 = scmp.ne.s32.totalorder %s48, %s49
    %p60 = scmp.eq.s32.totalorder %s17, 0
    %p61 = por %p59, %p60
    %p62 = scmp.ne.s32.totalorder %s48, %s49
    %p63 = scmp.eq.s32.totalorder %s18, 47
    %p64 = por %p62, %p63
    %p66 = scmp.ne.s32.totalorder %s49, %s65
    %p67 = scmp.eq.s32.totalorder %s18, 0
    %p68 = por %p66, %p67
    %s69 = ssub.s32 %s21, %s30
    %p70 = scmp.eq.s32.totalorder %s69, 0
    %s72 = sadd.s32 %s71, 1
    %s73 = scalar_select %p70, %s71, %s72
    %p76 = pneg %p70
    %p77 = scmp.eq.s32.totalorder %s12, 47
    %p78 = por %p76, %p77
    %p79 = scmp.ne.s32.totalorder %s71, %s74
    %p80 = scmp.eq.s32.totalorder %s12, 0
    %p81 = por %p79, %p80
    %p82 = scmp.ne.s32.totalorder %s71, %s74
    %p83 = scmp.eq.s32.totalorder %s17, 47
    %p84 = por %p82, %p83
    %p85 = scmp.ne.s32.totalorder %s74, %s75
    %p86 = scmp.eq.s32.totalorder %s17, 0
    %p87 = por %p85, %p86
    %p88 = scmp.ne.s32.totalorder %s74, %s75
    %p89 = scmp.eq.s32.totalorder %s18, 47
    %p90 = por %p88, %p89
    %p92 = scmp.ne.s32.totalorder %s75, %s91
    %p93 = scmp.eq.s32.totalorder %s18, 0
    %p94 = por %p92, %p93
    %s96 = sadd.s32 %s95, 1
    %p99 = scmp.eq.s32.totalorder %s12, 47
    %p100 = scmp.ne.s32.totalorder %s95, %s97
    %p101 = scmp.eq.s32.totalorder %s12, 0
    %p102 = por %p100, %p101
    %p103 = scmp.ne.s32.totalorder %s95, %s97
    %p104 = scmp.eq.s32.totalorder %s17, 47
    %p105 = por %p103, %p104
    %p106 = scmp.ne.s32.totalorder %s97, %s98
    %p107 = scmp.eq.s32.totalorder %s17, 0
    %p108 = por %p106, %p107
    %p109 = scmp.ne.s32.totalorder %s97, %s98
    %p110 = scmp.eq.s32.totalorder %s18, 47
    %p111 = por %p109, %p110
    %p113 = scmp.ne.s32.totalorder %s98, %s112
    %p114 = scmp.eq.s32.totalorder %s18, 0
    %p115 = por %p113, %p114
    %s116 = ssub.s32 %s19, %s38
    %s117 = ssub.s32 %s20, %s34
    %s118 = sor.u32 %s116, %s117
    %p119 = scmp.eq.s32.totalorder %s118, 0
    %s121 = sadd.s32 %s120, 1
    %s122 = scalar_select %p119, %s120, %s121
    %p125 = pneg %p119
    %p126 = scmp.eq.s32.totalorder %s12, 47
    %p127 = por %p125, %p126
    %p128 = scmp.ne.s32.totalorder %s120, %s123
    %p129 = scmp.eq.s32.totalorder %s12, 0
    %p130 = por %p128, %p129
    %p131 = scmp.ne.s32.totalorder %s120, %s123
    %p132 = scmp.eq.s32.totalorder %s17, 47
    %p133 = por %p131, %p132
    %p134 = scmp.ne.s32.totalorder %s123, %s124
    %p135 = scmp.eq.s32.totalorder %s17, 0
    %p136 = por %p134, %p135
    %p137 = scmp.ne.s32.totalorder %s123, %s124
    %p138 = scmp.eq.s32.totalorder %s18, 47
    %p139 = por %p137, %p138
    %p141 = scmp.ne.s32.totalorder %s124, %s140
    %p142 = scmp.eq.s32.totalorder %s18, 0
    %p143 = por %p141, %p142
    %s144 = ssub.s32 %s19, %s38
    %s145 = ssub.s32 %s20, %s34
    %s146 = sor.u32 %s144, %s145
    %p147 = scmp.eq.s32.totalorder %s146, 0
    %s149 = sadd.s32 %s148, 1
    %s150 = scalar_select %p147, %s148, %s149
    %p153 = pneg %p147
    %p154 = scmp.eq.s32.totalorder %s12, 47
    %p155 = por %p153, %p154
    %p156 = scmp.ne.s32.totalorder %s148, %s151
    %p157 = scmp.eq.s32.totalorder %s12, 0
    %p158 = por %p156, %p157
    %p159 = scmp.ne.s32.totalorder %s148, %s151
    %p160 = scmp.eq.s32.totalorder %s17, 47
    %p161 = por %p159, %p160
    %p162 = scmp.ne.s32.totalorder %s151, %s152
    %p163 = scmp.eq.s32.totalorder %s17, 0
    %p164 = por %p162, %p163
    %p165 = scmp.ne.s32.totalorder %s151, %s152
    %p166 = scmp.eq.s32.totalorder %s18, 47
    %p167 = por %p165, %p166
    %p169 = scmp.ne.s32.totalorder %s152, %s168
    %p170 = scmp.eq.s32.totalorder %s18, 0
    %p171 = por %p169, %p170
    %s172 = ssub.s32 %s19, %s38
    %s173 = ssub.s32 %s20, %s34
    %s174 = sor.u32 %s172, %s173
    %p175 = scmp.eq.s32.totalorder %s174, 0
    %s177 = sadd.s32 %s176, 1
    %s178 = scalar_select %p175, %s176, %s177
    %p181 = pneg %p175
    %p182 = scmp.eq.s32.totalorder %s12, 47
    %p183 = por %p181, %p182
    %p184 = scmp.ne.s32.totalorder %s176, %s179
    %p185 = scmp.eq.s32.totalorder %s12, 0
    %p186 = por %p184, %p185
    %p187 = scmp.ne.s32.totalorder %s176, %s179
    %p188 = scmp.eq.s32.totalorder %s17, 47
    %p189 = por %p187, %p188
    %p190 = scmp.ne.s32.totalorder %s179, %s180
    %p191 = scmp.eq.s32.totalorder %s17, 0
    %p192 = por %p190, %p191
    %p193 = scmp.ne.s32.totalorder %s179, %s180
    %p194 = scmp.eq.s32.totalorder %s18, 47
    %p195 = por %p193, %p194
    %p197 = scmp.ne.s32.totalorder %s180, %s196
    %p198 = scmp.eq.s32.totalorder %s18, 0
    %p199 = por %p197, %p198
    %p200 = scmp.le.s32.totalorder 1, %s12
    %p201 = scmp.lt.s32.totalorder %s12, 49
    %p202 = pnand %p200, %p201
    %p203 = pneg %p202
    // Predicated region
    $region9: #{rrconv_block_forward.23} parent=5 // pred_check
      _
    $region10: #{rrconv_block_forward.23} parent=5 // pred_check_branch
      %205 = sbr.rel (%p202) target = $region12
    $region11: #{rrconv_block_forward.23} parent=5 // pred_region
      %s206 = ssub.s32 %s12, 1
      // Predicated region
      $region13: #{rrconv_block_forward.23} parent=11 // pred_check
        %p207 = pneg %p108
      $region14: #{rrconv_block_forward.23} parent=11 // pred_check_branch
        %209 = sbr.rel (%p207) target = $region16
      $region15: #{rrconv_block_forward.23} parent=11 // pred_region
        _
      $region16: #{rrconv_block_forward.23} parent=11 // pred_fallthru
        _
    $region12: #{rrconv_block_forward.23} parent=5 // pred_fallthru
      _
    %p210 = scmp.lt.s32.totalorder %s12, 48
    // Predicated region
    $region17: #{rrconv_block_forward.23} parent=5 // pred_check
      %p211 = pneg %p210
    $region18: #{rrconv_block_forward.23} parent=5 // pred_check_branch
      %213 = sbr.rel (%p211) target = $region20
    $region19: #{rrconv_block_forward.23} parent=5 // pred_region
      // Predicated region
      $region21: #{rrconv_block_forward.23} parent=19 // pred_check
        %p214 = pneg %p55
      $region22: #{rrconv_block_forward.23} parent=19 // pred_check_branch
        %216 = sbr.rel (%p214) target = $region24
      $region23: #{rrconv_block_forward.23} parent=19 // pred_region
        %s217 = sadd.s32 %s20, %s21
        %p218 = scmp.lt.s32.totalorder %s19, 1
        %s219 = scalar_select %p218, %s19, 1
        %p220 = scmp.lt.s32.totalorder %s217, 9
        %s221 = scalar_select %p220, %s217, 9
        %s222 = smul.addr %s221, 20
        %s223 = smul.addr %s219, 200
        %s224 = sadd.s32 %s222, %s223
        %s225 = smul.addr %s224, 8
        %s226 = scalar_lea.vmem %s0, %s225
        %s227 = sadd.s32 %s20, %s21
      $region24: #{rrconv_block_forward.23} parent=19 // pred_fallthru
        _
      // Predicated region
      $region25: #{rrconv_block_forward.23} parent=19 // pred_check
        %p228 = pneg %p81
      $region26: #{rrconv_block_forward.23} parent=19 // pred_check_branch
        %230 = sbr.rel (%p228) target = $region28
      $region27: #{rrconv_block_forward.23} parent=19 // pred_region
        %p231 = scmp.lt.s32.totalorder %s21, 2
        %s232 = scalar_select %p231, %s21, 2
        %s233 = smul.addr %s232, 9
        %s234 = smul.addr %s233, 8
        %s235 = scalar_lea.vmem %s1, %s234
      $region28: #{rrconv_block_forward.23} parent=19 // pred_fallthru
        _
    $region20: #{rrconv_block_forward.23} parent=5 // pred_fallthru
      _
    %p236 = scmp.le.s32.totalorder 1, %s12
    %p237 = scmp.lt.s32.totalorder %s12, 49
    %p238 = pnand %p236, %p237
    %p239 = pneg %p238
    // Predicated region
    $region29: #{rrconv_block_forward.23} parent=5 // pred_check
      _
    $region30: #{rrconv_block_forward.23} parent=5 // pred_check_branch
      %241 = sbr.rel (%p238) target = $region32
    $region31: #{rrconv_block_forward.23} parent=5 // pred_region
      %s242 = ssub.s32 %s12, 1
      %s243 = sadd.s32 %s23, %s24
      %p244 = scmp.lt.s32.totalorder %s22, 1
      %s245 = scalar_select %p244, %s22, 1
      %p246 = scmp.lt.s32.totalorder %s243, 9
      %s247 = scalar_select %p246, %s243, 9
      %s248 = smul.addr %s247, 20
      %s249 = smul.addr %s245, 200
      %s250 = sadd.s32 %s248, %s249
      %s251 = smul.addr %s250, 8
      %s252 = scalar_lea.vmem %s0, %s251
      %p253 = pneg %p61
      %p254 = pneg %p58
      %p255 = scmp.lt.s32.totalorder %s24, 2
      %s256 = scalar_select %p255, %s24, 2
      %s257 = smul.addr %s256, 9
      %s258 = smul.addr %s257, 8
      %s259 = scalar_lea.vmem %s1, %s258
      %p260 = pneg %p87
      %p261 = pneg %p84
      %p262 = pneg %p108
      %p263 = pneg %p105
      %p264 = pneg %p136
      %p265 = pneg %p133
      %p266 = scmp.lt.s32.totalorder %s22, 1
      %s267 = scalar_select %p266, %s22, 1
      %p268 = scmp.lt.s32.totalorder %s23, 7
      %s269 = scalar_select %p268, %s23, 7
      %s270 = smul.addr %s269, 8
      %s271 = smul.addr %s267, 64
      %s272 = sadd.s32 %s270, %s271
      %s273 = smul.addr %s272, 8
      %s274 = scalar_lea.vmem %s3, %s273
      %p275 = pneg %p164
      %p276 = pneg %p161
      %p277 = scmp.lt.s32.totalorder %s22, 1
      %s278 = scalar_select %p277, %s22, 1
      %p279 = scmp.lt.s32.totalorder %s23, 7
      %s280 = scalar_select %p279, %s23, 7
      %s281 = smul.addr %s278, 8
      %s282 = sadd.s32 %s280, %s281
      %s283 = scalar_lea.vmem %s4, %s282
      %p284 = pneg %p192
      %p285 = pneg %p189
      %p286 = scmp.lt.s32.totalorder %s22, 1
      %s287 = scalar_select %p286, %s22, 1
      %p288 = scmp.lt.s32.totalorder %s23, 7
      %s289 = scalar_select %p288, %s23, 7
      %s290 = smul.addr %s287, 8
      %s291 = sadd.s32 %s289, %s290
      %s292 = scalar_lea.vmem %s5, %s291
      %s293 = sadd.s32 %s23, %s24
      %p294 = scmp.lt.s32.totalorder %s22, 1
      %s295 = scalar_select %p294, %s22, 1
      %p296 = scmp.lt.s32.totalorder %s293, 9
      %s297 = scalar_select %p296, %s293, 9
      %s298 = smul.addr %s297, 20
      %s299 = smul.addr %s295, 200
      %s300 = sadd.s32 %s298, %s299
      %s301 = smul.addr %s300, 8
      %s302 = scalar_lea.vmem %s0, %s301
      %s303 = sadd.s32 %s23, %s24
      %p304 = scmp.lt.s32.totalorder %s24, 2
      %s305 = scalar_select %p304, %s24, 2
      %s306 = smul.addr %s305, 9
      %s307 = smul.addr %s306, 8
      %s308 = scalar_lea.vmem %s1, %s307
      %p309 = scmp.lt.s32.totalorder %s22, 1
      %s310 = scalar_select %p309, %s22, 1
      %p311 = scmp.lt.s32.totalorder %s23, 7
      %s312 = scalar_select %p311, %s23, 7
      %s313 = smul.addr %s312, 8
      %s314 = smul.addr %s310, 64
      %s315 = sadd.s32 %s313, %s314
      %s316 = smul.addr %s315, 8
      %s317 = scalar_lea.vmem %s3, %s316
      %p318 = scmp.lt.s32.totalorder %s22, 1
      %s319 = scalar_select %p318, %s22, 1
      %p320 = scmp.lt.s32.totalorder %s23, 7
      %s321 = scalar_select %p320, %s23, 7
      %s322 = smul.addr %s319, 8
      %s323 = sadd.s32 %s321, %s322
      %s324 = scalar_lea.vmem %s4, %s323
      %p325 = scmp.lt.s32.totalorder %s22, 1
      %s326 = scalar_select %p325, %s22, 1
      %p327 = scmp.lt.s32.totalorder %s23, 7
      %s328 = scalar_select %p327, %s23, 7
      %s329 = smul.addr %s326, 8
      %s330 = sadd.s32 %s328, %s329
      %s331 = scalar_lea.vmem %s5, %s330
      %p332 = scmp.eq.s32.totalorder %s24, 0
      // Predicated region
      $region33: #{rrconv_block_forward.23} parent=31 // pred_check
        %p333 = pneg %p332
      $region34: #{rrconv_block_forward.23} parent=31 // pred_check_branch
        %335 = sbr.rel (%p333) target = $region36
      $region35: #{rrconv_block_forward.23} parent=31 // pred_region
        %vm336 = vcmask 64512
        %337 = vst.msk [vmem:[#allocation2] sm:$0xff] %vm336, 0.0
        %338 = vst.msk [vmem:[#allocation2 + $0x8] sm:$0xff] %vm336, 0.0
        %339 = vst.msk [vmem:[#allocation2 + $0x10] sm:$0xff] %vm336, 0.0
        %340 = vst.msk [vmem:[#allocation2 + $0x18] sm:$0xff] %vm336, 0.0
        %341 = vst.msk [vmem:[#allocation2 + $0x20] sm:$0xff] %vm336, 0.0
        %342 = vst.msk [vmem:[#allocation2 + $0x28] sm:$0xff] %vm336, 0.0
        %343 = vst.msk [vmem:[#allocation2 + $0x30] sm:$0xff] %vm336, 0.0
        %344 = vst.msk [vmem:[#allocation2 + $0x38] sm:$0xff] %vm336, 0.0
      $region36: #{rrconv_block_forward.23} parent=31 // pred_fallthru
        _
      %v345 = vld [vmem:[%s302] sm:$0xff]
      %v346 = vld [vmem:[%s302 + $0x8] sm:$0x3]
      %v347 = vld [vmem:[%s302 + $0x10] sm:$0xff]
      %v348 = vld [vmem:[%s302 + $0x18] sm:$0x3]
      %v349 = vld [vmem:[%s302 + $0x20] sm:$0xff]
      %v350 = vld [vmem:[%s302 + $0x28] sm:$0x3]
      %v351 = vld [vmem:[%s302 + $0x30] sm:$0xff]
      %v352 = vld [vmem:[%s302 + $0x38] sm:$0x3]
      %v353 = vld [vmem:[%s302 + $0x40] sm:$0xff]
      %v354 = vld [vmem:[%s302 + $0x48] sm:$0x3]
      %v355 = vld [vmem:[%s302 + $0x50] sm:$0xff]
      %v356 = vld [vmem:[%s302 + $0x58] sm:$0x3]
      %v357 = vld [vmem:[%s302 + $0x60] sm:$0xff]
      %v358 = vld [vmem:[%s302 + $0x68] sm:$0x3]
      %v359 = vld [vmem:[%s302 + $0x70] sm:$0xff]
      %v360 = vld [vmem:[%s302 + $0x78] sm:$0x3]
      %v361 = vld [vmem:[%s302 + $0x80] sm:$0xff]
      %v362 = vld [vmem:[%s302 + $0x88] sm:$0x3]
      %v363 = vld [vmem:[%s302 + $0x90] sm:$0xff]
      %v364 = vld [vmem:[%s302 + $0x98] sm:$0x3]
      %v365 = vld [vmem:[#allocation2] sm:$0xff]
      %v366 = vld [vmem:[#allocation2 + $0x8] sm:$0xff]
      %v367 = vld [vmem:[#allocation2 + $0x10] sm:$0xff]
      %v368 = vld [vmem:[#allocation2 + $0x18] sm:$0xff]
      %v369 = vld [vmem:[#allocation2 + $0x20] sm:$0xff]
      %v370 = vld [vmem:[#allocation2 + $0x28] sm:$0xff]
      %v371 = vld [vmem:[#allocation2 + $0x30] sm:$0xff]
      %v372 = vld [vmem:[#allocation2 + $0x38] sm:$0xff]
      %v373 = vld [vmem:[%s308] sm:$0xff]
      %vm374 = vcmask 64512
      %v376 = vsel %vm374, %v345, 0
      %v379 = vsel %vm374, %v347, 0
      %v382 = vsel %vm374, %v349, 0
      %v385 = vsel %vm374, %v351, 0
      %v388 = vsel %vm374, %v353, 0
      %v391 = vsel %vm374, %v355, 0
      %v394 = vsel %vm374, %v357, 0
      %v397 = vsel %vm374, %v359, 0
      %399 = vmatpush.msra.mxu0 0.0
      %400 = vmatpush.msra.mxu0 0.0
      %401 = vmatpush.msra.mxu0 0.0
      %402 = vmatpush.msra.mxu0 0.0
      %403 = vmatpush.msra.mxu0 0.0
      %404 = vmatpush.msra.mxu0 0.0
      %405 = vmatpush.msra.mxu0 0.0
      %406 = vmatpush.msra.mxu0 0.0
      %407 = vmatpush.msra.mxu0 0.0
      %408 = vmatpush.msra.mxu0 0.0
      %409 = vmatpush.msra.mxu0 0.0
      %410 = vmatpush.msra.mxu0 0.0
      %411 = vmatpush.msra.mxu0 0.0
      %412 = vmatpush.msra.mxu0 0.0
      %413 = vmatpush.msra.mxu0 0.0
      %414 = vmatpush.msra.mxu0 %v373
      %415 = vmatmul.f32.gmra.mxu0 %v376
      %v416 = vpop.f32.mrf.mxu0
      %v417 = vadd.f32 0.0, %v416
      %418 = vmatmul.f32.gmra.mxu0 %v379
      %v419 = vpop.f32.mrf.mxu0
      %v420 = vadd.f32 0.0, %v419
      %421 = vmatmul.f32.gmra.mxu0 %v382
      %v422 = vpop.f32.mrf.mxu0
      %v423 = vadd.f32 0.0, %v422
      %424 = vmatmul.f32.gmra.mxu0 %v385
      %v425 = vpop.f32.mrf.mxu0
      %v426 = vadd.f32 0.0, %v425
      %427 = vmatmul.f32.gmra.mxu0 %v388
      %v428 = vpop.f32.mrf.mxu0
      %v429 = vadd.f32 0.0, %v428
      %430 = vmatmul.f32.gmra.mxu0 %v391
      %v431 = vpop.f32.mrf.mxu0
      %v432 = vadd.f32 0.0, %v431
      %433 = vmatmul.f32.gmra.mxu0 %v394
      %v434 = vpop.f32.mrf.mxu0
      %v435 = vadd.f32 0.0, %v434
      %436 = vmatmul.f32.gmra.mxu0 %v397
      %v437 = vpop.f32.mrf.mxu0
      %v438 = vadd.f32 0.0, %v437
      %439 = vdwg.mxu0
      %v440 = vadd.f32 %v365, %v417
      %v441 = vadd.f32 %v366, %v420
      %v442 = vadd.f32 %v367, %v423
      %v443 = vadd.f32 %v368, %v426
      %v444 = vadd.f32 %v369, %v429
      %v445 = vadd.f32 %v370, %v432
      %v446 = vadd.f32 %v371, %v435
      %v447 = vadd.f32 %v372, %v438
      %vm456 = vcmask 1046528
      %v457 = vrot.slane %v345, 1
      %v458 = vrot.slane %v346, 1
      %v459 = vsel %vm456, %v457, %v458
      %v460 = vrot.slane %v347, 1
      %v461 = vrot.slane %v348, 1
      %v462 = vsel %vm456, %v460, %v461
      %v463 = vrot.slane %v349, 1
      %v464 = vrot.slane %v350, 1
      %v465 = vsel %vm456, %v463, %v464
      %v466 = vrot.slane %v351, 1
      %v467 = vrot.slane %v352, 1
      %v468 = vsel %vm456, %v466, %v467
      %v469 = vrot.slane %v353, 1
      %v470 = vrot.slane %v354, 1
      %v471 = vsel %vm456, %v469, %v470
      %v472 = vrot.slane %v355, 1
      %v473 = vrot.slane %v356, 1
      %v474 = vsel %vm456, %v472, %v473
      %v475 = vrot.slane %v357, 1
      %v476 = vrot.slane %v358, 1
      %v477 = vsel %vm456, %v475, %v476
      %v478 = vrot.slane %v359, 1
      %v479 = vrot.slane %v360, 1
      %v480 = vsel %vm456, %v478, %v479
      %s481 = scalar_lea.vmem %s308, 8
      %v482 = vld [vmem:[%s481] sm:$0xff]
      %v483 = vsel %vm374, %v459, 0
      %v485 = vsel %vm374, %v462, 0
      %v487 = vsel %vm374, %v465, 0
      %v489 = vsel %vm374, %v468, 0
      %v491 = vsel %vm374, %v471, 0
      %v493 = vsel %vm374, %v474, 0
      %v495 = vsel %vm374, %v477, 0
      %v497 = vsel %vm374, %v480, 0
      %499 = vmatpush.msra.mxu0 0.0
      %500 = vmatpush.msra.mxu0 0.0
      %501 = vmatpush.msra.mxu0 0.0
      %502 = vmatpush.msra.mxu0 0.0
      %503 = vmatpush.msra.mxu0 0.0
      %504 = vmatpush.msra.mxu0 0.0
      %505 = vmatpush.msra.mxu0 0.0
      %506 = vmatpush.msra.mxu0 0.0
      %507 = vmatpush.msra.mxu0 0.0
      %508 = vmatpush.msra.mxu0 0.0
      %509 = vmatpush.msra.mxu0 0.0
      %510 = vmatpush.msra.mxu0 0.0
      %511 = vmatpush.msra.mxu0 0.0
      %512 = vmatpush.msra.mxu0 0.0
      %513 = vmatpush.msra.mxu0 0.0
      %514 = vmatpush.msra.mxu0 %v482
      %515 = vmatmul.f32.gmra.mxu0 %v483
      %v516 = vpop.f32.mrf.mxu0
      %v517 = vadd.f32 0.0, %v516
      %518 = vmatmul.f32.gmra.mxu0 %v485
      %v519 = vpop.f32.mrf.mxu0
      %v520 = vadd.f32 0.0, %v519
      %521 = vmatmul.f32.gmra.mxu0 %v487
      %v522 = vpop.f32.mrf.mxu0
      %v523 = vadd.f32 0.0, %v522
      %524 = vmatmul.f32.gmra.mxu0 %v489
      %v525 = vpop.f32.mrf.mxu0
      %v526 = vadd.f32 0.0, %v525
      %527 = vmatmul.f32.gmra.mxu0 %v491
      %v528 = vpop.f32.mrf.mxu0
      %v529 = vadd.f32 0.0, %v528
      %530 = vmatmul.f32.gmra.mxu0 %v493
      %v531 = vpop.f32.mrf.mxu0
      %v532 = vadd.f32 0.0, %v531
      %533 = vmatmul.f32.gmra.mxu0 %v495
      %v534 = vpop.f32.mrf.mxu0
      %v535 = vadd.f32 0.0, %v534
      %536 = vmatmul.f32.gmra.mxu0 %v497
      %v537 = vpop.f32.mrf.mxu0
      %v538 = vadd.f32 0.0, %v537
      %539 = vdwg.mxu0
      %v540 = vadd.f32 %v440, %v517
      %v541 = vadd.f32 %v441, %v520
      %v542 = vadd.f32 %v442, %v523
      %v543 = vadd.f32 %v443, %v526
      %v544 = vadd.f32 %v444, %v529
      %v545 = vadd.f32 %v445, %v532
      %v546 = vadd.f32 %v446, %v535
      %v547 = vadd.f32 %v447, %v538
      %vm548 = vcmask 1045504
      %v549 = vrot.slane %v345, 2
      %v550 = vrot.slane %v346, 2
      %v551 = vsel %vm548, %v549, %v550
      %v552 = vrot.slane %v347, 2
      %v553 = vrot.slane %v348, 2
      %v554 = vsel %vm548, %v552, %v553
      %v555 = vrot.slane %v349, 2
      %v556 = vrot.slane %v350, 2
      %v557 = vsel %vm548, %v555, %v556
      %v558 = vrot.slane %v351, 2
      %v559 = vrot.slane %v352, 2
      %v560 = vsel %vm548, %v558, %v559
      %v561 = vrot.slane %v353, 2
      %v562 = vrot.slane %v354, 2
      %v563 = vsel %vm548, %v561, %v562
      %v564 = vrot.slane %v355, 2
      %v565 = vrot.slane %v356, 2
      %v566 = vsel %vm548, %v564, %v565
      %v567 = vrot.slane %v357, 2
      %v568 = vrot.slane %v358, 2
      %v569 = vsel %vm548, %v567, %v568
      %v570 = vrot.slane %v359, 2
      %v571 = vrot.slane %v360, 2
      %v572 = vsel %vm548, %v570, %v571
      %s573 = scalar_lea.vmem %s308, 16
      %v574 = vld [vmem:[%s573] sm:$0xff]
      %v575 = vsel %vm374, %v551, 0
      %v577 = vsel %vm374, %v554, 0
      %v579 = vsel %vm374, %v557, 0
      %v581 = vsel %vm374, %v560, 0
      %v583 = vsel %vm374, %v563, 0
      %v585 = vsel %vm374, %v566, 0
      %v587 = vsel %vm374, %v569, 0
      %v589 = vsel %vm374, %v572, 0
      %591 = vmatpush.msra.mxu0 0.0
      %592 = vmatpush.msra.mxu0 0.0
      %593 = vmatpush.msra.mxu0 0.0
      %594 = vmatpush.msra.mxu0 0.0
      %595 = vmatpush.msra.mxu0 0.0
      %596 = vmatpush.msra.mxu0 0.0
      %597 = vmatpush.msra.mxu0 0.0
      %598 = vmatpush.msra.mxu0 0.0
      %599 = vmatpush.msra.mxu0 0.0
      %600 = vmatpush.msra.mxu0 0.0
      %601 = vmatpush.msra.mxu0 0.0
      %602 = vmatpush.msra.mxu0 0.0
      %603 = vmatpush.msra.mxu0 0.0
      %604 = vmatpush.msra.mxu0 0.0
      %605 = vmatpush.msra.mxu0 0.0
      %606 = vmatpush.msra.mxu0 %v574
      %607 = vmatmul.f32.gmra.mxu0 %v575
      %v608 = vpop.f32.mrf.mxu0
      %v609 = vadd.f32 0.0, %v608
      %610 = vmatmul.f32.gmra.mxu0 %v577
      %v611 = vpop.f32.mrf.mxu0
      %v612 = vadd.f32 0.0, %v611
      %613 = vmatmul.f32.gmra.mxu0 %v579
      %v614 = vpop.f32.mrf.mxu0
      %v615 = vadd.f32 0.0, %v614
      %616 = vmatmul.f32.gmra.mxu0 %v581
      %v617 = vpop.f32.mrf.mxu0
      %v618 = vadd.f32 0.0, %v617
      %619 = vmatmul.f32.gmra.mxu0 %v583
      %v620 = vpop.f32.mrf.mxu0
      %v621 = vadd.f32 0.0, %v620
      %622 = vmatmul.f32.gmra.mxu0 %v585
      %v623 = vpop.f32.mrf.mxu0
      %v624 = vadd.f32 0.0, %v623
      %625 = vmatmul.f32.gmra.mxu0 %v587
      %v626 = vpop.f32.mrf.mxu0
      %v627 = vadd.f32 0.0, %v626
      %628 = vmatmul.f32.gmra.mxu0 %v589
      %v629 = vpop.f32.mrf.mxu0
      %v630 = vadd.f32 0.0, %v629
      %631 = vdwg.mxu0
      %v632 = vadd.f32 %v540, %v609
      %v633 = vadd.f32 %v541, %v612
      %v634 = vadd.f32 %v542, %v615
      %v635 = vadd.f32 %v543, %v618
      %v636 = vadd.f32 %v544, %v621
      %v637 = vadd.f32 %v545, %v624
      %v638 = vadd.f32 %v546, %v627
      %v639 = vadd.f32 %v547, %v630
      %s640 = scalar_lea.vmem %s308, 24
      %v641 = vld [vmem:[%s640] sm:$0xff]
      %v643 = vsel %vm374, %v361, 0
      %645 = vmatpush.msra.mxu0 0.0
      %646 = vmatpush.msra.mxu0 0.0
      %647 = vmatpush.msra.mxu0 0.0
      %648 = vmatpush.msra.mxu0 0.0
      %649 = vmatpush.msra.mxu0 0.0
      %650 = vmatpush.msra.mxu0 0.0
      %651 = vmatpush.msra.mxu0 0.0
      %652 = vmatpush.msra.mxu0 0.0
      %653 = vmatpush.msra.mxu0 0.0
      %654 = vmatpush.msra.mxu0 0.0
      %655 = vmatpush.msra.mxu0 0.0
      %656 = vmatpush.msra.mxu0 0.0
      %657 = vmatpush.msra.mxu0 0.0
      %658 = vmatpush.msra.mxu0 0.0
      %659 = vmatpush.msra.mxu0 0.0
      %660 = vmatpush.msra.mxu0 %v641
      %661 = vmatmul.f32.gmra.mxu0 %v379
      %v662 = vpop.f32.mrf.mxu0
      %v663 = vadd.f32 0.0, %v662
      %664 = vmatmul.f32.gmra.mxu0 %v382
      %v665 = vpop.f32.mrf.mxu0
      %v666 = vadd.f32 0.0, %v665
      %667 = vmatmul.f32.gmra.mxu0 %v385
      %v668 = vpop.f32.mrf.mxu0
      %v669 = vadd.f32 0.0, %v668
      %670 = vmatmul.f32.gmra.mxu0 %v388
      %v671 = vpop.f32.mrf.mxu0
      %v672 = vadd.f32 0.0, %v671
      %673 = vmatmul.f32.gmra.mxu0 %v391
      %v674 = vpop.f32.mrf.mxu0
      %v675 = vadd.f32 0.0, %v674
      %676 = vmatmul.f32.gmra.mxu0 %v394
      %v677 = vpop.f32.mrf.mxu0
      %v678 = vadd.f32 0.0, %v677
      %679 = vmatmul.f32.gmra.mxu0 %v397
      %v680 = vpop.f32.mrf.mxu0
      %v681 = vadd.f32 0.0, %v680
      %682 = vmatmul.f32.gmra.mxu0 %v643
      %v683 = vpop.f32.mrf.mxu0
      %v684 = vadd.f32 0.0, %v683
      %685 = vdwg.mxu0
      %v686 = vadd.f32 %v632, %v663
      %v687 = vadd.f32 %v633, %v666
      %v688 = vadd.f32 %v634, %v669
      %v689 = vadd.f32 %v635, %v672
      %v690 = vadd.f32 %v636, %v675
      %v691 = vadd.f32 %v637, %v678
      %v692 = vadd.f32 %v638, %v681
      %v693 = vadd.f32 %v639, %v684
      %v695 = vrot.slane %v361, 1
      %v696 = vrot.slane %v362, 1
      %v697 = vsel %vm456, %v695, %v696
      %s698 = scalar_lea.vmem %s308, 32
      %v699 = vld [vmem:[%s698] sm:$0xff]
      %v700 = vsel %vm374, %v697, 0
      %702 = vmatpush.msra.mxu0 0.0
      %703 = vmatpush.msra.mxu0 0.0
      %704 = vmatpush.msra.mxu0 0.0
      %705 = vmatpush.msra.mxu0 0.0
      %706 = vmatpush.msra.mxu0 0.0
      %707 = vmatpush.msra.mxu0 0.0
      %708 = vmatpush.msra.mxu0 0.0
      %709 = vmatpush.msra.mxu0 0.0
      %710 = vmatpush.msra.mxu0 0.0
      %711 = vmatpush.msra.mxu0 0.0
      %712 = vmatpush.msra.mxu0 0.0
      %713 = vmatpush.msra.mxu0 0.0
      %714 = vmatpush.msra.mxu0 0.0
      %715 = vmatpush.msra.mxu0 0.0
      %716 = vmatpush.msra.mxu0 0.0
      %717 = vmatpush.msra.mxu0 %v699
      %718 = vmatmul.f32.gmra.mxu0 %v485
      %v719 = vpop.f32.mrf.mxu0
      %v720 = vadd.f32 0.0, %v719
      %721 = vmatmul.f32.gmra.mxu0 %v487
      %v722 = vpop.f32.mrf.mxu0
      %v723 = vadd.f32 0.0, %v722
      %724 = vmatmul.f32.gmra.mxu0 %v489
      %v725 = vpop.f32.mrf.mxu0
      %v726 = vadd.f32 0.0, %v725
      %727 = vmatmul.f32.gmra.mxu0 %v491
      %v728 = vpop.f32.mrf.mxu0
      %v729 = vadd.f32 0.0, %v728
      %730 = vmatmul.f32.gmra.mxu0 %v493
      %v731 = vpop.f32.mrf.mxu0
      %v732 = vadd.f32 0.0, %v731
      %733 = vmatmul.f32.gmra.mxu0 %v495
      %v734 = vpop.f32.mrf.mxu0
      %v735 = vadd.f32 0.0, %v734
      %736 = vmatmul.f32.gmra.mxu0 %v497
      %v737 = vpop.f32.mrf.mxu0
      %v738 = vadd.f32 0.0, %v737
      %739 = vmatmul.f32.gmra.mxu0 %v700
      %v740 = vpop.f32.mrf.mxu0
      %v741 = vadd.f32 0.0, %v740
      %742 = vdwg.mxu0
      %v743 = vadd.f32 %v686, %v720
      %v744 = vadd.f32 %v687, %v723
      %v745 = vadd.f32 %v688, %v726
      %v746 = vadd.f32 %v689, %v729
      %v747 = vadd.f32 %v690, %v732
      %v748 = vadd.f32 %v691, %v735
      %v749 = vadd.f32 %v692, %v738
      %v750 = vadd.f32 %v693, %v741
      %v751 = vrot.slane %v361, 2
      %v752 = vrot.slane %v362, 2
      %v753 = vsel %vm548, %v751, %v752
      %s754 = scalar_lea.vmem %s308, 40
      %v755 = vld [vmem:[%s754] sm:$0xff]
      %v756 = vsel %vm374, %v753, 0
      %758 = vmatpush.msra.mxu0 0.0
      %759 = vmatpush.msra.mxu0 0.0
      %760 = vmatpush.msra.mxu0 0.0
      %761 = vmatpush.msra.mxu0 0.0
      %762 = vmatpush.msra.mxu0 0.0
      %763 = vmatpush.msra.mxu0 0.0
      %764 = vmatpush.msra.mxu0 0.0
      %765 = vmatpush.msra.mxu0 0.0
      %766 = vmatpush.msra.mxu0 0.0
      %767 = vmatpush.msra.mxu0 0.0
      %768 = vmatpush.msra.mxu0 0.0
      %769 = vmatpush.msra.mxu0 0.0
      %770 = vmatpush.msra.mxu0 0.0
      %771 = vmatpush.msra.mxu0 0.0
      %772 = vmatpush.msra.mxu0 0.0
      %773 = vmatpush.msra.mxu0 %v755
      %774 = vmatmul.f32.gmra.mxu0 %v577
      %v775 = vpop.f32.mrf.mxu0
      %v776 = vadd.f32 0.0, %v775
      %777 = vmatmul.f32.gmra.mxu0 %v579
      %v778 = vpop.f32.mrf.mxu0
      %v779 = vadd.f32 0.0, %v778
      %780 = vmatmul.f32.gmra.mxu0 %v581
      %v781 = vpop.f32.mrf.mxu0
      %v782 = vadd.f32 0.0, %v781
      %783 = vmatmul.f32.gmra.mxu0 %v583
      %v784 = vpop.f32.mrf.mxu0
      %v785 = vadd.f32 0.0, %v784
      %786 = vmatmul.f32.gmra.mxu0 %v585
      %v787 = vpop.f32.mrf.mxu0
      %v788 = vadd.f32 0.0, %v787
      %789 = vmatmul.f32.gmra.mxu0 %v587
      %v790 = vpop.f32.mrf.mxu0
      %v791 = vadd.f32 0.0, %v790
      %792 = vmatmul.f32.gmra.mxu0 %v589
      %v793 = vpop.f32.mrf.mxu0
      %v794 = vadd.f32 0.0, %v793
      %795 = vmatmul.f32.gmra.mxu0 %v756
      %v796 = vpop.f32.mrf.mxu0
      %v797 = vadd.f32 0.0, %v796
      %798 = vdwg.mxu0
      %v799 = vadd.f32 %v743, %v776
      %v800 = vadd.f32 %v744, %v779
      %v801 = vadd.f32 %v745, %v782
      %v802 = vadd.f32 %v746, %v785
      %v803 = vadd.f32 %v747, %v788
      %v804 = vadd.f32 %v748, %v791
      %v805 = vadd.f32 %v749, %v794
      %v806 = vadd.f32 %v750, %v797
      %s807 = scalar_lea.vmem %s308, 48
      %v808 = vld [vmem:[%s807] sm:$0xff]
      %v810 = vsel %vm374, %v363, 0
      %812 = vmatpush.msra.mxu0 0.0
      %813 = vmatpush.msra.mxu0 0.0
      %814 = vmatpush.msra.mxu0 0.0
      %815 = vmatpush.msra.mxu0 0.0
      %816 = vmatpush.msra.mxu0 0.0
      %817 = vmatpush.msra.mxu0 0.0
      %818 = vmatpush.msra.mxu0 0.0
      %819 = vmatpush.msra.mxu0 0.0
      %820 = vmatpush.msra.mxu0 0.0
      %821 = vmatpush.msra.mxu0 0.0
      %822 = vmatpush.msra.mxu0 0.0
      %823 = vmatpush.msra.mxu0 0.0
      %824 = vmatpush.msra.mxu0 0.0
      %825 = vmatpush.msra.mxu0 0.0
      %826 = vmatpush.msra.mxu0 0.0
      %827 = vmatpush.msra.mxu0 %v808
      %828 = vmatmul.f32.gmra.mxu0 %v382
      %v829 = vpop.f32.mrf.mxu0
      %v830 = vadd.f32 0.0, %v829
      %831 = vmatmul.f32.gmra.mxu0 %v385
      %v832 = vpop.f32.mrf.mxu0
      %v833 = vadd.f32 0.0, %v832
      %834 = vmatmul.f32.gmra.mxu0 %v388
      %v835 = vpop.f32.mrf.mxu0
      %v836 = vadd.f32 0.0, %v835
      %837 = vmatmul.f32.gmra.mxu0 %v391
      %v838 = vpop.f32.mrf.mxu0
      %v839 = vadd.f32 0.0, %v838
      %840 = vmatmul.f32.gmra.mxu0 %v394
      %v841 = vpop.f32.mrf.mxu0
      %v842 = vadd.f32 0.0, %v841
      %843 = vmatmul.f32.gmra.mxu0 %v397
      %v844 = vpop.f32.mrf.mxu0
      %v845 = vadd.f32 0.0, %v844
      %846 = vmatmul.f32.gmra.mxu0 %v643
      %v847 = vpop.f32.mrf.mxu0
      %v848 = vadd.f32 0.0, %v847
      %849 = vmatmul.f32.gmra.mxu0 %v810
      %v850 = vpop.f32.mrf.mxu0
      %v851 = vadd.f32 0.0, %v850
      %852 = vdwg.mxu0
      %v853 = vadd.f32 %v799, %v830
      %v854 = vadd.f32 %v800, %v833
      %v855 = vadd.f32 %v801, %v836
      %v856 = vadd.f32 %v802, %v839
      %v857 = vadd.f32 %v803, %v842
      %v858 = vadd.f32 %v804, %v845
      %v859 = vadd.f32 %v805, %v848
      %v860 = vadd.f32 %v806, %v851
      %v862 = vrot.slane %v363, 1
      %v863 = vrot.slane %v364, 1
      %v864 = vsel %vm456, %v862, %v863
      %s865 = scalar_lea.vmem %s308, 56
      %v866 = vld [vmem:[%s865] sm:$0xff]
      %v867 = vsel %vm374, %v864, 0
      %869 = vmatpush.msra.mxu0 0.0
      %870 = vmatpush.msra.mxu0 0.0
      %871 = vmatpush.msra.mxu0 0.0
      %872 = vmatpush.msra.mxu0 0.0
      %873 = vmatpush.msra.mxu0 0.0
      %874 = vmatpush.msra.mxu0 0.0
      %875 = vmatpush.msra.mxu0 0.0
      %876 = vmatpush.msra.mxu0 0.0
      %877 = vmatpush.msra.mxu0 0.0
      %878 = vmatpush.msra.mxu0 0.0
      %879 = vmatpush.msra.mxu0 0.0
      %880 = vmatpush.msra.mxu0 0.0
      %881 = vmatpush.msra.mxu0 0.0
      %882 = vmatpush.msra.mxu0 0.0
      %883 = vmatpush.msra.mxu0 0.0
      %884 = vmatpush.msra.mxu0 %v866
      %885 = vmatmul.f32.gmra.mxu0 %v487
      %v886 = vpop.f32.mrf.mxu0
      %v887 = vadd.f32 0.0, %v886
      %888 = vmatmul.f32.gmra.mxu0 %v489
      %v889 = vpop.f32.mrf.mxu0
      %v890 = vadd.f32 0.0, %v889
      %891 = vmatmul.f32.gmra.mxu0 %v491
      %v892 = vpop.f32.mrf.mxu0
      %v893 = vadd.f32 0.0, %v892
      %894 = vmatmul.f32.gmra.mxu0 %v493
      %v895 = vpop.f32.mrf.mxu0
      %v896 = vadd.f32 0.0, %v895
      %897 = vmatmul.f32.gmra.mxu0 %v495
      %v898 = vpop.f32.mrf.mxu0
      %v899 = vadd.f32 0.0, %v898
      %900 = vmatmul.f32.gmra.mxu0 %v497
      %v901 = vpop.f32.mrf.mxu0
      %v902 = vadd.f32 0.0, %v901
      %903 = vmatmul.f32.gmra.mxu0 %v700
      %v904 = vpop.f32.mrf.mxu0
      %v905 = vadd.f32 0.0, %v904
      %906 = vmatmul.f32.gmra.mxu0 %v867
      %v907 = vpop.f32.mrf.mxu0
      %v908 = vadd.f32 0.0, %v907
      %909 = vdwg.mxu0
      %v910 = vadd.f32 %v853, %v887
      %v911 = vadd.f32 %v854, %v890
      %v912 = vadd.f32 %v855, %v893
      %v913 = vadd.f32 %v856, %v896
      %v914 = vadd.f32 %v857, %v899
      %v915 = vadd.f32 %v858, %v902
      %v916 = vadd.f32 %v859, %v905
      %v917 = vadd.f32 %v860, %v908
      %v918 = vrot.slane %v363, 2
      %v919 = vrot.slane %v364, 2
      %v920 = vsel %vm548, %v918, %v919
      %s921 = scalar_lea.vmem %s308, 64
      %v922 = vld [vmem:[%s921] sm:$0xff]
      %v923 = vsel %vm374, %v920, 0
      %925 = vmatpush.msra.mxu0 0.0
      %926 = vmatpush.msra.mxu0 0.0
      %927 = vmatpush.msra.mxu0 0.0
      %928 = vmatpush.msra.mxu0 0.0
      %929 = vmatpush.msra.mxu0 0.0
      %930 = vmatpush.msra.mxu0 0.0
      %931 = vmatpush.msra.mxu0 0.0
      %932 = vmatpush.msra.mxu0 0.0
      %933 = vmatpush.msra.mxu0 0.0
      %934 = vmatpush.msra.mxu0 0.0
      %935 = vmatpush.msra.mxu0 0.0
      %936 = vmatpush.msra.mxu0 0.0
      %937 = vmatpush.msra.mxu0 0.0
      %938 = vmatpush.msra.mxu0 0.0
      %939 = vmatpush.msra.mxu0 0.0
      %940 = vmatpush.msra.mxu0 %v922
      %941 = vmatmul.f32.gmra.mxu0 %v579
      %v942 = vpop.f32.mrf.mxu0
      %v943 = vadd.f32 0.0, %v942
      %944 = vmatmul.f32.gmra.mxu0 %v581
      %v945 = vpop.f32.mrf.mxu0
      %v946 = vadd.f32 0.0, %v945
      %947 = vmatmul.f32.gmra.mxu0 %v583
      %v948 = vpop.f32.mrf.mxu0
      %v949 = vadd.f32 0.0, %v948
      %950 = vmatmul.f32.gmra.mxu0 %v585
      %v951 = vpop.f32.mrf.mxu0
      %v952 = vadd.f32 0.0, %v951
      %953 = vmatmul.f32.gmra.mxu0 %v587
      %v954 = vpop.f32.mrf.mxu0
      %v955 = vadd.f32 0.0, %v954
      %956 = vmatmul.f32.gmra.mxu0 %v589
      %v957 = vpop.f32.mrf.mxu0
      %v958 = vadd.f32 0.0, %v957
      %959 = vmatmul.f32.gmra.mxu0 %v756
      %v960 = vpop.f32.mrf.mxu0
      %v961 = vadd.f32 0.0, %v960
      %962 = vmatmul.f32.gmra.mxu0 %v923
      %v963 = vpop.f32.mrf.mxu0
      %v964 = vadd.f32 0.0, %v963
      %965 = vdwg.mxu0
      %v966 = vadd.f32 %v910, %v943
      %v967 = vadd.f32 %v911, %v946
      %v968 = vadd.f32 %v912, %v949
      %v969 = vadd.f32 %v913, %v952
      %v970 = vadd.f32 %v914, %v955
      %v971 = vadd.f32 %v915, %v958
      %v972 = vadd.f32 %v916, %v961
      %v973 = vadd.f32 %v917, %v964
      %974 = vst.msk [vmem:[#allocation2] sm:$0xff] %vm374, %v966
      %975 = vst.msk [vmem:[#allocation2 + $0x8] sm:$0xff] %vm374, %v967
      %976 = vst.msk [vmem:[#allocation2 + $0x10] sm:$0xff] %vm374, %v968
      %977 = vst.msk [vmem:[#allocation2 + $0x18] sm:$0xff] %vm374, %v969
      %978 = vst.msk [vmem:[#allocation2 + $0x20] sm:$0xff] %vm374, %v970
      %979 = vst.msk [vmem:[#allocation2 + $0x28] sm:$0xff] %vm374, %v971
      %980 = vst.msk [vmem:[#allocation2 + $0x30] sm:$0xff] %vm374, %v972
      %981 = vst.msk [vmem:[#allocation2 + $0x38] sm:$0xff] %vm374, %v973
      %p982 = scmp.eq.s32.totalorder %s24, 2
      // Predicated region
      $region37: #{rrconv_block_forward.23} parent=31 // pred_check
        %p983 = pneg %p982
      $region38: #{rrconv_block_forward.23} parent=31 // pred_check_branch
        %985 = sbr.rel (%p983) target = $region40
      $region39: #{rrconv_block_forward.23} parent=31 // pred_region
        %v986 = vld [vmem:[#allocation2] sm:$0xff]
        %v987 = vld [vmem:[#allocation2 + $0x8] sm:$0xff]
        %v988 = vld [vmem:[#allocation2 + $0x10] sm:$0xff]
        %v989 = vld [vmem:[#allocation2 + $0x18] sm:$0xff]
        %v990 = vld [vmem:[#allocation2 + $0x20] sm:$0xff]
        %v991 = vld [vmem:[#allocation2 + $0x28] sm:$0xff]
        %v992 = vld [vmem:[#allocation2 + $0x30] sm:$0xff]
        %v993 = vld [vmem:[#allocation2 + $0x38] sm:$0xff]
        %v994 = vld [vmem:[%s2] sm:$0x1]
        %v996 = vperm.slane %v994, 0
        %v998 = vadd.f32 %v986, %v996
        %v999 = vadd.f32 %v987, %v996
        %v1000 = vadd.f32 %v988, %v996
        %v1001 = vadd.f32 %v989, %v996
        %v1002 = vadd.f32 %v990, %v996
        %v1003 = vadd.f32 %v991, %v996
        %v1004 = vadd.f32 %v992, %v996
        %v1005 = vadd.f32 %v993, %v996
        %1006 = vst.msk [vmem:[%s317] sm:$0xff] %vm374, %v998
        %1007 = vst.msk [vmem:[%s317 + $0x8] sm:$0xff] %vm374, %v999
        %1008 = vst.msk [vmem:[%s317 + $0x10] sm:$0xff] %vm374, %v1000
        %1009 = vst.msk [vmem:[%s317 + $0x18] sm:$0xff] %vm374, %v1001
        %1010 = vst.msk [vmem:[%s317 + $0x20] sm:$0xff] %vm374, %v1002
        %1011 = vst.msk [vmem:[%s317 + $0x28] sm:$0xff] %vm374, %v1003
        %1012 = vst.msk [vmem:[%s317 + $0x30] sm:$0xff] %vm374, %v1004
        %1013 = vst.msk [vmem:[%s317 + $0x38] sm:$0xff] %vm374, %v1005
        %v1014 = vsel %vm374, %v998, 0.0
        %v1015 = vsel %vm374, %v999, 0.0
        %v1016 = vadd.f32 %v1014, %v1015
        %v1017 = vsel %vm374, %v1000, 0.0
        %v1018 = vadd.f32 %v1016, %v1017
        %v1019 = vsel %vm374, %v1001, 0.0
        %v1020 = vadd.f32 %v1018, %v1019
        %v1021 = vsel %vm374, %v1002, 0.0
        %v1022 = vadd.f32 %v1020, %v1021
        %v1023 = vsel %vm374, %v1003, 0.0
        %v1024 = vadd.f32 %v1022, %v1023
        %v1025 = vsel %vm374, %v1004, 0.0
        %v1026 = vadd.f32 %v1024, %v1025
        %v1027 = vsel %vm374, %v1005, 0.0
        %v1028 = vadd.f32 %v1026, %v1027
        %v1029 = vrot.slane %v1028, 4
        %v1030 = vadd.f32 %v1028, %v1029
        %v1031 = vrot.slane %v1030, 2
        %v1032 = vadd.f32 %v1030, %v1031
        %v1033 = vrot.slane %v1032, 1
        %v1034 = vadd.f32 %v1032, %v1033
        %vm1035 = vcmask 57344
        %1036 = vst.msk [vmem:[%s324] sm:$0x1] %vm1035, %v1034
        %v1037 = vmul.f32 %v998, %v998
        %v1038 = vmul.f32 %v999, %v999
        %v1039 = vmul.f32 %v1000, %v1000
        %v1040 = vmul.f32 %v1001, %v1001
        %v1041 = vmul.f32 %v1002, %v1002
        %v1042 = vmul.f32 %v1003, %v1003
        %v1043 = vmul.f32 %v1004, %v1004
        %v1044 = vmul.f32 %v1005, %v1005
        %v1045 = vsel %vm374, %v1037, 0.0
        %v1046 = vsel %vm374, %v1038, 0.0
        %v1047 = vadd.f32 %v1045, %v1046
        %v1048 = vsel %vm374, %v1039, 0.0
        %v1049 = vadd.f32 %v1047, %v1048
        %v1050 = vsel %vm374, %v1040, 0.0
        %v1051 = vadd.f32 %v1049, %v1050
        %v1052 = vsel %vm374, %v1041, 0.0
        %v1053 = vadd.f32 %v1051, %v1052
        %v1054 = vsel %vm374, %v1042, 0.0
        %v1055 = vadd.f32 %v1053, %v1054
        %v1056 = vsel %vm374, %v1043, 0.0
        %v1057 = vadd.f32 %v1055, %v1056
        %v1058 = vsel %vm374, %v1044, 0.0
        %v1059 = vadd.f32 %v1057, %v1058
        %v1060 = vrot.slane %v1059, 4
        %v1061 = vadd.f32 %v1059, %v1060
        %v1062 = vrot.slane %v1061, 2
        %v1063 = vadd.f32 %v1061, %v1062
        %v1064 = vrot.slane %v1063, 1
        %v1065 = vadd.f32 %v1063, %v1064
        %1066 = vst.msk [vmem:[%s331] sm:$0x1] %vm1035, %v1065
      $region40: #{rrconv_block_forward.23} parent=31 // pred_fallthru
        _
      %p1067 = scmp.lt.s32.totalorder %s22, 1
      %s1068 = scalar_select %p1067, %s22, 1
      %p1069 = scmp.lt.s32.totalorder %s23, 7
      %s1070 = scalar_select %p1069, %s23, 7
      %s1071 = smul.addr %s1070, 8
      %s1072 = smul.addr %s1068, 64
      %s1073 = sadd.s32 %s1071, %s1072
      %s1074 = smul.addr %s1073, 8
      %s1075 = scalar_lea.vmem %s3, %s1074
      %p1076 = scmp.lt.s32.totalorder %s22, 1
      %s1077 = scalar_select %p1076, %s22, 1
      %p1078 = scmp.lt.s32.totalorder %s23, 7
      %s1079 = scalar_select %p1078, %s23, 7
      %s1080 = smul.addr %s1077, 8
      %s1081 = sadd.s32 %s1079, %s1080
      %s1082 = scalar_lea.vmem %s4, %s1081
      %p1083 = scmp.lt.s32.totalorder %s22, 1
      %s1084 = scalar_select %p1083, %s22, 1
      %p1085 = scmp.lt.s32.totalorder %s23, 7
      %s1086 = scalar_select %p1085, %s23, 7
      %s1087 = smul.addr %s1084, 8
      %s1088 = sadd.s32 %s1086, %s1087
      %s1089 = scalar_lea.vmem %s5, %s1088
      // Predicated region
      $region41: #{rrconv_block_forward.23} parent=31 // pred_check
        %p1090 = pneg %p133
      $region42: #{rrconv_block_forward.23} parent=31 // pred_check_branch
        %1092 = sbr.rel (%p1090) target = $region44
      $region43: #{rrconv_block_forward.23} parent=31 // pred_region
        _
      $region44: #{rrconv_block_forward.23} parent=31 // pred_fallthru
        _
      // Predicated region
      $region45: #{rrconv_block_forward.23} parent=31 // pred_check
        %p1093 = pneg %p161
      $region46: #{rrconv_block_forward.23} parent=31 // pred_check_branch
        %1095 = sbr.rel (%p1093) target = $region48
      $region47: #{rrconv_block_forward.23} parent=31 // pred_region
        _
      $region48: #{rrconv_block_forward.23} parent=31 // pred_fallthru
        _
      // Predicated region
      $region49: #{rrconv_block_forward.23} parent=31 // pred_check
        %p1096 = pneg %p189
      $region50: #{rrconv_block_forward.23} parent=31 // pred_check_branch
        %1098 = sbr.rel (%p1096) target = $region52
      $region51: #{rrconv_block_forward.23} parent=31 // pred_region
        _
      $region52: #{rrconv_block_forward.23} parent=31 // pred_fallthru
        _
    $region32: #{rrconv_block_forward.23} parent=5 // pred_fallthru
      _
    %p1099 = scmp.le.s32.totalorder 2, %s12
    // Predicated region
    $region53: #{rrconv_block_forward.23} parent=5 // pred_check
      %p1100 = pneg %p1099
    $region54: #{rrconv_block_forward.23} parent=5 // pred_check_branch
      %1102 = sbr.rel (%p1100) target = $region56
    $region55: #{rrconv_block_forward.23} parent=5 // pred_region
      %s1103 = ssub.s32 %s12, 2
      // Predicated region
      $region57: #{rrconv_block_forward.23} parent=55 // pred_check
        %p1104 = pneg %p139
      $region58: #{rrconv_block_forward.23} parent=55 // pred_check_branch
        %1106 = sbr.rel (%p1104) target = $region60
      $region59: #{rrconv_block_forward.23} parent=55 // pred_region
        %p1107 = scmp.lt.s32.totalorder %s25, 1
        %s1108 = scalar_select %p1107, %s25, 1
        %p1109 = scmp.lt.s32.totalorder %s26, 7
        %s1110 = scalar_select %p1109, %s26, 7
        %s1111 = smul.addr %s1110, 8
        %s1112 = smul.addr %s1108, 64
        %s1113 = sadd.s32 %s1111, %s1112
        %s1114 = smul.addr %s1113, 8
        %s1115 = scalar_lea.vmem %s3, %s1114
      $region60: #{rrconv_block_forward.23} parent=55 // pred_fallthru
        _
      // Predicated region
      $region61: #{rrconv_block_forward.23} parent=55 // pred_check
        %p1116 = pneg %p167
      $region62: #{rrconv_block_forward.23} parent=55 // pred_check_branch
        %1118 = sbr.rel (%p1116) target = $region64
      $region63: #{rrconv_block_forward.23} parent=55 // pred_region
        %p1119 = scmp.lt.s32.totalorder %s25, 1
        %s1120 = scalar_select %p1119, %s25, 1
        %p1121 = scmp.lt.s32.totalorder %s26, 7
        %s1122 = scalar_select %p1121, %s26, 7
        %s1123 = smul.addr %s1120, 8
        %s1124 = sadd.s32 %s1122, %s1123
        %s1125 = scalar_lea.vmem %s4, %s1124
      $region64: #{rrconv_block_forward.23} parent=55 // pred_fallthru
        _
      // Predicated region
      $region65: #{rrconv_block_forward.23} parent=55 // pred_check
        %p1126 = pneg %p195
      $region66: #{rrconv_block_forward.23} parent=55 // pred_check_branch
        %1128 = sbr.rel (%p1126) target = $region68
      $region67: #{rrconv_block_forward.23} parent=55 // pred_region
        %p1129 = scmp.lt.s32.totalorder %s25, 1
        %s1130 = scalar_select %p1129, %s25, 1
        %p1131 = scmp.lt.s32.totalorder %s26, 7
        %s1132 = scalar_select %p1131, %s26, 7
        %s1133 = smul.addr %s1130, 8
        %s1134 = sadd.s32 %s1132, %s1133
        %s1135 = scalar_lea.vmem %s5, %s1134
      $region68: #{rrconv_block_forward.23} parent=55 // pred_fallthru
        _
    $region56: #{rrconv_block_forward.23} parent=5 // pred_fallthru
      _
  $region6: #{rrconv_block_forward.23} parent=0 // loop_footer
    %s16 = sadd.s32 1, %s12
  $region7: #{rrconv_block_forward.23} parent=0 // loop_footer_branch
    %11 = sbr.rel target = $region3
  $region8: #{rrconv_block_forward.23} parent=0 // loop_exit
    _

// kernel: rrconv_block_forward.28
$region0: #{rrconv_block_forward.28}
  #allocation0 [shape = 'u32[]', space=smem, size = 0x4, offset = 0x4, fixed_abs, tag = 'smem constant byte address 0x4 - core index']
  #allocation1 [shape = 'u32[72,128]{1,0:T(1,128)}', space=vmem, size = 0x9000, scoped, tag = 'internal scratch']
  %s0 = inlined_call_operand.vmem [shape: f32[2,32,128], index: 0, kind: input, shape index: {}]
  %s1 = inlined_call_operand.vmem [shape: f32[1,128], index: 1, kind: input, shape index: {}]
  %s2 = inlined_call_operand.vmem [shape: f32[1,128], index: 2, kind: input, shape index: {}]
  %s3 = inlined_call_operand.vmem [shape: f32[2,32,128], index: 3, kind: output, shape index: {}]
  %s4 = sld [smem:[#allocation0]]
  $region45: #{rrconv_block_forward.28} parent=0
    _
  %s6 = ssub.s32 1, %s4
  %s7 = scalar_select 0, %s6, %s4
  loop: start=0, step=1, limit=4
  $region2: #{rrconv_block_forward.28} parent=0 // loop_pre_header
    _
  $region3: #{rrconv_block_forward.28} parent=0 // loop_header
    %s9 = sphi 0, %s13
    %p10 = scmp.ge.s32.totalorder %s9, 4
    %s16 = sphi 0, %s28
    %s17 = sphi 0, %s24
    %s18 = sphi 0, %s16
    %s19 = sphi 0, %s17
    %s20 = sphi 0, %s18
    %s21 = sphi 0, %s19
    %s33 = sphi 0, %s35
    %s36 = sphi 0, %s33
    %s37 = sphi 0, %s36
    %s53 = sphi 0, %s37
    %s57 = sphi 0, %s57
    %s59 = sphi 0, %s57
    %s60 = sphi 0, %s59
    %s74 = sphi 0, %s60
    %s78 = sphi 0, %s78
    %s80 = sphi 0, %s78
    %s81 = sphi 0, %s80
    %s95 = sphi 0, %s81
    %s103 = sphi 0, %s105
    %s106 = sphi 0, %s103
    %s107 = sphi 0, %s106
    %s123 = sphi 0, %s107
  $region4: #{rrconv_block_forward.28} parent=0 // loop_header_branch
    %12 = sbr.rel (%p10) target = $region8
  $region5: #{rrconv_block_forward.28} parent=0 // loop_body
    %s14 = ssub.s32 %s9, 1
    %s15 = ssub.s32 %s9, 2
    %s22 = sadd.s32 1, %s17
    %p23 = scmp.ge.s32.totalorder %s22, 1
    %s24 = scalar_select %p23, 0, %s22
    %s25 = sadd.s32 1, %s16
    %s26 = scalar_select %p23, %s25, %s16
    %p27 = scmp.ge.s32.totalorder %s26, 2
    %s28 = scalar_select %p27, 0, %s26
    %s29 = ssub.s32 %s16, %s28
    %s30 = ssub.s32 %s17, %s24
    %s31 = sor.u32 %s29, %s30
    %p32 = scmp.eq.s32.totalorder %s31, 0
    %s34 = sadd.s32 %s33, 1
    %s35 = scalar_select %p32, %s33, %s34
    %p38 = pneg %p32
    %p39 = scmp.eq.s32.totalorder %s9, 1
    %p40 = por %p38, %p39
    %p41 = scmp.ne.s32.totalorder %s33, %s36
    %p42 = scmp.eq.s32.totalorder %s9, 0
    %p43 = por %p41, %p42
    %p44 = scmp.ne.s32.totalorder %s33, %s36
    %p45 = scmp.eq.s32.totalorder %s14, 1
    %p46 = por %p44, %p45
    %p47 = scmp.ne.s32.totalorder %s36, %s37
    %p48 = scmp.eq.s32.totalorder %s14, 0
    %p49 = por %p47, %p48
    %p50 = scmp.ne.s32.totalorder %s36, %s37
    %p51 = scmp.eq.s32.totalorder %s15, 1
    %p52 = por %p50, %p51
    %p54 = scmp.ne.s32.totalorder %s37, %s53
    %p55 = scmp.eq.s32.totalorder %s15, 0
    %p56 = por %p54, %p55
    %s58 = sadd.s32 %s57, 1
    %p61 = scmp.eq.s32.totalorder %s9, 1
    %p62 = scmp.ne.s32.totalorder %s57, %s59
    %p63 = scmp.eq.s32.totalorder %s9, 0
    %p64 = por %p62, %p63
    %p65 = scmp.ne.s32.totalorder %s57, %s59
    %p66 = scmp.eq.s32.totalorder %s14, 1
    %p67 = por %p65, %p66
    %p68 = scmp.ne.s32.totalorder %s59, %s60
    %p69 = scmp.eq.s32.totalorder %s14, 0
    %p70 = por %p68, %p69
    %p71 = scmp.ne.s32.totalorder %s59, %s60
    %p72 = scmp.eq.s32.totalorder %s15, 1
    %p73 = por %p71, %p72
    %p75 = scmp.ne.s32.totalorder %s60, %s74
    %p76 = scmp.eq.s32.totalorder %s15, 0
    %p77 = por %p75, %p76
    %s79 = sadd.s32 %s78, 1
    %p82 = scmp.eq.s32.totalorder %s9, 1
    %p83 = scmp.ne.s32.totalorder %s78, %s80
    %p84 = scmp.eq.s32.totalorder %s9, 0
    %p85 = por %p83, %p84
    %p86 = scmp.ne.s32.totalorder %s78, %s80
    %p87 = scmp.eq.s32.totalorder %s14, 1
    %p88 = por %p86, %p87
    %p89 = scmp.ne.s32.totalorder %s80, %s81
    %p90 = scmp.eq.s32.totalorder %s14, 0
    %p91 = por %p89, %p90
    %p92 = scmp.ne.s32.totalorder %s80, %s81
    %p93 = scmp.eq.s32.totalorder %s15, 1
    %p94 = por %p92, %p93
    %p96 = scmp.ne.s32.totalorder %s81, %s95
    %p97 = scmp.eq.s32.totalorder %s15, 0
    %p98 = por %p96, %p97
    %s99 = ssub.s32 %s16, %s28
    %s100 = ssub.s32 %s17, %s24
    %s101 = sor.u32 %s99, %s100
    %p102 = scmp.eq.s32.totalorder %s101, 0
    %s104 = sadd.s32 %s103, 1
    %s105 = scalar_select %p102, %s103, %s104
    %p108 = pneg %p102
    %p109 = scmp.eq.s32.totalorder %s9, 1
    %p110 = por %p108, %p109
    %p111 = scmp.ne.s32.totalorder %s103, %s106
    %p112 = scmp.eq.s32.totalorder %s9, 0
    %p113 = por %p111, %p112
    %p114 = scmp.ne.s32.totalorder %s103, %s106
    %p115 = scmp.eq.s32.totalorder %s14, 1
    %p116 = por %p114, %p115
    %p117 = scmp.ne.s32.totalorder %s106, %s107
    %p118 = scmp.eq.s32.totalorder %s14, 0
    %p119 = por %p117, %p118
    %p120 = scmp.ne.s32.totalorder %s106, %s107
    %p121 = scmp.eq.s32.totalorder %s15, 1
    %p122 = por %p120, %p121
    %p124 = scmp.ne.s32.totalorder %s107, %s123
    %p125 = scmp.eq.s32.totalorder %s15, 0
    %p126 = por %p124, %p125
    %p127 = scmp.le.s32.totalorder 1, %s9
    %p128 = scmp.lt.s32.totalorder %s9, 3
    %p129 = pnand %p127, %p128
    %p130 = pneg %p129
    // Predicated region
    $region9: #{rrconv_block_forward.28} parent=5 // pred_check
      _
    $region10: #{rrconv_block_forward.28} parent=5 // pred_check_branch
      %132 = sbr.rel (%p129) target = $region12
    $region11: #{rrconv_block_forward.28} parent=5 // pred_region
      %s133 = ssub.s32 %s9, 1
      // Predicated region
      $region13: #{rrconv_block_forward.28} parent=11 // pred_check
        %p134 = pneg %p70
      $region14: #{rrconv_block_forward.28} parent=11 // pred_check_branch
        %136 = sbr.rel (%p134) target = $region16
      $region15: #{rrconv_block_forward.28} parent=11 // pred_region
        _
      $region16: #{rrconv_block_forward.28} parent=11 // pred_fallthru
        _
      // Predicated region
      $region17: #{rrconv_block_forward.28} parent=11 // pred_check
        %p137 = pneg %p91
      $region18: #{rrconv_block_forward.28} parent=11 // pred_check_branch
        %139 = sbr.rel (%p137) target = $region20
      $region19: #{rrconv_block_forward.28} parent=11 // pred_region
        _
      $region20: #{rrconv_block_forward.28} parent=11 // pred_fallthru
        _
    $region12: #{rrconv_block_forward.28} parent=5 // pred_fallthru
      _
    %p140 = scmp.lt.s32.totalorder %s9, 2
    // Predicated region
    $region21: #{rrconv_block_forward.28} parent=5 // pred_check
      %p141 = pneg %p140
    $region22: #{rrconv_block_forward.28} parent=5 // pred_check_branch
      %143 = sbr.rel (%p141) target = $region24
    $region23: #{rrconv_block_forward.28} parent=5 // pred_region
      // Predicated region
      $region25: #{rrconv_block_forward.28} parent=23 // pred_check
        %p144 = pneg %p43
      $region26: #{rrconv_block_forward.28} parent=23 // pred_check_branch
        %146 = sbr.rel (%p144) target = $region28
      $region27: #{rrconv_block_forward.28} parent=23 // pred_region
        %s147 = smul.u32 4, %s17
        %p148 = scmp.lt.s32.totalorder %s16, 1
        %s149 = scalar_select %p148, %s16, 1
        %p150 = scmp.lt.s32.totalorder %s147, 3
        %s151 = scalar_select %p150, %s147, 3
        %s152 = smul.addr %s149, 4
        %s153 = sadd.s32 %s151, %s152
        %s154 = smul.addr %s153, 8
        %s155 = scalar_lea.vmem %s0, %s154
        %s156 = smul.u32 4, %s17
      $region28: #{rrconv_block_forward.28} parent=23 // pred_fallthru
        _
    $region24: #{rrconv_block_forward.28} parent=5 // pred_fallthru
      _
    %p157 = scmp.le.s32.totalorder 1, %s9
    %p158 = scmp.lt.s32.totalorder %s9, 3
    %p159 = pnand %p157, %p158
    %p160 = pneg %p159
    // Predicated region
    $region29: #{rrconv_block_forward.28} parent=5 // pred_check
      _
    $region30: #{rrconv_block_forward.28} parent=5 // pred_check_branch
      %162 = sbr.rel (%p159) target = $region32
    $region31: #{rrconv_block_forward.28} parent=5 // pred_region
      %s163 = ssub.s32 %s9, 1
      %s164 = smul.u32 4, %s19
      %p165 = scmp.lt.s32.totalorder %s18, 1
      %s166 = scalar_select %p165, %s18, 1
      %p167 = scmp.lt.s32.totalorder %s164, 3
      %s168 = scalar_select %p167, %s164, 3
      %s169 = smul.addr %s166, 4
      %s170 = sadd.s32 %s168, %s169
      %s171 = smul.addr %s170, 8
      %s172 = scalar_lea.vmem %s0, %s171
      %p173 = pneg %p49
      %p174 = pneg %p46
      %p175 = pneg %p70
      %p176 = pneg %p67
      %p177 = pneg %p91
      %p178 = pneg %p88
      %p179 = pneg %p119
      %p180 = pneg %p116
      %s181 = smul.u32 4, %s19
      %p182 = scmp.lt.s32.totalorder %s18, 1
      %s183 = scalar_select %p182, %s18, 1
      %p184 = scmp.lt.s32.totalorder %s181, 3
      %s185 = scalar_select %p184, %s181, 3
      %s186 = smul.addr %s183, 4
      %s187 = sadd.s32 %s185, %s186
      %s188 = smul.addr %s187, 8
      %s189 = scalar_lea.vmem %s3, %s188
      %s190 = smul.u32 4, %s19
      %p191 = scmp.lt.s32.totalorder %s18, 1
      %s192 = scalar_select %p191, %s18, 1
      %p193 = scmp.lt.s32.totalorder %s190, 3
      %s194 = scalar_select %p193, %s190, 3
      %s195 = smul.addr %s192, 4
      %s196 = sadd.s32 %s194, %s195
      %s197 = smul.addr %s196, 8
      %s198 = scalar_lea.vmem %s0, %s197
      %s199 = smul.u32 4, %s19
      %s200 = smul.u32 4, %s19
      %p201 = scmp.lt.s32.totalorder %s18, 1
      %s202 = scalar_select %p201, %s18, 1
      %p203 = scmp.lt.s32.totalorder %s200, 3
      %s204 = scalar_select %p203, %s200, 3
      %s205 = smul.addr %s202, 4
      %s206 = sadd.s32 %s204, %s205
      %s207 = smul.addr %s206, 8
      %s208 = scalar_lea.vmem %s3, %s207
      %s209 = smul.u32 4, %s19
      %v210 = vld [vmem:[%s198] sm:$0xff]
      %v211 = vld [vmem:[%s198 + $0x8] sm:$0xff]
      %v212 = vld [vmem:[%s198 + $0x10] sm:$0xff]
      %v213 = vld [vmem:[%s198 + $0x18] sm:$0xff]
      %v214 = vld [vmem:[%s1] sm:$0x1]
      %v216 = vperm.slane %v214, 0
      %v218 = vmul.f32 %v210, %v216
      %v219 = vmul.f32 %v211, %v216
      %v220 = vmul.f32 %v212, %v216
      %v221 = vmul.f32 %v213, %v216
      %v222 = vld [vmem:[%s2] sm:$0x1]
      %v224 = vperm.slane %v222, 0
      %v226 = vadd.f32 %v218, %v224
      %v227 = vadd.f32 %v219, %v224
      %v228 = vadd.f32 %v220, %v224
      %v229 = vadd.f32 %v221, %v224
      %v230 = vmax.f32 %v226, 0.0
      %v231 = vmax.f32 %v227, 0.0
      %v232 = vmax.f32 %v228, 0.0
      %v233 = vmax.f32 %v229, 0.0
      %234 = vst [vmem:[%s208] sm:$0xff] %v230
      %235 = vst [vmem:[%s208 + $0x8] sm:$0xff] %v231
      %236 = vst [vmem:[%s208 + $0x10] sm:$0xff] %v232
      %237 = vst [vmem:[%s208 + $0x18] sm:$0xff] %v233
      %s238 = smul.u32 4, %s19
      %p239 = scmp.lt.s32.totalorder %s18, 1
      %s240 = scalar_select %p239, %s18, 1
      %p241 = scmp.lt.s32.totalorder %s238, 3
      %s242 = scalar_select %p241, %s238, 3
      %s243 = smul.addr %s240, 4
      %s244 = sadd.s32 %s242, %s243
      %s245 = smul.addr %s244, 8
      %s246 = scalar_lea.vmem %s3, %s245
      // Predicated region
      $region33: #{rrconv_block_forward.28} parent=31 // pred_check
        %p247 = pneg %p116
      $region34: #{rrconv_block_forward.28} parent=31 // pred_check_branch
        %249 = sbr.rel (%p247) target = $region36
      $region35: #{rrconv_block_forward.28} parent=31 // pred_region
        %s250 = smul.u32 4, %s19
      $region36: #{rrconv_block_forward.28} parent=31 // pred_fallthru
        _
    $region32: #{rrconv_block_forward.28} parent=5 // pred_fallthru
      _
    %p251 = scmp.le.s32.totalorder 2, %s9
    // Predicated region
    $region37: #{rrconv_block_forward.28} parent=5 // pred_check
      %p252 = pneg %p251
    $region38: #{rrconv_block_forward.28} parent=5 // pred_check_branch
      %254 = sbr.rel (%p252) target = $region40
    $region39: #{rrconv_block_forward.28} parent=5 // pred_region
      %s255 = ssub.s32 %s9, 2
      // Predicated region
      $region41: #{rrconv_block_forward.28} parent=39 // pred_check
        %p256 = pneg %p122
      $region42: #{rrconv_block_forward.28} parent=39 // pred_check_branch
        %258 = sbr.rel (%p256) target = $region44
      $region43: #{rrconv_block_forward.28} parent=39 // pred_region
        %s259 = smul.u32 4, %s21
        %p260 = scmp.lt.s32.totalorder %s20, 1
        %s261 = scalar_select %p260, %s20, 1
        %p262 = scmp.lt.s32.totalorder %s259, 3
        %s263 = scalar_select %p262, %s259, 3
        %s264 = smul.addr %s261, 4
        %s265 = sadd.s32 %s263, %s264
        %s266 = smul.addr %s265, 8
        %s267 = scalar_lea.vmem %s3, %s266
      $region44: #{rrconv_block_forward.28} parent=39 // pred_fallthru
        _
    $region40: #{rrconv_block_forward.28} parent=5 // pred_fallthru
      _
  $region6: #{rrconv_block_forward.28} parent=0 // loop_footer
    %s13 = sadd.s32 1, %s9
  $region7: #{rrconv_block_forward.28} parent=0 // loop_footer_branch
    %8 = sbr.rel target = $region3
  $region8: #{rrconv_block_forward.28} parent=0 // loop_exit
    _

// kernel: rrconv_block_forward.35
$region0: #{rrconv_block_forward.35}
  #allocation0 [shape = 'u32[]', space=smem, size = 0x4, offset = 0x4, fixed_abs, tag = 'smem constant byte address 0x4 - core index']
  #allocation1 [shape = 'u32[72,128]{1,0:T(1,128)}', space=vmem, size = 0x9000, scoped, tag = 'internal scratch']
  #allocation2 [shape = 'f32[64,8]{1,0:T(8,128)}', space=vmem, size = 0x8000, scoped, tag = 'scratch operand']
  %s0 = inlined_call_operand.vmem [shape: f32[2,10,10,10,8], index: 0, kind: input, shape index: {}]
  %s1 = inlined_call_operand.vmem [shape: f32[4,3,3,8,8], index: 1, kind: input, shape index: {}]
  %s2 = inlined_call_operand.vmem [shape: f32[1,8], index: 2, kind: input, shape index: {}]
  %s3 = inlined_call_operand.vmem [shape: f32[2,4,64,8], index: 3, kind: output, shape index: {}]
  %s4 = sld [smem:[#allocation0]]
  $region53: #{rrconv_block_forward.35} parent=0
    _
  %s6 = ssub.s32 1, %s4
  %s7 = scalar_select 0, %s6, %s4
  loop: start=0, step=1, limit=34
  $region2: #{rrconv_block_forward.35} parent=0 // loop_pre_header
    _
  $region3: #{rrconv_block_forward.35} parent=0 // loop_header
    %s9 = sphi 0, %s13
    %p10 = scmp.ge.s32.totalorder %s9, 34
    %s16 = sphi 0, %s35
    %s17 = sphi 0, %s31
    %s18 = sphi 0, %s27
    %s19 = sphi 0, %s16
    %s20 = sphi 0, %s17
    %s21 = sphi 0, %s18
    %s22 = sphi 0, %s19
    %s23 = sphi 0, %s20
    %s24 = sphi 0, %s21
    %s44 = sphi 0, %s46
    %s47 = sphi 0, %s44
    %s48 = sphi 0, %s47
    %s64 = sphi 0, %s48
    %s70 = sphi 0, %s72
    %s73 = sphi 0, %s70
    %s74 = sphi 0, %s73
    %s90 = sphi 0, %s74
    %s94 = sphi 0, %s94
    %s96 = sphi 0, %s94
    %s97 = sphi 0, %s96
    %s111 = sphi 0, %s97
    %s119 = sphi 0, %s121
    %s122 = sphi 0, %s119
    %s123 = sphi 0, %s122
    %s139 = sphi 0, %s123
  $region4: #{rrconv_block_forward.35} parent=0 // loop_header_branch
    %12 = sbr.rel (%p10) target = $region8
  $region5: #{rrconv_block_forward.35} parent=0 // loop_body
    %s14 = ssub.s32 %s9, 1
    %s15 = ssub.s32 %s9, 2
    %s25 = sadd.s32 1, %s18
    %p26 = scmp.ge.s32.totalorder %s25, 4
    %s27 = scalar_select %p26, 0, %s25
    %s28 = sadd.s32 1, %s17
    %s29 = scalar_select %p26, %s28, %s17
    %p30 = scmp.ge.s32.totalorder %s29, 4
    %s31 = scalar_select %p30, 0, %s29
    %s32 = sadd.s32 1, %s16
    %s33 = scalar_select %p30, %s32, %s16
    %p34 = scmp.ge.s32.totalorder %s33, 2
    %s35 = scalar_select %p34, 0, %s33
    %s36 = smul.u32 %s17, 2
    %s37 = sadd.s32 %s36, %s18
    %s38 = smul.u32 %s31, 2
    %s39 = sadd.s32 %s38, %s27
    %s40 = ssub.s32 %s16, %s35
    %s41 = ssub.s32 %s37, %s39
    %s42 = sor.u32 %s40, %s41
    %p43 = scmp.eq.s32.totalorder %s42, 0
    %s45 = sadd.s32 %s44, 1
    %s46 = scalar_select %p43, %s44, %s45
    %p49 = pneg %p43
    %p50 = scmp.eq.s32.totalorder %s9, 31
    %p51 = por %p49, %p50
    %p52 = scmp.ne.s32.totalorder %s44, %s47
    %p53 = scmp.eq.s32.totalorder %s9, 0
    %p54 = por %p52, %p53
    %p55 = scmp.ne.s32.totalorder %s44, %s47
    %p56 = scmp.eq.s32.totalorder %s14, 31
    %p57 = por %p55, %p56
    %p58 = scmp.ne.s32.totalorder %s47, %s48
    %p59 = scmp.eq.s32.totalorder %s14, 0
    %p60 = por %p58, %p59
    %p61 = scmp.ne.s32.totalorder %s47, %s48
    %p62 = scmp.eq.s32.totalorder %s15, 31
    %p63 = por %p61, %p62
    %p65 = scmp.ne.s32.totalorder %s48, %s64
    %p66 = scmp.eq.s32.totalorder %s15, 0
    %p67 = por %p65, %p66
    %s68 = ssub.s32 %s18, %s27
    %p69 = scmp.eq.s32.totalorder %s68, 0
    %s71 = sadd.s32 %s70, 1
    %s72 = scalar_select %p69, %s70, %s71
    %p75 = pneg %p69
    %p76 = scmp.eq.s32.totalorder %s9, 31
    %p77 = por %p75, %p76
    %p78 = scmp.ne.s32.totalorder %s70, %s73
    %p79 = scmp.eq.s32.totalorder %s9, 0
    %p80 = por %p78, %p79
    %p81 = scmp.ne.s32.totalorder %s70, %s73
    %p82 = scmp.eq.s32.totalorder %s14, 31
    %p83 = por %p81, %p82
    %p84 = scmp.ne.s32.totalorder %s73, %s74
    %p85 = scmp.eq.s32.totalorder %s14, 0
    %p86 = por %p84, %p85
    %p87 = scmp.ne.s32.totalorder %s73, %s74
    %p88 = scmp.eq.s32.totalorder %s15, 31
    %p89 = por %p87, %p88
    %p91 = scmp.ne.s32.totalorder %s74, %s90
    %p92 = scmp.eq.s32.totalorder %s15, 0
    %p93 = por %p91, %p92
    %s95 = sadd.s32 %s94, 1
    %p98 = scmp.eq.s32.totalorder %s9, 31
    %p99 = scmp.ne.s32.totalorder %s94, %s96
    %p100 = scmp.eq.s32.totalorder %s9, 0
    %p101 = por %p99, %p100
    %p102 = scmp.ne.s32.totalorder %s94, %s96
    %p103 = scmp.eq.s32.totalorder %s14, 31
    %p104 = por %p102, %p103
    %p105 = scmp.ne.s32.totalorder %s96, %s97
    %p106 = scmp.eq.s32.totalorder %s14, 0
    %p107 = por %p105, %p106
    %p108 = scmp.ne.s32.totalorder %s96, %s97
    %p109 = scmp.eq.s32.totalorder %s15, 31
    %p110 = por %p108, %p109
    %p112 = scmp.ne.s32.totalorder %s97, %s111
    %p113 = scmp.eq.s32.totalorder %s15, 0
    %p114 = por %p112, %p113
    %s115 = ssub.s32 %s16, %s35
    %s116 = ssub.s32 %s17, %s31
    %s117 = sor.u32 %s115, %s116
    %p118 = scmp.eq.s32.totalorder %s117, 0
    %s120 = sadd.s32 %s119, 1
    %s121 = scalar_select %p118, %s119, %s120
    %p124 = pneg %p118
    %p125 = scmp.eq.s32.totalorder %s9, 31
    %p126 = por %p124, %p125
    %p127 = scmp.ne.s32.totalorder %s119, %s122
    %p128 = scmp.eq.s32.totalorder %s9, 0
    %p129 = por %p127, %p128
    %p130 = scmp.ne.s32.totalorder %s119, %s122
    %p131 = scmp.eq.s32.totalorder %s14, 31
    %p132 = por %p130, %p131
    %p133 = scmp.ne.s32.totalorder %s122, %s123
    %p134 = scmp.eq.s32.totalorder %s14, 0
    %p135 = por %p133, %p134
    %p136 = scmp.ne.s32.totalorder %s122, %s123
    %p137 = scmp.eq.s32.totalorder %s15, 31
    %p138 = por %p136, %p137
    %p140 = scmp.ne.s32.totalorder %s123, %s139
    %p141 = scmp.eq.s32.totalorder %s15, 0
    %p142 = por %p140, %p141
    %p143 = scmp.le.s32.totalorder 1, %s9
    %p144 = scmp.lt.s32.totalorder %s9, 33
    %p145 = pnand %p143, %p144
    %p146 = pneg %p145
    // Predicated region
    $region9: #{rrconv_block_forward.35} parent=5 // pred_check
      _
    $region10: #{rrconv_block_forward.35} parent=5 // pred_check_branch
      %148 = sbr.rel (%p145) target = $region12
    $region11: #{rrconv_block_forward.35} parent=5 // pred_region
      %s149 = ssub.s32 %s9, 1
      // Predicated region
      $region13: #{rrconv_block_forward.35} parent=11 // pred_check
        %p150 = pneg %p107
      $region14: #{rrconv_block_forward.35} parent=11 // pred_check_branch
        %152 = sbr.rel (%p150) target = $region16
      $region15: #{rrconv_block_forward.35} parent=11 // pred_region
        _
      $region16: #{rrconv_block_forward.35} parent=11 // pred_fallthru
        _
    $region12: #{rrconv_block_forward.35} parent=5 // pred_fallthru
      _
    %p153 = scmp.lt.s32.totalorder %s9, 32
    // Predicated region
    $region17: #{rrconv_block_forward.35} parent=5 // pred_check
      %p154 = pneg %p153
    $region18: #{rrconv_block_forward.35} parent=5 // pred_check_branch
      %156 = sbr.rel (%p154) target = $region20
    $region19: #{rrconv_block_forward.35} parent=5 // pred_region
      // Predicated region
      $region21: #{rrconv_block_forward.35} parent=19 // pred_check
        %p157 = pneg %p54
      $region22: #{rrconv_block_forward.35} parent=19 // pred_check_branch
        %159 = sbr.rel (%p157) target = $region24
      $region23: #{rrconv_block_forward.35} parent=19 // pred_region
        %s160 = smul.u32 %s17, 2
        %s161 = sadd.s32 %s160, %s18
        %p162 = scmp.lt.s32.totalorder %s16, 1
        %s163 = scalar_select %p162, %s16, 1
        %p164 = scmp.lt.s32.totalorder %s161, 9
        %s165 = scalar_select %p164, %s161, 9
        %s166 = smul.addr %s165, 20
        %s167 = smul.addr %s163, 200
        %s168 = sadd.s32 %s166, %s167
        %s169 = smul.addr %s168, 8
        %s170 = scalar_lea.vmem %s0, %s169
        %s171 = smul.u32 %s17, 2
        %s172 = sadd.s32 %s171, %s18
      $region24: #{rrconv_block_forward.35} parent=19 // pred_fallthru
        _
      // Predicated region
      $region25: #{rrconv_block_forward.35} parent=19 // pred_check
        %p173 = pneg %p80
      $region26: #{rrconv_block_forward.35} parent=19 // pred_check_branch
        %175 = sbr.rel (%p173) target = $region28
      $region27: #{rrconv_block_forward.35} parent=19 // pred_region
        %p176 = scmp.lt.s32.totalorder %s18, 3
        %s177 = scalar_select %p176, %s18, 3
        %s178 = smul.addr %s177, 9
        %s179 = smul.addr %s178, 8
        %s180 = scalar_lea.vmem %s1, %s179
      $region28: #{rrconv_block_forward.35} parent=19 // pred_fallthru
        _
    $region20: #{rrconv_block_forward.35} parent=5 // pred_fallthru
      _
    %p181 = scmp.le.s32.totalorder 1, %s9
    %p182 = scmp.lt.s32.totalorder %s9, 33
    %p183 = pnand %p181, %p182
    %p184 = pneg %p183
    // Predicated region
    $region29: #{rrconv_block_forward.35} parent=5 // pred_check
      _
    $region30: #{rrconv_block_forward.35} parent=5 // pred_check_branch
      %186 = sbr.rel (%p183) target = $region32
    $region31: #{rrconv_block_forward.35} parent=5 // pred_region
      %s187 = ssub.s32 %s9, 1
      %s188 = smul.u32 %s20, 2
      %s189 = sadd.s32 %s188, %s21
      %p190 = scmp.lt.s32.totalorder %s19, 1
      %s191 = scalar_select %p190, %s19, 1
      %p192 = scmp.lt.s32.totalorder %s189, 9
      %s193 = scalar_select %p192, %s189, 9
      %s194 = smul.addr %s193, 20
      %s195 = smul.addr %s191, 200
      %s196 = sadd.s32 %s194, %s195
      %s197 = smul.addr %s196, 8
      %s198 = scalar_lea.vmem %s0, %s197
      %p199 = pneg %p60
      %p200 = pneg %p57
      %p201 = scmp.lt.s32.totalorder %s21, 3
      %s202 = scalar_select %p201, %s21, 3
      %s203 = smul.addr %s202, 9
      %s204 = smul.addr %s203, 8
      %s205 = scalar_lea.vmem %s1, %s204
      %p206 = pneg %p86
      %p207 = pneg %p83
      %p208 = pneg %p107
      %p209 = pneg %p104
      %p210 = pneg %p135
      %p211 = pneg %p132
      %p212 = scmp.lt.s32.totalorder %s19, 1
      %s213 = scalar_select %p212, %s19, 1
      %p214 = scmp.lt.s32.totalorder %s20, 3
      %s215 = scalar_select %p214, %s20, 3
      %s216 = smul.addr %s215, 8
      %s217 = smul.addr %s213, 32
      %s218 = sadd.s32 %s216, %s217
      %s219 = smul.addr %s218, 8
      %s220 = scalar_lea.vmem %s3, %s219
      %s221 = smul.u32 %s20, 2
      %s222 = sadd.s32 %s221, %s21
      %p223 = scmp.lt.s32.totalorder %s19, 1
      %s224 = scalar_select %p223, %s19, 1
      %p225 = scmp.lt.s32.totalorder %s222, 9
      %s226 = scalar_select %p225, %s222, 9
      %s227 = smul.addr %s226, 20
      %s228 = smul.addr %s224, 200
      %s229 = sadd.s32 %s227, %s228
      %s230 = smul.addr %s229, 8
      %s231 = scalar_lea.vmem %s0, %s230
      %s232 = smul.u32 %s20, 2
      %s233 = sadd.s32 %s232, %s21
      %p234 = scmp.lt.s32.totalorder %s21, 3
      %s235 = scalar_select %p234, %s21, 3
      %s236 = smul.addr %s235, 9
      %s237 = smul.addr %s236, 8
      %s238 = scalar_lea.vmem %s1, %s237
      %p239 = scmp.lt.s32.totalorder %s19, 1
      %s240 = scalar_select %p239, %s19, 1
      %p241 = scmp.lt.s32.totalorder %s20, 3
      %s242 = scalar_select %p241, %s20, 3
      %s243 = smul.addr %s242, 8
      %s244 = smul.addr %s240, 32
      %s245 = sadd.s32 %s243, %s244
      %s246 = smul.addr %s245, 8
      %s247 = scalar_lea.vmem %s3, %s246
      %p248 = scmp.eq.s32.totalorder %s21, 0
      // Predicated region
      $region33: #{rrconv_block_forward.35} parent=31 // pred_check
        %p249 = pneg %p248
      $region34: #{rrconv_block_forward.35} parent=31 // pred_check_branch
        %251 = sbr.rel (%p249) target = $region36
      $region35: #{rrconv_block_forward.35} parent=31 // pred_region
        %vm252 = vcmask 64512
        %253 = vst.msk [vmem:[#allocation2] sm:$0xff] %vm252, 0.0
        %254 = vst.msk [vmem:[#allocation2 + $0x8] sm:$0xff] %vm252, 0.0
        %255 = vst.msk [vmem:[#allocation2 + $0x10] sm:$0xff] %vm252, 0.0
        %256 = vst.msk [vmem:[#allocation2 + $0x18] sm:$0xff] %vm252, 0.0
        %257 = vst.msk [vmem:[#allocation2 + $0x20] sm:$0xff] %vm252, 0.0
        %258 = vst.msk [vmem:[#allocation2 + $0x28] sm:$0xff] %vm252, 0.0
        %259 = vst.msk [vmem:[#allocation2 + $0x30] sm:$0xff] %vm252, 0.0
        %260 = vst.msk [vmem:[#allocation2 + $0x38] sm:$0xff] %vm252, 0.0
      $region36: #{rrconv_block_forward.35} parent=31 // pred_fallthru
        _
      %v261 = vld [vmem:[%s231] sm:$0xff]
      %v262 = vld [vmem:[%s231 + $0x8] sm:$0x3]
      %v263 = vld [vmem:[%s231 + $0x10] sm:$0xff]
      %v264 = vld [vmem:[%s231 + $0x18] sm:$0x3]
      %v265 = vld [vmem:[%s231 + $0x20] sm:$0xff]
      %v266 = vld [vmem:[%s231 + $0x28] sm:$0x3]
      %v267 = vld [vmem:[%s231 + $0x30] sm:$0xff]
      %v268 = vld [vmem:[%s231 + $0x38] sm:$0x3]
      %v269 = vld [vmem:[%s231 + $0x40] sm:$0xff]
      %v270 = vld [vmem:[%s231 + $0x48] sm:$0x3]
      %v271 = vld [vmem:[%s231 + $0x50] sm:$0xff]
      %v272 = vld [vmem:[%s231 + $0x58] sm:$0x3]
      %v273 = vld [vmem:[%s231 + $0x60] sm:$0xff]
      %v274 = vld [vmem:[%s231 + $0x68] sm:$0x3]
      %v275 = vld [vmem:[%s231 + $0x70] sm:$0xff]
      %v276 = vld [vmem:[%s231 + $0x78] sm:$0x3]
      %v277 = vld [vmem:[%s231 + $0x80] sm:$0xff]
      %v278 = vld [vmem:[%s231 + $0x88] sm:$0x3]
      %v279 = vld [vmem:[%s231 + $0x90] sm:$0xff]
      %v280 = vld [vmem:[%s231 + $0x98] sm:$0x3]
      %v281 = vld [vmem:[#allocation2] sm:$0xff]
      %v282 = vld [vmem:[#allocation2 + $0x8] sm:$0xff]
      %v283 = vld [vmem:[#allocation2 + $0x10] sm:$0xff]
      %v284 = vld [vmem:[#allocation2 + $0x18] sm:$0xff]
      %v285 = vld [vmem:[#allocation2 + $0x20] sm:$0xff]
      %v286 = vld [vmem:[#allocation2 + $0x28] sm:$0xff]
      %v287 = vld [vmem:[#allocation2 + $0x30] sm:$0xff]
      %v288 = vld [vmem:[#allocation2 + $0x38] sm:$0xff]
      %v289 = vld [vmem:[%s238] sm:$0xff]
      %vm290 = vcmask 64512
      %v292 = vsel %vm290, %v261, 0
      %v295 = vsel %vm290, %v263, 0
      %v298 = vsel %vm290, %v265, 0
      %v301 = vsel %vm290, %v267, 0
      %v304 = vsel %vm290, %v269, 0
      %v307 = vsel %vm290, %v271, 0
      %v310 = vsel %vm290, %v273, 0
      %v313 = vsel %vm290, %v275, 0
      %315 = vmatpush.msra.mxu0 0.0
      %316 = vmatpush.msra.mxu0 0.0
      %317 = vmatpush.msra.mxu0 0.0
      %318 = vmatpush.msra.mxu0 0.0
      %319 = vmatpush.msra.mxu0 0.0
      %320 = vmatpush.msra.mxu0 0.0
      %321 = vmatpush.msra.mxu0 0.0
      %322 = vmatpush.msra.mxu0 0.0
      %323 = vmatpush.msra.mxu0 0.0
      %324 = vmatpush.msra.mxu0 0.0
      %325 = vmatpush.msra.mxu0 0.0
      %326 = vmatpush.msra.mxu0 0.0
      %327 = vmatpush.msra.mxu0 0.0
      %328 = vmatpush.msra.mxu0 0.0
      %329 = vmatpush.msra.mxu0 0.0
      %330 = vmatpush.msra.mxu0 %v289
      %331 = vmatmul.f32.gmra.mxu0 %v292
      %v332 = vpop.f32.mrf.mxu0
      %v333 = vadd.f32 0.0, %v332
      %334 = vmatmul.f32.gmra.mxu0 %v295
      %v335 = vpop.f32.mrf.mxu0
      %v336 = vadd.f32 0.0, %v335
      %337 = vmatmul.f32.gmra.mxu0 %v298
      %v338 = vpop.f32.mrf.mxu0
      %v339 = vadd.f32 0.0, %v338
      %340 = vmatmul.f32.gmra.mxu0 %v301
      %v341 = vpop.f32.mrf.mxu0
      %v342 = vadd.f32 0.0, %v341
      %343 = vmatmul.f32.gmra.mxu0 %v304
      %v344 = vpop.f32.mrf.mxu0
      %v345 = vadd.f32 0.0, %v344
      %346 = vmatmul.f32.gmra.mxu0 %v307
      %v347 = vpop.f32.mrf.mxu0
      %v348 = vadd.f32 0.0, %v347
      %349 = vmatmul.f32.gmra.mxu0 %v310
      %v350 = vpop.f32.mrf.mxu0
      %v351 = vadd.f32 0.0, %v350
      %352 = vmatmul.f32.gmra.mxu0 %v313
      %v353 = vpop.f32.mrf.mxu0
      %v354 = vadd.f32 0.0, %v353
      %355 = vdwg.mxu0
      %v356 = vadd.f32 %v281, %v333
      %v357 = vadd.f32 %v282, %v336
      %v358 = vadd.f32 %v283, %v339
      %v359 = vadd.f32 %v284, %v342
      %v360 = vadd.f32 %v285, %v345
      %v361 = vadd.f32 %v286, %v348
      %v362 = vadd.f32 %v287, %v351
      %v363 = vadd.f32 %v288, %v354
      %vm372 = vcmask 1046528
      %v373 = vrot.slane %v261, 1
      %v374 = vrot.slane %v262, 1
      %v375 = vsel %vm372, %v373, %v374
      %v376 = vrot.slane %v263, 1
      %v377 = vrot.slane %v264, 1
      %v378 = vsel %vm372, %v376, %v377
      %v379 = vrot.slane %v265, 1
      %v380 = vrot.slane %v266, 1
      %v381 = vsel %vm372, %v379, %v380
      %v382 = vrot.slane %v267, 1
      %v383 = vrot.slane %v268, 1
      %v384 = vsel %vm372, %v382, %v383
      %v385 = vrot.slane %v269, 1
      %v386 = vrot.slane %v270, 1
      %v387 = vsel %vm372, %v385, %v386
      %v388 = vrot.slane %v271, 1
      %v389 = vrot.slane %v272, 1
      %v390 = vsel %vm372, %v388, %v389
      %v391 = vrot.slane %v273, 1
      %v392 = vrot.slane %v274, 1
      %v393 = vsel %vm372, %v391, %v392
      %v394 = vrot.slane %v275, 1
      %v395 = vrot.slane %v276, 1
      %v396 = vsel %vm372, %v394, %v395
      %s397 = scalar_lea.vmem %s238, 8
      %v398 = vld [vmem:[%s397] sm:$0xff]
      %v399 = vsel %vm290, %v375, 0
      %v401 = vsel %vm290, %v378, 0
      %v403 = vsel %vm290, %v381, 0
      %v405 = vsel %vm290, %v384, 0
      %v407 = vsel %vm290, %v387, 0
      %v409 = vsel %vm290, %v390, 0
      %v411 = vsel %vm290, %v393, 0
      %v413 = vsel %vm290, %v396, 0
      %415 = vmatpush.msra.mxu0 0.0
      %416 = vmatpush.msra.mxu0 0.0
      %417 = vmatpush.msra.mxu0 0.0
      %418 = vmatpush.msra.mxu0 0.0
      %419 = vmatpush.msra.mxu0 0.0
      %420 = vmatpush.msra.mxu0 0.0
      %421 = vmatpush.msra.mxu0 0.0
      %422 = vmatpush.msra.mxu0 0.0
      %423 = vmatpush.msra.mxu0 0.0
      %424 = vmatpush.msra.mxu0 0.0
      %425 = vmatpush.msra.mxu0 0.0
      %426 = vmatpush.msra.mxu0 0.0
      %427 = vmatpush.msra.mxu0 0.0
      %428 = vmatpush.msra.mxu0 0.0
      %429 = vmatpush.msra.mxu0 0.0
      %430 = vmatpush.msra.mxu0 %v398
      %431 = vmatmul.f32.gmra.mxu0 %v399
      %v432 = vpop.f32.mrf.mxu0
      %v433 = vadd.f32 0.0, %v432
      %434 = vmatmul.f32.gmra.mxu0 %v401
      %v435 = vpop.f32.mrf.mxu0
      %v436 = vadd.f32 0.0, %v435
      %437 = vmatmul.f32.gmra.mxu0 %v403
      %v438 = vpop.f32.mrf.mxu0
      %v439 = vadd.f32 0.0, %v438
      %440 = vmatmul.f32.gmra.mxu0 %v405
      %v441 = vpop.f32.mrf.mxu0
      %v442 = vadd.f32 0.0, %v441
      %443 = vmatmul.f32.gmra.mxu0 %v407
      %v444 = vpop.f32.mrf.mxu0
      %v445 = vadd.f32 0.0, %v444
      %446 = vmatmul.f32.gmra.mxu0 %v409
      %v447 = vpop.f32.mrf.mxu0
      %v448 = vadd.f32 0.0, %v447
      %449 = vmatmul.f32.gmra.mxu0 %v411
      %v450 = vpop.f32.mrf.mxu0
      %v451 = vadd.f32 0.0, %v450
      %452 = vmatmul.f32.gmra.mxu0 %v413
      %v453 = vpop.f32.mrf.mxu0
      %v454 = vadd.f32 0.0, %v453
      %455 = vdwg.mxu0
      %v456 = vadd.f32 %v356, %v433
      %v457 = vadd.f32 %v357, %v436
      %v458 = vadd.f32 %v358, %v439
      %v459 = vadd.f32 %v359, %v442
      %v460 = vadd.f32 %v360, %v445
      %v461 = vadd.f32 %v361, %v448
      %v462 = vadd.f32 %v362, %v451
      %v463 = vadd.f32 %v363, %v454
      %vm464 = vcmask 1045504
      %v465 = vrot.slane %v261, 2
      %v466 = vrot.slane %v262, 2
      %v467 = vsel %vm464, %v465, %v466
      %v468 = vrot.slane %v263, 2
      %v469 = vrot.slane %v264, 2
      %v470 = vsel %vm464, %v468, %v469
      %v471 = vrot.slane %v265, 2
      %v472 = vrot.slane %v266, 2
      %v473 = vsel %vm464, %v471, %v472
      %v474 = vrot.slane %v267, 2
      %v475 = vrot.slane %v268, 2
      %v476 = vsel %vm464, %v474, %v475
      %v477 = vrot.slane %v269, 2
      %v478 = vrot.slane %v270, 2
      %v479 = vsel %vm464, %v477, %v478
      %v480 = vrot.slane %v271, 2
      %v481 = vrot.slane %v272, 2
      %v482 = vsel %vm464, %v480, %v481
      %v483 = vrot.slane %v273, 2
      %v484 = vrot.slane %v274, 2
      %v485 = vsel %vm464, %v483, %v484
      %v486 = vrot.slane %v275, 2
      %v487 = vrot.slane %v276, 2
      %v488 = vsel %vm464, %v486, %v487
      %s489 = scalar_lea.vmem %s238, 16
      %v490 = vld [vmem:[%s489] sm:$0xff]
      %v491 = vsel %vm290, %v467, 0
      %v493 = vsel %vm290, %v470, 0
      %v495 = vsel %vm290, %v473, 0
      %v497 = vsel %vm290, %v476, 0
      %v499 = vsel %vm290, %v479, 0
      %v501 = vsel %vm290, %v482, 0
      %v503 = vsel %vm290, %v485, 0
      %v505 = vsel %vm290, %v488, 0
      %507 = vmatpush.msra.mxu0 0.0
      %508 = vmatpush.msra.mxu0 0.0
      %509 = vmatpush.msra.mxu0 0.0
      %510 = vmatpush.msra.mxu0 0.0
      %511 = vmatpush.msra.mxu0 0.0
      %512 = vmatpush.msra.mxu0 0.0
      %513 = vmatpush.msra.mxu0 0.0
      %514 = vmatpush.msra.mxu0 0.0
      %515 = vmatpush.msra.mxu0 0.0
      %516 = vmatpush.msra.mxu0 0.0
      %517 = vmatpush.msra.mxu0 0.0
      %518 = vmatpush.msra.mxu0 0.0
      %519 = vmatpush.msra.mxu0 0.0
      %520 = vmatpush.msra.mxu0 0.0
      %521 = vmatpush.msra.mxu0 0.0
      %522 = vmatpush.msra.mxu0 %v490
      %523 = vmatmul.f32.gmra.mxu0 %v491
      %v524 = vpop.f32.mrf.mxu0
      %v525 = vadd.f32 0.0, %v524
      %526 = vmatmul.f32.gmra.mxu0 %v493
      %v527 = vpop.f32.mrf.mxu0
      %v528 = vadd.f32 0.0, %v527
      %529 = vmatmul.f32.gmra.mxu0 %v495
      %v530 = vpop.f32.mrf.mxu0
      %v531 = vadd.f32 0.0, %v530
      %532 = vmatmul.f32.gmra.mxu0 %v497
      %v533 = vpop.f32.mrf.mxu0
      %v534 = vadd.f32 0.0, %v533
      %535 = vmatmul.f32.gmra.mxu0 %v499
      %v536 = vpop.f32.mrf.mxu0
      %v537 = vadd.f32 0.0, %v536
      %538 = vmatmul.f32.gmra.mxu0 %v501
      %v539 = vpop.f32.mrf.mxu0
      %v540 = vadd.f32 0.0, %v539
      %541 = vmatmul.f32.gmra.mxu0 %v503
      %v542 = vpop.f32.mrf.mxu0
      %v543 = vadd.f32 0.0, %v542
      %544 = vmatmul.f32.gmra.mxu0 %v505
      %v545 = vpop.f32.mrf.mxu0
      %v546 = vadd.f32 0.0, %v545
      %547 = vdwg.mxu0
      %v548 = vadd.f32 %v456, %v525
      %v549 = vadd.f32 %v457, %v528
      %v550 = vadd.f32 %v458, %v531
      %v551 = vadd.f32 %v459, %v534
      %v552 = vadd.f32 %v460, %v537
      %v553 = vadd.f32 %v461, %v540
      %v554 = vadd.f32 %v462, %v543
      %v555 = vadd.f32 %v463, %v546
      %s556 = scalar_lea.vmem %s238, 24
      %v557 = vld [vmem:[%s556] sm:$0xff]
      %v559 = vsel %vm290, %v277, 0
      %561 = vmatpush.msra.mxu0 0.0
      %562 = vmatpush.msra.mxu0 0.0
      %563 = vmatpush.msra.mxu0 0.0
      %564 = vmatpush.msra.mxu0 0.0
      %565 = vmatpush.msra.mxu0 0.0
      %566 = vmatpush.msra.mxu0 0.0
      %567 = vmatpush.msra.mxu0 0.0
      %568 = vmatpush.msra.mxu0 0.0
      %569 = vmatpush.msra.mxu0 0.0
      %570 = vmatpush.msra.mxu0 0.0
      %571 = vmatpush.msra.mxu0 0.0
      %572 = vmatpush.msra.mxu0 0.0
      %573 = vmatpush.msra.mxu0 0.0
      %574 = vmatpush.msra.mxu0 0.0
      %575 = vmatpush.msra.mxu0 0.0
      %576 = vmatpush.msra.mxu0 %v557
      %577 = vmatmul.f32.gmra.mxu0 %v295
      %v578 = vpop.f32.mrf.mxu0
      %v579 = vadd.f32 0.0, %v578
      %580 = vmatmul.f32.gmra.mxu0 %v298
      %v581 = vpop.f32.mrf.mxu0
      %v582 = vadd.f32 0.0, %v581
      %583 = vmatmul.f32.gmra.mxu0 %v301
      %v584 = vpop.f32.mrf.mxu0
      %v585 = vadd.f32 0.0, %v584
      %586 = vmatmul.f32.gmra.mxu0 %v304
      %v587 = vpop.f32.mrf.mxu0
      %v588 = vadd.f32 0.0, %v587
      %589 = vmatmul.f32.gmra.mxu0 %v307
      %v590 = vpop.f32.mrf.mxu0
      %v591 = vadd.f32 0.0, %v590
      %592 = vmatmul.f32.gmra.mxu0 %v310
      %v593 = vpop.f32.mrf.mxu0
      %v594 = vadd.f32 0.0, %v593
      %595 = vmatmul.f32.gmra.mxu0 %v313
      %v596 = vpop.f32.mrf.mxu0
      %v597 = vadd.f32 0.0, %v596
      %598 = vmatmul.f32.gmra.mxu0 %v559
      %v599 = vpop.f32.mrf.mxu0
      %v600 = vadd.f32 0.0, %v599
      %601 = vdwg.mxu0
      %v602 = vadd.f32 %v548, %v579
      %v603 = vadd.f32 %v549, %v582
      %v604 = vadd.f32 %v550, %v585
      %v605 = vadd.f32 %v551, %v588
      %v606 = vadd.f32 %v552, %v591
      %v607 = vadd.f32 %v553, %v594
      %v608 = vadd.f32 %v554, %v597
      %v609 = vadd.f32 %v555, %v600
      %v611 = vrot.slane %v277, 1
      %v612 = vrot.slane %v278, 1
      %v613 = vsel %vm372, %v611, %v612
      %s614 = scalar_lea.vmem %s238, 32
      %v615 = vld [vmem:[%s614] sm:$0xff]
      %v616 = vsel %vm290, %v613, 0
      %618 = vmatpush.msra.mxu0 0.0
      %619 = vmatpush.msra.mxu0 0.0
      %620 = vmatpush.msra.mxu0 0.0
      %621 = vmatpush.msra.mxu0 0.0
      %622 = vmatpush.msra.mxu0 0.0
      %623 = vmatpush.msra.mxu0 0.0
      %624 = vmatpush.msra.mxu0 0.0
      %625 = vmatpush.msra.mxu0 0.0
      %626 = vmatpush.msra.mxu0 0.0
      %627 = vmatpush.msra.mxu0 0.0
      %628 = vmatpush.msra.mxu0 0.0
      %629 = vmatpush.msra.mxu0 0.0
      %630 = vmatpush.msra.mxu0 0.0
      %631 = vmatpush.msra.mxu0 0.0
      %632 = vmatpush.msra.mxu0 0.0
      %633 = vmatpush.msra.mxu0 %v615
      %634 = vmatmul.f32.gmra.mxu0 %v401
      %v635 = vpop.f32.mrf.mxu0
      %v636 = vadd.f32 0.0, %v635
      %637 = vmatmul.f32.gmra.mxu0 %v403
      %v638 = vpop.f32.mrf.mxu0
      %v639 = vadd.f32 0.0, %v638
      %640 = vmatmul.f32.gmra.mxu0 %v405
      %v641 = vpop.f32.mrf.mxu0
      %v642 = vadd.f32 0.0, %v641
      %643 = vmatmul.f32.gmra.mxu0 %v407
      %v644 = vpop.f32.mrf.mxu0
      %v645 = vadd.f32 0.0, %v644
      %646 = vmatmul.f32.gmra.mxu0 %v409
      %v647 = vpop.f32.mrf.mxu0
      %v648 = vadd.f32 0.0, %v647
      %649 = vmatmul.f32.gmra.mxu0 %v411
      %v650 = vpop.f32.mrf.mxu0
      %v651 = vadd.f32 0.0, %v650
      %652 = vmatmul.f32.gmra.mxu0 %v413
      %v653 = vpop.f32.mrf.mxu0
      %v654 = vadd.f32 0.0, %v653
      %655 = vmatmul.f32.gmra.mxu0 %v616
      %v656 = vpop.f32.mrf.mxu0
      %v657 = vadd.f32 0.0, %v656
      %658 = vdwg.mxu0
      %v659 = vadd.f32 %v602, %v636
      %v660 = vadd.f32 %v603, %v639
      %v661 = vadd.f32 %v604, %v642
      %v662 = vadd.f32 %v605, %v645
      %v663 = vadd.f32 %v606, %v648
      %v664 = vadd.f32 %v607, %v651
      %v665 = vadd.f32 %v608, %v654
      %v666 = vadd.f32 %v609, %v657
      %v667 = vrot.slane %v277, 2
      %v668 = vrot.slane %v278, 2
      %v669 = vsel %vm464, %v667, %v668
      %s670 = scalar_lea.vmem %s238, 40
      %v671 = vld [vmem:[%s670] sm:$0xff]
      %v672 = vsel %vm290, %v669, 0
      %674 = vmatpush.msra.mxu0 0.0
      %675 = vmatpush.msra.mxu0 0.0
      %676 = vmatpush.msra.mxu0 0.0
      %677 = vmatpush.msra.mxu0 0.0
      %678 = vmatpush.msra.mxu0 0.0
      %679 = vmatpush.msra.mxu0 0.0
      %680 = vmatpush.msra.mxu0 0.0
      %681 = vmatpush.msra.mxu0 0.0
      %682 = vmatpush.msra.mxu0 0.0
      %683 = vmatpush.msra.mxu0 0.0
      %684 = vmatpush.msra.mxu0 0.0
      %685 = vmatpush.msra.mxu0 0.0
      %686 = vmatpush.msra.mxu0 0.0
      %687 = vmatpush.msra.mxu0 0.0
      %688 = vmatpush.msra.mxu0 0.0
      %689 = vmatpush.msra.mxu0 %v671
      %690 = vmatmul.f32.gmra.mxu0 %v493
      %v691 = vpop.f32.mrf.mxu0
      %v692 = vadd.f32 0.0, %v691
      %693 = vmatmul.f32.gmra.mxu0 %v495
      %v694 = vpop.f32.mrf.mxu0
      %v695 = vadd.f32 0.0, %v694
      %696 = vmatmul.f32.gmra.mxu0 %v497
      %v697 = vpop.f32.mrf.mxu0
      %v698 = vadd.f32 0.0, %v697
      %699 = vmatmul.f32.gmra.mxu0 %v499
      %v700 = vpop.f32.mrf.mxu0
      %v701 = vadd.f32 0.0, %v700
      %702 = vmatmul.f32.gmra.mxu0 %v501
      %v703 = vpop.f32.mrf.mxu0
      %v704 = vadd.f32 0.0, %v703
      %705 = vmatmul.f32.gmra.mxu0 %v503
      %v706 = vpop.f32.mrf.mxu0
      %v707 = vadd.f32 0.0, %v706
      %708 = vmatmul.f32.gmra.mxu0 %v505
      %v709 = vpop.f32.mrf.mxu0
      %v710 = vadd.f32 0.0, %v709
      %711 = vmatmul.f32.gmra.mxu0 %v672
      %v712 = vpop.f32.mrf.mxu0
      %v713 = vadd.f32 0.0, %v712
      %714 = vdwg.mxu0
      %v715 = vadd.f32 %v659, %v692
      %v716 = vadd.f32 %v660, %v695
      %v717 = vadd.f32 %v661, %v698
      %v718 = vadd.f32 %v662, %v701
      %v719 = vadd.f32 %v663, %v704
      %v720 = vadd.f32 %v664, %v707
      %v721 = vadd.f32 %v665, %v710
      %v722 = vadd.f32 %v666, %v713
      %s723 = scalar_lea.vmem %s238, 48
      %v724 = vld [vmem:[%s723] sm:$0xff]
      %v726 = vsel %vm290, %v279, 0
      %728 = vmatpush.msra.mxu0 0.0
      %729 = vmatpush.msra.mxu0 0.0
      %730 = vmatpush.msra.mxu0 0.0
      %731 = vmatpush.msra.mxu0 0.0
      %732 = vmatpush.msra.mxu0 0.0
      %733 = vmatpush.msra.mxu0 0.0
      %734 = vmatpush.msra.mxu0 0.0
      %735 = vmatpush.msra.mxu0 0.0
      %736 = vmatpush.msra.mxu0 0.0
      %737 = vmatpush.msra.mxu0 0.0
      %738 = vmatpush.msra.mxu0 0.0
      %739 = vmatpush.msra.mxu0 0.0
      %740 = vmatpush.msra.mxu0 0.0
      %741 = vmatpush.msra.mxu0 0.0
      %742 = vmatpush.msra.mxu0 0.0
      %743 = vmatpush.msra.mxu0 %v724
      %744 = vmatmul.f32.gmra.mxu0 %v298
      %v745 = vpop.f32.mrf.mxu0
      %v746 = vadd.f32 0.0, %v745
      %747 = vmatmul.f32.gmra.mxu0 %v301
      %v748 = vpop.f32.mrf.mxu0
      %v749 = vadd.f32 0.0, %v748
      %750 = vmatmul.f32.gmra.mxu0 %v304
      %v751 = vpop.f32.mrf.mxu0
      %v752 = vadd.f32 0.0, %v751
      %753 = vmatmul.f32.gmra.mxu0 %v307
      %v754 = vpop.f32.mrf.mxu0
      %v755 = vadd.f32 0.0, %v754
      %756 = vmatmul.f32.gmra.mxu0 %v310
      %v757 = vpop.f32.mrf.mxu0
      %v758 = vadd.f32 0.0, %v757
      %759 = vmatmul.f32.gmra.mxu0 %v313
      %v760 = vpop.f32.mrf.mxu0
      %v761 = vadd.f32 0.0, %v760
      %762 = vmatmul.f32.gmra.mxu0 %v559
      %v763 = vpop.f32.mrf.mxu0
      %v764 = vadd.f32 0.0, %v763
      %765 = vmatmul.f32.gmra.mxu0 %v726
      %v766 = vpop.f32.mrf.mxu0
      %v767 = vadd.f32 0.0, %v766
      %768 = vdwg.mxu0
      %v769 = vadd.f32 %v715, %v746
      %v770 = vadd.f32 %v716, %v749
      %v771 = vadd.f32 %v717, %v752
      %v772 = vadd.f32 %v718, %v755
      %v773 = vadd.f32 %v719, %v758
      %v774 = vadd.f32 %v720, %v761
      %v775 = vadd.f32 %v721, %v764
      %v776 = vadd.f32 %v722, %v767
      %v778 = vrot.slane %v279, 1
      %v779 = vrot.slane %v280, 1
      %v780 = vsel %vm372, %v778, %v779
      %s781 = scalar_lea.vmem %s238, 56
      %v782 = vld [vmem:[%s781] sm:$0xff]
      %v783 = vsel %vm290, %v780, 0
      %785 = vmatpush.msra.mxu0 0.0
      %786 = vmatpush.msra.mxu0 0.0
      %787 = vmatpush.msra.mxu0 0.0
      %788 = vmatpush.msra.mxu0 0.0
      %789 = vmatpush.msra.mxu0 0.0
      %790 = vmatpush.msra.mxu0 0.0
      %791 = vmatpush.msra.mxu0 0.0
      %792 = vmatpush.msra.mxu0 0.0
      %793 = vmatpush.msra.mxu0 0.0
      %794 = vmatpush.msra.mxu0 0.0
      %795 = vmatpush.msra.mxu0 0.0
      %796 = vmatpush.msra.mxu0 0.0
      %797 = vmatpush.msra.mxu0 0.0
      %798 = vmatpush.msra.mxu0 0.0
      %799 = vmatpush.msra.mxu0 0.0
      %800 = vmatpush.msra.mxu0 %v782
      %801 = vmatmul.f32.gmra.mxu0 %v403
      %v802 = vpop.f32.mrf.mxu0
      %v803 = vadd.f32 0.0, %v802
      %804 = vmatmul.f32.gmra.mxu0 %v405
      %v805 = vpop.f32.mrf.mxu0
      %v806 = vadd.f32 0.0, %v805
      %807 = vmatmul.f32.gmra.mxu0 %v407
      %v808 = vpop.f32.mrf.mxu0
      %v809 = vadd.f32 0.0, %v808
      %810 = vmatmul.f32.gmra.mxu0 %v409
      %v811 = vpop.f32.mrf.mxu0
      %v812 = vadd.f32 0.0, %v811
      %813 = vmatmul.f32.gmra.mxu0 %v411
      %v814 = vpop.f32.mrf.mxu0
      %v815 = vadd.f32 0.0, %v814
      %816 = vmatmul.f32.gmra.mxu0 %v413
      %v817 = vpop.f32.mrf.mxu0
      %v818 = vadd.f32 0.0, %v817
      %819 = vmatmul.f32.gmra.mxu0 %v616
      %v820 = vpop.f32.mrf.mxu0
      %v821 = vadd.f32 0.0, %v820
      %822 = vmatmul.f32.gmra.mxu0 %v783
      %v823 = vpop.f32.mrf.mxu0
      %v824 = vadd.f32 0.0, %v823
      %825 = vdwg.mxu0
      %v826 = vadd.f32 %v769, %v803
      %v827 = vadd.f32 %v770, %v806
      %v828 = vadd.f32 %v771, %v809
      %v829 = vadd.f32 %v772, %v812
      %v830 = vadd.f32 %v773, %v815
      %v831 = vadd.f32 %v774, %v818
      %v832 = vadd.f32 %v775, %v821
      %v833 = vadd.f32 %v776, %v824
      %v834 = vrot.slane %v279, 2
      %v835 = vrot.slane %v280, 2
      %v836 = vsel %vm464, %v834, %v835
      %s837 = scalar_lea.vmem %s238, 64
      %v838 = vld [vmem:[%s837] sm:$0xff]
      %v839 = vsel %vm290, %v836, 0
      %841 = vmatpush.msra.mxu0 0.0
      %842 = vmatpush.msra.mxu0 0.0
      %843 = vmatpush.msra.mxu0 0.0
      %844 = vmatpush.msra.mxu0 0.0
      %845 = vmatpush.msra.mxu0 0.0
      %846 = vmatpush.msra.mxu0 0.0
      %847 = vmatpush.msra.mxu0 0.0
      %848 = vmatpush.msra.mxu0 0.0
      %849 = vmatpush.msra.mxu0 0.0
      %850 = vmatpush.msra.mxu0 0.0
      %851 = vmatpush.msra.mxu0 0.0
      %852 = vmatpush.msra.mxu0 0.0
      %853 = vmatpush.msra.mxu0 0.0
      %854 = vmatpush.msra.mxu0 0.0
      %855 = vmatpush.msra.mxu0 0.0
      %856 = vmatpush.msra.mxu0 %v838
      %857 = vmatmul.f32.gmra.mxu0 %v495
      %v858 = vpop.f32.mrf.mxu0
      %v859 = vadd.f32 0.0, %v858
      %860 = vmatmul.f32.gmra.mxu0 %v497
      %v861 = vpop.f32.mrf.mxu0
      %v862 = vadd.f32 0.0, %v861
      %863 = vmatmul.f32.gmra.mxu0 %v499
      %v864 = vpop.f32.mrf.mxu0
      %v865 = vadd.f32 0.0, %v864
      %866 = vmatmul.f32.gmra.mxu0 %v501
      %v867 = vpop.f32.mrf.mxu0
      %v868 = vadd.f32 0.0, %v867
      %869 = vmatmul.f32.gmra.mxu0 %v503
      %v870 = vpop.f32.mrf.mxu0
      %v871 = vadd.f32 0.0, %v870
      %872 = vmatmul.f32.gmra.mxu0 %v505
      %v873 = vpop.f32.mrf.mxu0
      %v874 = vadd.f32 0.0, %v873
      %875 = vmatmul.f32.gmra.mxu0 %v672
      %v876 = vpop.f32.mrf.mxu0
      %v877 = vadd.f32 0.0, %v876
      %878 = vmatmul.f32.gmra.mxu0 %v839
      %v879 = vpop.f32.mrf.mxu0
      %v880 = vadd.f32 0.0, %v879
      %881 = vdwg.mxu0
      %v882 = vadd.f32 %v826, %v859
      %v883 = vadd.f32 %v827, %v862
      %v884 = vadd.f32 %v828, %v865
      %v885 = vadd.f32 %v829, %v868
      %v886 = vadd.f32 %v830, %v871
      %v887 = vadd.f32 %v831, %v874
      %v888 = vadd.f32 %v832, %v877
      %v889 = vadd.f32 %v833, %v880
      %890 = vst.msk [vmem:[#allocation2] sm:$0xff] %vm290, %v882
      %891 = vst.msk [vmem:[#allocation2 + $0x8] sm:$0xff] %vm290, %v883
      %892 = vst.msk [vmem:[#allocation2 + $0x10] sm:$0xff] %vm290, %v884
      %893 = vst.msk [vmem:[#allocation2 + $0x18] sm:$0xff] %vm290, %v885
      %894 = vst.msk [vmem:[#allocation2 + $0x20] sm:$0xff] %vm290, %v886
      %895 = vst.msk [vmem:[#allocation2 + $0x28] sm:$0xff] %vm290, %v887
      %896 = vst.msk [vmem:[#allocation2 + $0x30] sm:$0xff] %vm290, %v888
      %897 = vst.msk [vmem:[#allocation2 + $0x38] sm:$0xff] %vm290, %v889
      %p898 = scmp.eq.s32.totalorder %s21, 3
      // Predicated region
      $region37: #{rrconv_block_forward.35} parent=31 // pred_check
        %p899 = pneg %p898
      $region38: #{rrconv_block_forward.35} parent=31 // pred_check_branch
        %901 = sbr.rel (%p899) target = $region40
      $region39: #{rrconv_block_forward.35} parent=31 // pred_region
        %v902 = vld [vmem:[#allocation2] sm:$0xff]
        %v903 = vld [vmem:[#allocation2 + $0x8] sm:$0xff]
        %v904 = vld [vmem:[#allocation2 + $0x10] sm:$0xff]
        %v905 = vld [vmem:[#allocation2 + $0x18] sm:$0xff]
        %v906 = vld [vmem:[#allocation2 + $0x20] sm:$0xff]
        %v907 = vld [vmem:[#allocation2 + $0x28] sm:$0xff]
        %v908 = vld [vmem:[#allocation2 + $0x30] sm:$0xff]
        %v909 = vld [vmem:[#allocation2 + $0x38] sm:$0xff]
        %v910 = vld [vmem:[%s2] sm:$0x1]
        %v912 = vperm.slane %v910, 0
        %v914 = vadd.f32 %v902, %v912
        %v915 = vadd.f32 %v903, %v912
        %v916 = vadd.f32 %v904, %v912
        %v917 = vadd.f32 %v905, %v912
        %v918 = vadd.f32 %v906, %v912
        %v919 = vadd.f32 %v907, %v912
        %v920 = vadd.f32 %v908, %v912
        %v921 = vadd.f32 %v909, %v912
        %922 = vst.msk [vmem:[%s247] sm:$0xff] %vm290, %v914
        %923 = vst.msk [vmem:[%s247 + $0x8] sm:$0xff] %vm290, %v915
        %924 = vst.msk [vmem:[%s247 + $0x10] sm:$0xff] %vm290, %v916
        %925 = vst.msk [vmem:[%s247 + $0x18] sm:$0xff] %vm290, %v917
        %926 = vst.msk [vmem:[%s247 + $0x20] sm:$0xff] %vm290, %v918
        %927 = vst.msk [vmem:[%s247 + $0x28] sm:$0xff] %vm290, %v919
        %928 = vst.msk [vmem:[%s247 + $0x30] sm:$0xff] %vm290, %v920
        %929 = vst.msk [vmem:[%s247 + $0x38] sm:$0xff] %vm290, %v921
      $region40: #{rrconv_block_forward.35} parent=31 // pred_fallthru
        _
      %p930 = scmp.lt.s32.totalorder %s19, 1
      %s931 = scalar_select %p930, %s19, 1
      %p932 = scmp.lt.s32.totalorder %s20, 3
      %s933 = scalar_select %p932, %s20, 3
      %s934 = smul.addr %s933, 8
      %s935 = smul.addr %s931, 32
      %s936 = sadd.s32 %s934, %s935
      %s937 = smul.addr %s936, 8
      %s938 = scalar_lea.vmem %s3, %s937
      // Predicated region
      $region41: #{rrconv_block_forward.35} parent=31 // pred_check
        %p939 = pneg %p132
      $region42: #{rrconv_block_forward.35} parent=31 // pred_check_branch
        %941 = sbr.rel (%p939) target = $region44
      $region43: #{rrconv_block_forward.35} parent=31 // pred_region
        _
      $region44: #{rrconv_block_forward.35} parent=31 // pred_fallthru
        _
    $region32: #{rrconv_block_forward.35} parent=5 // pred_fallthru
      _
    %p942 = scmp.le.s32.totalorder 2, %s9
    // Predicated region
    $region45: #{rrconv_block_forward.35} parent=5 // pred_check
      %p943 = pneg %p942
    $region46: #{rrconv_block_forward.35} parent=5 // pred_check_branch
      %945 = sbr.rel (%p943) target = $region48
    $region47: #{rrconv_block_forward.35} parent=5 // pred_region
      %s946 = ssub.s32 %s9, 2
      // Predicated region
      $region49: #{rrconv_block_forward.35} parent=47 // pred_check
        %p947 = pneg %p138
      $region50: #{rrconv_block_forward.35} parent=47 // pred_check_branch
        %949 = sbr.rel (%p947) target = $region52
      $region51: #{rrconv_block_forward.35} parent=47 // pred_region
        %p950 = scmp.lt.s32.totalorder %s22, 1
        %s951 = scalar_select %p950, %s22, 1
        %p952 = scmp.lt.s32.totalorder %s23, 3
        %s953 = scalar_select %p952, %s23, 3
        %s954 = smul.addr %s953, 8
        %s955 = smul.addr %s951, 32
        %s956 = sadd.s32 %s954, %s955
        %s957 = smul.addr %s956, 8
        %s958 = scalar_lea.vmem %s3, %s957
      $region52: #{rrconv_block_forward.35} parent=47 // pred_fallthru
        _
    $region48: #{rrconv_block_forward.35} parent=5 // pred_fallthru
      _
  $region6: #{rrconv_block_forward.35} parent=0 // loop_footer
    %s13 = sadd.s32 1, %s9
  $region7: #{rrconv_block_forward.35} parent=0 // loop_footer_branch
    %8 = sbr.rel target = $region3
  $region8: #{rrconv_block_forward.35} parent=0 // loop_exit
    _

</llo_original>
